<compile_context>
chip_gen: v7x
topology: tpu7x:2x2x1
jax: 0.10.0
libtpu: 0.0.40
codegen_flags: <defaults>
</compile_context>

<pallas_src>
import functools
import math

import jax
import jax.numpy as jnp
from jax import lax
from jax.experimental import pallas as pl
from jax.experimental.pallas import tpu as pltpu

EPS = 1e-5          # torch.nn.LayerNorm default eps
NEG_INF = -1e20     # masked_fill value in the reference model


# --------------------------------------------------------------------------
# Fused decoder kernel (single pallas_call, no grid)
# --------------------------------------------------------------------------

def _decoder_kernel(x_ref, enc_ref, smask_ref, cmask_ref,
                    swq_ref, swk_ref, swvo_ref, sbo_ref,
                    cwq_ref, cwk_ref, cwvo_ref, cbo_ref,
                    ng_ref, nb_ref, n1g_ref, n1b_ref, n2g_ref, n2b_ref,
                    fw1_ref, fb1_ref, fw2_ref, fb2_ref,
                    fcw_ref, fcb_ref,
                    out_ref, attn_buf,
                    *, num_layers, heads, head_dim, embed_size,
                    n_batch, lt, ls):
    """Whole decoder forward for all batches, fully resident in VMEM.

    x_ref   : (N*Lt, E)  target embeddings (word + positional)
    enc_ref : (N*Ls, E)  encoder (ProtT5 stub) output
    smask   : (N, Lt, Lt)  self-attention mask (1 keep / 0 mask)
    cmask   : (N, Lt, Ls)  cross-attention mask
    s*/c*   : per-layer stacked self / cross attention weights
              wq/wk: block-diagonal (E,E); wvo: fused V+output proj (E, H*E)
    attn_buf: (N*Lt, E) VMEM scratch reused by every attention call.
    """
    inv_scale = jnp.float32(1.0 / math.sqrt(embed_size))

    def add_ln(a, b, g, beta):
        y = a + b
        mean = jnp.mean(y, axis=-1, keepdims=True)
        var = jnp.mean(jnp.square(y - mean), axis=-1, keepdims=True)
        # rsqrt on EUP + multiply instead of a full-tile divide.
        return (y - mean) * lax.rsqrt(var + EPS) * g + beta

    def attention(x_q, x_kv, mask_ref, lk, wq_bd, wk_bd, wvo, bo):
        # Head projections batched over all heads/rows: single MXU matmuls.
        q = jnp.dot(x_q, wq_bd, preferred_element_type=jnp.float32)   # (N*Lt, E)
        k = jnp.dot(x_kv, wk_bd, preferred_element_type=jnp.float32)  # (N*lk, E)
        # Fused V-projection + output-projection, lane-dense (H*E) operand.
        vo = jnp.dot(x_kv, wvo, preferred_element_type=jnp.float32)   # (N*lk, H*E)
        for b in range(n_batch):
            qb = q[b * lt:(b + 1) * lt]
            kb = k[b * lk:(b + 1) * lk]
            vob = vo[b * lk:(b + 1) * lk]
            # Mask compare/broadcast hoisted out of the head loop (additive).
            add_mask = jnp.where(mask_ref[b] == 0.0,
                                 jnp.float32(NEG_INF), jnp.float32(0.0))
            acc = jnp.zeros((lt, embed_size), jnp.float32)
            for h in range(heads):
                sl = slice(h * head_dim, (h + 1) * head_dim)
                # q_h @ k_h^T without materializing a transpose.
                e = lax.dot_general(qb[:, sl], kb[:, sl],
                                    (((1,), (1,)), ((), ())),
                                    preferred_element_type=jnp.float32)
                e = e * inv_scale + add_mask       # scale as multiply + add-mask
                e = e - jnp.max(e, axis=-1, keepdims=True)
                p = jnp.exp(e)
                attn = p * pl.reciprocal(jnp.sum(p, axis=-1, keepdims=True),
                                         approx=True)
                # attn @ (V_h @ Wo_h) == (attn @ V_h) @ Wo_h  (fused on host)
                acc = acc + jnp.dot(
                    attn, vob[:, h * embed_size:(h + 1) * embed_size],
                    preferred_element_type=jnp.float32)
            attn_buf[b * lt:(b + 1) * lt, :] = acc + bo
        return attn_buf[...]

    x = x_ref[...]        # (N*Lt, E)
    enc = enc_ref[...]    # (N*Ls, E)

    for l in range(num_layers):
        a = attention(x, x, smask_ref, lt,
                      swq_ref[l], swk_ref[l], swvo_ref[l], sbo_ref[l])
        qr = add_ln(a, x, ng_ref[l], nb_ref[l])
        a2 = attention(qr, enc, cmask_ref, ls,
                       cwq_ref[l], cwk_ref[l], cwvo_ref[l], cbo_ref[l])
        x2 = add_ln(a2, qr, n1g_ref[l], n1b_ref[l])
        hidden = jnp.maximum(
            jnp.dot(x2, fw1_ref[l], preferred_element_type=jnp.float32)
            + fb1_ref[l], 0.0)
        ff = jnp.dot(hidden, fw2_ref[l],
                     preferred_element_type=jnp.float32) + fb2_ref[l]
        x = add_ln(ff, x2, n2g_ref[l], n2b_ref[l])

    out_ref[...] = jnp.dot(x, fcw_ref[...],
                           preferred_element_type=jnp.float32) + fcb_ref[...]


# --------------------------------------------------------------------------
# Host-side weight prep (block-diagonal / fused projections)
# --------------------------------------------------------------------------

def _block_diag(w, heads):
    """(d,d) per-head shared projection -> block-diagonal (E,E)."""
    return jnp.kron(jnp.eye(heads, dtype=w.dtype), w)


def _fused_vo(wv, wo, heads, head_dim):
    """Fuse per-head V projection with the output projection.

    Returns (E, heads*E) where block [h*d:(h+1)*d, h*E:(h+1)*E] = wv @ wo_h.
    """
    E = wo.shape[0]
    hp = jax.lax.Precision.HIGHEST
    cols = []
    for h in range(heads):
        m = jnp.dot(wv, wo[h * head_dim:(h + 1) * head_dim, :], precision=hp)
        blk = jnp.zeros((E, E), wv.dtype).at[h * head_dim:(h + 1) * head_dim, :].set(m)
        cols.append(blk)
    return jnp.concatenate(cols, axis=1)


# --------------------------------------------------------------------------
# Model (parameters + forward)
# --------------------------------------------------------------------------

def init_params(key, *, src_vocab, trg_vocab, embed_size, num_layers, heads,
                forward_expansion, max_length):
    d = embed_size // heads
    hidden = forward_expansion * embed_size
    keys = iter(jax.random.split(key, 32 + num_layers * 32))

    def nrm(shape, scale=0.1):
        return scale * jax.random.normal(next(keys), shape, dtype=jnp.float32)

    def attn_params():
        return {"wq": nrm((d, d)), "wk": nrm((d, d)), "wv": nrm((d, d)),
                "wo": nrm((embed_size, embed_size)),
                "bo": nrm((1, embed_size), 0.02)}

    params = {
        # TODO(synk): prot_t5_model is an external pretrained ProtT5 encoder;
        # replaced here with a deterministic embedding-table stub producing
        # `last_hidden_state` of shape (N, src_len, embed_size).
        "enc_embed": nrm((src_vocab, embed_size), 1.0),
        "word_embed": nrm((trg_vocab, embed_size), 1.0),
        "pos_embed": nrm((max_length, embed_size), 1.0),
        "fc_w": nrm((embed_size, trg_vocab)),
        "fc_b": nrm((1, trg_vocab), 0.02),
        "layers": [],
    }
    for _ in range(num_layers):
        params["layers"].append({
            "self": attn_params(),
            "cross": attn_params(),
            "norm_g": jnp.ones((1, embed_size), jnp.float32),
            "norm_b": jnp.zeros((1, embed_size), jnp.float32),
            "norm1_g": jnp.ones((1, embed_size), jnp.float32),
            "norm1_b": jnp.zeros((1, embed_size), jnp.float32),
            "norm2_g": jnp.ones((1, embed_size), jnp.float32),
            "norm2_b": jnp.zeros((1, embed_size), jnp.float32),
            "ff_w1": nrm((embed_size, hidden)),
            "ff_b1": nrm((1, hidden), 0.02),
            "ff_w2": nrm((hidden, embed_size)),
            "ff_b2": nrm((1, embed_size), 0.02),
        })
    return params


def _make_masks(src, trg, src_pad_idx, trg_pad_idx):
    N, Lt = trg.shape
    src_mask = (src != src_pad_idx).astype(jnp.int32)[:, None, None, :]      # (N,1,1,Ls)
    tril = jnp.tril(jnp.ones((Lt, Lt), jnp.float32))
    trg_mask = (jnp.broadcast_to(tril, (N, 1, Lt, Lt))
                * (trg != trg_pad_idx)[:, None, None, :].astype(jnp.float32))  # (N,1,Lt,Lt)
    return src_mask, trg_mask


def transformer_forward(params, src, trg, *, src_pad_idx, trg_pad_idx,
                        heads, embed_size):
    N, Lt = trg.shape
    Ls = src.shape[1]
    E = embed_size
    d = E // heads
    nl = len(params["layers"])
    V = params["fc_w"].shape[1]

    src_mask, trg_mask = _make_masks(src, trg, src_pad_idx, trg_pad_idx)
    self_mask = trg_mask[:, 0]                                               # (N, Lt, Lt)
    cross_mask = jnp.broadcast_to(
        src_mask[:, 0, 0][:, None, :].astype(jnp.float32), (N, Lt, Ls))      # (N, Lt, Ls)

    # Encoder stub (see TODO(synk) in init_params).  Embedding gathers and
    # dropout(p=0)=identity stay as JAX glue.
    enc = params["enc_embed"][src].reshape(N * Ls, E)
    positions = jnp.arange(Lt)
    x0 = (params["word_embed"][trg]
          + params["pos_embed"][positions][None, :, :]).reshape(N * Lt, E)

    def stack(fn):
        return jnp.stack([fn(lp) for lp in params["layers"]])

    swq = stack(lambda lp: _block_diag(lp["self"]["wq"], heads))
    swk = stack(lambda lp: _block_diag(lp["self"]["wk"], heads))
    swvo = stack(lambda lp: _fused_vo(lp["self"]["wv"], lp["self"]["wo"], heads, d))
    sbo = stack(lambda lp: lp["self"]["bo"])
    cwq = stack(lambda lp: _block_diag(lp["cross"]["wq"], heads))
    cwk = stack(lambda lp: _block_diag(lp["cross"]["wk"], heads))
    cwvo = stack(lambda lp: _fused_vo(lp["cross"]["wv"], lp["cross"]["wo"], heads, d))
    cbo = stack(lambda lp: lp["cross"]["bo"])
    ng = stack(lambda lp: lp["norm_g"])
    nb = stack(lambda lp: lp["norm_b"])
    n1g = stack(lambda lp: lp["norm1_g"])
    n1b = stack(lambda lp: lp["norm1_b"])
    n2g = stack(lambda lp: lp["norm2_g"])
    n2b = stack(lambda lp: lp["norm2_b"])
    fw1 = stack(lambda lp: lp["ff_w1"])
    fb1 = stack(lambda lp: lp["ff_b1"])
    fw2 = stack(lambda lp: lp["ff_w2"])
    fb2 = stack(lambda lp: lp["ff_b2"])

    kernel = functools.partial(_decoder_kernel, num_layers=nl, heads=heads,
                               head_dim=d, embed_size=E, n_batch=N,
                               lt=Lt, ls=Ls)
    out = pl.pallas_call(
        kernel,
        out_shape=jax.ShapeDtypeStruct((N * Lt, V), jnp.float32),
        scratch_shapes=[pltpu.VMEM((N * Lt, E), jnp.float32)],
        compiler_params=pltpu.CompilerParams(
            vmem_limit_bytes=32 * 1024 * 1024),
    )(x0, enc, self_mask, cross_mask,
      swq, swk, swvo, sbo,
      cwq, cwk, cwvo, cbo,
      ng, nb, n1g, n1b, n2g, n2b,
      fw1, fb1, fw2, fb2,
      params["fc_w"], params["fc_b"])
    return out.reshape(N, Lt, V)


# --------------------------------------------------------------------------
# Pure-JAX reference (mirrors the PyTorch math) for a correctness check
# --------------------------------------------------------------------------

def _ref_mha(q_in, k_in, v_in, mask4, p, heads, embed_size):
    N, Lq, E = q_in.shape
    Lk = k_in.shape[1]
    d = E // heads
    hp = jax.lax.Precision.HIGHEST
    q = jnp.einsum("nqhd,de->nqhe", q_in.reshape(N, Lq, heads, d), p["wq"], precision=hp)
    k = jnp.einsum("nkhd,de->nkhe", k_in.reshape(N, Lk, heads, d), p["wk"], precision=hp)
    v = jnp.einsum("nkhd,de->nkhe", v_in.reshape(N, Lk, heads, d), p["wv"], precision=hp)
    energy = jnp.einsum("nqhd,nkhd->nhqk", q, k, precision=hp)
    energy = jnp.where(mask4 == 0, NEG_INF, energy)
    s = energy / math.sqrt(embed_size)
    s = s - jnp.max(s, axis=-1, keepdims=True)
    pr = jnp.exp(s)
    attn = pr / jnp.sum(pr, axis=-1, keepdims=True)
    out = jnp.einsum("nhqk,nkhd->nqhd", attn, v, precision=hp).reshape(N, Lq, E)
    return jnp.dot(out, p["wo"], precision=hp) + p["bo"][0]


def _ref_add_ln(a, b, g, beta):
    x = a + b
    mean = jnp.mean(x, -1, keepdims=True)
    var = jnp.mean(jnp.square(x - mean), -1, keepdims=True)
    return (x - mean) / jnp.sqrt(var + EPS) * g[0] + beta[0]


def ref_forward(params, src, trg, *, src_pad_idx, trg_pad_idx, heads, embed_size):
    N, Lt = trg.shape
    hp = jax.lax.Precision.HIGHEST
    src_mask, trg_mask = _make_masks(src, trg, src_pad_idx, trg_pad_idx)
    enc_src = params["enc_embed"][src]
    positions = jnp.broadcast_to(jnp.arange(Lt), (N, Lt))
    x = params["word_embed"][trg] + params["pos_embed"][positions]
    for lp in params["layers"]:
        attn = _ref_mha(x, x, x, trg_mask, lp["self"], heads, embed_size)
        query = _ref_add_ln(attn, x, lp["norm_g"], lp["norm_b"])
        attn2 = _ref_mha(query, enc_src, enc_src, src_mask, lp["cross"],
                         heads, embed_size)
        x2 = _ref_add_ln(attn2, query, lp["norm1_g"], lp["norm1_b"])
        h = jnp.maximum(jnp.dot(x2, lp["ff_w1"], precision=hp) + lp["ff_b1"][0], 0.0)
        ff = jnp.dot(h, lp["ff_w2"], precision=hp) + lp["ff_b2"][0]
        x = _ref_add_ln(ff, x2, lp["norm2_g"], lp["norm2_b"])
    return jnp.dot(x, params["fc_w"], precision=hp) + params["fc_b"][0]


# --------------------------------------------------------------------------
# Demo
# --------------------------------------------------------------------------

if __name__ == "__main__":
    SRC_VOCAB, TRG_VOCAB = 20, 24
    SRC_PAD, TRG_PAD = 0, 0
    EMBED, LAYERS, HEADS, FEXP, MAXLEN = 32, 2, 4, 4, 64
    N, LS, LT = 2, 16, 8

    key = jax.random.PRNGKey(0)
    kp, ksrc, ktrg = jax.random.split(key, 3)
    params = init_params(kp, src_vocab=SRC_VOCAB, trg_vocab=TRG_VOCAB,
                         embed_size=EMBED, num_layers=LAYERS, heads=HEADS,
                         forward_expansion=FEXP, max_length=MAXLEN)

    src = jax.random.randint(ksrc, (N, LS), 1, SRC_VOCAB)
    trg = jax.random.randint(ktrg, (N, LT), 1, TRG_VOCAB)
    src = src.at[0, -3:].set(SRC_PAD)   # exercise src padding mask
    trg = trg.at[1, -2:].set(TRG_PAD)   # exercise trg padding mask

    fwd = jax.jit(functools.partial(transformer_forward,
                                    src_pad_idx=SRC_PAD, trg_pad_idx=TRG_PAD,
                                    heads=HEADS, embed_size=EMBED))
    out = jax.block_until_ready(fwd(params, src, trg))

    ref = ref_forward(params, src, trg, src_pad_idx=SRC_PAD,
                      trg_pad_idx=TRG_PAD, heads=HEADS, embed_size=EMBED)

    assert out.shape == (N, LT, TRG_VOCAB), out.shape
    max_err = float(jnp.max(jnp.abs(out - ref)))
    assert jnp.allclose(out, ref, atol=1e-2, rtol=1e-2), f"max_err={max_err}"
    print("KERNEL_OK")
</pallas_src>

<mosaic_0001>
module attributes {stable_mosaic.version = 11 : i64} {
  func.func @_decoder_kernel(%arg0: memref<16x32xf32, #tpu.memory_space<vmem>>, %arg1: memref<32x32xf32, #tpu.memory_space<vmem>>, %arg2: memref<2x8x8xf32, #tpu.memory_space<vmem>>, %arg3: memref<2x8x16xf32, #tpu.memory_space<vmem>>, %arg4: memref<2x32x32xf32, #tpu.memory_space<vmem>>, %arg5: memref<2x32x32xf32, #tpu.memory_space<vmem>>, %arg6: memref<2x32x128xf32, #tpu.memory_space<vmem>>, %arg7: memref<2x1x32xf32, #tpu.memory_space<vmem>>, %arg8: memref<2x32x32xf32, #tpu.memory_space<vmem>>, %arg9: memref<2x32x32xf32, #tpu.memory_space<vmem>>, %arg10: memref<2x32x128xf32, #tpu.memory_space<vmem>>, %arg11: memref<2x1x32xf32, #tpu.memory_space<vmem>>, %arg12: memref<2x1x32xf32, #tpu.memory_space<vmem>>, %arg13: memref<2x1x32xf32, #tpu.memory_space<vmem>>, %arg14: memref<2x1x32xf32, #tpu.memory_space<vmem>>, %arg15: memref<2x1x32xf32, #tpu.memory_space<vmem>>, %arg16: memref<2x1x32xf32, #tpu.memory_space<vmem>>, %arg17: memref<2x1x32xf32, #tpu.memory_space<vmem>>, %arg18: memref<2x32x128xf32, #tpu.memory_space<vmem>>, %arg19: memref<2x1x128xf32, #tpu.memory_space<vmem>>, %arg20: memref<2x128x32xf32, #tpu.memory_space<vmem>>, %arg21: memref<2x1x32xf32, #tpu.memory_space<vmem>>, %arg22: memref<32x24xf32, #tpu.memory_space<vmem>>, %arg23: memref<1x24xf32, #tpu.memory_space<vmem>>, %arg24: memref<16x24xf32, #tpu.memory_space<vmem>>, %arg25: memref<16x32xf32, #tpu.memory_space<vmem>>) attributes {dimension_semantics = [], scalar_prefetch = 0 : i64, scratch_operands = 1 : i64, tpu.core_type = #tpu.core_type<tc>} {
    %c0 = arith.constant 0 : index
    %c0_0 = arith.constant 0 : index
    %0 = vector.load %arg0[%c0, %c0_0] : memref<16x32xf32, #tpu.memory_space<vmem>>, vector<16x32xf32>
    %c0_1 = arith.constant 0 : index
    %c0_2 = arith.constant 0 : index
    %1 = vector.load %arg1[%c0_1, %c0_2] : memref<32x32xf32, #tpu.memory_space<vmem>>, vector<32x32xf32>
    %c0_3 = arith.constant 0 : index
    %c0_4 = arith.constant 0 : index
    %c0_5 = arith.constant 0 : index
    %2 = vector.load %arg4[%c0_3, %c0_4, %c0_5] : memref<2x32x32xf32, #tpu.memory_space<vmem>>, vector<1x32x32xf32>
    %3 = vector.shape_cast %2 : vector<1x32x32xf32> to vector<32x32xf32>
    %c0_6 = arith.constant 0 : index
    %c0_7 = arith.constant 0 : index
    %c0_8 = arith.constant 0 : index
    %4 = vector.load %arg5[%c0_6, %c0_7, %c0_8] : memref<2x32x32xf32, #tpu.memory_space<vmem>>, vector<1x32x32xf32>
    %5 = vector.shape_cast %4 : vector<1x32x32xf32> to vector<32x32xf32>
    %c0_9 = arith.constant 0 : index
    %c0_10 = arith.constant 0 : index
    %c0_11 = arith.constant 0 : index
    %6 = vector.load %arg6[%c0_9, %c0_10, %c0_11] : memref<2x32x128xf32, #tpu.memory_space<vmem>>, vector<1x32x128xf32>
    %7 = vector.shape_cast %6 : vector<1x32x128xf32> to vector<32x128xf32>
    %c0_12 = arith.constant 0 : index
    %c0_13 = arith.constant 0 : index
    %c0_14 = arith.constant 0 : index
    %8 = vector.load %arg7[%c0_12, %c0_13, %c0_14] : memref<2x1x32xf32, #tpu.memory_space<vmem>>, vector<1x1x32xf32>
    %9 = vector.shape_cast %8 : vector<1x1x32xf32> to vector<1x32xf32>
    %cst = arith.constant dense<0.000000e+00> : vector<16x32xf32>
    %10 = tpu.matmul %0, %3, %cst {dimension_numbers = #tpu.dot_dimension_numbers<[1], [0], [0], [1], [0, 0, 1, 1], [], []>} : vector<16x32xf32>, vector<32x32xf32>, vector<16x32xf32> -> vector<16x32xf32>
    %cst_15 = arith.constant dense<0.000000e+00> : vector<16x32xf32>
    %11 = tpu.matmul %0, %5, %cst_15 {dimension_numbers = #tpu.dot_dimension_numbers<[1], [0], [0], [1], [0, 0, 1, 1], [], []>} : vector<16x32xf32>, vector<32x32xf32>, vector<16x32xf32> -> vector<16x32xf32>
    %cst_16 = arith.constant dense<0.000000e+00> : vector<16x128xf32>
    %12 = tpu.matmul %0, %7, %cst_16 {dimension_numbers = #tpu.dot_dimension_numbers<[1], [0], [0], [1], [0, 0, 1, 1], [], []>} : vector<16x32xf32>, vector<32x128xf32>, vector<16x128xf32> -> vector<16x128xf32>
    %13 = vector.extract_strided_slice %10 {offsets = [0, 0], sizes = [8, 32], strides = [1, 1]} : vector<16x32xf32> to vector<8x32xf32>
    %14 = vector.extract_strided_slice %11 {offsets = [0, 0], sizes = [8, 32], strides = [1, 1]} : vector<16x32xf32> to vector<8x32xf32>
    %15 = vector.extract_strided_slice %12 {offsets = [0, 0], sizes = [8, 128], strides = [1, 1]} : vector<16x128xf32> to vector<8x128xf32>
    %c0_17 = arith.constant 0 : index
    %c0_18 = arith.constant 0 : index
    %c0_19 = arith.constant 0 : index
    %16 = vector.load %arg2[%c0_17, %c0_18, %c0_19] : memref<2x8x8xf32, #tpu.memory_space<vmem>>, vector<1x8x8xf32>
    %17 = vector.shape_cast %16 : vector<1x8x8xf32> to vector<8x8xf32>
    %cst_20 = arith.constant 0.000000e+00 : f32
    %18 = vector.broadcast %cst_20 : f32 to vector<8x8xf32>
    %19 = arith.cmpf oeq, %17, %18 : vector<8x8xf32>
    %cst_21 = arith.constant -1.000000e+20 : f32
    %cst_22 = arith.constant 0.000000e+00 : f32
    %20 = vector.broadcast %cst_21 : f32 to vector<8x8xf32>
    %21 = vector.broadcast %cst_22 : f32 to vector<8x8xf32>
    %22 = arith.select %19, %20, %21 : vector<8x8xi1>, vector<8x8xf32>
    %cst_23 = arith.constant 0.000000e+00 : f32
    %23 = vector.broadcast %cst_23 : f32 to vector<8x32xf32>
    %24 = vector.extract_strided_slice %13 {offsets = [0, 0], sizes = [8, 8], strides = [1, 1]} : vector<8x32xf32> to vector<8x8xf32>
    %25 = vector.extract_strided_slice %14 {offsets = [0, 0], sizes = [8, 8], strides = [1, 1]} : vector<8x32xf32> to vector<8x8xf32>
    %cst_24 = arith.constant dense<0.000000e+00> : vector<8x8xf32>
    %26 = tpu.matmul %24, %25, %cst_24 {dimension_numbers = #tpu.dot_dimension_numbers<[1], [1], [0], [0], [0, 0, 1, 0], [], []>} : vector<8x8xf32>, vector<8x8xf32>, vector<8x8xf32> -> vector<8x8xf32>
    %cst_25 = arith.constant 0.176776692 : f32
    %27 = vector.broadcast %cst_25 : f32 to vector<8x8xf32>
    %28 = arith.mulf %26, %27 : vector<8x8xf32>
    %29 = arith.addf %28, %22 : vector<8x8xf32>
    %cst_26 = arith.constant dense<0xFF800000> : vector<8xf32>
    %30 = vector.multi_reduction <maximumf>, %29, %cst_26 [1] : vector<8x8xf32> to vector<8xf32>
    %31 = vector.shape_cast %30 : vector<8xf32> to vector<8x1xf32>
    %32 = vector.broadcast %31 : vector<8x1xf32> to vector<8x8xf32>
    %33 = arith.subf %29, %32 : vector<8x8xf32>
    %34 = math.exp %33 : vector<8x8xf32>
    %cst_27 = arith.constant dense<0.000000e+00> : vector<8xf32>
    %35 = vector.multi_reduction <add>, %34, %cst_27 [1] : vector<8x8xf32> to vector<8xf32>
    %36 = vector.shape_cast %35 : vector<8xf32> to vector<8x1xf32>
    %37 = tpu.reciprocal %36 {approx = true} : vector<8x1xf32> -> vector<8x1xf32>
    %38 = vector.broadcast %37 : vector<8x1xf32> to vector<8x8xf32>
    %39 = arith.mulf %34, %38 : vector<8x8xf32>
    %40 = vector.extract_strided_slice %15 {offsets = [0, 0], sizes = [8, 32], strides = [1, 1]} : vector<8x128xf32> to vector<8x32xf32>
    %cst_28 = arith.constant dense<0.000000e+00> : vector<8x32xf32>
    %41 = tpu.matmul %39, %40, %cst_28 {dimension_numbers = #tpu.dot_dimension_numbers<[1], [0], [0], [1], [0, 0, 1, 1], [], []>} : vector<8x8xf32>, vector<8x32xf32>, vector<8x32xf32> -> vector<8x32xf32>
    %42 = arith.addf %23, %41 : vector<8x32xf32>
    %43 = vector.extract_strided_slice %13 {offsets = [0, 8], sizes = [8, 8], strides = [1, 1]} : vector<8x32xf32> to vector<8x8xf32>
    %44 = vector.extract_strided_slice %14 {offsets = [0, 8], sizes = [8, 8], strides = [1, 1]} : vector<8x32xf32> to vector<8x8xf32>
    %cst_29 = arith.constant dense<0.000000e+00> : vector<8x8xf32>
    %45 = tpu.matmul %43, %44, %cst_29 {dimension_numbers = #tpu.dot_dimension_numbers<[1], [1], [0], [0], [0, 0, 1, 0], [], []>} : vector<8x8xf32>, vector<8x8xf32>, vector<8x8xf32> -> vector<8x8xf32>
    %cst_30 = arith.constant 0.176776692 : f32
    %46 = vector.broadcast %cst_30 : f32 to vector<8x8xf32>
    %47 = arith.mulf %45, %46 : vector<8x8xf32>
    %48 = arith.addf %47, %22 : vector<8x8xf32>
    %cst_31 = arith.constant dense<0xFF800000> : vector<8xf32>
    %49 = vector.multi_reduction <maximumf>, %48, %cst_31 [1] : vector<8x8xf32> to vector<8xf32>
    %50 = vector.shape_cast %49 : vector<8xf32> to vector<8x1xf32>
    %51 = vector.broadcast %50 : vector<8x1xf32> to vector<8x8xf32>
    %52 = arith.subf %48, %51 : vector<8x8xf32>
    %53 = math.exp %52 : vector<8x8xf32>
    %cst_32 = arith.constant dense<0.000000e+00> : vector<8xf32>
    %54 = vector.multi_reduction <add>, %53, %cst_32 [1] : vector<8x8xf32> to vector<8xf32>
    %55 = vector.shape_cast %54 : vector<8xf32> to vector<8x1xf32>
    %56 = tpu.reciprocal %55 {approx = true} : vector<8x1xf32> -> vector<8x1xf32>
    %57 = vector.broadcast %56 : vector<8x1xf32> to vector<8x8xf32>
    %58 = arith.mulf %53, %57 : vector<8x8xf32>
    %59 = vector.extract_strided_slice %15 {offsets = [0, 32], sizes = [8, 32], strides = [1, 1]} : vector<8x128xf32> to vector<8x32xf32>
    %cst_33 = arith.constant dense<0.000000e+00> : vector<8x32xf32>
    %60 = tpu.matmul %58, %59, %cst_33 {dimension_numbers = #tpu.dot_dimension_numbers<[1], [0], [0], [1], [0, 0, 1, 1], [], []>} : vector<8x8xf32>, vector<8x32xf32>, vector<8x32xf32> -> vector<8x32xf32>
    %61 = arith.addf %42, %60 : vector<8x32xf32>
    %62 = vector.extract_strided_slice %13 {offsets = [0, 16], sizes = [8, 8], strides = [1, 1]} : vector<8x32xf32> to vector<8x8xf32>
    %63 = vector.extract_strided_slice %14 {offsets = [0, 16], sizes = [8, 8], strides = [1, 1]} : vector<8x32xf32> to vector<8x8xf32>
    %cst_34 = arith.constant dense<0.000000e+00> : vector<8x8xf32>
    %64 = tpu.matmul %62, %63, %cst_34 {dimension_numbers = #tpu.dot_dimension_numbers<[1], [1], [0], [0], [0, 0, 1, 0], [], []>} : vector<8x8xf32>, vector<8x8xf32>, vector<8x8xf32> -> vector<8x8xf32>
    %cst_35 = arith.constant 0.176776692 : f32
    %65 = vector.broadcast %cst_35 : f32 to vector<8x8xf32>
    %66 = arith.mulf %64, %65 : vector<8x8xf32>
    %67 = arith.addf %66, %22 : vector<8x8xf32>
    %cst_36 = arith.constant dense<0xFF800000> : vector<8xf32>
    %68 = vector.multi_reduction <maximumf>, %67, %cst_36 [1] : vector<8x8xf32> to vector<8xf32>
    %69 = vector.shape_cast %68 : vector<8xf32> to vector<8x1xf32>
    %70 = vector.broadcast %69 : vector<8x1xf32> to vector<8x8xf32>
    %71 = arith.subf %67, %70 : vector<8x8xf32>
    %72 = math.exp %71 : vector<8x8xf32>
    %cst_37 = arith.constant dense<0.000000e+00> : vector<8xf32>
    %73 = vector.multi_reduction <add>, %72, %cst_37 [1] : vector<8x8xf32> to vector<8xf32>
    %74 = vector.shape_cast %73 : vector<8xf32> to vector<8x1xf32>
    %75 = tpu.reciprocal %74 {approx = true} : vector<8x1xf32> -> vector<8x1xf32>
    %76 = vector.broadcast %75 : vector<8x1xf32> to vector<8x8xf32>
    %77 = arith.mulf %72, %76 : vector<8x8xf32>
    %78 = vector.extract_strided_slice %15 {offsets = [0, 64], sizes = [8, 32], strides = [1, 1]} : vector<8x128xf32> to vector<8x32xf32>
    %cst_38 = arith.constant dense<0.000000e+00> : vector<8x32xf32>
    %79 = tpu.matmul %77, %78, %cst_38 {dimension_numbers = #tpu.dot_dimension_numbers<[1], [0], [0], [1], [0, 0, 1, 1], [], []>} : vector<8x8xf32>, vector<8x32xf32>, vector<8x32xf32> -> vector<8x32xf32>
    %80 = arith.addf %61, %79 : vector<8x32xf32>
    %81 = vector.extract_strided_slice %13 {offsets = [0, 24], sizes = [8, 8], strides = [1, 1]} : vector<8x32xf32> to vector<8x8xf32>
    %82 = vector.extract_strided_slice %14 {offsets = [0, 24], sizes = [8, 8], strides = [1, 1]} : vector<8x32xf32> to vector<8x8xf32>
    %cst_39 = arith.constant dense<0.000000e+00> : vector<8x8xf32>
    %83 = tpu.matmul %81, %82, %cst_39 {dimension_numbers = #tpu.dot_dimension_numbers<[1], [1], [0], [0], [0, 0, 1, 0], [], []>} : vector<8x8xf32>, vector<8x8xf32>, vector<8x8xf32> -> vector<8x8xf32>
    %cst_40 = arith.constant 0.176776692 : f32
    %84 = vector.broadcast %cst_40 : f32 to vector<8x8xf32>
    %85 = arith.mulf %83, %84 : vector<8x8xf32>
    %86 = arith.addf %85, %22 : vector<8x8xf32>
    %cst_41 = arith.constant dense<0xFF800000> : vector<8xf32>
    %87 = vector.multi_reduction <maximumf>, %86, %cst_41 [1] : vector<8x8xf32> to vector<8xf32>
    %88 = vector.shape_cast %87 : vector<8xf32> to vector<8x1xf32>
    %89 = vector.broadcast %88 : vector<8x1xf32> to vector<8x8xf32>
    %90 = arith.subf %86, %89 : vector<8x8xf32>
    %91 = math.exp %90 : vector<8x8xf32>
    %cst_42 = arith.constant dense<0.000000e+00> : vector<8xf32>
    %92 = vector.multi_reduction <add>, %91, %cst_42 [1] : vector<8x8xf32> to vector<8xf32>
    %93 = vector.shape_cast %92 : vector<8xf32> to vector<8x1xf32>
    %94 = tpu.reciprocal %93 {approx = true} : vector<8x1xf32> -> vector<8x1xf32>
    %95 = vector.broadcast %94 : vector<8x1xf32> to vector<8x8xf32>
    %96 = arith.mulf %91, %95 : vector<8x8xf32>
    %97 = vector.extract_strided_slice %15 {offsets = [0, 96], sizes = [8, 32], strides = [1, 1]} : vector<8x128xf32> to vector<8x32xf32>
    %cst_43 = arith.constant dense<0.000000e+00> : vector<8x32xf32>
    %98 = tpu.matmul %96, %97, %cst_43 {dimension_numbers = #tpu.dot_dimension_numbers<[1], [0], [0], [1], [0, 0, 1, 1], [], []>} : vector<8x8xf32>, vector<8x32xf32>, vector<8x32xf32> -> vector<8x32xf32>
    %99 = arith.addf %80, %98 : vector<8x32xf32>
    %100 = vector.broadcast %9 : vector<1x32xf32> to vector<8x32xf32>
    %101 = arith.addf %99, %100 : vector<8x32xf32>
    %c0_44 = arith.constant 0 : index
    %c0_45 = arith.constant 0 : index
    %102 = vector.load %arg25[%c0_44, %c0_45] : memref<16x32xf32, #tpu.memory_space<vmem>>, vector<8x32xf32>
    tpu.vector_store %arg25[%c0_44, %c0_45], %101 {strides = array<i32>} : memref<16x32xf32, #tpu.memory_space<vmem>>, vector<8x32xf32>,
    %103 = vector.extract_strided_slice %10 {offsets = [8, 0], sizes = [8, 32], strides = [1, 1]} : vector<16x32xf32> to vector<8x32xf32>
    %104 = vector.extract_strided_slice %11 {offsets = [8, 0], sizes = [8, 32], strides = [1, 1]} : vector<16x32xf32> to vector<8x32xf32>
    %105 = vector.extract_strided_slice %12 {offsets = [8, 0], sizes = [8, 128], strides = [1, 1]} : vector<16x128xf32> to vector<8x128xf32>
    %c1 = arith.constant 1 : index
    %c0_46 = arith.constant 0 : index
    %c0_47 = arith.constant 0 : index
    %106 = vector.load %arg2[%c1, %c0_46, %c0_47] : memref<2x8x8xf32, #tpu.memory_space<vmem>>, vector<1x8x8xf32>
    %107 = vector.shape_cast %106 : vector<1x8x8xf32> to vector<8x8xf32>
    %cst_48 = arith.constant 0.000000e+00 : f32
    %108 = vector.broadcast %cst_48 : f32 to vector<8x8xf32>
    %109 = arith.cmpf oeq, %107, %108 : vector<8x8xf32>
    %cst_49 = arith.constant -1.000000e+20 : f32
    %cst_50 = arith.constant 0.000000e+00 : f32
    %110 = vector.broadcast %cst_49 : f32 to vector<8x8xf32>
    %111 = vector.broadcast %cst_50 : f32 to vector<8x8xf32>
    %112 = arith.select %109, %110, %111 : vector<8x8xi1>, vector<8x8xf32>
    %cst_51 = arith.constant 0.000000e+00 : f32
    %113 = vector.broadcast %cst_51 : f32 to vector<8x32xf32>
    %114 = vector.extract_strided_slice %103 {offsets = [0, 0], sizes = [8, 8], strides = [1, 1]} : vector<8x32xf32> to vector<8x8xf32>
    %115 = vector.extract_strided_slice %104 {offsets = [0, 0], sizes = [8, 8], strides = [1, 1]} : vector<8x32xf32> to vector<8x8xf32>
    %cst_52 = arith.constant dense<0.000000e+00> : vector<8x8xf32>
    %116 = tpu.matmul %114, %115, %cst_52 {dimension_numbers = #tpu.dot_dimension_numbers<[1], [1], [0], [0], [0, 0, 1, 0], [], []>} : vector<8x8xf32>, vector<8x8xf32>, vector<8x8xf32> -> vector<8x8xf32>
    %cst_53 = arith.constant 0.176776692 : f32
    %117 = vector.broadcast %cst_53 : f32 to vector<8x8xf32>
    %118 = arith.mulf %116, %117 : vector<8x8xf32>
    %119 = arith.addf %118, %112 : vector<8x8xf32>
    %cst_54 = arith.constant dense<0xFF800000> : vector<8xf32>
    %120 = vector.multi_reduction <maximumf>, %119, %cst_54 [1] : vector<8x8xf32> to vector<8xf32>
    %121 = vector.shape_cast %120 : vector<8xf32> to vector<8x1xf32>
    %122 = vector.broadcast %121 : vector<8x1xf32> to vector<8x8xf32>
    %123 = arith.subf %119, %122 : vector<8x8xf32>
    %124 = math.exp %123 : vector<8x8xf32>
    %cst_55 = arith.constant dense<0.000000e+00> : vector<8xf32>
    %125 = vector.multi_reduction <add>, %124, %cst_55 [1] : vector<8x8xf32> to vector<8xf32>
    %126 = vector.shape_cast %125 : vector<8xf32> to vector<8x1xf32>
    %127 = tpu.reciprocal %126 {approx = true} : vector<8x1xf32> -> vector<8x1xf32>
    %128 = vector.broadcast %127 : vector<8x1xf32> to vector<8x8xf32>
    %129 = arith.mulf %124, %128 : vector<8x8xf32>
    %130 = vector.extract_strided_slice %105 {offsets = [0, 0], sizes = [8, 32], strides = [1, 1]} : vector<8x128xf32> to vector<8x32xf32>
    %cst_56 = arith.constant dense<0.000000e+00> : vector<8x32xf32>
    %131 = tpu.matmul %129, %130, %cst_56 {dimension_numbers = #tpu.dot_dimension_numbers<[1], [0], [0], [1], [0, 0, 1, 1], [], []>} : vector<8x8xf32>, vector<8x32xf32>, vector<8x32xf32> -> vector<8x32xf32>
    %132 = arith.addf %113, %131 : vector<8x32xf32>
    %133 = vector.extract_strided_slice %103 {offsets = [0, 8], sizes = [8, 8], strides = [1, 1]} : vector<8x32xf32> to vector<8x8xf32>
    %134 = vector.extract_strided_slice %104 {offsets = [0, 8], sizes = [8, 8], strides = [1, 1]} : vector<8x32xf32> to vector<8x8xf32>
    %cst_57 = arith.constant dense<0.000000e+00> : vector<8x8xf32>
    %135 = tpu.matmul %133, %134, %cst_57 {dimension_numbers = #tpu.dot_dimension_numbers<[1], [1], [0], [0], [0, 0, 1, 0], [], []>} : vector<8x8xf32>, vector<8x8xf32>, vector<8x8xf32> -> vector<8x8xf32>
    %cst_58 = arith.constant 0.176776692 : f32
    %136 = vector.broadcast %cst_58 : f32 to vector<8x8xf32>
    %137 = arith.mulf %135, %136 : vector<8x8xf32>
    %138 = arith.addf %137, %112 : vector<8x8xf32>
    %cst_59 = arith.constant dense<0xFF800000> : vector<8xf32>
    %139 = vector.multi_reduction <maximumf>, %138, %cst_59 [1] : vector<8x8xf32> to vector<8xf32>
    %140 = vector.shape_cast %139 : vector<8xf32> to vector<8x1xf32>
    %141 = vector.broadcast %140 : vector<8x1xf32> to vector<8x8xf32>
    %142 = arith.subf %138, %141 : vector<8x8xf32>
    %143 = math.exp %142 : vector<8x8xf32>
    %cst_60 = arith.constant dense<0.000000e+00> : vector<8xf32>
    %144 = vector.multi_reduction <add>, %143, %cst_60 [1] : vector<8x8xf32> to vector<8xf32>
    %145 = vector.shape_cast %144 : vector<8xf32> to vector<8x1xf32>
    %146 = tpu.reciprocal %145 {approx = true} : vector<8x1xf32> -> vector<8x1xf32>
    %147 = vector.broadcast %146 : vector<8x1xf32> to vector<8x8xf32>
    %148 = arith.mulf %143, %147 : vector<8x8xf32>
    %149 = vector.extract_strided_slice %105 {offsets = [0, 32], sizes = [8, 32], strides = [1, 1]} : vector<8x128xf32> to vector<8x32xf32>
    %cst_61 = arith.constant dense<0.000000e+00> : vector<8x32xf32>
    %150 = tpu.matmul %148, %149, %cst_61 {dimension_numbers = #tpu.dot_dimension_numbers<[1], [0], [0], [1], [0, 0, 1, 1], [], []>} : vector<8x8xf32>, vector<8x32xf32>, vector<8x32xf32> -> vector<8x32xf32>
    %151 = arith.addf %132, %150 : vector<8x32xf32>
    %152 = vector.extract_strided_slice %103 {offsets = [0, 16], sizes = [8, 8], strides = [1, 1]} : vector<8x32xf32> to vector<8x8xf32>
    %153 = vector.extract_strided_slice %104 {offsets = [0, 16], sizes = [8, 8], strides = [1, 1]} : vector<8x32xf32> to vector<8x8xf32>
    %cst_62 = arith.constant dense<0.000000e+00> : vector<8x8xf32>
    %154 = tpu.matmul %152, %153, %cst_62 {dimension_numbers = #tpu.dot_dimension_numbers<[1], [1], [0], [0], [0, 0, 1, 0], [], []>} : vector<8x8xf32>, vector<8x8xf32>, vector<8x8xf32> -> vector<8x8xf32>
    %cst_63 = arith.constant 0.176776692 : f32
    %155 = vector.broadcast %cst_63 : f32 to vector<8x8xf32>
    %156 = arith.mulf %154, %155 : vector<8x8xf32>
    %157 = arith.addf %156, %112 : vector<8x8xf32>
    %cst_64 = arith.constant dense<0xFF800000> : vector<8xf32>
    %158 = vector.multi_reduction <maximumf>, %157, %cst_64 [1] : vector<8x8xf32> to vector<8xf32>
    %159 = vector.shape_cast %158 : vector<8xf32> to vector<8x1xf32>
    %160 = vector.broadcast %159 : vector<8x1xf32> to vector<8x8xf32>
    %161 = arith.subf %157, %160 : vector<8x8xf32>
    %162 = math.exp %161 : vector<8x8xf32>
    %cst_65 = arith.constant dense<0.000000e+00> : vector<8xf32>
    %163 = vector.multi_reduction <add>, %162, %cst_65 [1] : vector<8x8xf32> to vector<8xf32>
    %164 = vector.shape_cast %163 : vector<8xf32> to vector<8x1xf32>
    %165 = tpu.reciprocal %164 {approx = true} : vector<8x1xf32> -> vector<8x1xf32>
    %166 = vector.broadcast %165 : vector<8x1xf32> to vector<8x8xf32>
    %167 = arith.mulf %162, %166 : vector<8x8xf32>
    %168 = vector.extract_strided_slice %105 {offsets = [0, 64], sizes = [8, 32], strides = [1, 1]} : vector<8x128xf32> to vector<8x32xf32>
    %cst_66 = arith.constant dense<0.000000e+00> : vector<8x32xf32>
    %169 = tpu.matmul %167, %168, %cst_66 {dimension_numbers = #tpu.dot_dimension_numbers<[1], [0], [0], [1], [0, 0, 1, 1], [], []>} : vector<8x8xf32>, vector<8x32xf32>, vector<8x32xf32> -> vector<8x32xf32>
    %170 = arith.addf %151, %169 : vector<8x32xf32>
    %171 = vector.extract_strided_slice %103 {offsets = [0, 24], sizes = [8, 8], strides = [1, 1]} : vector<8x32xf32> to vector<8x8xf32>
    %172 = vector.extract_strided_slice %104 {offsets = [0, 24], sizes = [8, 8], strides = [1, 1]} : vector<8x32xf32> to vector<8x8xf32>
    %cst_67 = arith.constant dense<0.000000e+00> : vector<8x8xf32>
    %173 = tpu.matmul %171, %172, %cst_67 {dimension_numbers = #tpu.dot_dimension_numbers<[1], [1], [0], [0], [0, 0, 1, 0], [], []>} : vector<8x8xf32>, vector<8x8xf32>, vector<8x8xf32> -> vector<8x8xf32>
    %cst_68 = arith.constant 0.176776692 : f32
    %174 = vector.broadcast %cst_68 : f32 to vector<8x8xf32>
    %175 = arith.mulf %173, %174 : vector<8x8xf32>
    %176 = arith.addf %175, %112 : vector<8x8xf32>
    %cst_69 = arith.constant dense<0xFF800000> : vector<8xf32>
    %177 = vector.multi_reduction <maximumf>, %176, %cst_69 [1] : vector<8x8xf32> to vector<8xf32>
    %178 = vector.shape_cast %177 : vector<8xf32> to vector<8x1xf32>
    %179 = vector.broadcast %178 : vector<8x1xf32> to vector<8x8xf32>
    %180 = arith.subf %176, %179 : vector<8x8xf32>
    %181 = math.exp %180 : vector<8x8xf32>
    %cst_70 = arith.constant dense<0.000000e+00> : vector<8xf32>
    %182 = vector.multi_reduction <add>, %181, %cst_70 [1] : vector<8x8xf32> to vector<8xf32>
    %183 = vector.shape_cast %182 : vector<8xf32> to vector<8x1xf32>
    %184 = tpu.reciprocal %183 {approx = true} : vector<8x1xf32> -> vector<8x1xf32>
    %185 = vector.broadcast %184 : vector<8x1xf32> to vector<8x8xf32>
    %186 = arith.mulf %181, %185 : vector<8x8xf32>
    %187 = vector.extract_strided_slice %105 {offsets = [0, 96], sizes = [8, 32], strides = [1, 1]} : vector<8x128xf32> to vector<8x32xf32>
    %cst_71 = arith.constant dense<0.000000e+00> : vector<8x32xf32>
    %188 = tpu.matmul %186, %187, %cst_71 {dimension_numbers = #tpu.dot_dimension_numbers<[1], [0], [0], [1], [0, 0, 1, 1], [], []>} : vector<8x8xf32>, vector<8x32xf32>, vector<8x32xf32> -> vector<8x32xf32>
    %189 = arith.addf %170, %188 : vector<8x32xf32>
    %190 = vector.broadcast %9 : vector<1x32xf32> to vector<8x32xf32>
    %191 = arith.addf %189, %190 : vector<8x32xf32>
    %c8 = arith.constant 8 : index
    %c0_72 = arith.constant 0 : index
    %192 = vector.load %arg25[%c8, %c0_72] : memref<16x32xf32, #tpu.memory_space<vmem>>, vector<8x32xf32>
    tpu.vector_store %arg25[%c8, %c0_72], %191 {strides = array<i32>} : memref<16x32xf32, #tpu.memory_space<vmem>>, vector<8x32xf32>,
    %c0_73 = arith.constant 0 : index
    %c0_74 = arith.constant 0 : index
    %193 = vector.load %arg25[%c0_73, %c0_74] : memref<16x32xf32, #tpu.memory_space<vmem>>, vector<16x32xf32>
    %c0_75 = arith.constant 0 : index
    %c0_76 = arith.constant 0 : index
    %c0_77 = arith.constant 0 : index
    %194 = vector.load %arg12[%c0_75, %c0_76, %c0_77] : memref<2x1x32xf32, #tpu.memory_space<vmem>>, vector<1x1x32xf32>
    %195 = vector.shape_cast %194 : vector<1x1x32xf32> to vector<1x32xf32>
    %c0_78 = arith.constant 0 : index
    %c0_79 = arith.constant 0 : index
    %c0_80 = arith.constant 0 : index
    %196 = vector.load %arg13[%c0_78, %c0_79, %c0_80] : memref<2x1x32xf32, #tpu.memory_space<vmem>>, vector<1x1x32xf32>
    %197 = vector.shape_cast %196 : vector<1x1x32xf32> to vector<1x32xf32>
    %198 = arith.addf %193, %0 : vector<16x32xf32>
    %cst_81 = arith.constant dense<0.000000e+00> : vector<16xf32>
    %199 = vector.multi_reduction <add>, %198, %cst_81 [1] : vector<16x32xf32> to vector<16xf32>
    %200 = vector.shape_cast %199 : vector<16xf32> to vector<16x1xf32>
    %cst_82 = arith.constant 3.200000e+01 : f32
    %201 = vector.broadcast %cst_82 : f32 to vector<16x1xf32>
    %202 = arith.divf %200, %201 : vector<16x1xf32>
    %203 = vector.broadcast %202 : vector<16x1xf32> to vector<16x32xf32>
    %204 = arith.subf %198, %203 : vector<16x32xf32>
    %205 = arith.mulf %204, %204 : vector<16x32xf32>
    %cst_83 = arith.constant dense<0.000000e+00> : vector<16xf32>
    %206 = vector.multi_reduction <add>, %205, %cst_83 [1] : vector<16x32xf32> to vector<16xf32>
    %207 = vector.shape_cast %206 : vector<16xf32> to vector<16x1xf32>
    %cst_84 = arith.constant 3.200000e+01 : f32
    %208 = vector.broadcast %cst_84 : f32 to vector<16x1xf32>
    %209 = arith.divf %207, %208 : vector<16x1xf32>
    %210 = vector.broadcast %202 : vector<16x1xf32> to vector<16x32xf32>
    %211 = arith.subf %198, %210 : vector<16x32xf32>
    %cst_85 = arith.constant 9.99999974E-6 : f32
    %212 = vector.broadcast %cst_85 : f32 to vector<16x1xf32>
    %213 = arith.addf %209, %212 : vector<16x1xf32>
    %214 = math.rsqrt %213 : vector<16x1xf32>
    %215 = vector.broadcast %214 : vector<16x1xf32> to vector<16x32xf32>
    %216 = arith.mulf %211, %215 : vector<16x32xf32>
    %217 = vector.broadcast %195 : vector<1x32xf32> to vector<16x32xf32>
    %218 = arith.mulf %216, %217 : vector<16x32xf32>
    %219 = vector.broadcast %197 : vector<1x32xf32> to vector<16x32xf32>
    %220 = arith.addf %218, %219 : vector<16x32xf32>
    %c0_86 = arith.constant 0 : index
    %c0_87 = arith.constant 0 : index
    %c0_88 = arith.constant 0 : index
    %221 = vector.load %arg8[%c0_86, %c0_87, %c0_88] : memref<2x32x32xf32, #tpu.memory_space<vmem>>, vector<1x32x32xf32>
    %222 = vector.shape_cast %221 : vector<1x32x32xf32> to vector<32x32xf32>
    %c0_89 = arith.constant 0 : index
    %c0_90 = arith.constant 0 : index
    %c0_91 = arith.constant 0 : index
    %223 = vector.load %arg9[%c0_89, %c0_90, %c0_91] : memref<2x32x32xf32, #tpu.memory_space<vmem>>, vector<1x32x32xf32>
    %224 = vector.shape_cast %223 : vector<1x32x32xf32> to vector<32x32xf32>
    %c0_92 = arith.constant 0 : index
    %c0_93 = arith.constant 0 : index
    %c0_94 = arith.constant 0 : index
    %225 = vector.load %arg10[%c0_92, %c0_93, %c0_94] : memref<2x32x128xf32, #tpu.memory_space<vmem>>, vector<1x32x128xf32>
    %226 = vector.shape_cast %225 : vector<1x32x128xf32> to vector<32x128xf32>
    %c0_95 = arith.constant 0 : index
    %c0_96 = arith.constant 0 : index
    %c0_97 = arith.constant 0 : index
    %227 = vector.load %arg11[%c0_95, %c0_96, %c0_97] : memref<2x1x32xf32, #tpu.memory_space<vmem>>, vector<1x1x32xf32>
    %228 = vector.shape_cast %227 : vector<1x1x32xf32> to vector<1x32xf32>
    %cst_98 = arith.constant dense<0.000000e+00> : vector<16x32xf32>
    %229 = tpu.matmul %220, %222, %cst_98 {dimension_numbers = #tpu.dot_dimension_numbers<[1], [0], [0], [1], [0, 0, 1, 1], [], []>} : vector<16x32xf32>, vector<32x32xf32>, vector<16x32xf32> -> vector<16x32xf32>
    %cst_99 = arith.constant dense<0.000000e+00> : vector<32x32xf32>
    %230 = tpu.matmul %1, %224, %cst_99 {dimension_numbers = #tpu.dot_dimension_numbers<[1], [0], [0], [1], [0, 0, 1, 1], [], []>} : vector<32x32xf32>, vector<32x32xf32>, vector<32x32xf32> -> vector<32x32xf32>
    %cst_100 = arith.constant dense<0.000000e+00> : vector<32x128xf32>
    %231 = tpu.matmul %1, %226, %cst_100 {dimension_numbers = #tpu.dot_dimension_numbers<[1], [0], [0], [1], [0, 0, 1, 1], [], []>} : vector<32x32xf32>, vector<32x128xf32>, vector<32x128xf32> -> vector<32x128xf32>
    %232 = vector.extract_strided_slice %229 {offsets = [0, 0], sizes = [8, 32], strides = [1, 1]} : vector<16x32xf32> to vector<8x32xf32>
    %233 = vector.extract_strided_slice %230 {offsets = [0, 0], sizes = [16, 32], strides = [1, 1]} : vector<32x32xf32> to vector<16x32xf32>
    %234 = vector.extract_strided_slice %231 {offsets = [0, 0], sizes = [16, 128], strides = [1, 1]} : vector<32x128xf32> to vector<16x128xf32>
    %c0_101 = arith.constant 0 : index
    %c0_102 = arith.constant 0 : index
    %c0_103 = arith.constant 0 : index
    %235 = vector.load %arg3[%c0_101, %c0_102, %c0_103] : memref<2x8x16xf32, #tpu.memory_space<vmem>>, vector<1x8x16xf32>
    %236 = vector.shape_cast %235 : vector<1x8x16xf32> to vector<8x16xf32>
    %cst_104 = arith.constant 0.000000e+00 : f32
    %237 = vector.broadcast %cst_104 : f32 to vector<8x16xf32>
    %238 = arith.cmpf oeq, %236, %237 : vector<8x16xf32>
    %cst_105 = arith.constant -1.000000e+20 : f32
    %cst_106 = arith.constant 0.000000e+00 : f32
    %239 = vector.broadcast %cst_105 : f32 to vector<8x16xf32>
    %240 = vector.broadcast %cst_106 : f32 to vector<8x16xf32>
    %241 = arith.select %238, %239, %240 : vector<8x16xi1>, vector<8x16xf32>
    %cst_107 = arith.constant 0.000000e+00 : f32
    %242 = vector.broadcast %cst_107 : f32 to vector<8x32xf32>
    %243 = vector.extract_strided_slice %232 {offsets = [0, 0], sizes = [8, 8], strides = [1, 1]} : vector<8x32xf32> to vector<8x8xf32>
    %244 = vector.extract_strided_slice %233 {offsets = [0, 0], sizes = [16, 8], strides = [1, 1]} : vector<16x32xf32> to vector<16x8xf32>
    %cst_108 = arith.constant dense<0.000000e+00> : vector<8x16xf32>
    %245 = tpu.matmul %243, %244, %cst_108 {dimension_numbers = #tpu.dot_dimension_numbers<[1], [1], [0], [0], [0, 0, 1, 0], [], []>} : vector<8x8xf32>, vector<16x8xf32>, vector<8x16xf32> -> vector<8x16xf32>
    %cst_109 = arith.constant 0.176776692 : f32
    %246 = vector.broadcast %cst_109 : f32 to vector<8x16xf32>
    %247 = arith.mulf %245, %246 : vector<8x16xf32>
    %248 = arith.addf %247, %241 : vector<8x16xf32>
    %cst_110 = arith.constant dense<0xFF800000> : vector<8xf32>
    %249 = vector.multi_reduction <maximumf>, %248, %cst_110 [1] : vector<8x16xf32> to vector<8xf32>
    %250 = vector.shape_cast %249 : vector<8xf32> to vector<8x1xf32>
    %251 = vector.broadcast %250 : vector<8x1xf32> to vector<8x16xf32>
    %252 = arith.subf %248, %251 : vector<8x16xf32>
    %253 = math.exp %252 : vector<8x16xf32>
    %cst_111 = arith.constant dense<0.000000e+00> : vector<8xf32>
    %254 = vector.multi_reduction <add>, %253, %cst_111 [1] : vector<8x16xf32> to vector<8xf32>
    %255 = vector.shape_cast %254 : vector<8xf32> to vector<8x1xf32>
    %256 = tpu.reciprocal %255 {approx = true} : vector<8x1xf32> -> vector<8x1xf32>
    %257 = vector.broadcast %256 : vector<8x1xf32> to vector<8x16xf32>
    %258 = arith.mulf %253, %257 : vector<8x16xf32>
    %259 = vector.extract_strided_slice %234 {offsets = [0, 0], sizes = [16, 32], strides = [1, 1]} : vector<16x128xf32> to vector<16x32xf32>
    %cst_112 = arith.constant dense<0.000000e+00> : vector<8x32xf32>
    %260 = tpu.matmul %258, %259, %cst_112 {dimension_numbers = #tpu.dot_dimension_numbers<[1], [0], [0], [1], [0, 0, 1, 1], [], []>} : vector<8x16xf32>, vector<16x32xf32>, vector<8x32xf32> -> vector<8x32xf32>
    %261 = arith.addf %242, %260 : vector<8x32xf32>
    %262 = vector.extract_strided_slice %232 {offsets = [0, 8], sizes = [8, 8], strides = [1, 1]} : vector<8x32xf32> to vector<8x8xf32>
    %263 = vector.extract_strided_slice %233 {offsets = [0, 8], sizes = [16, 8], strides = [1, 1]} : vector<16x32xf32> to vector<16x8xf32>
    %cst_113 = arith.constant dense<0.000000e+00> : vector<8x16xf32>
    %264 = tpu.matmul %262, %263, %cst_113 {dimension_numbers = #tpu.dot_dimension_numbers<[1], [1], [0], [0], [0, 0, 1, 0], [], []>} : vector<8x8xf32>, vector<16x8xf32>, vector<8x16xf32> -> vector<8x16xf32>
    %cst_114 = arith.constant 0.176776692 : f32
    %265 = vector.broadcast %cst_114 : f32 to vector<8x16xf32>
    %266 = arith.mulf %264, %265 : vector<8x16xf32>
    %267 = arith.addf %266, %241 : vector<8x16xf32>
    %cst_115 = arith.constant dense<0xFF800000> : vector<8xf32>
    %268 = vector.multi_reduction <maximumf>, %267, %cst_115 [1] : vector<8x16xf32> to vector<8xf32>
    %269 = vector.shape_cast %268 : vector<8xf32> to vector<8x1xf32>
    %270 = vector.broadcast %269 : vector<8x1xf32> to vector<8x16xf32>
    %271 = arith.subf %267, %270 : vector<8x16xf32>
    %272 = math.exp %271 : vector<8x16xf32>
    %cst_116 = arith.constant dense<0.000000e+00> : vector<8xf32>
    %273 = vector.multi_reduction <add>, %272, %cst_116 [1] : vector<8x16xf32> to vector<8xf32>
    %274 = vector.shape_cast %273 : vector<8xf32> to vector<8x1xf32>
    %275 = tpu.reciprocal %274 {approx = true} : vector<8x1xf32> -> vector<8x1xf32>
    %276 = vector.broadcast %275 : vector<8x1xf32> to vector<8x16xf32>
    %277 = arith.mulf %272, %276 : vector<8x16xf32>
    %278 = vector.extract_strided_slice %234 {offsets = [0, 32], sizes = [16, 32], strides = [1, 1]} : vector<16x128xf32> to vector<16x32xf32>
    %cst_117 = arith.constant dense<0.000000e+00> : vector<8x32xf32>
    %279 = tpu.matmul %277, %278, %cst_117 {dimension_numbers = #tpu.dot_dimension_numbers<[1], [0], [0], [1], [0, 0, 1, 1], [], []>} : vector<8x16xf32>, vector<16x32xf32>, vector<8x32xf32> -> vector<8x32xf32>
    %280 = arith.addf %261, %279 : vector<8x32xf32>
    %281 = vector.extract_strided_slice %232 {offsets = [0, 16], sizes = [8, 8], strides = [1, 1]} : vector<8x32xf32> to vector<8x8xf32>
    %282 = vector.extract_strided_slice %233 {offsets = [0, 16], sizes = [16, 8], strides = [1, 1]} : vector<16x32xf32> to vector<16x8xf32>
    %cst_118 = arith.constant dense<0.000000e+00> : vector<8x16xf32>
    %283 = tpu.matmul %281, %282, %cst_118 {dimension_numbers = #tpu.dot_dimension_numbers<[1], [1], [0], [0], [0, 0, 1, 0], [], []>} : vector<8x8xf32>, vector<16x8xf32>, vector<8x16xf32> -> vector<8x16xf32>
    %cst_119 = arith.constant 0.176776692 : f32
    %284 = vector.broadcast %cst_119 : f32 to vector<8x16xf32>
    %285 = arith.mulf %283, %284 : vector<8x16xf32>
    %286 = arith.addf %285, %241 : vector<8x16xf32>
    %cst_120 = arith.constant dense<0xFF800000> : vector<8xf32>
    %287 = vector.multi_reduction <maximumf>, %286, %cst_120 [1] : vector<8x16xf32> to vector<8xf32>
    %288 = vector.shape_cast %287 : vector<8xf32> to vector<8x1xf32>
    %289 = vector.broadcast %288 : vector<8x1xf32> to vector<8x16xf32>
    %290 = arith.subf %286, %289 : vector<8x16xf32>
    %291 = math.exp %290 : vector<8x16xf32>
    %cst_121 = arith.constant dense<0.000000e+00> : vector<8xf32>
    %292 = vector.multi_reduction <add>, %291, %cst_121 [1] : vector<8x16xf32> to vector<8xf32>
    %293 = vector.shape_cast %292 : vector<8xf32> to vector<8x1xf32>
    %294 = tpu.reciprocal %293 {approx = true} : vector<8x1xf32> -> vector<8x1xf32>
    %295 = vector.broadcast %294 : vector<8x1xf32> to vector<8x16xf32>
    %296 = arith.mulf %291, %295 : vector<8x16xf32>
    %297 = vector.extract_strided_slice %234 {offsets = [0, 64], sizes = [16, 32], strides = [1, 1]} : vector<16x128xf32> to vector<16x32xf32>
    %cst_122 = arith.constant dense<0.000000e+00> : vector<8x32xf32>
    %298 = tpu.matmul %296, %297, %cst_122 {dimension_numbers = #tpu.dot_dimension_numbers<[1], [0], [0], [1], [0, 0, 1, 1], [], []>} : vector<8x16xf32>, vector<16x32xf32>, vector<8x32xf32> -> vector<8x32xf32>
    %299 = arith.addf %280, %298 : vector<8x32xf32>
    %300 = vector.extract_strided_slice %232 {offsets = [0, 24], sizes = [8, 8], strides = [1, 1]} : vector<8x32xf32> to vector<8x8xf32>
    %301 = vector.extract_strided_slice %233 {offsets = [0, 24], sizes = [16, 8], strides = [1, 1]} : vector<16x32xf32> to vector<16x8xf32>
    %cst_123 = arith.constant dense<0.000000e+00> : vector<8x16xf32>
    %302 = tpu.matmul %300, %301, %cst_123 {dimension_numbers = #tpu.dot_dimension_numbers<[1], [1], [0], [0], [0, 0, 1, 0], [], []>} : vector<8x8xf32>, vector<16x8xf32>, vector<8x16xf32> -> vector<8x16xf32>
    %cst_124 = arith.constant 0.176776692 : f32
    %303 = vector.broadcast %cst_124 : f32 to vector<8x16xf32>
    %304 = arith.mulf %302, %303 : vector<8x16xf32>
    %305 = arith.addf %304, %241 : vector<8x16xf32>
    %cst_125 = arith.constant dense<0xFF800000> : vector<8xf32>
    %306 = vector.multi_reduction <maximumf>, %305, %cst_125 [1] : vector<8x16xf32> to vector<8xf32>
    %307 = vector.shape_cast %306 : vector<8xf32> to vector<8x1xf32>
    %308 = vector.broadcast %307 : vector<8x1xf32> to vector<8x16xf32>
    %309 = arith.subf %305, %308 : vector<8x16xf32>
    %310 = math.exp %309 : vector<8x16xf32>
    %cst_126 = arith.constant dense<0.000000e+00> : vector<8xf32>
    %311 = vector.multi_reduction <add>, %310, %cst_126 [1] : vector<8x16xf32> to vector<8xf32>
    %312 = vector.shape_cast %311 : vector<8xf32> to vector<8x1xf32>
    %313 = tpu.reciprocal %312 {approx = true} : vector<8x1xf32> -> vector<8x1xf32>
    %314 = vector.broadcast %313 : vector<8x1xf32> to vector<8x16xf32>
    %315 = arith.mulf %310, %314 : vector<8x16xf32>
    %316 = vector.extract_strided_slice %234 {offsets = [0, 96], sizes = [16, 32], strides = [1, 1]} : vector<16x128xf32> to vector<16x32xf32>
    %cst_127 = arith.constant dense<0.000000e+00> : vector<8x32xf32>
    %317 = tpu.matmul %315, %316, %cst_127 {dimension_numbers = #tpu.dot_dimension_numbers<[1], [0], [0], [1], [0, 0, 1, 1], [], []>} : vector<8x16xf32>, vector<16x32xf32>, vector<8x32xf32> -> vector<8x32xf32>
    %318 = arith.addf %299, %317 : vector<8x32xf32>
    %319 = vector.broadcast %228 : vector<1x32xf32> to vector<8x32xf32>
    %320 = arith.addf %318, %319 : vector<8x32xf32>
    %c0_128 = arith.constant 0 : index
    %c0_129 = arith.constant 0 : index
    %321 = vector.load %arg25[%c0_128, %c0_129] : memref<16x32xf32, #tpu.memory_space<vmem>>, vector<8x32xf32>
    tpu.vector_store %arg25[%c0_128, %c0_129], %320 {strides = array<i32>} : memref<16x32xf32, #tpu.memory_space<vmem>>, vector<8x32xf32>,
    %322 = vector.extract_strided_slice %229 {offsets = [8, 0], sizes = [8, 32], strides = [1, 1]} : vector<16x32xf32> to vector<8x32xf32>
    %323 = vector.extract_strided_slice %230 {offsets = [16, 0], sizes = [16, 32], strides = [1, 1]} : vector<32x32xf32> to vector<16x32xf32>
    %324 = vector.extract_strided_slice %231 {offsets = [16, 0], sizes = [16, 128], strides = [1, 1]} : vector<32x128xf32> to vector<16x128xf32>
    %c1_130 = arith.constant 1 : index
    %c0_131 = arith.constant 0 : index
    %c0_132 = arith.constant 0 : index
    %325 = vector.load %arg3[%c1_130, %c0_131, %c0_132] : memref<2x8x16xf32, #tpu.memory_space<vmem>>, vector<1x8x16xf32>
    %326 = vector.shape_cast %325 : vector<1x8x16xf32> to vector<8x16xf32>
    %cst_133 = arith.constant 0.000000e+00 : f32
    %327 = vector.broadcast %cst_133 : f32 to vector<8x16xf32>
    %328 = arith.cmpf oeq, %326, %327 : vector<8x16xf32>
    %cst_134 = arith.constant -1.000000e+20 : f32
    %cst_135 = arith.constant 0.000000e+00 : f32
    %329 = vector.broadcast %cst_134 : f32 to vector<8x16xf32>
    %330 = vector.broadcast %cst_135 : f32 to vector<8x16xf32>
    %331 = arith.select %328, %329, %330 : vector<8x16xi1>, vector<8x16xf32>
    %cst_136 = arith.constant 0.000000e+00 : f32
    %332 = vector.broadcast %cst_136 : f32 to vector<8x32xf32>
    %333 = vector.extract_strided_slice %322 {offsets = [0, 0], sizes = [8, 8], strides = [1, 1]} : vector<8x32xf32> to vector<8x8xf32>
    %334 = vector.extract_strided_slice %323 {offsets = [0, 0], sizes = [16, 8], strides = [1, 1]} : vector<16x32xf32> to vector<16x8xf32>
    %cst_137 = arith.constant dense<0.000000e+00> : vector<8x16xf32>
    %335 = tpu.matmul %333, %334, %cst_137 {dimension_numbers = #tpu.dot_dimension_numbers<[1], [1], [0], [0], [0, 0, 1, 0], [], []>} : vector<8x8xf32>, vector<16x8xf32>, vector<8x16xf32> -> vector<8x16xf32>
    %cst_138 = arith.constant 0.176776692 : f32
    %336 = vector.broadcast %cst_138 : f32 to vector<8x16xf32>
    %337 = arith.mulf %335, %336 : vector<8x16xf32>
    %338 = arith.addf %337, %331 : vector<8x16xf32>
    %cst_139 = arith.constant dense<0xFF800000> : vector<8xf32>
    %339 = vector.multi_reduction <maximumf>, %338, %cst_139 [1] : vector<8x16xf32> to vector<8xf32>
    %340 = vector.shape_cast %339 : vector<8xf32> to vector<8x1xf32>
    %341 = vector.broadcast %340 : vector<8x1xf32> to vector<8x16xf32>
    %342 = arith.subf %338, %341 : vector<8x16xf32>
    %343 = math.exp %342 : vector<8x16xf32>
    %cst_140 = arith.constant dense<0.000000e+00> : vector<8xf32>
    %344 = vector.multi_reduction <add>, %343, %cst_140 [1] : vector<8x16xf32> to vector<8xf32>
    %345 = vector.shape_cast %344 : vector<8xf32> to vector<8x1xf32>
    %346 = tpu.reciprocal %345 {approx = true} : vector<8x1xf32> -> vector<8x1xf32>
    %347 = vector.broadcast %346 : vector<8x1xf32> to vector<8x16xf32>
    %348 = arith.mulf %343, %347 : vector<8x16xf32>
    %349 = vector.extract_strided_slice %324 {offsets = [0, 0], sizes = [16, 32], strides = [1, 1]} : vector<16x128xf32> to vector<16x32xf32>
    %cst_141 = arith.constant dense<0.000000e+00> : vector<8x32xf32>
    %350 = tpu.matmul %348, %349, %cst_141 {dimension_numbers = #tpu.dot_dimension_numbers<[1], [0], [0], [1], [0, 0, 1, 1], [], []>} : vector<8x16xf32>, vector<16x32xf32>, vector<8x32xf32> -> vector<8x32xf32>
    %351 = arith.addf %332, %350 : vector<8x32xf32>
    %352 = vector.extract_strided_slice %322 {offsets = [0, 8], sizes = [8, 8], strides = [1, 1]} : vector<8x32xf32> to vector<8x8xf32>
    %353 = vector.extract_strided_slice %323 {offsets = [0, 8], sizes = [16, 8], strides = [1, 1]} : vector<16x32xf32> to vector<16x8xf32>
    %cst_142 = arith.constant dense<0.000000e+00> : vector<8x16xf32>
    %354 = tpu.matmul %352, %353, %cst_142 {dimension_numbers = #tpu.dot_dimension_numbers<[1], [1], [0], [0], [0, 0, 1, 0], [], []>} : vector<8x8xf32>, vector<16x8xf32>, vector<8x16xf32> -> vector<8x16xf32>
    %cst_143 = arith.constant 0.176776692 : f32
    %355 = vector.broadcast %cst_143 : f32 to vector<8x16xf32>
    %356 = arith.mulf %354, %355 : vector<8x16xf32>
    %357 = arith.addf %356, %331 : vector<8x16xf32>
    %cst_144 = arith.constant dense<0xFF800000> : vector<8xf32>
    %358 = vector.multi_reduction <maximumf>, %357, %cst_144 [1] : vector<8x16xf32> to vector<8xf32>
    %359 = vector.shape_cast %358 : vector<8xf32> to vector<8x1xf32>
    %360 = vector.broadcast %359 : vector<8x1xf32> to vector<8x16xf32>
    %361 = arith.subf %357, %360 : vector<8x16xf32>
    %362 = math.exp %361 : vector<8x16xf32>
    %cst_145 = arith.constant dense<0.000000e+00> : vector<8xf32>
    %363 = vector.multi_reduction <add>, %362, %cst_145 [1] : vector<8x16xf32> to vector<8xf32>
    %364 = vector.shape_cast %363 : vector<8xf32> to vector<8x1xf32>
    %365 = tpu.reciprocal %364 {approx = true} : vector<8x1xf32> -> vector<8x1xf32>
    %366 = vector.broadcast %365 : vector<8x1xf32> to vector<8x16xf32>
    %367 = arith.mulf %362, %366 : vector<8x16xf32>
    %368 = vector.extract_strided_slice %324 {offsets = [0, 32], sizes = [16, 32], strides = [1, 1]} : vector<16x128xf32> to vector<16x32xf32>
    %cst_146 = arith.constant dense<0.000000e+00> : vector<8x32xf32>
    %369 = tpu.matmul %367, %368, %cst_146 {dimension_numbers = #tpu.dot_dimension_numbers<[1], [0], [0], [1], [0, 0, 1, 1], [], []>} : vector<8x16xf32>, vector<16x32xf32>, vector<8x32xf32> -> vector<8x32xf32>
    %370 = arith.addf %351, %369 : vector<8x32xf32>
    %371 = vector.extract_strided_slice %322 {offsets = [0, 16], sizes = [8, 8], strides = [1, 1]} : vector<8x32xf32> to vector<8x8xf32>
    %372 = vector.extract_strided_slice %323 {offsets = [0, 16], sizes = [16, 8], strides = [1, 1]} : vector<16x32xf32> to vector<16x8xf32>
    %cst_147 = arith.constant dense<0.000000e+00> : vector<8x16xf32>
    %373 = tpu.matmul %371, %372, %cst_147 {dimension_numbers = #tpu.dot_dimension_numbers<[1], [1], [0], [0], [0, 0, 1, 0], [], []>} : vector<8x8xf32>, vector<16x8xf32>, vector<8x16xf32> -> vector<8x16xf32>
    %cst_148 = arith.constant 0.176776692 : f32
    %374 = vector.broadcast %cst_148 : f32 to vector<8x16xf32>
    %375 = arith.mulf %373, %374 : vector<8x16xf32>
    %376 = arith.addf %375, %331 : vector<8x16xf32>
    %cst_149 = arith.constant dense<0xFF800000> : vector<8xf32>
    %377 = vector.multi_reduction <maximumf>, %376, %cst_149 [1] : vector<8x16xf32> to vector<8xf32>
    %378 = vector.shape_cast %377 : vector<8xf32> to vector<8x1xf32>
    %379 = vector.broadcast %378 : vector<8x1xf32> to vector<8x16xf32>
    %380 = arith.subf %376, %379 : vector<8x16xf32>
    %381 = math.exp %380 : vector<8x16xf32>
    %cst_150 = arith.constant dense<0.000000e+00> : vector<8xf32>
    %382 = vector.multi_reduction <add>, %381, %cst_150 [1] : vector<8x16xf32> to vector<8xf32>
    %383 = vector.shape_cast %382 : vector<8xf32> to vector<8x1xf32>
    %384 = tpu.reciprocal %383 {approx = true} : vector<8x1xf32> -> vector<8x1xf32>
    %385 = vector.broadcast %384 : vector<8x1xf32> to vector<8x16xf32>
    %386 = arith.mulf %381, %385 : vector<8x16xf32>
    %387 = vector.extract_strided_slice %324 {offsets = [0, 64], sizes = [16, 32], strides = [1, 1]} : vector<16x128xf32> to vector<16x32xf32>
    %cst_151 = arith.constant dense<0.000000e+00> : vector<8x32xf32>
    %388 = tpu.matmul %386, %387, %cst_151 {dimension_numbers = #tpu.dot_dimension_numbers<[1], [0], [0], [1], [0, 0, 1, 1], [], []>} : vector<8x16xf32>, vector<16x32xf32>, vector<8x32xf32> -> vector<8x32xf32>
    %389 = arith.addf %370, %388 : vector<8x32xf32>
    %390 = vector.extract_strided_slice %322 {offsets = [0, 24], sizes = [8, 8], strides = [1, 1]} : vector<8x32xf32> to vector<8x8xf32>
    %391 = vector.extract_strided_slice %323 {offsets = [0, 24], sizes = [16, 8], strides = [1, 1]} : vector<16x32xf32> to vector<16x8xf32>
    %cst_152 = arith.constant dense<0.000000e+00> : vector<8x16xf32>
    %392 = tpu.matmul %390, %391, %cst_152 {dimension_numbers = #tpu.dot_dimension_numbers<[1], [1], [0], [0], [0, 0, 1, 0], [], []>} : vector<8x8xf32>, vector<16x8xf32>, vector<8x16xf32> -> vector<8x16xf32>
    %cst_153 = arith.constant 0.176776692 : f32
    %393 = vector.broadcast %cst_153 : f32 to vector<8x16xf32>
    %394 = arith.mulf %392, %393 : vector<8x16xf32>
    %395 = arith.addf %394, %331 : vector<8x16xf32>
    %cst_154 = arith.constant dense<0xFF800000> : vector<8xf32>
    %396 = vector.multi_reduction <maximumf>, %395, %cst_154 [1] : vector<8x16xf32> to vector<8xf32>
    %397 = vector.shape_cast %396 : vector<8xf32> to vector<8x1xf32>
    %398 = vector.broadcast %397 : vector<8x1xf32> to vector<8x16xf32>
    %399 = arith.subf %395, %398 : vector<8x16xf32>
    %400 = math.exp %399 : vector<8x16xf32>
    %cst_155 = arith.constant dense<0.000000e+00> : vector<8xf32>
    %401 = vector.multi_reduction <add>, %400, %cst_155 [1] : vector<8x16xf32> to vector<8xf32>
    %402 = vector.shape_cast %401 : vector<8xf32> to vector<8x1xf32>
    %403 = tpu.reciprocal %402 {approx = true} : vector<8x1xf32> -> vector<8x1xf32>
    %404 = vector.broadcast %403 : vector<8x1xf32> to vector<8x16xf32>
    %405 = arith.mulf %400, %404 : vector<8x16xf32>
    %406 = vector.extract_strided_slice %324 {offsets = [0, 96], sizes = [16, 32], strides = [1, 1]} : vector<16x128xf32> to vector<16x32xf32>
    %cst_156 = arith.constant dense<0.000000e+00> : vector<8x32xf32>
    %407 = tpu.matmul %405, %406, %cst_156 {dimension_numbers = #tpu.dot_dimension_numbers<[1], [0], [0], [1], [0, 0, 1, 1], [], []>} : vector<8x16xf32>, vector<16x32xf32>, vector<8x32xf32> -> vector<8x32xf32>
    %408 = arith.addf %389, %407 : vector<8x32xf32>
    %409 = vector.broadcast %228 : vector<1x32xf32> to vector<8x32xf32>
    %410 = arith.addf %408, %409 : vector<8x32xf32>
    %c8_157 = arith.constant 8 : index
    %c0_158 = arith.constant 0 : index
    %411 = vector.load %arg25[%c8_157, %c0_158] : memref<16x32xf32, #tpu.memory_space<vmem>>, vector<8x32xf32>
    tpu.vector_store %arg25[%c8_157, %c0_158], %410 {strides = array<i32>} : memref<16x32xf32, #tpu.memory_space<vmem>>, vector<8x32xf32>,
    %c0_159 = arith.constant 0 : index
    %c0_160 = arith.constant 0 : index
    %412 = vector.load %arg25[%c0_159, %c0_160] : memref<16x32xf32, #tpu.memory_space<vmem>>, vector<16x32xf32>
    %c0_161 = arith.constant 0 : index
    %c0_162 = arith.constant 0 : index
    %c0_163 = arith.constant 0 : index
    %413 = vector.load %arg14[%c0_161, %c0_162, %c0_163] : memref<2x1x32xf32, #tpu.memory_space<vmem>>, vector<1x1x32xf32>
    %414 = vector.shape_cast %413 : vector<1x1x32xf32> to vector<1x32xf32>
    %c0_164 = arith.constant 0 : index
    %c0_165 = arith.constant 0 : index
    %c0_166 = arith.constant 0 : index
    %415 = vector.load %arg15[%c0_164, %c0_165, %c0_166] : memref<2x1x32xf32, #tpu.memory_space<vmem>>, vector<1x1x32xf32>
    %416 = vector.shape_cast %415 : vector<1x1x32xf32> to vector<1x32xf32>
    %417 = arith.addf %412, %220 : vector<16x32xf32>
    %cst_167 = arith.constant dense<0.000000e+00> : vector<16xf32>
    %418 = vector.multi_reduction <add>, %417, %cst_167 [1] : vector<16x32xf32> to vector<16xf32>
    %419 = vector.shape_cast %418 : vector<16xf32> to vector<16x1xf32>
    %cst_168 = arith.constant 3.200000e+01 : f32
    %420 = vector.broadcast %cst_168 : f32 to vector<16x1xf32>
    %421 = arith.divf %419, %420 : vector<16x1xf32>
    %422 = vector.broadcast %421 : vector<16x1xf32> to vector<16x32xf32>
    %423 = arith.subf %417, %422 : vector<16x32xf32>
    %424 = arith.mulf %423, %423 : vector<16x32xf32>
    %cst_169 = arith.constant dense<0.000000e+00> : vector<16xf32>
    %425 = vector.multi_reduction <add>, %424, %cst_169 [1] : vector<16x32xf32> to vector<16xf32>
    %426 = vector.shape_cast %425 : vector<16xf32> to vector<16x1xf32>
    %cst_170 = arith.constant 3.200000e+01 : f32
    %427 = vector.broadcast %cst_170 : f32 to vector<16x1xf32>
    %428 = arith.divf %426, %427 : vector<16x1xf32>
    %429 = vector.broadcast %421 : vector<16x1xf32> to vector<16x32xf32>
    %430 = arith.subf %417, %429 : vector<16x32xf32>
    %cst_171 = arith.constant 9.99999974E-6 : f32
    %431 = vector.broadcast %cst_171 : f32 to vector<16x1xf32>
    %432 = arith.addf %428, %431 : vector<16x1xf32>
    %433 = math.rsqrt %432 : vector<16x1xf32>
    %434 = vector.broadcast %433 : vector<16x1xf32> to vector<16x32xf32>
    %435 = arith.mulf %430, %434 : vector<16x32xf32>
    %436 = vector.broadcast %414 : vector<1x32xf32> to vector<16x32xf32>
    %437 = arith.mulf %435, %436 : vector<16x32xf32>
    %438 = vector.broadcast %416 : vector<1x32xf32> to vector<16x32xf32>
    %439 = arith.addf %437, %438 : vector<16x32xf32>
    %c0_172 = arith.constant 0 : index
    %c0_173 = arith.constant 0 : index
    %c0_174 = arith.constant 0 : index
    %440 = vector.load %arg18[%c0_172, %c0_173, %c0_174] : memref<2x32x128xf32, #tpu.memory_space<vmem>>, vector<1x32x128xf32>
    %441 = vector.shape_cast %440 : vector<1x32x128xf32> to vector<32x128xf32>
    %cst_175 = arith.constant dense<0.000000e+00> : vector<16x128xf32>
    %442 = tpu.matmul %439, %441, %cst_175 {dimension_numbers = #tpu.dot_dimension_numbers<[1], [0], [0], [1], [0, 0, 1, 1], [], []>} : vector<16x32xf32>, vector<32x128xf32>, vector<16x128xf32> -> vector<16x128xf32>
    %c0_176 = arith.constant 0 : index
    %c0_177 = arith.constant 0 : index
    %c0_178 = arith.constant 0 : index
    %443 = vector.load %arg19[%c0_176, %c0_177, %c0_178] : memref<2x1x128xf32, #tpu.memory_space<vmem>>, vector<1x1x128xf32>
    %444 = vector.shape_cast %443 : vector<1x1x128xf32> to vector<1x128xf32>
    %445 = vector.broadcast %444 : vector<1x128xf32> to vector<16x128xf32>
    %446 = arith.addf %442, %445 : vector<16x128xf32>
    %cst_179 = arith.constant 0.000000e+00 : f32
    %447 = vector.broadcast %cst_179 : f32 to vector<16x128xf32>
    %448 = arith.maximumf %446, %447 : vector<16x128xf32>
    %c0_180 = arith.constant 0 : index
    %c0_181 = arith.constant 0 : index
    %c0_182 = arith.constant 0 : index
    %449 = vector.load %arg20[%c0_180, %c0_181, %c0_182] : memref<2x128x32xf32, #tpu.memory_space<vmem>>, vector<1x128x32xf32>
    %450 = vector.shape_cast %449 : vector<1x128x32xf32> to vector<128x32xf32>
    %cst_183 = arith.constant dense<0.000000e+00> : vector<16x32xf32>
    %451 = tpu.matmul %448, %450, %cst_183 {dimension_numbers = #tpu.dot_dimension_numbers<[1], [0], [0], [1], [0, 0, 1, 1], [], []>} : vector<16x128xf32>, vector<128x32xf32>, vector<16x32xf32> -> vector<16x32xf32>
    %c0_184 = arith.constant 0 : index
    %c0_185 = arith.constant 0 : index
    %c0_186 = arith.constant 0 : index
    %452 = vector.load %arg21[%c0_184, %c0_185, %c0_186] : memref<2x1x32xf32, #tpu.memory_space<vmem>>, vector<1x1x32xf32>
    %453 = vector.shape_cast %452 : vector<1x1x32xf32> to vector<1x32xf32>
    %454 = vector.broadcast %453 : vector<1x32xf32> to vector<16x32xf32>
    %455 = arith.addf %451, %454 : vector<16x32xf32>
    %c0_187 = arith.constant 0 : index
    %c0_188 = arith.constant 0 : index
    %c0_189 = arith.constant 0 : index
    %456 = vector.load %arg16[%c0_187, %c0_188, %c0_189] : memref<2x1x32xf32, #tpu.memory_space<vmem>>, vector<1x1x32xf32>
    %457 = vector.shape_cast %456 : vector<1x1x32xf32> to vector<1x32xf32>
    %c0_190 = arith.constant 0 : index
    %c0_191 = arith.constant 0 : index
    %c0_192 = arith.constant 0 : index
    %458 = vector.load %arg17[%c0_190, %c0_191, %c0_192] : memref<2x1x32xf32, #tpu.memory_space<vmem>>, vector<1x1x32xf32>
    %459 = vector.shape_cast %458 : vector<1x1x32xf32> to vector<1x32xf32>
    %460 = arith.addf %455, %439 : vector<16x32xf32>
    %cst_193 = arith.constant dense<0.000000e+00> : vector<16xf32>
    %461 = vector.multi_reduction <add>, %460, %cst_193 [1] : vector<16x32xf32> to vector<16xf32>
    %462 = vector.shape_cast %461 : vector<16xf32> to vector<16x1xf32>
    %cst_194 = arith.constant 3.200000e+01 : f32
    %463 = vector.broadcast %cst_194 : f32 to vector<16x1xf32>
    %464 = arith.divf %462, %463 : vector<16x1xf32>
    %465 = vector.broadcast %464 : vector<16x1xf32> to vector<16x32xf32>
    %466 = arith.subf %460, %465 : vector<16x32xf32>
    %467 = arith.mulf %466, %466 : vector<16x32xf32>
    %cst_195 = arith.constant dense<0.000000e+00> : vector<16xf32>
    %468 = vector.multi_reduction <add>, %467, %cst_195 [1] : vector<16x32xf32> to vector<16xf32>
    %469 = vector.shape_cast %468 : vector<16xf32> to vector<16x1xf32>
    %cst_196 = arith.constant 3.200000e+01 : f32
    %470 = vector.broadcast %cst_196 : f32 to vector<16x1xf32>
    %471 = arith.divf %469, %470 : vector<16x1xf32>
    %472 = vector.broadcast %464 : vector<16x1xf32> to vector<16x32xf32>
    %473 = arith.subf %460, %472 : vector<16x32xf32>
    %cst_197 = arith.constant 9.99999974E-6 : f32
    %474 = vector.broadcast %cst_197 : f32 to vector<16x1xf32>
    %475 = arith.addf %471, %474 : vector<16x1xf32>
    %476 = math.rsqrt %475 : vector<16x1xf32>
    %477 = vector.broadcast %476 : vector<16x1xf32> to vector<16x32xf32>
    %478 = arith.mulf %473, %477 : vector<16x32xf32>
    %479 = vector.broadcast %457 : vector<1x32xf32> to vector<16x32xf32>
    %480 = arith.mulf %478, %479 : vector<16x32xf32>
    %481 = vector.broadcast %459 : vector<1x32xf32> to vector<16x32xf32>
    %482 = arith.addf %480, %481 : vector<16x32xf32>
    %c1_198 = arith.constant 1 : index
    %c0_199 = arith.constant 0 : index
    %c0_200 = arith.constant 0 : index
    %483 = vector.load %arg4[%c1_198, %c0_199, %c0_200] : memref<2x32x32xf32, #tpu.memory_space<vmem>>, vector<1x32x32xf32>
    %484 = vector.shape_cast %483 : vector<1x32x32xf32> to vector<32x32xf32>
    %c1_201 = arith.constant 1 : index
    %c0_202 = arith.constant 0 : index
    %c0_203 = arith.constant 0 : index
    %485 = vector.load %arg5[%c1_201, %c0_202, %c0_203] : memref<2x32x32xf32, #tpu.memory_space<vmem>>, vector<1x32x32xf32>
    %486 = vector.shape_cast %485 : vector<1x32x32xf32> to vector<32x32xf32>
    %c1_204 = arith.constant 1 : index
    %c0_205 = arith.constant 0 : index
    %c0_206 = arith.constant 0 : index
    %487 = vector.load %arg6[%c1_204, %c0_205, %c0_206] : memref<2x32x128xf32, #tpu.memory_space<vmem>>, vector<1x32x128xf32>
    %488 = vector.shape_cast %487 : vector<1x32x128xf32> to vector<32x128xf32>
    %c1_207 = arith.constant 1 : index
    %c0_208 = arith.constant 0 : index
    %c0_209 = arith.constant 0 : index
    %489 = vector.load %arg7[%c1_207, %c0_208, %c0_209] : memref<2x1x32xf32, #tpu.memory_space<vmem>>, vector<1x1x32xf32>
    %490 = vector.shape_cast %489 : vector<1x1x32xf32> to vector<1x32xf32>
    %cst_210 = arith.constant dense<0.000000e+00> : vector<16x32xf32>
    %491 = tpu.matmul %482, %484, %cst_210 {dimension_numbers = #tpu.dot_dimension_numbers<[1], [0], [0], [1], [0, 0, 1, 1], [], []>} : vector<16x32xf32>, vector<32x32xf32>, vector<16x32xf32> -> vector<16x32xf32>
    %cst_211 = arith.constant dense<0.000000e+00> : vector<16x32xf32>
    %492 = tpu.matmul %482, %486, %cst_211 {dimension_numbers = #tpu.dot_dimension_numbers<[1], [0], [0], [1], [0, 0, 1, 1], [], []>} : vector<16x32xf32>, vector<32x32xf32>, vector<16x32xf32> -> vector<16x32xf32>
    %cst_212 = arith.constant dense<0.000000e+00> : vector<16x128xf32>
    %493 = tpu.matmul %482, %488, %cst_212 {dimension_numbers = #tpu.dot_dimension_numbers<[1], [0], [0], [1], [0, 0, 1, 1], [], []>} : vector<16x32xf32>, vector<32x128xf32>, vector<16x128xf32> -> vector<16x128xf32>
    %494 = vector.extract_strided_slice %491 {offsets = [0, 0], sizes = [8, 32], strides = [1, 1]} : vector<16x32xf32> to vector<8x32xf32>
    %495 = vector.extract_strided_slice %492 {offsets = [0, 0], sizes = [8, 32], strides = [1, 1]} : vector<16x32xf32> to vector<8x32xf32>
    %496 = vector.extract_strided_slice %493 {offsets = [0, 0], sizes = [8, 128], strides = [1, 1]} : vector<16x128xf32> to vector<8x128xf32>
    %c0_213 = arith.constant 0 : index
    %c0_214 = arith.constant 0 : index
    %c0_215 = arith.constant 0 : index
    %497 = vector.load %arg2[%c0_213, %c0_214, %c0_215] : memref<2x8x8xf32, #tpu.memory_space<vmem>>, vector<1x8x8xf32>
    %498 = vector.shape_cast %497 : vector<1x8x8xf32> to vector<8x8xf32>
    %cst_216 = arith.constant 0.000000e+00 : f32
    %499 = vector.broadcast %cst_216 : f32 to vector<8x8xf32>
    %500 = arith.cmpf oeq, %498, %499 : vector<8x8xf32>
    %cst_217 = arith.constant -1.000000e+20 : f32
    %cst_218 = arith.constant 0.000000e+00 : f32
    %501 = vector.broadcast %cst_217 : f32 to vector<8x8xf32>
    %502 = vector.broadcast %cst_218 : f32 to vector<8x8xf32>
    %503 = arith.select %500, %501, %502 : vector<8x8xi1>, vector<8x8xf32>
    %cst_219 = arith.constant 0.000000e+00 : f32
    %504 = vector.broadcast %cst_219 : f32 to vector<8x32xf32>
    %505 = vector.extract_strided_slice %494 {offsets = [0, 0], sizes = [8, 8], strides = [1, 1]} : vector<8x32xf32> to vector<8x8xf32>
    %506 = vector.extract_strided_slice %495 {offsets = [0, 0], sizes = [8, 8], strides = [1, 1]} : vector<8x32xf32> to vector<8x8xf32>
    %cst_220 = arith.constant dense<0.000000e+00> : vector<8x8xf32>
    %507 = tpu.matmul %505, %506, %cst_220 {dimension_numbers = #tpu.dot_dimension_numbers<[1], [1], [0], [0], [0, 0, 1, 0], [], []>} : vector<8x8xf32>, vector<8x8xf32>, vector<8x8xf32> -> vector<8x8xf32>
    %cst_221 = arith.constant 0.176776692 : f32
    %508 = vector.broadcast %cst_221 : f32 to vector<8x8xf32>
    %509 = arith.mulf %507, %508 : vector<8x8xf32>
    %510 = arith.addf %509, %503 : vector<8x8xf32>
    %cst_222 = arith.constant dense<0xFF800000> : vector<8xf32>
    %511 = vector.multi_reduction <maximumf>, %510, %cst_222 [1] : vector<8x8xf32> to vector<8xf32>
    %512 = vector.shape_cast %511 : vector<8xf32> to vector<8x1xf32>
    %513 = vector.broadcast %512 : vector<8x1xf32> to vector<8x8xf32>
    %514 = arith.subf %510, %513 : vector<8x8xf32>
    %515 = math.exp %514 : vector<8x8xf32>
    %cst_223 = arith.constant dense<0.000000e+00> : vector<8xf32>
    %516 = vector.multi_reduction <add>, %515, %cst_223 [1] : vector<8x8xf32> to vector<8xf32>
    %517 = vector.shape_cast %516 : vector<8xf32> to vector<8x1xf32>
    %518 = tpu.reciprocal %517 {approx = true} : vector<8x1xf32> -> vector<8x1xf32>
    %519 = vector.broadcast %518 : vector<8x1xf32> to vector<8x8xf32>
    %520 = arith.mulf %515, %519 : vector<8x8xf32>
    %521 = vector.extract_strided_slice %496 {offsets = [0, 0], sizes = [8, 32], strides = [1, 1]} : vector<8x128xf32> to vector<8x32xf32>
    %cst_224 = arith.constant dense<0.000000e+00> : vector<8x32xf32>
    %522 = tpu.matmul %520, %521, %cst_224 {dimension_numbers = #tpu.dot_dimension_numbers<[1], [0], [0], [1], [0, 0, 1, 1], [], []>} : vector<8x8xf32>, vector<8x32xf32>, vector<8x32xf32> -> vector<8x32xf32>
    %523 = arith.addf %504, %522 : vector<8x32xf32>
    %524 = vector.extract_strided_slice %494 {offsets = [0, 8], sizes = [8, 8], strides = [1, 1]} : vector<8x32xf32> to vector<8x8xf32>
    %525 = vector.extract_strided_slice %495 {offsets = [0, 8], sizes = [8, 8], strides = [1, 1]} : vector<8x32xf32> to vector<8x8xf32>
    %cst_225 = arith.constant dense<0.000000e+00> : vector<8x8xf32>
    %526 = tpu.matmul %524, %525, %cst_225 {dimension_numbers = #tpu.dot_dimension_numbers<[1], [1], [0], [0], [0, 0, 1, 0], [], []>} : vector<8x8xf32>, vector<8x8xf32>, vector<8x8xf32> -> vector<8x8xf32>
    %cst_226 = arith.constant 0.176776692 : f32
    %527 = vector.broadcast %cst_226 : f32 to vector<8x8xf32>
    %528 = arith.mulf %526, %527 : vector<8x8xf32>
    %529 = arith.addf %528, %503 : vector<8x8xf32>
    %cst_227 = arith.constant dense<0xFF800000> : vector<8xf32>
    %530 = vector.multi_reduction <maximumf>, %529, %cst_227 [1] : vector<8x8xf32> to vector<8xf32>
    %531 = vector.shape_cast %530 : vector<8xf32> to vector<8x1xf32>
    %532 = vector.broadcast %531 : vector<8x1xf32> to vector<8x8xf32>
    %533 = arith.subf %529, %532 : vector<8x8xf32>
    %534 = math.exp %533 : vector<8x8xf32>
    %cst_228 = arith.constant dense<0.000000e+00> : vector<8xf32>
    %535 = vector.multi_reduction <add>, %534, %cst_228 [1] : vector<8x8xf32> to vector<8xf32>
    %536 = vector.shape_cast %535 : vector<8xf32> to vector<8x1xf32>
    %537 = tpu.reciprocal %536 {approx = true} : vector<8x1xf32> -> vector<8x1xf32>
    %538 = vector.broadcast %537 : vector<8x1xf32> to vector<8x8xf32>
    %539 = arith.mulf %534, %538 : vector<8x8xf32>
    %540 = vector.extract_strided_slice %496 {offsets = [0, 32], sizes = [8, 32], strides = [1, 1]} : vector<8x128xf32> to vector<8x32xf32>
    %cst_229 = arith.constant dense<0.000000e+00> : vector<8x32xf32>
    %541 = tpu.matmul %539, %540, %cst_229 {dimension_numbers = #tpu.dot_dimension_numbers<[1], [0], [0], [1], [0, 0, 1, 1], [], []>} : vector<8x8xf32>, vector<8x32xf32>, vector<8x32xf32> -> vector<8x32xf32>
    %542 = arith.addf %523, %541 : vector<8x32xf32>
    %543 = vector.extract_strided_slice %494 {offsets = [0, 16], sizes = [8, 8], strides = [1, 1]} : vector<8x32xf32> to vector<8x8xf32>
    %544 = vector.extract_strided_slice %495 {offsets = [0, 16], sizes = [8, 8], strides = [1, 1]} : vector<8x32xf32> to vector<8x8xf32>
    %cst_230 = arith.constant dense<0.000000e+00> : vector<8x8xf32>
    %545 = tpu.matmul %543, %544, %cst_230 {dimension_numbers = #tpu.dot_dimension_numbers<[1], [1], [0], [0], [0, 0, 1, 0], [], []>} : vector<8x8xf32>, vector<8x8xf32>, vector<8x8xf32> -> vector<8x8xf32>
    %cst_231 = arith.constant 0.176776692 : f32
    %546 = vector.broadcast %cst_231 : f32 to vector<8x8xf32>
    %547 = arith.mulf %545, %546 : vector<8x8xf32>
    %548 = arith.addf %547, %503 : vector<8x8xf32>
    %cst_232 = arith.constant dense<0xFF800000> : vector<8xf32>
    %549 = vector.multi_reduction <maximumf>, %548, %cst_232 [1] : vector<8x8xf32> to vector<8xf32>
    %550 = vector.shape_cast %549 : vector<8xf32> to vector<8x1xf32>
    %551 = vector.broadcast %550 : vector<8x1xf32> to vector<8x8xf32>
    %552 = arith.subf %548, %551 : vector<8x8xf32>
    %553 = math.exp %552 : vector<8x8xf32>
    %cst_233 = arith.constant dense<0.000000e+00> : vector<8xf32>
    %554 = vector.multi_reduction <add>, %553, %cst_233 [1] : vector<8x8xf32> to vector<8xf32>
    %555 = vector.shape_cast %554 : vector<8xf32> to vector<8x1xf32>
    %556 = tpu.reciprocal %555 {approx = true} : vector<8x1xf32> -> vector<8x1xf32>
    %557 = vector.broadcast %556 : vector<8x1xf32> to vector<8x8xf32>
    %558 = arith.mulf %553, %557 : vector<8x8xf32>
    %559 = vector.extract_strided_slice %496 {offsets = [0, 64], sizes = [8, 32], strides = [1, 1]} : vector<8x128xf32> to vector<8x32xf32>
    %cst_234 = arith.constant dense<0.000000e+00> : vector<8x32xf32>
    %560 = tpu.matmul %558, %559, %cst_234 {dimension_numbers = #tpu.dot_dimension_numbers<[1], [0], [0], [1], [0, 0, 1, 1], [], []>} : vector<8x8xf32>, vector<8x32xf32>, vector<8x32xf32> -> vector<8x32xf32>
    %561 = arith.addf %542, %560 : vector<8x32xf32>
    %562 = vector.extract_strided_slice %494 {offsets = [0, 24], sizes = [8, 8], strides = [1, 1]} : vector<8x32xf32> to vector<8x8xf32>
    %563 = vector.extract_strided_slice %495 {offsets = [0, 24], sizes = [8, 8], strides = [1, 1]} : vector<8x32xf32> to vector<8x8xf32>
    %cst_235 = arith.constant dense<0.000000e+00> : vector<8x8xf32>
    %564 = tpu.matmul %562, %563, %cst_235 {dimension_numbers = #tpu.dot_dimension_numbers<[1], [1], [0], [0], [0, 0, 1, 0], [], []>} : vector<8x8xf32>, vector<8x8xf32>, vector<8x8xf32> -> vector<8x8xf32>
    %cst_236 = arith.constant 0.176776692 : f32
    %565 = vector.broadcast %cst_236 : f32 to vector<8x8xf32>
    %566 = arith.mulf %564, %565 : vector<8x8xf32>
    %567 = arith.addf %566, %503 : vector<8x8xf32>
    %cst_237 = arith.constant dense<0xFF800000> : vector<8xf32>
    %568 = vector.multi_reduction <maximumf>, %567, %cst_237 [1] : vector<8x8xf32> to vector<8xf32>
    %569 = vector.shape_cast %568 : vector<8xf32> to vector<8x1xf32>
    %570 = vector.broadcast %569 : vector<8x1xf32> to vector<8x8xf32>
    %571 = arith.subf %567, %570 : vector<8x8xf32>
    %572 = math.exp %571 : vector<8x8xf32>
    %cst_238 = arith.constant dense<0.000000e+00> : vector<8xf32>
    %573 = vector.multi_reduction <add>, %572, %cst_238 [1] : vector<8x8xf32> to vector<8xf32>
    %574 = vector.shape_cast %573 : vector<8xf32> to vector<8x1xf32>
    %575 = tpu.reciprocal %574 {approx = true} : vector<8x1xf32> -> vector<8x1xf32>
    %576 = vector.broadcast %575 : vector<8x1xf32> to vector<8x8xf32>
    %577 = arith.mulf %572, %576 : vector<8x8xf32>
    %578 = vector.extract_strided_slice %496 {offsets = [0, 96], sizes = [8, 32], strides = [1, 1]} : vector<8x128xf32> to vector<8x32xf32>
    %cst_239 = arith.constant dense<0.000000e+00> : vector<8x32xf32>
    %579 = tpu.matmul %577, %578, %cst_239 {dimension_numbers = #tpu.dot_dimension_numbers<[1], [0], [0], [1], [0, 0, 1, 1], [], []>} : vector<8x8xf32>, vector<8x32xf32>, vector<8x32xf32> -> vector<8x32xf32>
    %580 = arith.addf %561, %579 : vector<8x32xf32>
    %581 = vector.broadcast %490 : vector<1x32xf32> to vector<8x32xf32>
    %582 = arith.addf %580, %581 : vector<8x32xf32>
    %c0_240 = arith.constant 0 : index
    %c0_241 = arith.constant 0 : index
    %583 = vector.load %arg25[%c0_240, %c0_241] : memref<16x32xf32, #tpu.memory_space<vmem>>, vector<8x32xf32>
    tpu.vector_store %arg25[%c0_240, %c0_241], %582 {strides = array<i32>} : memref<16x32xf32, #tpu.memory_space<vmem>>, vector<8x32xf32>,
    %584 = vector.extract_strided_slice %491 {offsets = [8, 0], sizes = [8, 32], strides = [1, 1]} : vector<16x32xf32> to vector<8x32xf32>
    %585 = vector.extract_strided_slice %492 {offsets = [8, 0], sizes = [8, 32], strides = [1, 1]} : vector<16x32xf32> to vector<8x32xf32>
    %586 = vector.extract_strided_slice %493 {offsets = [8, 0], sizes = [8, 128], strides = [1, 1]} : vector<16x128xf32> to vector<8x128xf32>
    %c1_242 = arith.constant 1 : index
    %c0_243 = arith.constant 0 : index
    %c0_244 = arith.constant 0 : index
    %587 = vector.load %arg2[%c1_242, %c0_243, %c0_244] : memref<2x8x8xf32, #tpu.memory_space<vmem>>, vector<1x8x8xf32>
    %588 = vector.shape_cast %587 : vector<1x8x8xf32> to vector<8x8xf32>
    %cst_245 = arith.constant 0.000000e+00 : f32
    %589 = vector.broadcast %cst_245 : f32 to vector<8x8xf32>
    %590 = arith.cmpf oeq, %588, %589 : vector<8x8xf32>
    %cst_246 = arith.constant -1.000000e+20 : f32
    %cst_247 = arith.constant 0.000000e+00 : f32
    %591 = vector.broadcast %cst_246 : f32 to vector<8x8xf32>
    %592 = vector.broadcast %cst_247 : f32 to vector<8x8xf32>
    %593 = arith.select %590, %591, %592 : vector<8x8xi1>, vector<8x8xf32>
    %cst_248 = arith.constant 0.000000e+00 : f32
    %594 = vector.broadcast %cst_248 : f32 to vector<8x32xf32>
    %595 = vector.extract_strided_slice %584 {offsets = [0, 0], sizes = [8, 8], strides = [1, 1]} : vector<8x32xf32> to vector<8x8xf32>
    %596 = vector.extract_strided_slice %585 {offsets = [0, 0], sizes = [8, 8], strides = [1, 1]} : vector<8x32xf32> to vector<8x8xf32>
    %cst_249 = arith.constant dense<0.000000e+00> : vector<8x8xf32>
    %597 = tpu.matmul %595, %596, %cst_249 {dimension_numbers = #tpu.dot_dimension_numbers<[1], [1], [0], [0], [0, 0, 1, 0], [], []>} : vector<8x8xf32>, vector<8x8xf32>, vector<8x8xf32> -> vector<8x8xf32>
    %cst_250 = arith.constant 0.176776692 : f32
    %598 = vector.broadcast %cst_250 : f32 to vector<8x8xf32>
    %599 = arith.mulf %597, %598 : vector<8x8xf32>
    %600 = arith.addf %599, %593 : vector<8x8xf32>
    %cst_251 = arith.constant dense<0xFF800000> : vector<8xf32>
    %601 = vector.multi_reduction <maximumf>, %600, %cst_251 [1] : vector<8x8xf32> to vector<8xf32>
    %602 = vector.shape_cast %601 : vector<8xf32> to vector<8x1xf32>
    %603 = vector.broadcast %602 : vector<8x1xf32> to vector<8x8xf32>
    %604 = arith.subf %600, %603 : vector<8x8xf32>
    %605 = math.exp %604 : vector<8x8xf32>
    %cst_252 = arith.constant dense<0.000000e+00> : vector<8xf32>
    %606 = vector.multi_reduction <add>, %605, %cst_252 [1] : vector<8x8xf32> to vector<8xf32>
    %607 = vector.shape_cast %606 : vector<8xf32> to vector<8x1xf32>
    %608 = tpu.reciprocal %607 {approx = true} : vector<8x1xf32> -> vector<8x1xf32>
    %609 = vector.broadcast %608 : vector<8x1xf32> to vector<8x8xf32>
    %610 = arith.mulf %605, %609 : vector<8x8xf32>
    %611 = vector.extract_strided_slice %586 {offsets = [0, 0], sizes = [8, 32], strides = [1, 1]} : vector<8x128xf32> to vector<8x32xf32>
    %cst_253 = arith.constant dense<0.000000e+00> : vector<8x32xf32>
    %612 = tpu.matmul %610, %611, %cst_253 {dimension_numbers = #tpu.dot_dimension_numbers<[1], [0], [0], [1], [0, 0, 1, 1], [], []>} : vector<8x8xf32>, vector<8x32xf32>, vector<8x32xf32> -> vector<8x32xf32>
    %613 = arith.addf %594, %612 : vector<8x32xf32>
    %614 = vector.extract_strided_slice %584 {offsets = [0, 8], sizes = [8, 8], strides = [1, 1]} : vector<8x32xf32> to vector<8x8xf32>
    %615 = vector.extract_strided_slice %585 {offsets = [0, 8], sizes = [8, 8], strides = [1, 1]} : vector<8x32xf32> to vector<8x8xf32>
    %cst_254 = arith.constant dense<0.000000e+00> : vector<8x8xf32>
    %616 = tpu.matmul %614, %615, %cst_254 {dimension_numbers = #tpu.dot_dimension_numbers<[1], [1], [0], [0], [0, 0, 1, 0], [], []>} : vector<8x8xf32>, vector<8x8xf32>, vector<8x8xf32> -> vector<8x8xf32>
    %cst_255 = arith.constant 0.176776692 : f32
    %617 = vector.broadcast %cst_255 : f32 to vector<8x8xf32>
    %618 = arith.mulf %616, %617 : vector<8x8xf32>
    %619 = arith.addf %618, %593 : vector<8x8xf32>
    %cst_256 = arith.constant dense<0xFF800000> : vector<8xf32>
    %620 = vector.multi_reduction <maximumf>, %619, %cst_256 [1] : vector<8x8xf32> to vector<8xf32>
    %621 = vector.shape_cast %620 : vector<8xf32> to vector<8x1xf32>
    %622 = vector.broadcast %621 : vector<8x1xf32> to vector<8x8xf32>
    %623 = arith.subf %619, %622 : vector<8x8xf32>
    %624 = math.exp %623 : vector<8x8xf32>
    %cst_257 = arith.constant dense<0.000000e+00> : vector<8xf32>
    %625 = vector.multi_reduction <add>, %624, %cst_257 [1] : vector<8x8xf32> to vector<8xf32>
    %626 = vector.shape_cast %625 : vector<8xf32> to vector<8x1xf32>
    %627 = tpu.reciprocal %626 {approx = true} : vector<8x1xf32> -> vector<8x1xf32>
    %628 = vector.broadcast %627 : vector<8x1xf32> to vector<8x8xf32>
    %629 = arith.mulf %624, %628 : vector<8x8xf32>
    %630 = vector.extract_strided_slice %586 {offsets = [0, 32], sizes = [8, 32], strides = [1, 1]} : vector<8x128xf32> to vector<8x32xf32>
    %cst_258 = arith.constant dense<0.000000e+00> : vector<8x32xf32>
    %631 = tpu.matmul %629, %630, %cst_258 {dimension_numbers = #tpu.dot_dimension_numbers<[1], [0], [0], [1], [0, 0, 1, 1], [], []>} : vector<8x8xf32>, vector<8x32xf32>, vector<8x32xf32> -> vector<8x32xf32>
    %632 = arith.addf %613, %631 : vector<8x32xf32>
    %633 = vector.extract_strided_slice %584 {offsets = [0, 16], sizes = [8, 8], strides = [1, 1]} : vector<8x32xf32> to vector<8x8xf32>
    %634 = vector.extract_strided_slice %585 {offsets = [0, 16], sizes = [8, 8], strides = [1, 1]} : vector<8x32xf32> to vector<8x8xf32>
    %cst_259 = arith.constant dense<0.000000e+00> : vector<8x8xf32>
    %635 = tpu.matmul %633, %634, %cst_259 {dimension_numbers = #tpu.dot_dimension_numbers<[1], [1], [0], [0], [0, 0, 1, 0], [], []>} : vector<8x8xf32>, vector<8x8xf32>, vector<8x8xf32> -> vector<8x8xf32>
    %cst_260 = arith.constant 0.176776692 : f32
    %636 = vector.broadcast %cst_260 : f32 to vector<8x8xf32>
    %637 = arith.mulf %635, %636 : vector<8x8xf32>
    %638 = arith.addf %637, %593 : vector<8x8xf32>
    %cst_261 = arith.constant dense<0xFF800000> : vector<8xf32>
    %639 = vector.multi_reduction <maximumf>, %638, %cst_261 [1] : vector<8x8xf32> to vector<8xf32>
    %640 = vector.shape_cast %639 : vector<8xf32> to vector<8x1xf32>
    %641 = vector.broadcast %640 : vector<8x1xf32> to vector<8x8xf32>
    %642 = arith.subf %638, %641 : vector<8x8xf32>
    %643 = math.exp %642 : vector<8x8xf32>
    %cst_262 = arith.constant dense<0.000000e+00> : vector<8xf32>
    %644 = vector.multi_reduction <add>, %643, %cst_262 [1] : vector<8x8xf32> to vector<8xf32>
    %645 = vector.shape_cast %644 : vector<8xf32> to vector<8x1xf32>
    %646 = tpu.reciprocal %645 {approx = true} : vector<8x1xf32> -> vector<8x1xf32>
    %647 = vector.broadcast %646 : vector<8x1xf32> to vector<8x8xf32>
    %648 = arith.mulf %643, %647 : vector<8x8xf32>
    %649 = vector.extract_strided_slice %586 {offsets = [0, 64], sizes = [8, 32], strides = [1, 1]} : vector<8x128xf32> to vector<8x32xf32>
    %cst_263 = arith.constant dense<0.000000e+00> : vector<8x32xf32>
    %650 = tpu.matmul %648, %649, %cst_263 {dimension_numbers = #tpu.dot_dimension_numbers<[1], [0], [0], [1], [0, 0, 1, 1], [], []>} : vector<8x8xf32>, vector<8x32xf32>, vector<8x32xf32> -> vector<8x32xf32>
    %651 = arith.addf %632, %650 : vector<8x32xf32>
    %652 = vector.extract_strided_slice %584 {offsets = [0, 24], sizes = [8, 8], strides = [1, 1]} : vector<8x32xf32> to vector<8x8xf32>
    %653 = vector.extract_strided_slice %585 {offsets = [0, 24], sizes = [8, 8], strides = [1, 1]} : vector<8x32xf32> to vector<8x8xf32>
    %cst_264 = arith.constant dense<0.000000e+00> : vector<8x8xf32>
    %654 = tpu.matmul %652, %653, %cst_264 {dimension_numbers = #tpu.dot_dimension_numbers<[1], [1], [0], [0], [0, 0, 1, 0], [], []>} : vector<8x8xf32>, vector<8x8xf32>, vector<8x8xf32> -> vector<8x8xf32>
    %cst_265 = arith.constant 0.176776692 : f32
    %655 = vector.broadcast %cst_265 : f32 to vector<8x8xf32>
    %656 = arith.mulf %654, %655 : vector<8x8xf32>
    %657 = arith.addf %656, %593 : vector<8x8xf32>
    %cst_266 = arith.constant dense<0xFF800000> : vector<8xf32>
    %658 = vector.multi_reduction <maximumf>, %657, %cst_266 [1] : vector<8x8xf32> to vector<8xf32>
    %659 = vector.shape_cast %658 : vector<8xf32> to vector<8x1xf32>
    %660 = vector.broadcast %659 : vector<8x1xf32> to vector<8x8xf32>
    %661 = arith.subf %657, %660 : vector<8x8xf32>
    %662 = math.exp %661 : vector<8x8xf32>
    %cst_267 = arith.constant dense<0.000000e+00> : vector<8xf32>
    %663 = vector.multi_reduction <add>, %662, %cst_267 [1] : vector<8x8xf32> to vector<8xf32>
    %664 = vector.shape_cast %663 : vector<8xf32> to vector<8x1xf32>
    %665 = tpu.reciprocal %664 {approx = true} : vector<8x1xf32> -> vector<8x1xf32>
    %666 = vector.broadcast %665 : vector<8x1xf32> to vector<8x8xf32>
    %667 = arith.mulf %662, %666 : vector<8x8xf32>
    %668 = vector.extract_strided_slice %586 {offsets = [0, 96], sizes = [8, 32], strides = [1, 1]} : vector<8x128xf32> to vector<8x32xf32>
    %cst_268 = arith.constant dense<0.000000e+00> : vector<8x32xf32>
    %669 = tpu.matmul %667, %668, %cst_268 {dimension_numbers = #tpu.dot_dimension_numbers<[1], [0], [0], [1], [0, 0, 1, 1], [], []>} : vector<8x8xf32>, vector<8x32xf32>, vector<8x32xf32> -> vector<8x32xf32>
    %670 = arith.addf %651, %669 : vector<8x32xf32>
    %671 = vector.broadcast %490 : vector<1x32xf32> to vector<8x32xf32>
    %672 = arith.addf %670, %671 : vector<8x32xf32>
    %c8_269 = arith.constant 8 : index
    %c0_270 = arith.constant 0 : index
    %673 = vector.load %arg25[%c8_269, %c0_270] : memref<16x32xf32, #tpu.memory_space<vmem>>, vector<8x32xf32>
    tpu.vector_store %arg25[%c8_269, %c0_270], %672 {strides = array<i32>} : memref<16x32xf32, #tpu.memory_space<vmem>>, vector<8x32xf32>,
    %c0_271 = arith.constant 0 : index
    %c0_272 = arith.constant 0 : index
    %674 = vector.load %arg25[%c0_271, %c0_272] : memref<16x32xf32, #tpu.memory_space<vmem>>, vector<16x32xf32>
    %c1_273 = arith.constant 1 : index
    %c0_274 = arith.constant 0 : index
    %c0_275 = arith.constant 0 : index
    %675 = vector.load %arg12[%c1_273, %c0_274, %c0_275] : memref<2x1x32xf32, #tpu.memory_space<vmem>>, vector<1x1x32xf32>
    %676 = vector.shape_cast %675 : vector<1x1x32xf32> to vector<1x32xf32>
    %c1_276 = arith.constant 1 : index
    %c0_277 = arith.constant 0 : index
    %c0_278 = arith.constant 0 : index
    %677 = vector.load %arg13[%c1_276, %c0_277, %c0_278] : memref<2x1x32xf32, #tpu.memory_space<vmem>>, vector<1x1x32xf32>
    %678 = vector.shape_cast %677 : vector<1x1x32xf32> to vector<1x32xf32>
    %679 = arith.addf %674, %482 : vector<16x32xf32>
    %cst_279 = arith.constant dense<0.000000e+00> : vector<16xf32>
    %680 = vector.multi_reduction <add>, %679, %cst_279 [1] : vector<16x32xf32> to vector<16xf32>
    %681 = vector.shape_cast %680 : vector<16xf32> to vector<16x1xf32>
    %cst_280 = arith.constant 3.200000e+01 : f32
    %682 = vector.broadcast %cst_280 : f32 to vector<16x1xf32>
    %683 = arith.divf %681, %682 : vector<16x1xf32>
    %684 = vector.broadcast %683 : vector<16x1xf32> to vector<16x32xf32>
    %685 = arith.subf %679, %684 : vector<16x32xf32>
    %686 = arith.mulf %685, %685 : vector<16x32xf32>
    %cst_281 = arith.constant dense<0.000000e+00> : vector<16xf32>
    %687 = vector.multi_reduction <add>, %686, %cst_281 [1] : vector<16x32xf32> to vector<16xf32>
    %688 = vector.shape_cast %687 : vector<16xf32> to vector<16x1xf32>
    %cst_282 = arith.constant 3.200000e+01 : f32
    %689 = vector.broadcast %cst_282 : f32 to vector<16x1xf32>
    %690 = arith.divf %688, %689 : vector<16x1xf32>
    %691 = vector.broadcast %683 : vector<16x1xf32> to vector<16x32xf32>
    %692 = arith.subf %679, %691 : vector<16x32xf32>
    %cst_283 = arith.constant 9.99999974E-6 : f32
    %693 = vector.broadcast %cst_283 : f32 to vector<16x1xf32>
    %694 = arith.addf %690, %693 : vector<16x1xf32>
    %695 = math.rsqrt %694 : vector<16x1xf32>
    %696 = vector.broadcast %695 : vector<16x1xf32> to vector<16x32xf32>
    %697 = arith.mulf %692, %696 : vector<16x32xf32>
    %698 = vector.broadcast %676 : vector<1x32xf32> to vector<16x32xf32>
    %699 = arith.mulf %697, %698 : vector<16x32xf32>
    %700 = vector.broadcast %678 : vector<1x32xf32> to vector<16x32xf32>
    %701 = arith.addf %699, %700 : vector<16x32xf32>
    %c1_284 = arith.constant 1 : index
    %c0_285 = arith.constant 0 : index
    %c0_286 = arith.constant 0 : index
    %702 = vector.load %arg8[%c1_284, %c0_285, %c0_286] : memref<2x32x32xf32, #tpu.memory_space<vmem>>, vector<1x32x32xf32>
    %703 = vector.shape_cast %702 : vector<1x32x32xf32> to vector<32x32xf32>
    %c1_287 = arith.constant 1 : index
    %c0_288 = arith.constant 0 : index
    %c0_289 = arith.constant 0 : index
    %704 = vector.load %arg9[%c1_287, %c0_288, %c0_289] : memref<2x32x32xf32, #tpu.memory_space<vmem>>, vector<1x32x32xf32>
    %705 = vector.shape_cast %704 : vector<1x32x32xf32> to vector<32x32xf32>
    %c1_290 = arith.constant 1 : index
    %c0_291 = arith.constant 0 : index
    %c0_292 = arith.constant 0 : index
    %706 = vector.load %arg10[%c1_290, %c0_291, %c0_292] : memref<2x32x128xf32, #tpu.memory_space<vmem>>, vector<1x32x128xf32>
    %707 = vector.shape_cast %706 : vector<1x32x128xf32> to vector<32x128xf32>
    %c1_293 = arith.constant 1 : index
    %c0_294 = arith.constant 0 : index
    %c0_295 = arith.constant 0 : index
    %708 = vector.load %arg11[%c1_293, %c0_294, %c0_295] : memref<2x1x32xf32, #tpu.memory_space<vmem>>, vector<1x1x32xf32>
    %709 = vector.shape_cast %708 : vector<1x1x32xf32> to vector<1x32xf32>
    %cst_296 = arith.constant dense<0.000000e+00> : vector<16x32xf32>
    %710 = tpu.matmul %701, %703, %cst_296 {dimension_numbers = #tpu.dot_dimension_numbers<[1], [0], [0], [1], [0, 0, 1, 1], [], []>} : vector<16x32xf32>, vector<32x32xf32>, vector<16x32xf32> -> vector<16x32xf32>
    %cst_297 = arith.constant dense<0.000000e+00> : vector<32x32xf32>
    %711 = tpu.matmul %1, %705, %cst_297 {dimension_numbers = #tpu.dot_dimension_numbers<[1], [0], [0], [1], [0, 0, 1, 1], [], []>} : vector<32x32xf32>, vector<32x32xf32>, vector<32x32xf32> -> vector<32x32xf32>
    %cst_298 = arith.constant dense<0.000000e+00> : vector<32x128xf32>
    %712 = tpu.matmul %1, %707, %cst_298 {dimension_numbers = #tpu.dot_dimension_numbers<[1], [0], [0], [1], [0, 0, 1, 1], [], []>} : vector<32x32xf32>, vector<32x128xf32>, vector<32x128xf32> -> vector<32x128xf32>
    %713 = vector.extract_strided_slice %710 {offsets = [0, 0], sizes = [8, 32], strides = [1, 1]} : vector<16x32xf32> to vector<8x32xf32>
    %714 = vector.extract_strided_slice %711 {offsets = [0, 0], sizes = [16, 32], strides = [1, 1]} : vector<32x32xf32> to vector<16x32xf32>
    %715 = vector.extract_strided_slice %712 {offsets = [0, 0], sizes = [16, 128], strides = [1, 1]} : vector<32x128xf32> to vector<16x128xf32>
    %c0_299 = arith.constant 0 : index
    %c0_300 = arith.constant 0 : index
    %c0_301 = arith.constant 0 : index
    %716 = vector.load %arg3[%c0_299, %c0_300, %c0_301] : memref<2x8x16xf32, #tpu.memory_space<vmem>>, vector<1x8x16xf32>
    %717 = vector.shape_cast %716 : vector<1x8x16xf32> to vector<8x16xf32>
    %cst_302 = arith.constant 0.000000e+00 : f32
    %718 = vector.broadcast %cst_302 : f32 to vector<8x16xf32>
    %719 = arith.cmpf oeq, %717, %718 : vector<8x16xf32>
    %cst_303 = arith.constant -1.000000e+20 : f32
    %cst_304 = arith.constant 0.000000e+00 : f32
    %720 = vector.broadcast %cst_303 : f32 to vector<8x16xf32>
    %721 = vector.broadcast %cst_304 : f32 to vector<8x16xf32>
    %722 = arith.select %719, %720, %721 : vector<8x16xi1>, vector<8x16xf32>
    %cst_305 = arith.constant 0.000000e+00 : f32
    %723 = vector.broadcast %cst_305 : f32 to vector<8x32xf32>
    %724 = vector.extract_strided_slice %713 {offsets = [0, 0], sizes = [8, 8], strides = [1, 1]} : vector<8x32xf32> to vector<8x8xf32>
    %725 = vector.extract_strided_slice %714 {offsets = [0, 0], sizes = [16, 8], strides = [1, 1]} : vector<16x32xf32> to vector<16x8xf32>
    %cst_306 = arith.constant dense<0.000000e+00> : vector<8x16xf32>
    %726 = tpu.matmul %724, %725, %cst_306 {dimension_numbers = #tpu.dot_dimension_numbers<[1], [1], [0], [0], [0, 0, 1, 0], [], []>} : vector<8x8xf32>, vector<16x8xf32>, vector<8x16xf32> -> vector<8x16xf32>
    %cst_307 = arith.constant 0.176776692 : f32
    %727 = vector.broadcast %cst_307 : f32 to vector<8x16xf32>
    %728 = arith.mulf %726, %727 : vector<8x16xf32>
    %729 = arith.addf %728, %722 : vector<8x16xf32>
    %cst_308 = arith.constant dense<0xFF800000> : vector<8xf32>
    %730 = vector.multi_reduction <maximumf>, %729, %cst_308 [1] : vector<8x16xf32> to vector<8xf32>
    %731 = vector.shape_cast %730 : vector<8xf32> to vector<8x1xf32>
    %732 = vector.broadcast %731 : vector<8x1xf32> to vector<8x16xf32>
    %733 = arith.subf %729, %732 : vector<8x16xf32>
    %734 = math.exp %733 : vector<8x16xf32>
    %cst_309 = arith.constant dense<0.000000e+00> : vector<8xf32>
    %735 = vector.multi_reduction <add>, %734, %cst_309 [1] : vector<8x16xf32> to vector<8xf32>
    %736 = vector.shape_cast %735 : vector<8xf32> to vector<8x1xf32>
    %737 = tpu.reciprocal %736 {approx = true} : vector<8x1xf32> -> vector<8x1xf32>
    %738 = vector.broadcast %737 : vector<8x1xf32> to vector<8x16xf32>
    %739 = arith.mulf %734, %738 : vector<8x16xf32>
    %740 = vector.extract_strided_slice %715 {offsets = [0, 0], sizes = [16, 32], strides = [1, 1]} : vector<16x128xf32> to vector<16x32xf32>
    %cst_310 = arith.constant dense<0.000000e+00> : vector<8x32xf32>
    %741 = tpu.matmul %739, %740, %cst_310 {dimension_numbers = #tpu.dot_dimension_numbers<[1], [0], [0], [1], [0, 0, 1, 1], [], []>} : vector<8x16xf32>, vector<16x32xf32>, vector<8x32xf32> -> vector<8x32xf32>
    %742 = arith.addf %723, %741 : vector<8x32xf32>
    %743 = vector.extract_strided_slice %713 {offsets = [0, 8], sizes = [8, 8], strides = [1, 1]} : vector<8x32xf32> to vector<8x8xf32>
    %744 = vector.extract_strided_slice %714 {offsets = [0, 8], sizes = [16, 8], strides = [1, 1]} : vector<16x32xf32> to vector<16x8xf32>
    %cst_311 = arith.constant dense<0.000000e+00> : vector<8x16xf32>
    %745 = tpu.matmul %743, %744, %cst_311 {dimension_numbers = #tpu.dot_dimension_numbers<[1], [1], [0], [0], [0, 0, 1, 0], [], []>} : vector<8x8xf32>, vector<16x8xf32>, vector<8x16xf32> -> vector<8x16xf32>
    %cst_312 = arith.constant 0.176776692 : f32
    %746 = vector.broadcast %cst_312 : f32 to vector<8x16xf32>
    %747 = arith.mulf %745, %746 : vector<8x16xf32>
    %748 = arith.addf %747, %722 : vector<8x16xf32>
    %cst_313 = arith.constant dense<0xFF800000> : vector<8xf32>
    %749 = vector.multi_reduction <maximumf>, %748, %cst_313 [1] : vector<8x16xf32> to vector<8xf32>
    %750 = vector.shape_cast %749 : vector<8xf32> to vector<8x1xf32>
    %751 = vector.broadcast %750 : vector<8x1xf32> to vector<8x16xf32>
    %752 = arith.subf %748, %751 : vector<8x16xf32>
    %753 = math.exp %752 : vector<8x16xf32>
    %cst_314 = arith.constant dense<0.000000e+00> : vector<8xf32>
    %754 = vector.multi_reduction <add>, %753, %cst_314 [1] : vector<8x16xf32> to vector<8xf32>
    %755 = vector.shape_cast %754 : vector<8xf32> to vector<8x1xf32>
    %756 = tpu.reciprocal %755 {approx = true} : vector<8x1xf32> -> vector<8x1xf32>
    %757 = vector.broadcast %756 : vector<8x1xf32> to vector<8x16xf32>
    %758 = arith.mulf %753, %757 : vector<8x16xf32>
    %759 = vector.extract_strided_slice %715 {offsets = [0, 32], sizes = [16, 32], strides = [1, 1]} : vector<16x128xf32> to vector<16x32xf32>
    %cst_315 = arith.constant dense<0.000000e+00> : vector<8x32xf32>
    %760 = tpu.matmul %758, %759, %cst_315 {dimension_numbers = #tpu.dot_dimension_numbers<[1], [0], [0], [1], [0, 0, 1, 1], [], []>} : vector<8x16xf32>, vector<16x32xf32>, vector<8x32xf32> -> vector<8x32xf32>
    %761 = arith.addf %742, %760 : vector<8x32xf32>
    %762 = vector.extract_strided_slice %713 {offsets = [0, 16], sizes = [8, 8], strides = [1, 1]} : vector<8x32xf32> to vector<8x8xf32>
    %763 = vector.extract_strided_slice %714 {offsets = [0, 16], sizes = [16, 8], strides = [1, 1]} : vector<16x32xf32> to vector<16x8xf32>
    %cst_316 = arith.constant dense<0.000000e+00> : vector<8x16xf32>
    %764 = tpu.matmul %762, %763, %cst_316 {dimension_numbers = #tpu.dot_dimension_numbers<[1], [1], [0], [0], [0, 0, 1, 0], [], []>} : vector<8x8xf32>, vector<16x8xf32>, vector<8x16xf32> -> vector<8x16xf32>
    %cst_317 = arith.constant 0.176776692 : f32
    %765 = vector.broadcast %cst_317 : f32 to vector<8x16xf32>
    %766 = arith.mulf %764, %765 : vector<8x16xf32>
    %767 = arith.addf %766, %722 : vector<8x16xf32>
    %cst_318 = arith.constant dense<0xFF800000> : vector<8xf32>
    %768 = vector.multi_reduction <maximumf>, %767, %cst_318 [1] : vector<8x16xf32> to vector<8xf32>
    %769 = vector.shape_cast %768 : vector<8xf32> to vector<8x1xf32>
    %770 = vector.broadcast %769 : vector<8x1xf32> to vector<8x16xf32>
    %771 = arith.subf %767, %770 : vector<8x16xf32>
    %772 = math.exp %771 : vector<8x16xf32>
    %cst_319 = arith.constant dense<0.000000e+00> : vector<8xf32>
    %773 = vector.multi_reduction <add>, %772, %cst_319 [1] : vector<8x16xf32> to vector<8xf32>
    %774 = vector.shape_cast %773 : vector<8xf32> to vector<8x1xf32>
    %775 = tpu.reciprocal %774 {approx = true} : vector<8x1xf32> -> vector<8x1xf32>
    %776 = vector.broadcast %775 : vector<8x1xf32> to vector<8x16xf32>
    %777 = arith.mulf %772, %776 : vector<8x16xf32>
    %778 = vector.extract_strided_slice %715 {offsets = [0, 64], sizes = [16, 32], strides = [1, 1]} : vector<16x128xf32> to vector<16x32xf32>
    %cst_320 = arith.constant dense<0.000000e+00> : vector<8x32xf32>
    %779 = tpu.matmul %777, %778, %cst_320 {dimension_numbers = #tpu.dot_dimension_numbers<[1], [0], [0], [1], [0, 0, 1, 1], [], []>} : vector<8x16xf32>, vector<16x32xf32>, vector<8x32xf32> -> vector<8x32xf32>
    %780 = arith.addf %761, %779 : vector<8x32xf32>
    %781 = vector.extract_strided_slice %713 {offsets = [0, 24], sizes = [8, 8], strides = [1, 1]} : vector<8x32xf32> to vector<8x8xf32>
    %782 = vector.extract_strided_slice %714 {offsets = [0, 24], sizes = [16, 8], strides = [1, 1]} : vector<16x32xf32> to vector<16x8xf32>
    %cst_321 = arith.constant dense<0.000000e+00> : vector<8x16xf32>
    %783 = tpu.matmul %781, %782, %cst_321 {dimension_numbers = #tpu.dot_dimension_numbers<[1], [1], [0], [0], [0, 0, 1, 0], [], []>} : vector<8x8xf32>, vector<16x8xf32>, vector<8x16xf32> -> vector<8x16xf32>
    %cst_322 = arith.constant 0.176776692 : f32
    %784 = vector.broadcast %cst_322 : f32 to vector<8x16xf32>
    %785 = arith.mulf %783, %784 : vector<8x16xf32>
    %786 = arith.addf %785, %722 : vector<8x16xf32>
    %cst_323 = arith.constant dense<0xFF800000> : vector<8xf32>
    %787 = vector.multi_reduction <maximumf>, %786, %cst_323 [1] : vector<8x16xf32> to vector<8xf32>
    %788 = vector.shape_cast %787 : vector<8xf32> to vector<8x1xf32>
    %789 = vector.broadcast %788 : vector<8x1xf32> to vector<8x16xf32>
    %790 = arith.subf %786, %789 : vector<8x16xf32>
    %791 = math.exp %790 : vector<8x16xf32>
    %cst_324 = arith.constant dense<0.000000e+00> : vector<8xf32>
    %792 = vector.multi_reduction <add>, %791, %cst_324 [1] : vector<8x16xf32> to vector<8xf32>
    %793 = vector.shape_cast %792 : vector<8xf32> to vector<8x1xf32>
    %794 = tpu.reciprocal %793 {approx = true} : vector<8x1xf32> -> vector<8x1xf32>
    %795 = vector.broadcast %794 : vector<8x1xf32> to vector<8x16xf32>
    %796 = arith.mulf %791, %795 : vector<8x16xf32>
    %797 = vector.extract_strided_slice %715 {offsets = [0, 96], sizes = [16, 32], strides = [1, 1]} : vector<16x128xf32> to vector<16x32xf32>
    %cst_325 = arith.constant dense<0.000000e+00> : vector<8x32xf32>
    %798 = tpu.matmul %796, %797, %cst_325 {dimension_numbers = #tpu.dot_dimension_numbers<[1], [0], [0], [1], [0, 0, 1, 1], [], []>} : vector<8x16xf32>, vector<16x32xf32>, vector<8x32xf32> -> vector<8x32xf32>
    %799 = arith.addf %780, %798 : vector<8x32xf32>
    %800 = vector.broadcast %709 : vector<1x32xf32> to vector<8x32xf32>
    %801 = arith.addf %799, %800 : vector<8x32xf32>
    %c0_326 = arith.constant 0 : index
    %c0_327 = arith.constant 0 : index
    %802 = vector.load %arg25[%c0_326, %c0_327] : memref<16x32xf32, #tpu.memory_space<vmem>>, vector<8x32xf32>
    tpu.vector_store %arg25[%c0_326, %c0_327], %801 {strides = array<i32>} : memref<16x32xf32, #tpu.memory_space<vmem>>, vector<8x32xf32>,
    %803 = vector.extract_strided_slice %710 {offsets = [8, 0], sizes = [8, 32], strides = [1, 1]} : vector<16x32xf32> to vector<8x32xf32>
    %804 = vector.extract_strided_slice %711 {offsets = [16, 0], sizes = [16, 32], strides = [1, 1]} : vector<32x32xf32> to vector<16x32xf32>
    %805 = vector.extract_strided_slice %712 {offsets = [16, 0], sizes = [16, 128], strides = [1, 1]} : vector<32x128xf32> to vector<16x128xf32>
    %c1_328 = arith.constant 1 : index
    %c0_329 = arith.constant 0 : index
    %c0_330 = arith.constant 0 : index
    %806 = vector.load %arg3[%c1_328, %c0_329, %c0_330] : memref<2x8x16xf32, #tpu.memory_space<vmem>>, vector<1x8x16xf32>
    %807 = vector.shape_cast %806 : vector<1x8x16xf32> to vector<8x16xf32>
    %cst_331 = arith.constant 0.000000e+00 : f32
    %808 = vector.broadcast %cst_331 : f32 to vector<8x16xf32>
    %809 = arith.cmpf oeq, %807, %808 : vector<8x16xf32>
    %cst_332 = arith.constant -1.000000e+20 : f32
    %cst_333 = arith.constant 0.000000e+00 : f32
    %810 = vector.broadcast %cst_332 : f32 to vector<8x16xf32>
    %811 = vector.broadcast %cst_333 : f32 to vector<8x16xf32>
    %812 = arith.select %809, %810, %811 : vector<8x16xi1>, vector<8x16xf32>
    %cst_334 = arith.constant 0.000000e+00 : f32
    %813 = vector.broadcast %cst_334 : f32 to vector<8x32xf32>
    %814 = vector.extract_strided_slice %803 {offsets = [0, 0], sizes = [8, 8], strides = [1, 1]} : vector<8x32xf32> to vector<8x8xf32>
    %815 = vector.extract_strided_slice %804 {offsets = [0, 0], sizes = [16, 8], strides = [1, 1]} : vector<16x32xf32> to vector<16x8xf32>
    %cst_335 = arith.constant dense<0.000000e+00> : vector<8x16xf32>
    %816 = tpu.matmul %814, %815, %cst_335 {dimension_numbers = #tpu.dot_dimension_numbers<[1], [1], [0], [0], [0, 0, 1, 0], [], []>} : vector<8x8xf32>, vector<16x8xf32>, vector<8x16xf32> -> vector<8x16xf32>
    %cst_336 = arith.constant 0.176776692 : f32
    %817 = vector.broadcast %cst_336 : f32 to vector<8x16xf32>
    %818 = arith.mulf %816, %817 : vector<8x16xf32>
    %819 = arith.addf %818, %812 : vector<8x16xf32>
    %cst_337 = arith.constant dense<0xFF800000> : vector<8xf32>
    %820 = vector.multi_reduction <maximumf>, %819, %cst_337 [1] : vector<8x16xf32> to vector<8xf32>
    %821 = vector.shape_cast %820 : vector<8xf32> to vector<8x1xf32>
    %822 = vector.broadcast %821 : vector<8x1xf32> to vector<8x16xf32>
    %823 = arith.subf %819, %822 : vector<8x16xf32>
    %824 = math.exp %823 : vector<8x16xf32>
    %cst_338 = arith.constant dense<0.000000e+00> : vector<8xf32>
    %825 = vector.multi_reduction <add>, %824, %cst_338 [1] : vector<8x16xf32> to vector<8xf32>
    %826 = vector.shape_cast %825 : vector<8xf32> to vector<8x1xf32>
    %827 = tpu.reciprocal %826 {approx = true} : vector<8x1xf32> -> vector<8x1xf32>
    %828 = vector.broadcast %827 : vector<8x1xf32> to vector<8x16xf32>
    %829 = arith.mulf %824, %828 : vector<8x16xf32>
    %830 = vector.extract_strided_slice %805 {offsets = [0, 0], sizes = [16, 32], strides = [1, 1]} : vector<16x128xf32> to vector<16x32xf32>
    %cst_339 = arith.constant dense<0.000000e+00> : vector<8x32xf32>
    %831 = tpu.matmul %829, %830, %cst_339 {dimension_numbers = #tpu.dot_dimension_numbers<[1], [0], [0], [1], [0, 0, 1, 1], [], []>} : vector<8x16xf32>, vector<16x32xf32>, vector<8x32xf32> -> vector<8x32xf32>
    %832 = arith.addf %813, %831 : vector<8x32xf32>
    %833 = vector.extract_strided_slice %803 {offsets = [0, 8], sizes = [8, 8], strides = [1, 1]} : vector<8x32xf32> to vector<8x8xf32>
    %834 = vector.extract_strided_slice %804 {offsets = [0, 8], sizes = [16, 8], strides = [1, 1]} : vector<16x32xf32> to vector<16x8xf32>
    %cst_340 = arith.constant dense<0.000000e+00> : vector<8x16xf32>
    %835 = tpu.matmul %833, %834, %cst_340 {dimension_numbers = #tpu.dot_dimension_numbers<[1], [1], [0], [0], [0, 0, 1, 0], [], []>} : vector<8x8xf32>, vector<16x8xf32>, vector<8x16xf32> -> vector<8x16xf32>
    %cst_341 = arith.constant 0.176776692 : f32
    %836 = vector.broadcast %cst_341 : f32 to vector<8x16xf32>
    %837 = arith.mulf %835, %836 : vector<8x16xf32>
    %838 = arith.addf %837, %812 : vector<8x16xf32>
    %cst_342 = arith.constant dense<0xFF800000> : vector<8xf32>
    %839 = vector.multi_reduction <maximumf>, %838, %cst_342 [1] : vector<8x16xf32> to vector<8xf32>
    %840 = vector.shape_cast %839 : vector<8xf32> to vector<8x1xf32>
    %841 = vector.broadcast %840 : vector<8x1xf32> to vector<8x16xf32>
    %842 = arith.subf %838, %841 : vector<8x16xf32>
    %843 = math.exp %842 : vector<8x16xf32>
    %cst_343 = arith.constant dense<0.000000e+00> : vector<8xf32>
    %844 = vector.multi_reduction <add>, %843, %cst_343 [1] : vector<8x16xf32> to vector<8xf32>
    %845 = vector.shape_cast %844 : vector<8xf32> to vector<8x1xf32>
    %846 = tpu.reciprocal %845 {approx = true} : vector<8x1xf32> -> vector<8x1xf32>
    %847 = vector.broadcast %846 : vector<8x1xf32> to vector<8x16xf32>
    %848 = arith.mulf %843, %847 : vector<8x16xf32>
    %849 = vector.extract_strided_slice %805 {offsets = [0, 32], sizes = [16, 32], strides = [1, 1]} : vector<16x128xf32> to vector<16x32xf32>
    %cst_344 = arith.constant dense<0.000000e+00> : vector<8x32xf32>
    %850 = tpu.matmul %848, %849, %cst_344 {dimension_numbers = #tpu.dot_dimension_numbers<[1], [0], [0], [1], [0, 0, 1, 1], [], []>} : vector<8x16xf32>, vector<16x32xf32>, vector<8x32xf32> -> vector<8x32xf32>
    %851 = arith.addf %832, %850 : vector<8x32xf32>
    %852 = vector.extract_strided_slice %803 {offsets = [0, 16], sizes = [8, 8], strides = [1, 1]} : vector<8x32xf32> to vector<8x8xf32>
    %853 = vector.extract_strided_slice %804 {offsets = [0, 16], sizes = [16, 8], strides = [1, 1]} : vector<16x32xf32> to vector<16x8xf32>
    %cst_345 = arith.constant dense<0.000000e+00> : vector<8x16xf32>
    %854 = tpu.matmul %852, %853, %cst_345 {dimension_numbers = #tpu.dot_dimension_numbers<[1], [1], [0], [0], [0, 0, 1, 0], [], []>} : vector<8x8xf32>, vector<16x8xf32>, vector<8x16xf32> -> vector<8x16xf32>
    %cst_346 = arith.constant 0.176776692 : f32
    %855 = vector.broadcast %cst_346 : f32 to vector<8x16xf32>
    %856 = arith.mulf %854, %855 : vector<8x16xf32>
    %857 = arith.addf %856, %812 : vector<8x16xf32>
    %cst_347 = arith.constant dense<0xFF800000> : vector<8xf32>
    %858 = vector.multi_reduction <maximumf>, %857, %cst_347 [1] : vector<8x16xf32> to vector<8xf32>
    %859 = vector.shape_cast %858 : vector<8xf32> to vector<8x1xf32>
    %860 = vector.broadcast %859 : vector<8x1xf32> to vector<8x16xf32>
    %861 = arith.subf %857, %860 : vector<8x16xf32>
    %862 = math.exp %861 : vector<8x16xf32>
    %cst_348 = arith.constant dense<0.000000e+00> : vector<8xf32>
    %863 = vector.multi_reduction <add>, %862, %cst_348 [1] : vector<8x16xf32> to vector<8xf32>
    %864 = vector.shape_cast %863 : vector<8xf32> to vector<8x1xf32>
    %865 = tpu.reciprocal %864 {approx = true} : vector<8x1xf32> -> vector<8x1xf32>
    %866 = vector.broadcast %865 : vector<8x1xf32> to vector<8x16xf32>
    %867 = arith.mulf %862, %866 : vector<8x16xf32>
    %868 = vector.extract_strided_slice %805 {offsets = [0, 64], sizes = [16, 32], strides = [1, 1]} : vector<16x128xf32> to vector<16x32xf32>
    %cst_349 = arith.constant dense<0.000000e+00> : vector<8x32xf32>
    %869 = tpu.matmul %867, %868, %cst_349 {dimension_numbers = #tpu.dot_dimension_numbers<[1], [0], [0], [1], [0, 0, 1, 1], [], []>} : vector<8x16xf32>, vector<16x32xf32>, vector<8x32xf32> -> vector<8x32xf32>
    %870 = arith.addf %851, %869 : vector<8x32xf32>
    %871 = vector.extract_strided_slice %803 {offsets = [0, 24], sizes = [8, 8], strides = [1, 1]} : vector<8x32xf32> to vector<8x8xf32>
    %872 = vector.extract_strided_slice %804 {offsets = [0, 24], sizes = [16, 8], strides = [1, 1]} : vector<16x32xf32> to vector<16x8xf32>
    %cst_350 = arith.constant dense<0.000000e+00> : vector<8x16xf32>
    %873 = tpu.matmul %871, %872, %cst_350 {dimension_numbers = #tpu.dot_dimension_numbers<[1], [1], [0], [0], [0, 0, 1, 0], [], []>} : vector<8x8xf32>, vector<16x8xf32>, vector<8x16xf32> -> vector<8x16xf32>
    %cst_351 = arith.constant 0.176776692 : f32
    %874 = vector.broadcast %cst_351 : f32 to vector<8x16xf32>
    %875 = arith.mulf %873, %874 : vector<8x16xf32>
    %876 = arith.addf %875, %812 : vector<8x16xf32>
    %cst_352 = arith.constant dense<0xFF800000> : vector<8xf32>
    %877 = vector.multi_reduction <maximumf>, %876, %cst_352 [1] : vector<8x16xf32> to vector<8xf32>
    %878 = vector.shape_cast %877 : vector<8xf32> to vector<8x1xf32>
    %879 = vector.broadcast %878 : vector<8x1xf32> to vector<8x16xf32>
    %880 = arith.subf %876, %879 : vector<8x16xf32>
    %881 = math.exp %880 : vector<8x16xf32>
    %cst_353 = arith.constant dense<0.000000e+00> : vector<8xf32>
    %882 = vector.multi_reduction <add>, %881, %cst_353 [1] : vector<8x16xf32> to vector<8xf32>
    %883 = vector.shape_cast %882 : vector<8xf32> to vector<8x1xf32>
    %884 = tpu.reciprocal %883 {approx = true} : vector<8x1xf32> -> vector<8x1xf32>
    %885 = vector.broadcast %884 : vector<8x1xf32> to vector<8x16xf32>
    %886 = arith.mulf %881, %885 : vector<8x16xf32>
    %887 = vector.extract_strided_slice %805 {offsets = [0, 96], sizes = [16, 32], strides = [1, 1]} : vector<16x128xf32> to vector<16x32xf32>
    %cst_354 = arith.constant dense<0.000000e+00> : vector<8x32xf32>
    %888 = tpu.matmul %886, %887, %cst_354 {dimension_numbers = #tpu.dot_dimension_numbers<[1], [0], [0], [1], [0, 0, 1, 1], [], []>} : vector<8x16xf32>, vector<16x32xf32>, vector<8x32xf32> -> vector<8x32xf32>
    %889 = arith.addf %870, %888 : vector<8x32xf32>
    %890 = vector.broadcast %709 : vector<1x32xf32> to vector<8x32xf32>
    %891 = arith.addf %889, %890 : vector<8x32xf32>
    %c8_355 = arith.constant 8 : index
    %c0_356 = arith.constant 0 : index
    %892 = vector.load %arg25[%c8_355, %c0_356] : memref<16x32xf32, #tpu.memory_space<vmem>>, vector<8x32xf32>
    tpu.vector_store %arg25[%c8_355, %c0_356], %891 {strides = array<i32>} : memref<16x32xf32, #tpu.memory_space<vmem>>, vector<8x32xf32>,
    %c0_357 = arith.constant 0 : index
    %c0_358 = arith.constant 0 : index
    %893 = vector.load %arg25[%c0_357, %c0_358] : memref<16x32xf32, #tpu.memory_space<vmem>>, vector<16x32xf32>
    %c1_359 = arith.constant 1 : index
    %c0_360 = arith.constant 0 : index
    %c0_361 = arith.constant 0 : index
    %894 = vector.load %arg14[%c1_359, %c0_360, %c0_361] : memref<2x1x32xf32, #tpu.memory_space<vmem>>, vector<1x1x32xf32>
    %895 = vector.shape_cast %894 : vector<1x1x32xf32> to vector<1x32xf32>
    %c1_362 = arith.constant 1 : index
    %c0_363 = arith.constant 0 : index
    %c0_364 = arith.constant 0 : index
    %896 = vector.load %arg15[%c1_362, %c0_363, %c0_364] : memref<2x1x32xf32, #tpu.memory_space<vmem>>, vector<1x1x32xf32>
    %897 = vector.shape_cast %896 : vector<1x1x32xf32> to vector<1x32xf32>
    %898 = arith.addf %893, %701 : vector<16x32xf32>
    %cst_365 = arith.constant dense<0.000000e+00> : vector<16xf32>
    %899 = vector.multi_reduction <add>, %898, %cst_365 [1] : vector<16x32xf32> to vector<16xf32>
    %900 = vector.shape_cast %899 : vector<16xf32> to vector<16x1xf32>
    %cst_366 = arith.constant 3.200000e+01 : f32
    %901 = vector.broadcast %cst_366 : f32 to vector<16x1xf32>
    %902 = arith.divf %900, %901 : vector<16x1xf32>
    %903 = vector.broadcast %902 : vector<16x1xf32> to vector<16x32xf32>
    %904 = arith.subf %898, %903 : vector<16x32xf32>
    %905 = arith.mulf %904, %904 : vector<16x32xf32>
    %cst_367 = arith.constant dense<0.000000e+00> : vector<16xf32>
    %906 = vector.multi_reduction <add>, %905, %cst_367 [1] : vector<16x32xf32> to vector<16xf32>
    %907 = vector.shape_cast %906 : vector<16xf32> to vector<16x1xf32>
    %cst_368 = arith.constant 3.200000e+01 : f32
    %908 = vector.broadcast %cst_368 : f32 to vector<16x1xf32>
    %909 = arith.divf %907, %908 : vector<16x1xf32>
    %910 = vector.broadcast %902 : vector<16x1xf32> to vector<16x32xf32>
    %911 = arith.subf %898, %910 : vector<16x32xf32>
    %cst_369 = arith.constant 9.99999974E-6 : f32
    %912 = vector.broadcast %cst_369 : f32 to vector<16x1xf32>
    %913 = arith.addf %909, %912 : vector<16x1xf32>
    %914 = math.rsqrt %913 : vector<16x1xf32>
    %915 = vector.broadcast %914 : vector<16x1xf32> to vector<16x32xf32>
    %916 = arith.mulf %911, %915 : vector<16x32xf32>
    %917 = vector.broadcast %895 : vector<1x32xf32> to vector<16x32xf32>
    %918 = arith.mulf %916, %917 : vector<16x32xf32>
    %919 = vector.broadcast %897 : vector<1x32xf32> to vector<16x32xf32>
    %920 = arith.addf %918, %919 : vector<16x32xf32>
    %c1_370 = arith.constant 1 : index
    %c0_371 = arith.constant 0 : index
    %c0_372 = arith.constant 0 : index
    %921 = vector.load %arg18[%c1_370, %c0_371, %c0_372] : memref<2x32x128xf32, #tpu.memory_space<vmem>>, vector<1x32x128xf32>
    %922 = vector.shape_cast %921 : vector<1x32x128xf32> to vector<32x128xf32>
    %cst_373 = arith.constant dense<0.000000e+00> : vector<16x128xf32>
    %923 = tpu.matmul %920, %922, %cst_373 {dimension_numbers = #tpu.dot_dimension_numbers<[1], [0], [0], [1], [0, 0, 1, 1], [], []>} : vector<16x32xf32>, vector<32x128xf32>, vector<16x128xf32> -> vector<16x128xf32>
    %c1_374 = arith.constant 1 : index
    %c0_375 = arith.constant 0 : index
    %c0_376 = arith.constant 0 : index
    %924 = vector.load %arg19[%c1_374, %c0_375, %c0_376] : memref<2x1x128xf32, #tpu.memory_space<vmem>>, vector<1x1x128xf32>
    %925 = vector.shape_cast %924 : vector<1x1x128xf32> to vector<1x128xf32>
    %926 = vector.broadcast %925 : vector<1x128xf32> to vector<16x128xf32>
    %927 = arith.addf %923, %926 : vector<16x128xf32>
    %cst_377 = arith.constant 0.000000e+00 : f32
    %928 = vector.broadcast %cst_377 : f32 to vector<16x128xf32>
    %929 = arith.maximumf %927, %928 : vector<16x128xf32>
    %c1_378 = arith.constant 1 : index
    %c0_379 = arith.constant 0 : index
    %c0_380 = arith.constant 0 : index
    %930 = vector.load %arg20[%c1_378, %c0_379, %c0_380] : memref<2x128x32xf32, #tpu.memory_space<vmem>>, vector<1x128x32xf32>
    %931 = vector.shape_cast %930 : vector<1x128x32xf32> to vector<128x32xf32>
    %cst_381 = arith.constant dense<0.000000e+00> : vector<16x32xf32>
    %932 = tpu.matmul %929, %931, %cst_381 {dimension_numbers = #tpu.dot_dimension_numbers<[1], [0], [0], [1], [0, 0, 1, 1], [], []>} : vector<16x128xf32>, vector<128x32xf32>, vector<16x32xf32> -> vector<16x32xf32>
    %c1_382 = arith.constant 1 : index
    %c0_383 = arith.constant 0 : index
    %c0_384 = arith.constant 0 : index
    %933 = vector.load %arg21[%c1_382, %c0_383, %c0_384] : memref<2x1x32xf32, #tpu.memory_space<vmem>>, vector<1x1x32xf32>
    %934 = vector.shape_cast %933 : vector<1x1x32xf32> to vector<1x32xf32>
    %935 = vector.broadcast %934 : vector<1x32xf32> to vector<16x32xf32>
    %936 = arith.addf %932, %935 : vector<16x32xf32>
    %c1_385 = arith.constant 1 : index
    %c0_386 = arith.constant 0 : index
    %c0_387 = arith.constant 0 : index
    %937 = vector.load %arg16[%c1_385, %c0_386, %c0_387] : memref<2x1x32xf32, #tpu.memory_space<vmem>>, vector<1x1x32xf32>
    %938 = vector.shape_cast %937 : vector<1x1x32xf32> to vector<1x32xf32>
    %c1_388 = arith.constant 1 : index
    %c0_389 = arith.constant 0 : index
    %c0_390 = arith.constant 0 : index
    %939 = vector.load %arg17[%c1_388, %c0_389, %c0_390] : memref<2x1x32xf32, #tpu.memory_space<vmem>>, vector<1x1x32xf32>
    %940 = vector.shape_cast %939 : vector<1x1x32xf32> to vector<1x32xf32>
    %941 = arith.addf %936, %920 : vector<16x32xf32>
    %cst_391 = arith.constant dense<0.000000e+00> : vector<16xf32>
    %942 = vector.multi_reduction <add>, %941, %cst_391 [1] : vector<16x32xf32> to vector<16xf32>
    %943 = vector.shape_cast %942 : vector<16xf32> to vector<16x1xf32>
    %cst_392 = arith.constant 3.200000e+01 : f32
    %944 = vector.broadcast %cst_392 : f32 to vector<16x1xf32>
    %945 = arith.divf %943, %944 : vector<16x1xf32>
    %946 = vector.broadcast %945 : vector<16x1xf32> to vector<16x32xf32>
    %947 = arith.subf %941, %946 : vector<16x32xf32>
    %948 = arith.mulf %947, %947 : vector<16x32xf32>
    %cst_393 = arith.constant dense<0.000000e+00> : vector<16xf32>
    %949 = vector.multi_reduction <add>, %948, %cst_393 [1] : vector<16x32xf32> to vector<16xf32>
    %950 = vector.shape_cast %949 : vector<16xf32> to vector<16x1xf32>
    %cst_394 = arith.constant 3.200000e+01 : f32
    %951 = vector.broadcast %cst_394 : f32 to vector<16x1xf32>
    %952 = arith.divf %950, %951 : vector<16x1xf32>
    %953 = vector.broadcast %945 : vector<16x1xf32> to vector<16x32xf32>
    %954 = arith.subf %941, %953 : vector<16x32xf32>
    %cst_395 = arith.constant 9.99999974E-6 : f32
    %955 = vector.broadcast %cst_395 : f32 to vector<16x1xf32>
    %956 = arith.addf %952, %955 : vector<16x1xf32>
    %957 = math.rsqrt %956 : vector<16x1xf32>
    %958 = vector.broadcast %957 : vector<16x1xf32> to vector<16x32xf32>
    %959 = arith.mulf %954, %958 : vector<16x32xf32>
    %960 = vector.broadcast %938 : vector<1x32xf32> to vector<16x32xf32>
    %961 = arith.mulf %959, %960 : vector<16x32xf32>
    %962 = vector.broadcast %940 : vector<1x32xf32> to vector<16x32xf32>
    %963 = arith.addf %961, %962 : vector<16x32xf32>
    %c0_396 = arith.constant 0 : index
    %c0_397 = arith.constant 0 : index
    %964 = vector.load %arg22[%c0_396, %c0_397] : memref<32x24xf32, #tpu.memory_space<vmem>>, vector<32x24xf32>
    %cst_398 = arith.constant dense<0.000000e+00> : vector<16x24xf32>
    %965 = tpu.matmul %963, %964, %cst_398 {dimension_numbers = #tpu.dot_dimension_numbers<[1], [0], [0], [1], [0, 0, 1, 1], [], []>} : vector<16x32xf32>, vector<32x24xf32>, vector<16x24xf32> -> vector<16x24xf32>
    %c0_399 = arith.constant 0 : index
    %c0_400 = arith.constant 0 : index
    %966 = vector.load %arg23[%c0_399, %c0_400] : memref<1x24xf32, #tpu.memory_space<vmem>>, vector<1x24xf32>
    %967 = vector.broadcast %966 : vector<1x24xf32> to vector<16x24xf32>
    %968 = arith.addf %965, %967 : vector<16x24xf32>
    %c0_401 = arith.constant 0 : index
    %c0_402 = arith.constant 0 : index
    %969 = vector.load %arg24[%c0_401, %c0_402] : memref<16x24xf32, #tpu.memory_space<vmem>>, vector<16x24xf32>
    tpu.vector_store %arg24[%c0_401, %c0_402], %968 {strides = array<i32>} : memref<16x24xf32, #tpu.memory_space<vmem>>, vector<16x24xf32>,
    return
  }
}

</mosaic_0001>

<llo_original>
// kernel: transformer_forward.1
$region0: #{transformer_forward.1}
  #allocation0 [shape = 'u32[]', space=smem, size = 0x4, offset = 0x4, fixed_abs, tag = 'smem constant byte address 0x4 - core index']
  #allocation1 [shape = 'u32[144,128]{1,0:T(1,128)}', space=vmem, size = 0x12000, scoped, tag = 'internal scratch']
  #allocation2 [shape = 'f32[16,32]{1,0:T(8,128)}', space=vmem, size = 0x2000, scoped, tag = 'scratch operand']
  %s0 = inlined_call_operand.vmem [shape: f32[16,32], index: 0, kind: input, shape index: {}]
  %s1 = inlined_call_operand.vmem [shape: f32[32,32], index: 1, kind: input, shape index: {}]
  %s2 = inlined_call_operand.vmem [shape: f32[2,8,8], index: 2, kind: input, shape index: {}]
  %s3 = inlined_call_operand.vmem [shape: f32[2,8,16], index: 3, kind: input, shape index: {}]
  %s4 = inlined_call_operand.vmem [shape: f32[2,32,32], index: 4, kind: input, shape index: {}]
  %s5 = inlined_call_operand.vmem [shape: f32[2,32,32], index: 5, kind: input, shape index: {}]
  %s6 = inlined_call_operand.vmem [shape: f32[2,32,128], index: 6, kind: input, shape index: {}]
  %s7 = inlined_call_operand.vmem [shape: f32[2,1,32], index: 7, kind: input, shape index: {}]
  %s8 = inlined_call_operand.vmem [shape: f32[2,32,32], index: 8, kind: input, shape index: {}]
  %s9 = inlined_call_operand.vmem [shape: f32[2,32,32], index: 9, kind: input, shape index: {}]
  %s10 = inlined_call_operand.vmem [shape: f32[2,32,128], index: 10, kind: input, shape index: {}]
  %s11 = inlined_call_operand.vmem [shape: f32[2,1,32], index: 11, kind: input, shape index: {}]
  %s12 = inlined_call_operand.vmem [shape: f32[2,1,32], index: 12, kind: input, shape index: {}]
  %s13 = inlined_call_operand.vmem [shape: f32[2,1,32], index: 13, kind: input, shape index: {}]
  %s14 = inlined_call_operand.vmem [shape: f32[2,1,32], index: 14, kind: input, shape index: {}]
  %s15 = inlined_call_operand.vmem [shape: f32[2,1,32], index: 15, kind: input, shape index: {}]
  %s16 = inlined_call_operand.vmem [shape: f32[2,1,32], index: 16, kind: input, shape index: {}]
  %s17 = inlined_call_operand.vmem [shape: f32[2,1,32], index: 17, kind: input, shape index: {}]
  %s18 = inlined_call_operand.vmem [shape: f32[2,32,128], index: 18, kind: input, shape index: {}]
  %s19 = inlined_call_operand.vmem [shape: f32[2,1,128], index: 19, kind: input, shape index: {}]
  %s20 = inlined_call_operand.vmem [shape: f32[2,128,32], index: 20, kind: input, shape index: {}]
  %s21 = inlined_call_operand.vmem [shape: f32[2,1,32], index: 21, kind: input, shape index: {}]
  %s22 = inlined_call_operand.vmem [shape: f32[32,24], index: 22, kind: input, shape index: {}]
  %s23 = inlined_call_operand.vmem [shape: f32[1,24], index: 23, kind: input, shape index: {}]
  %s24 = inlined_call_operand.hbm [shape: f32[16,24], index: 24, kind: output, shape index: {}]
  %s25 = sld [smem:[#allocation0]]
  $region106: #{transformer_forward.1} parent=0
    _
  %s27 = ssub.s32 1, %s25
  %s28 = scalar_select 0, %s27, %s25
  $region1: #{transformer_forward.1} parent=0
    #allocation3 [shape = 'u8[8192]{0}', space=vmem, size = 0x2000, scoped, tag = 'output window, operand 0, single buffered']
    #allocation4 [shape = 's32[1]{0}', space=sflag, size = 0x4, scoped, tag = 'scoped memory for transformer_forward.1']
    %29 = vsyncpa [#allocation4], 0
    // Predicated region
    $region2: #{transformer_forward.1} parent=1 // pred_check
      _
    $region3: #{transformer_forward.1} parent=1 // pred_check_branch
      %31 = sbr.rel (0) target = $region5
    $region4: #{transformer_forward.1} parent=1 // pred_region
      _
    $region5: #{transformer_forward.1} parent=1 // pred_fallthru
      _
    // Predicated region
    $region6: #{transformer_forward.1} parent=1 // pred_check
      _
    $region7: #{transformer_forward.1} parent=1 // pred_check_branch
      %33 = sbr.rel (0) target = $region9
    $region8: #{transformer_forward.1} parent=1 // pred_region
      _
    $region9: #{transformer_forward.1} parent=1 // pred_fallthru
      _
    // Predicated region
    $region10: #{transformer_forward.1} parent=1 // pred_check
      _
    $region11: #{transformer_forward.1} parent=1 // pred_check_branch
      %35 = sbr.rel (0) target = $region13
    $region12: #{transformer_forward.1} parent=1 // pred_region
      _
    $region13: #{transformer_forward.1} parent=1 // pred_fallthru
      _
    // Predicated region
    $region14: #{transformer_forward.1} parent=1 // pred_check
      _
    $region15: #{transformer_forward.1} parent=1 // pred_check_branch
      %37 = sbr.rel (0) target = $region17
    $region16: #{transformer_forward.1} parent=1 // pred_region
      _
    $region17: #{transformer_forward.1} parent=1 // pred_fallthru
      _
    // Predicated region
    $region18: #{transformer_forward.1} parent=1 // pred_check
      _
    $region19: #{transformer_forward.1} parent=1 // pred_check_branch
      %39 = sbr.rel (0) target = $region21
    $region20: #{transformer_forward.1} parent=1 // pred_region
      _
    $region21: #{transformer_forward.1} parent=1 // pred_fallthru
      _
    // Predicated region
    $region22: #{transformer_forward.1} parent=1 // pred_check
      _
    $region23: #{transformer_forward.1} parent=1 // pred_check_branch
      %41 = sbr.rel (0) target = $region25
    $region24: #{transformer_forward.1} parent=1 // pred_region
      _
    $region25: #{transformer_forward.1} parent=1 // pred_fallthru
      _
    // Predicated region
    $region26: #{transformer_forward.1} parent=1 // pred_check
      _
    $region27: #{transformer_forward.1} parent=1 // pred_check_branch
      %43 = sbr.rel (0) target = $region29
    $region28: #{transformer_forward.1} parent=1 // pred_region
      _
    $region29: #{transformer_forward.1} parent=1 // pred_fallthru
      _
    // Predicated region
    $region30: #{transformer_forward.1} parent=1 // pred_check
      _
    $region31: #{transformer_forward.1} parent=1 // pred_check_branch
      %45 = sbr.rel (0) target = $region33
    $region32: #{transformer_forward.1} parent=1 // pred_region
      _
    $region33: #{transformer_forward.1} parent=1 // pred_fallthru
      _
    // Predicated region
    $region34: #{transformer_forward.1} parent=1 // pred_check
      _
    $region35: #{transformer_forward.1} parent=1 // pred_check_branch
      %47 = sbr.rel (0) target = $region37
    $region36: #{transformer_forward.1} parent=1 // pred_region
      _
    $region37: #{transformer_forward.1} parent=1 // pred_fallthru
      _
    // Predicated region
    $region38: #{transformer_forward.1} parent=1 // pred_check
      _
    $region39: #{transformer_forward.1} parent=1 // pred_check_branch
      %49 = sbr.rel (0) target = $region41
    $region40: #{transformer_forward.1} parent=1 // pred_region
      _
    $region41: #{transformer_forward.1} parent=1 // pred_fallthru
      _
    // Predicated region
    $region42: #{transformer_forward.1} parent=1 // pred_check
      _
    $region43: #{transformer_forward.1} parent=1 // pred_check_branch
      %51 = sbr.rel (0) target = $region45
    $region44: #{transformer_forward.1} parent=1 // pred_region
      _
    $region45: #{transformer_forward.1} parent=1 // pred_fallthru
      _
    // Predicated region
    $region46: #{transformer_forward.1} parent=1 // pred_check
      _
    $region47: #{transformer_forward.1} parent=1 // pred_check_branch
      %53 = sbr.rel (0) target = $region49
    $region48: #{transformer_forward.1} parent=1 // pred_region
      _
    $region49: #{transformer_forward.1} parent=1 // pred_fallthru
      _
    // Predicated region
    $region50: #{transformer_forward.1} parent=1 // pred_check
      _
    $region51: #{transformer_forward.1} parent=1 // pred_check_branch
      %55 = sbr.rel (0) target = $region53
    $region52: #{transformer_forward.1} parent=1 // pred_region
      _
    $region53: #{transformer_forward.1} parent=1 // pred_fallthru
      _
    // Predicated region
    $region54: #{transformer_forward.1} parent=1 // pred_check
      _
    $region55: #{transformer_forward.1} parent=1 // pred_check_branch
      %57 = sbr.rel (0) target = $region57
    $region56: #{transformer_forward.1} parent=1 // pred_region
      _
    $region57: #{transformer_forward.1} parent=1 // pred_fallthru
      _
    // Predicated region
    $region58: #{transformer_forward.1} parent=1 // pred_check
      _
    $region59: #{transformer_forward.1} parent=1 // pred_check_branch
      %59 = sbr.rel (0) target = $region61
    $region60: #{transformer_forward.1} parent=1 // pred_region
      _
    $region61: #{transformer_forward.1} parent=1 // pred_fallthru
      _
    // Predicated region
    $region62: #{transformer_forward.1} parent=1 // pred_check
      _
    $region63: #{transformer_forward.1} parent=1 // pred_check_branch
      %61 = sbr.rel (0) target = $region65
    $region64: #{transformer_forward.1} parent=1 // pred_region
      _
    $region65: #{transformer_forward.1} parent=1 // pred_fallthru
      _
    // Predicated region
    $region66: #{transformer_forward.1} parent=1 // pred_check
      _
    $region67: #{transformer_forward.1} parent=1 // pred_check_branch
      %63 = sbr.rel (0) target = $region69
    $region68: #{transformer_forward.1} parent=1 // pred_region
      _
    $region69: #{transformer_forward.1} parent=1 // pred_fallthru
      _
    // Predicated region
    $region70: #{transformer_forward.1} parent=1 // pred_check
      _
    $region71: #{transformer_forward.1} parent=1 // pred_check_branch
      %65 = sbr.rel (0) target = $region73
    $region72: #{transformer_forward.1} parent=1 // pred_region
      _
    $region73: #{transformer_forward.1} parent=1 // pred_fallthru
      _
    // Predicated region
    $region74: #{transformer_forward.1} parent=1 // pred_check
      _
    $region75: #{transformer_forward.1} parent=1 // pred_check_branch
      %67 = sbr.rel (0) target = $region77
    $region76: #{transformer_forward.1} parent=1 // pred_region
      _
    $region77: #{transformer_forward.1} parent=1 // pred_fallthru
      _
    // Predicated region
    $region78: #{transformer_forward.1} parent=1 // pred_check
      _
    $region79: #{transformer_forward.1} parent=1 // pred_check_branch
      %69 = sbr.rel (0) target = $region81
    $region80: #{transformer_forward.1} parent=1 // pred_region
      _
    $region81: #{transformer_forward.1} parent=1 // pred_fallthru
      _
    // Predicated region
    $region82: #{transformer_forward.1} parent=1 // pred_check
      _
    $region83: #{transformer_forward.1} parent=1 // pred_check_branch
      %71 = sbr.rel (0) target = $region85
    $region84: #{transformer_forward.1} parent=1 // pred_region
      _
    $region85: #{transformer_forward.1} parent=1 // pred_fallthru
      _
    // Predicated region
    $region86: #{transformer_forward.1} parent=1 // pred_check
      _
    $region87: #{transformer_forward.1} parent=1 // pred_check_branch
      %73 = sbr.rel (0) target = $region89
    $region88: #{transformer_forward.1} parent=1 // pred_region
      _
    $region89: #{transformer_forward.1} parent=1 // pred_fallthru
      _
    // Predicated region
    $region90: #{transformer_forward.1} parent=1 // pred_check
      _
    $region91: #{transformer_forward.1} parent=1 // pred_check_branch
      %75 = sbr.rel (0) target = $region93
    $region92: #{transformer_forward.1} parent=1 // pred_region
      _
    $region93: #{transformer_forward.1} parent=1 // pred_fallthru
      _
    // Predicated region
    $region94: #{transformer_forward.1} parent=1 // pred_check
      _
    $region95: #{transformer_forward.1} parent=1 // pred_check_branch
      %77 = sbr.rel (0) target = $region97
    $region96: #{transformer_forward.1} parent=1 // pred_region
      _
    $region97: #{transformer_forward.1} parent=1 // pred_fallthru
      _
    %v78 = vld [vmem:[%s0] sm:$0xff]
    %v79 = vld [vmem:[%s0 + $0x8] sm:$0xff]
    %v80 = vld [vmem:[%s1] sm:$0xff]
    %v81 = vld [vmem:[%s1 + $0x8] sm:$0xff]
    %v82 = vld [vmem:[%s1 + $0x10] sm:$0xff]
    %v83 = vld [vmem:[%s1 + $0x18] sm:$0xff]
    %v84 = vld [vmem:[%s4] sm:$0xff]
    %v85 = vld [vmem:[%s4 + $0x8] sm:$0xff]
    %v86 = vld [vmem:[%s4 + $0x10] sm:$0xff]
    %v87 = vld [vmem:[%s4 + $0x18] sm:$0xff]
    %v88 = vld [vmem:[%s5] sm:$0xff]
    %v89 = vld [vmem:[%s5 + $0x8] sm:$0xff]
    %v90 = vld [vmem:[%s5 + $0x10] sm:$0xff]
    %v91 = vld [vmem:[%s5 + $0x18] sm:$0xff]
    %v92 = vld [vmem:[%s6] sm:$0xff]
    %v93 = vld [vmem:[%s6 + $0x8] sm:$0xff]
    %v94 = vld [vmem:[%s6 + $0x10] sm:$0xff]
    %v95 = vld [vmem:[%s6 + $0x18] sm:$0xff]
    %v96 = vld [vmem:[%s7] sm:$0x1]
    %vm97 = vcmask 261120
    %v99 = vsel %vm97, %v78, 0
    %v102 = vsel %vm97, %v79, 0
    %104 = vmatprep.subr.mxu0 0.0
    %105 = vmatpush1.msra.mxu0 %v84
    %106 = vmatprep.subr.mxu0 0.0
    %107 = vmatpush1.msra.mxu0 %v85
    %108 = vmatprep.subr.mxu0 0.0
    %109 = vmatpush1.msra.mxu0 %v86
    %110 = vmatprep.subr.mxu0 0.0
    %111 = vmatpush1.msra.mxu0 %v87
    %112 = vmatprep.subr.mxu0 0.0
    %113 = vmatpush1.msra.mxu0 0.0
    %114 = vmatprep.subr.mxu0 0.0
    %115 = vmatpush1.msra.mxu0 0.0
    %116 = vmatprep.subr.mxu0 0.0
    %117 = vmatpush1.msra.mxu0 0.0
    %118 = vmatprep.subr.mxu0 0.0
    %119 = vmatpush1.msra.mxu0 0.0
    %120 = vmatprep.subr.mxu0 0.0
    %121 = vmatpush1.msra.mxu0 0.0
    %122 = vmatprep.subr.mxu0 0.0
    %123 = vmatpush1.msra.mxu0 0.0
    %124 = vmatprep.subr.mxu0 0.0
    %125 = vmatpush1.msra.mxu0 0.0
    %126 = vmatprep.subr.mxu0 0.0
    %127 = vmatpush1.msra.mxu0 0.0
    %128 = vmatprep.subr.mxu0 0.0
    %129 = vmatpush1.msra.mxu0 0.0
    %130 = vmatprep.subr.mxu0 0.0
    %131 = vmatpush1.msra.mxu0 0.0
    %132 = vmatprep.subr.mxu0 0.0
    %133 = vmatpush1.msra.mxu0 0.0
    %134 = vmatprep.subr.mxu0 0.0
    %135 = vmatpush1.msra.mxu0 0.0
    %136 = vmatprep.subr.mxu0 0.0
    %137 = vmatpush1.msra.mxu0 0.0
    %138 = vmatprep.subr.mxu0 0.0
    %139 = vmatpush1.msra.mxu0 0.0
    %140 = vmatprep.subr.mxu0 0.0
    %141 = vmatpush1.msra.mxu0 0.0
    %142 = vmatprep.subr.mxu0 0.0
    %143 = vmatpush1.msra.mxu0 0.0
    %144 = vmatprep.subr.mxu0 0.0
    %145 = vmatpush1.msra.mxu0 0.0
    %146 = vmatprep.subr.mxu0 0.0
    %147 = vmatpush1.msra.mxu0 0.0
    %148 = vmatprep.subr.mxu0 0.0
    %149 = vmatpush1.msra.mxu0 0.0
    %150 = vmatprep.subr.mxu0 0.0
    %151 = vmatpush1.msra.mxu0 0.0
    %152 = vmatprep.subr.mxu0 0.0
    %153 = vmatpush1.msra.mxu0 0.0
    %154 = vmatprep.subr.mxu0 0.0
    %155 = vmatpush1.msra.mxu0 0.0
    %156 = vmatprep.subr.mxu0 0.0
    %157 = vmatpush1.msra.mxu0 0.0
    %158 = vmatprep.subr.mxu0 0.0
    %159 = vmatpush1.msra.mxu0 0.0
    %160 = vmatprep.subr.mxu0 0.0
    %161 = vmatpush1.msra.mxu0 0.0
    %162 = vmatprep.subr.mxu0 0.0
    %163 = vmatpush1.msra.mxu0 0.0
    %164 = vmatprep.subr.mxu0 0.0
    %165 = vmatpush1.msra.mxu0 0.0
    %166 = vmatprep.subr.mxu0 0.0
    %167 = vmatpush1.msra.mxu0 0.0
    %168 = vmatprep.mubr.f32.mxu0 0.0
    %169 = vmatmul.mubr.f32.gmra.mrb[0].mxu0 %v99
    %v170 = vpop.f32.mrb[0].mxu0
    %v171 = vadd.f32 0.0, %v170
    %v172 = vpop.f32.mrb[0].mxu0
    %173 = vmatprep.mubr.f32.mxu0 0.0
    %174 = vmatmul.mubr.f32.gmra.mrb[0].mxu0 %v102
    %v175 = vpop.f32.mrb[0].mxu0
    %v176 = vadd.f32 0.0, %v175
    %v177 = vpop.f32.mrb[0].mxu0
    %178 = vdwg.mxu0
    %179 = vmatprep.subr.mxu0 0.0
    %180 = vmatpush1.msra.mxu0 %v88
    %181 = vmatprep.subr.mxu0 0.0
    %182 = vmatpush1.msra.mxu0 %v89
    %183 = vmatprep.subr.mxu0 0.0
    %184 = vmatpush1.msra.mxu0 %v90
    %185 = vmatprep.subr.mxu0 0.0
    %186 = vmatpush1.msra.mxu0 %v91
    %187 = vmatprep.subr.mxu0 0.0
    %188 = vmatpush1.msra.mxu0 0.0
    %189 = vmatprep.subr.mxu0 0.0
    %190 = vmatpush1.msra.mxu0 0.0
    %191 = vmatprep.subr.mxu0 0.0
    %192 = vmatpush1.msra.mxu0 0.0
    %193 = vmatprep.subr.mxu0 0.0
    %194 = vmatpush1.msra.mxu0 0.0
    %195 = vmatprep.subr.mxu0 0.0
    %196 = vmatpush1.msra.mxu0 0.0
    %197 = vmatprep.subr.mxu0 0.0
    %198 = vmatpush1.msra.mxu0 0.0
    %199 = vmatprep.subr.mxu0 0.0
    %200 = vmatpush1.msra.mxu0 0.0
    %201 = vmatprep.subr.mxu0 0.0
    %202 = vmatpush1.msra.mxu0 0.0
    %203 = vmatprep.subr.mxu0 0.0
    %204 = vmatpush1.msra.mxu0 0.0
    %205 = vmatprep.subr.mxu0 0.0
    %206 = vmatpush1.msra.mxu0 0.0
    %207 = vmatprep.subr.mxu0 0.0
    %208 = vmatpush1.msra.mxu0 0.0
    %209 = vmatprep.subr.mxu0 0.0
    %210 = vmatpush1.msra.mxu0 0.0
    %211 = vmatprep.subr.mxu0 0.0
    %212 = vmatpush1.msra.mxu0 0.0
    %213 = vmatprep.subr.mxu0 0.0
    %214 = vmatpush1.msra.mxu0 0.0
    %215 = vmatprep.subr.mxu0 0.0
    %216 = vmatpush1.msra.mxu0 0.0
    %217 = vmatprep.subr.mxu0 0.0
    %218 = vmatpush1.msra.mxu0 0.0
    %219 = vmatprep.subr.mxu0 0.0
    %220 = vmatpush1.msra.mxu0 0.0
    %221 = vmatprep.subr.mxu0 0.0
    %222 = vmatpush1.msra.mxu0 0.0
    %223 = vmatprep.subr.mxu0 0.0
    %224 = vmatpush1.msra.mxu0 0.0
    %225 = vmatprep.subr.mxu0 0.0
    %226 = vmatpush1.msra.mxu0 0.0
    %227 = vmatprep.subr.mxu0 0.0
    %228 = vmatpush1.msra.mxu0 0.0
    %229 = vmatprep.subr.mxu0 0.0
    %230 = vmatpush1.msra.mxu0 0.0
    %231 = vmatprep.subr.mxu0 0.0
    %232 = vmatpush1.msra.mxu0 0.0
    %233 = vmatprep.subr.mxu0 0.0
    %234 = vmatpush1.msra.mxu0 0.0
    %235 = vmatprep.subr.mxu0 0.0
    %236 = vmatpush1.msra.mxu0 0.0
    %237 = vmatprep.subr.mxu0 0.0
    %238 = vmatpush1.msra.mxu0 0.0
    %239 = vmatprep.subr.mxu0 0.0
    %240 = vmatpush1.msra.mxu0 0.0
    %241 = vmatprep.subr.mxu0 0.0
    %242 = vmatpush1.msra.mxu0 0.0
    %243 = vmatprep.mubr.f32.mxu0 0.0
    %244 = vmatmul.mubr.f32.gmra.mrb[0].mxu0 %v99
    %v245 = vpop.f32.mrb[0].mxu0
    %v246 = vadd.f32 0.0, %v245
    %v247 = vpop.f32.mrb[0].mxu0
    %248 = vmatprep.mubr.f32.mxu0 0.0
    %249 = vmatmul.mubr.f32.gmra.mrb[0].mxu0 %v102
    %v250 = vpop.f32.mrb[0].mxu0
    %v251 = vadd.f32 0.0, %v250
    %v252 = vpop.f32.mrb[0].mxu0
    %253 = vdwg.mxu0
    %254 = vmatprep.subr.mxu0 0.0
    %255 = vmatpush1.msra.mxu0 %v92
    %256 = vmatprep.subr.mxu0 0.0
    %257 = vmatpush1.msra.mxu0 %v93
    %258 = vmatprep.subr.mxu0 0.0
    %259 = vmatpush1.msra.mxu0 %v94
    %260 = vmatprep.subr.mxu0 0.0
    %261 = vmatpush1.msra.mxu0 %v95
    %262 = vmatprep.subr.mxu0 0.0
    %263 = vmatpush1.msra.mxu0 0.0
    %264 = vmatprep.subr.mxu0 0.0
    %265 = vmatpush1.msra.mxu0 0.0
    %266 = vmatprep.subr.mxu0 0.0
    %267 = vmatpush1.msra.mxu0 0.0
    %268 = vmatprep.subr.mxu0 0.0
    %269 = vmatpush1.msra.mxu0 0.0
    %270 = vmatprep.subr.mxu0 0.0
    %271 = vmatpush1.msra.mxu0 0.0
    %272 = vmatprep.subr.mxu0 0.0
    %273 = vmatpush1.msra.mxu0 0.0
    %274 = vmatprep.subr.mxu0 0.0
    %275 = vmatpush1.msra.mxu0 0.0
    %276 = vmatprep.subr.mxu0 0.0
    %277 = vmatpush1.msra.mxu0 0.0
    %278 = vmatprep.subr.mxu0 0.0
    %279 = vmatpush1.msra.mxu0 0.0
    %280 = vmatprep.subr.mxu0 0.0
    %281 = vmatpush1.msra.mxu0 0.0
    %282 = vmatprep.subr.mxu0 0.0
    %283 = vmatpush1.msra.mxu0 0.0
    %284 = vmatprep.subr.mxu0 0.0
    %285 = vmatpush1.msra.mxu0 0.0
    %286 = vmatprep.subr.mxu0 0.0
    %287 = vmatpush1.msra.mxu0 0.0
    %288 = vmatprep.subr.mxu0 0.0
    %289 = vmatpush1.msra.mxu0 0.0
    %290 = vmatprep.subr.mxu0 0.0
    %291 = vmatpush1.msra.mxu0 0.0
    %292 = vmatprep.subr.mxu0 0.0
    %293 = vmatpush1.msra.mxu0 0.0
    %294 = vmatprep.subr.mxu0 0.0
    %295 = vmatpush1.msra.mxu0 0.0
    %296 = vmatprep.subr.mxu0 0.0
    %297 = vmatpush1.msra.mxu0 0.0
    %298 = vmatprep.subr.mxu0 0.0
    %299 = vmatpush1.msra.mxu0 0.0
    %300 = vmatprep.subr.mxu0 0.0
    %301 = vmatpush1.msra.mxu0 0.0
    %302 = vmatprep.subr.mxu0 0.0
    %303 = vmatpush1.msra.mxu0 0.0
    %304 = vmatprep.subr.mxu0 0.0
    %305 = vmatpush1.msra.mxu0 0.0
    %306 = vmatprep.subr.mxu0 0.0
    %307 = vmatpush1.msra.mxu0 0.0
    %308 = vmatprep.subr.mxu0 0.0
    %309 = vmatpush1.msra.mxu0 0.0
    %310 = vmatprep.subr.mxu0 0.0
    %311 = vmatpush1.msra.mxu0 0.0
    %312 = vmatprep.subr.mxu0 0.0
    %313 = vmatpush1.msra.mxu0 0.0
    %314 = vmatprep.subr.mxu0 0.0
    %315 = vmatpush1.msra.mxu0 0.0
    %316 = vmatprep.subr.mxu0 0.0
    %317 = vmatpush1.msra.mxu0 0.0
    %318 = vmatprep.mubr.f32.mxu0 0.0
    %319 = vmatmul.mubr.f32.gmra.mrb[0].mxu0 %v99
    %v320 = vpop.f32.mrb[0].mxu0
    %v321 = vadd.f32 0.0, %v320
    %v322 = vpop.f32.mrb[0].mxu0
    %323 = vmatprep.mubr.f32.mxu0 0.0
    %324 = vmatmul.mubr.f32.gmra.mrb[0].mxu0 %v102
    %v325 = vpop.f32.mrb[0].mxu0
    %v326 = vadd.f32 0.0, %v325
    %v327 = vpop.f32.mrb[0].mxu0
    %328 = vdwg.mxu0
    %v329 = vld [vmem:[%s2] sm:$0xff]
    %vm330 = vcmp.eq.f32.partialorder %v329, 0.0
    %v331 = vsel %vm330, -1e+20, 0.0
    %vm332 = vcmask 64512
    %v334 = vsel %vm332, %v171, 0
    %v337 = vsel %vm332, %v246, 0
    %339 = vmatprep.subr.mxu0 0.0
    %340 = vmatpush1.xpose.msra.mxu0 %v337
    %341 = vmatprep.subr.mxu0 0.0
    %342 = vmatpush1.xpose.msra.mxu0 0.0
    %343 = vmatprep.subr.mxu0 0.0
    %344 = vmatpush1.xpose.msra.mxu0 0.0
    %345 = vmatprep.subr.mxu0 0.0
    %346 = vmatpush1.xpose.msra.mxu0 0.0
    %347 = vmatprep.subr.mxu0 0.0
    %348 = vmatpush1.xpose.msra.mxu0 0.0
    %349 = vmatprep.subr.mxu0 0.0
    %350 = vmatpush1.xpose.msra.mxu0 0.0
    %351 = vmatprep.subr.mxu0 0.0
    %352 = vmatpush1.xpose.msra.mxu0 0.0
    %353 = vmatprep.subr.mxu0 0.0
    %354 = vmatpush1.xpose.msra.mxu0 0.0
    %355 = vmatprep.subr.mxu0 0.0
    %356 = vmatpush1.xpose.msra.mxu0 0.0
    %357 = vmatprep.subr.mxu0 0.0
    %358 = vmatpush1.xpose.msra.mxu0 0.0
    %359 = vmatprep.subr.mxu0 0.0
    %360 = vmatpush1.xpose.msra.mxu0 0.0
    %361 = vmatprep.subr.mxu0 0.0
    %362 = vmatpush1.xpose.msra.mxu0 0.0
    %363 = vmatprep.subr.mxu0 0.0
    %364 = vmatpush1.xpose.msra.mxu0 0.0
    %365 = vmatprep.subr.mxu0 0.0
    %366 = vmatpush1.xpose.msra.mxu0 0.0
    %367 = vmatprep.subr.mxu0 0.0
    %368 = vmatpush1.xpose.msra.mxu0 0.0
    %369 = vmatprep.subr.mxu0 0.0
    %370 = vmatpush1.xpose.msra.mxu0 0.0
    %371 = vmatprep.subr.mxu0 0.0
    %372 = vmatpush1.xpose.msra.mxu0 0.0
    %373 = vmatprep.subr.mxu0 0.0
    %374 = vmatpush1.xpose.msra.mxu0 0.0
    %375 = vmatprep.subr.mxu0 0.0
    %376 = vmatpush1.xpose.msra.mxu0 0.0
    %377 = vmatprep.subr.mxu0 0.0
    %378 = vmatpush1.xpose.msra.mxu0 0.0
    %379 = vmatprep.subr.mxu0 0.0
    %380 = vmatpush1.xpose.msra.mxu0 0.0
    %381 = vmatprep.subr.mxu0 0.0
    %382 = vmatpush1.xpose.msra.mxu0 0.0
    %383 = vmatprep.subr.mxu0 0.0
    %384 = vmatpush1.xpose.msra.mxu0 0.0
    %385 = vmatprep.subr.mxu0 0.0
    %386 = vmatpush1.xpose.msra.mxu0 0.0
    %387 = vmatprep.subr.mxu0 0.0
    %388 = vmatpush1.xpose.msra.mxu0 0.0
    %389 = vmatprep.subr.mxu0 0.0
    %390 = vmatpush1.xpose.msra.mxu0 0.0
    %391 = vmatprep.subr.mxu0 0.0
    %392 = vmatpush1.xpose.msra.mxu0 0.0
    %393 = vmatprep.subr.mxu0 0.0
    %394 = vmatpush1.xpose.msra.mxu0 0.0
    %395 = vmatprep.subr.mxu0 0.0
    %396 = vmatpush1.xpose.msra.mxu0 0.0
    %397 = vmatprep.subr.mxu0 0.0
    %398 = vmatpush1.xpose.msra.mxu0 0.0
    %399 = vmatprep.subr.mxu0 0.0
    %400 = vmatpush1.xpose.msra.mxu0 0.0
    %401 = vmatprep.subr.mxu0 0.0
    %402 = vmatpush1.xpose.msra.mxu0 0.0
    %403 = vmatprep.mubr.f32.mxu0 0.0
    %404 = vmatmul.mubr.f32.gmra.mrb[0].mxu0 %v334
    %v405 = vpop.f32.mrb[0].mxu0
    %v406 = vadd.f32 0.0, %v405
    %v407 = vpop.f32.mrb[0].mxu0
    %408 = vdwg.mxu0
    %v409 = vmul.f32 %v406, 0.17677669
    %v410 = vadd.f32 %v409, %v331
    %v411 = vsel %vm332, %v410, -inf
    %412 = vmax.xlane.f32.xlu0 %v411
    %v413 = vpop.xlane.xlu0 %412
    %v414 = vsub.f32 %v410, %v413
    %v415 = vmul.f32 %v414, 1.442695
    %v416 = vpow.pop %v415
    %v417 = vsel %vm332, %v416, 0.0
    %418 = vadd.xlane.f32.xlu0 %v417
    %v419 = vpop.xlane.xlu0 %418
    %v420 = vrcp.pop %v419
    %v421 = vmul.f32 %v416, %v420
    %422 = vrot.lane.b32.xlu0 %v171, 120
    %v423 = vpop.permute.xlu0 %422
    %424 = vrot.lane.b32.xlu0 %v246, 120
    %v425 = vpop.permute.xlu0 %424
    %v426 = vsel %vm332, %v423, 0
    %v428 = vsel %vm332, %v425, 0
    %430 = vmatprep.subr.mxu0 0.0
    %431 = vmatpush1.xpose.msra.mxu0 %v428
    %432 = vmatprep.subr.mxu0 0.0
    %433 = vmatpush1.xpose.msra.mxu0 0.0
    %434 = vmatprep.subr.mxu0 0.0
    %435 = vmatpush1.xpose.msra.mxu0 0.0
    %436 = vmatprep.subr.mxu0 0.0
    %437 = vmatpush1.xpose.msra.mxu0 0.0
    %438 = vmatprep.subr.mxu0 0.0
    %439 = vmatpush1.xpose.msra.mxu0 0.0
    %440 = vmatprep.subr.mxu0 0.0
    %441 = vmatpush1.xpose.msra.mxu0 0.0
    %442 = vmatprep.subr.mxu0 0.0
    %443 = vmatpush1.xpose.msra.mxu0 0.0
    %444 = vmatprep.subr.mxu0 0.0
    %445 = vmatpush1.xpose.msra.mxu0 0.0
    %446 = vmatprep.subr.mxu0 0.0
    %447 = vmatpush1.xpose.msra.mxu0 0.0
    %448 = vmatprep.subr.mxu0 0.0
    %449 = vmatpush1.xpose.msra.mxu0 0.0
    %450 = vmatprep.subr.mxu0 0.0
    %451 = vmatpush1.xpose.msra.mxu0 0.0
    %452 = vmatprep.subr.mxu0 0.0
    %453 = vmatpush1.xpose.msra.mxu0 0.0
    %454 = vmatprep.subr.mxu0 0.0
    %455 = vmatpush1.xpose.msra.mxu0 0.0
    %456 = vmatprep.subr.mxu0 0.0
    %457 = vmatpush1.xpose.msra.mxu0 0.0
    %458 = vmatprep.subr.mxu0 0.0
    %459 = vmatpush1.xpose.msra.mxu0 0.0
    %460 = vmatprep.subr.mxu0 0.0
    %461 = vmatpush1.xpose.msra.mxu0 0.0
    %462 = vmatprep.subr.mxu0 0.0
    %463 = vmatpush1.xpose.msra.mxu0 0.0
    %464 = vmatprep.subr.mxu0 0.0
    %465 = vmatpush1.xpose.msra.mxu0 0.0
    %466 = vmatprep.subr.mxu0 0.0
    %467 = vmatpush1.xpose.msra.mxu0 0.0
    %468 = vmatprep.subr.mxu0 0.0
    %469 = vmatpush1.xpose.msra.mxu0 0.0
    %470 = vmatprep.subr.mxu0 0.0
    %471 = vmatpush1.xpose.msra.mxu0 0.0
    %472 = vmatprep.subr.mxu0 0.0
    %473 = vmatpush1.xpose.msra.mxu0 0.0
    %474 = vmatprep.subr.mxu0 0.0
    %475 = vmatpush1.xpose.msra.mxu0 0.0
    %476 = vmatprep.subr.mxu0 0.0
    %477 = vmatpush1.xpose.msra.mxu0 0.0
    %478 = vmatprep.subr.mxu0 0.0
    %479 = vmatpush1.xpose.msra.mxu0 0.0
    %480 = vmatprep.subr.mxu0 0.0
    %481 = vmatpush1.xpose.msra.mxu0 0.0
    %482 = vmatprep.subr.mxu0 0.0
    %483 = vmatpush1.xpose.msra.mxu0 0.0
    %484 = vmatprep.subr.mxu0 0.0
    %485 = vmatpush1.xpose.msra.mxu0 0.0
    %486 = vmatprep.subr.mxu0 0.0
    %487 = vmatpush1.xpose.msra.mxu0 0.0
    %488 = vmatprep.subr.mxu0 0.0
    %489 = vmatpush1.xpose.msra.mxu0 0.0
    %490 = vmatprep.subr.mxu0 0.0
    %491 = vmatpush1.xpose.msra.mxu0 0.0
    %492 = vmatprep.subr.mxu0 0.0
    %493 = vmatpush1.xpose.msra.mxu0 0.0
    %494 = vmatprep.mubr.f32.mxu0 0.0
    %495 = vmatmul.mubr.f32.gmra.mrb[0].mxu0 %v426
    %v496 = vpop.f32.mrb[0].mxu0
    %v497 = vadd.f32 0.0, %v496
    %v498 = vpop.f32.mrb[0].mxu0
    %499 = vdwg.mxu0
    %v500 = vmul.f32 %v497, 0.17677669
    %v501 = vadd.f32 %v500, %v331
    %v502 = vsel %vm332, %v501, -inf
    %503 = vmax.xlane.f32.xlu0 %v502
    %v504 = vpop.xlane.xlu0 %503
    %v505 = vsub.f32 %v501, %v504
    %v506 = vmul.f32 %v505, 1.442695
    %v507 = vpow.pop %v506
    %v508 = vsel %vm332, %v507, 0.0
    %509 = vadd.xlane.f32.xlu0 %v508
    %v510 = vpop.xlane.xlu0 %509
    %v511 = vrcp.pop %v510
    %v512 = vmul.f32 %v507, %v511
    %514 = vrot.lane.b32.xlu0 %v321, 96
    %v515 = vpop.permute.xlu0 %514
    %v518 = vsel %vm332, %v512, 0
    %520 = vmatprep.subr.mxu0 0.0
    %521 = vmatpush1.msra.mxu0 %v515
    %522 = vmatprep.subr.mxu0 0.0
    %523 = vmatpush1.msra.mxu0 0.0
    %524 = vmatprep.subr.mxu0 0.0
    %525 = vmatpush1.msra.mxu0 0.0
    %526 = vmatprep.subr.mxu0 0.0
    %527 = vmatpush1.msra.mxu0 0.0
    %528 = vmatprep.subr.mxu0 0.0
    %529 = vmatpush1.msra.mxu0 0.0
    %530 = vmatprep.subr.mxu0 0.0
    %531 = vmatpush1.msra.mxu0 0.0
    %532 = vmatprep.subr.mxu0 0.0
    %533 = vmatpush1.msra.mxu0 0.0
    %534 = vmatprep.subr.mxu0 0.0
    %535 = vmatpush1.msra.mxu0 0.0
    %536 = vmatprep.subr.mxu0 0.0
    %537 = vmatpush1.msra.mxu0 0.0
    %538 = vmatprep.subr.mxu0 0.0
    %539 = vmatpush1.msra.mxu0 0.0
    %540 = vmatprep.subr.mxu0 0.0
    %541 = vmatpush1.msra.mxu0 0.0
    %542 = vmatprep.subr.mxu0 0.0
    %543 = vmatpush1.msra.mxu0 0.0
    %544 = vmatprep.subr.mxu0 0.0
    %545 = vmatpush1.msra.mxu0 0.0
    %546 = vmatprep.subr.mxu0 0.0
    %547 = vmatpush1.msra.mxu0 0.0
    %548 = vmatprep.subr.mxu0 0.0
    %549 = vmatpush1.msra.mxu0 0.0
    %550 = vmatprep.subr.mxu0 0.0
    %551 = vmatpush1.msra.mxu0 0.0
    %552 = vmatprep.subr.mxu0 0.0
    %553 = vmatpush1.msra.mxu0 0.0
    %554 = vmatprep.subr.mxu0 0.0
    %555 = vmatpush1.msra.mxu0 0.0
    %556 = vmatprep.subr.mxu0 0.0
    %557 = vmatpush1.msra.mxu0 0.0
    %558 = vmatprep.subr.mxu0 0.0
    %559 = vmatpush1.msra.mxu0 0.0
    %560 = vmatprep.subr.mxu0 0.0
    %561 = vmatpush1.msra.mxu0 0.0
    %562 = vmatprep.subr.mxu0 0.0
    %563 = vmatpush1.msra.mxu0 0.0
    %564 = vmatprep.subr.mxu0 0.0
    %565 = vmatpush1.msra.mxu0 0.0
    %566 = vmatprep.subr.mxu0 0.0
    %567 = vmatpush1.msra.mxu0 0.0
    %568 = vmatprep.subr.mxu0 0.0
    %569 = vmatpush1.msra.mxu0 0.0
    %570 = vmatprep.subr.mxu0 0.0
    %571 = vmatpush1.msra.mxu0 0.0
    %572 = vmatprep.subr.mxu0 0.0
    %573 = vmatpush1.msra.mxu0 0.0
    %574 = vmatprep.subr.mxu0 0.0
    %575 = vmatpush1.msra.mxu0 0.0
    %576 = vmatprep.subr.mxu0 0.0
    %577 = vmatpush1.msra.mxu0 0.0
    %578 = vmatprep.subr.mxu0 0.0
    %579 = vmatpush1.msra.mxu0 0.0
    %580 = vmatprep.subr.mxu0 0.0
    %581 = vmatpush1.msra.mxu0 0.0
    %582 = vmatprep.subr.mxu0 0.0
    %583 = vmatpush1.msra.mxu0 0.0
    %584 = vmatprep.mubr.f32.mxu0 0.0
    %585 = vmatmul.mubr.f32.gmra.mrb[0].mxu0 %v518
    %v586 = vpop.f32.mrb[0].mxu0
    %v587 = vadd.f32 0.0, %v586
    %v588 = vpop.f32.mrb[0].mxu0
    %589 = vdwg.mxu0
    %v591 = vsel %vm332, %v421, 0
    %593 = vmatprep.subr.mxu0 0.0
    %594 = vmatpush1.msra.mxu0 %v321
    %595 = vmatprep.subr.mxu0 0.0
    %596 = vmatpush1.msra.mxu0 0.0
    %597 = vmatprep.subr.mxu0 0.0
    %598 = vmatpush1.msra.mxu0 0.0
    %599 = vmatprep.subr.mxu0 0.0
    %600 = vmatpush1.msra.mxu0 0.0
    %601 = vmatprep.subr.mxu0 0.0
    %602 = vmatpush1.msra.mxu0 0.0
    %603 = vmatprep.subr.mxu0 0.0
    %604 = vmatpush1.msra.mxu0 0.0
    %605 = vmatprep.subr.mxu0 0.0
    %606 = vmatpush1.msra.mxu0 0.0
    %607 = vmatprep.subr.mxu0 0.0
    %608 = vmatpush1.msra.mxu0 0.0
    %609 = vmatprep.subr.mxu0 0.0
    %610 = vmatpush1.msra.mxu0 0.0
    %611 = vmatprep.subr.mxu0 0.0
    %612 = vmatpush1.msra.mxu0 0.0
    %613 = vmatprep.subr.mxu0 0.0
    %614 = vmatpush1.msra.mxu0 0.0
    %615 = vmatprep.subr.mxu0 0.0
    %616 = vmatpush1.msra.mxu0 0.0
    %617 = vmatprep.subr.mxu0 0.0
    %618 = vmatpush1.msra.mxu0 0.0
    %619 = vmatprep.subr.mxu0 0.0
    %620 = vmatpush1.msra.mxu0 0.0
    %621 = vmatprep.subr.mxu0 0.0
    %622 = vmatpush1.msra.mxu0 0.0
    %623 = vmatprep.subr.mxu0 0.0
    %624 = vmatpush1.msra.mxu0 0.0
    %625 = vmatprep.subr.mxu0 0.0
    %626 = vmatpush1.msra.mxu0 0.0
    %627 = vmatprep.subr.mxu0 0.0
    %628 = vmatpush1.msra.mxu0 0.0
    %629 = vmatprep.subr.mxu0 0.0
    %630 = vmatpush1.msra.mxu0 0.0
    %631 = vmatprep.subr.mxu0 0.0
    %632 = vmatpush1.msra.mxu0 0.0
    %633 = vmatprep.subr.mxu0 0.0
    %634 = vmatpush1.msra.mxu0 0.0
    %635 = vmatprep.subr.mxu0 0.0
    %636 = vmatpush1.msra.mxu0 0.0
    %637 = vmatprep.subr.mxu0 0.0
    %638 = vmatpush1.msra.mxu0 0.0
    %639 = vmatprep.subr.mxu0 0.0
    %640 = vmatpush1.msra.mxu0 0.0
    %641 = vmatprep.subr.mxu0 0.0
    %642 = vmatpush1.msra.mxu0 0.0
    %643 = vmatprep.subr.mxu0 0.0
    %644 = vmatpush1.msra.mxu0 0.0
    %645 = vmatprep.subr.mxu0 0.0
    %646 = vmatpush1.msra.mxu0 0.0
    %647 = vmatprep.subr.mxu0 0.0
    %648 = vmatpush1.msra.mxu0 0.0
    %649 = vmatprep.subr.mxu0 0.0
    %650 = vmatpush1.msra.mxu0 0.0
    %651 = vmatprep.subr.mxu0 0.0
    %652 = vmatpush1.msra.mxu0 0.0
    %653 = vmatprep.subr.mxu0 0.0
    %654 = vmatpush1.msra.mxu0 0.0
    %655 = vmatprep.subr.mxu0 0.0
    %656 = vmatpush1.msra.mxu0 0.0
    %657 = vmatprep.mubr.f32.mxu0 0.0
    %658 = vmatmul.mubr.f32.gmra.mrb[0].mxu0 %v591
    %v659 = vpop.f32.mrb[0].mxu0
    %v660 = vadd.f32 %v587, %v659
    %v661 = vpop.f32.mrb[0].mxu0
    %662 = vdwg.mxu0
    %663 = vrot.lane.b32.xlu0 %v171, 112
    %v664 = vpop.permute.xlu0 %663
    %665 = vrot.lane.b32.xlu0 %v246, 112
    %v666 = vpop.permute.xlu0 %665
    %v667 = vsel %vm332, %v664, 0
    %v669 = vsel %vm332, %v666, 0
    %671 = vmatprep.subr.mxu0 0.0
    %672 = vmatpush1.xpose.msra.mxu0 %v669
    %673 = vmatprep.subr.mxu0 0.0
    %674 = vmatpush1.xpose.msra.mxu0 0.0
    %675 = vmatprep.subr.mxu0 0.0
    %676 = vmatpush1.xpose.msra.mxu0 0.0
    %677 = vmatprep.subr.mxu0 0.0
    %678 = vmatpush1.xpose.msra.mxu0 0.0
    %679 = vmatprep.subr.mxu0 0.0
    %680 = vmatpush1.xpose.msra.mxu0 0.0
    %681 = vmatprep.subr.mxu0 0.0
    %682 = vmatpush1.xpose.msra.mxu0 0.0
    %683 = vmatprep.subr.mxu0 0.0
    %684 = vmatpush1.xpose.msra.mxu0 0.0
    %685 = vmatprep.subr.mxu0 0.0
    %686 = vmatpush1.xpose.msra.mxu0 0.0
    %687 = vmatprep.subr.mxu0 0.0
    %688 = vmatpush1.xpose.msra.mxu0 0.0
    %689 = vmatprep.subr.mxu0 0.0
    %690 = vmatpush1.xpose.msra.mxu0 0.0
    %691 = vmatprep.subr.mxu0 0.0
    %692 = vmatpush1.xpose.msra.mxu0 0.0
    %693 = vmatprep.subr.mxu0 0.0
    %694 = vmatpush1.xpose.msra.mxu0 0.0
    %695 = vmatprep.subr.mxu0 0.0
    %696 = vmatpush1.xpose.msra.mxu0 0.0
    %697 = vmatprep.subr.mxu0 0.0
    %698 = vmatpush1.xpose.msra.mxu0 0.0
    %699 = vmatprep.subr.mxu0 0.0
    %700 = vmatpush1.xpose.msra.mxu0 0.0
    %701 = vmatprep.subr.mxu0 0.0
    %702 = vmatpush1.xpose.msra.mxu0 0.0
    %703 = vmatprep.subr.mxu0 0.0
    %704 = vmatpush1.xpose.msra.mxu0 0.0
    %705 = vmatprep.subr.mxu0 0.0
    %706 = vmatpush1.xpose.msra.mxu0 0.0
    %707 = vmatprep.subr.mxu0 0.0
    %708 = vmatpush1.xpose.msra.mxu0 0.0
    %709 = vmatprep.subr.mxu0 0.0
    %710 = vmatpush1.xpose.msra.mxu0 0.0
    %711 = vmatprep.subr.mxu0 0.0
    %712 = vmatpush1.xpose.msra.mxu0 0.0
    %713 = vmatprep.subr.mxu0 0.0
    %714 = vmatpush1.xpose.msra.mxu0 0.0
    %715 = vmatprep.subr.mxu0 0.0
    %716 = vmatpush1.xpose.msra.mxu0 0.0
    %717 = vmatprep.subr.mxu0 0.0
    %718 = vmatpush1.xpose.msra.mxu0 0.0
    %719 = vmatprep.subr.mxu0 0.0
    %720 = vmatpush1.xpose.msra.mxu0 0.0
    %721 = vmatprep.subr.mxu0 0.0
    %722 = vmatpush1.xpose.msra.mxu0 0.0
    %723 = vmatprep.subr.mxu0 0.0
    %724 = vmatpush1.xpose.msra.mxu0 0.0
    %725 = vmatprep.subr.mxu0 0.0
    %726 = vmatpush1.xpose.msra.mxu0 0.0
    %727 = vmatprep.subr.mxu0 0.0
    %728 = vmatpush1.xpose.msra.mxu0 0.0
    %729 = vmatprep.subr.mxu0 0.0
    %730 = vmatpush1.xpose.msra.mxu0 0.0
    %731 = vmatprep.subr.mxu0 0.0
    %732 = vmatpush1.xpose.msra.mxu0 0.0
    %733 = vmatprep.subr.mxu0 0.0
    %734 = vmatpush1.xpose.msra.mxu0 0.0
    %735 = vmatprep.mubr.f32.mxu0 0.0
    %736 = vmatmul.mubr.f32.gmra.mrb[0].mxu0 %v667
    %v737 = vpop.f32.mrb[0].mxu0
    %v738 = vadd.f32 0.0, %v737
    %v739 = vpop.f32.mrb[0].mxu0
    %740 = vdwg.mxu0
    %v741 = vmul.f32 %v738, 0.17677669
    %v742 = vadd.f32 %v741, %v331
    %v743 = vsel %vm332, %v742, -inf
    %744 = vmax.xlane.f32.xlu0 %v743
    %v745 = vpop.xlane.xlu0 %744
    %v746 = vsub.f32 %v742, %v745
    %v747 = vmul.f32 %v746, 1.442695
    %v748 = vpow.pop %v747
    %v749 = vsel %vm332, %v748, 0.0
    %750 = vadd.xlane.f32.xlu0 %v749
    %v751 = vpop.xlane.xlu0 %750
    %v752 = vrcp.pop %v751
    %v753 = vmul.f32 %v748, %v752
    %754 = vrot.lane.b32.xlu0 %v321, 64
    %v755 = vpop.permute.xlu0 %754
    %v758 = vsel %vm332, %v753, 0
    %760 = vmatprep.subr.mxu0 0.0
    %761 = vmatpush1.msra.mxu0 %v755
    %762 = vmatprep.subr.mxu0 0.0
    %763 = vmatpush1.msra.mxu0 0.0
    %764 = vmatprep.subr.mxu0 0.0
    %765 = vmatpush1.msra.mxu0 0.0
    %766 = vmatprep.subr.mxu0 0.0
    %767 = vmatpush1.msra.mxu0 0.0
    %768 = vmatprep.subr.mxu0 0.0
    %769 = vmatpush1.msra.mxu0 0.0
    %770 = vmatprep.subr.mxu0 0.0
    %771 = vmatpush1.msra.mxu0 0.0
    %772 = vmatprep.subr.mxu0 0.0
    %773 = vmatpush1.msra.mxu0 0.0
    %774 = vmatprep.subr.mxu0 0.0
    %775 = vmatpush1.msra.mxu0 0.0
    %776 = vmatprep.subr.mxu0 0.0
    %777 = vmatpush1.msra.mxu0 0.0
    %778 = vmatprep.subr.mxu0 0.0
    %779 = vmatpush1.msra.mxu0 0.0
    %780 = vmatprep.subr.mxu0 0.0
    %781 = vmatpush1.msra.mxu0 0.0
    %782 = vmatprep.subr.mxu0 0.0
    %783 = vmatpush1.msra.mxu0 0.0
    %784 = vmatprep.subr.mxu0 0.0
    %785 = vmatpush1.msra.mxu0 0.0
    %786 = vmatprep.subr.mxu0 0.0
    %787 = vmatpush1.msra.mxu0 0.0
    %788 = vmatprep.subr.mxu0 0.0
    %789 = vmatpush1.msra.mxu0 0.0
    %790 = vmatprep.subr.mxu0 0.0
    %791 = vmatpush1.msra.mxu0 0.0
    %792 = vmatprep.subr.mxu0 0.0
    %793 = vmatpush1.msra.mxu0 0.0
    %794 = vmatprep.subr.mxu0 0.0
    %795 = vmatpush1.msra.mxu0 0.0
    %796 = vmatprep.subr.mxu0 0.0
    %797 = vmatpush1.msra.mxu0 0.0
    %798 = vmatprep.subr.mxu0 0.0
    %799 = vmatpush1.msra.mxu0 0.0
    %800 = vmatprep.subr.mxu0 0.0
    %801 = vmatpush1.msra.mxu0 0.0
    %802 = vmatprep.subr.mxu0 0.0
    %803 = vmatpush1.msra.mxu0 0.0
    %804 = vmatprep.subr.mxu0 0.0
    %805 = vmatpush1.msra.mxu0 0.0
    %806 = vmatprep.subr.mxu0 0.0
    %807 = vmatpush1.msra.mxu0 0.0
    %808 = vmatprep.subr.mxu0 0.0
    %809 = vmatpush1.msra.mxu0 0.0
    %810 = vmatprep.subr.mxu0 0.0
    %811 = vmatpush1.msra.mxu0 0.0
    %812 = vmatprep.subr.mxu0 0.0
    %813 = vmatpush1.msra.mxu0 0.0
    %814 = vmatprep.subr.mxu0 0.0
    %815 = vmatpush1.msra.mxu0 0.0
    %816 = vmatprep.subr.mxu0 0.0
    %817 = vmatpush1.msra.mxu0 0.0
    %818 = vmatprep.subr.mxu0 0.0
    %819 = vmatpush1.msra.mxu0 0.0
    %820 = vmatprep.subr.mxu0 0.0
    %821 = vmatpush1.msra.mxu0 0.0
    %822 = vmatprep.subr.mxu0 0.0
    %823 = vmatpush1.msra.mxu0 0.0
    %824 = vmatprep.mubr.f32.mxu0 0.0
    %825 = vmatmul.mubr.f32.gmra.mrb[0].mxu0 %v758
    %v826 = vpop.f32.mrb[0].mxu0
    %v827 = vadd.f32 0.0, %v826
    %v828 = vpop.f32.mrb[0].mxu0
    %829 = vdwg.mxu0
    %v830 = vadd.f32 %v660, %v827
    %831 = vrot.lane.b32.xlu0 %v171, 104
    %v832 = vpop.permute.xlu0 %831
    %833 = vrot.lane.b32.xlu0 %v246, 104
    %v834 = vpop.permute.xlu0 %833
    %v835 = vsel %vm332, %v832, 0
    %v837 = vsel %vm332, %v834, 0
    %839 = vmatprep.subr.mxu0 0.0
    %840 = vmatpush1.xpose.msra.mxu0 %v837
    %841 = vmatprep.subr.mxu0 0.0
    %842 = vmatpush1.xpose.msra.mxu0 0.0
    %843 = vmatprep.subr.mxu0 0.0
    %844 = vmatpush1.xpose.msra.mxu0 0.0
    %845 = vmatprep.subr.mxu0 0.0
    %846 = vmatpush1.xpose.msra.mxu0 0.0
    %847 = vmatprep.subr.mxu0 0.0
    %848 = vmatpush1.xpose.msra.mxu0 0.0
    %849 = vmatprep.subr.mxu0 0.0
    %850 = vmatpush1.xpose.msra.mxu0 0.0
    %851 = vmatprep.subr.mxu0 0.0
    %852 = vmatpush1.xpose.msra.mxu0 0.0
    %853 = vmatprep.subr.mxu0 0.0
    %854 = vmatpush1.xpose.msra.mxu0 0.0
    %855 = vmatprep.subr.mxu0 0.0
    %856 = vmatpush1.xpose.msra.mxu0 0.0
    %857 = vmatprep.subr.mxu0 0.0
    %858 = vmatpush1.xpose.msra.mxu0 0.0
    %859 = vmatprep.subr.mxu0 0.0
    %860 = vmatpush1.xpose.msra.mxu0 0.0
    %861 = vmatprep.subr.mxu0 0.0
    %862 = vmatpush1.xpose.msra.mxu0 0.0
    %863 = vmatprep.subr.mxu0 0.0
    %864 = vmatpush1.xpose.msra.mxu0 0.0
    %865 = vmatprep.subr.mxu0 0.0
    %866 = vmatpush1.xpose.msra.mxu0 0.0
    %867 = vmatprep.subr.mxu0 0.0
    %868 = vmatpush1.xpose.msra.mxu0 0.0
    %869 = vmatprep.subr.mxu0 0.0
    %870 = vmatpush1.xpose.msra.mxu0 0.0
    %871 = vmatprep.subr.mxu0 0.0
    %872 = vmatpush1.xpose.msra.mxu0 0.0
    %873 = vmatprep.subr.mxu0 0.0
    %874 = vmatpush1.xpose.msra.mxu0 0.0
    %875 = vmatprep.subr.mxu0 0.0
    %876 = vmatpush1.xpose.msra.mxu0 0.0
    %877 = vmatprep.subr.mxu0 0.0
    %878 = vmatpush1.xpose.msra.mxu0 0.0
    %879 = vmatprep.subr.mxu0 0.0
    %880 = vmatpush1.xpose.msra.mxu0 0.0
    %881 = vmatprep.subr.mxu0 0.0
    %882 = vmatpush1.xpose.msra.mxu0 0.0
    %883 = vmatprep.subr.mxu0 0.0
    %884 = vmatpush1.xpose.msra.mxu0 0.0
    %885 = vmatprep.subr.mxu0 0.0
    %886 = vmatpush1.xpose.msra.mxu0 0.0
    %887 = vmatprep.subr.mxu0 0.0
    %888 = vmatpush1.xpose.msra.mxu0 0.0
    %889 = vmatprep.subr.mxu0 0.0
    %890 = vmatpush1.xpose.msra.mxu0 0.0
    %891 = vmatprep.subr.mxu0 0.0
    %892 = vmatpush1.xpose.msra.mxu0 0.0
    %893 = vmatprep.subr.mxu0 0.0
    %894 = vmatpush1.xpose.msra.mxu0 0.0
    %895 = vmatprep.subr.mxu0 0.0
    %896 = vmatpush1.xpose.msra.mxu0 0.0
    %897 = vmatprep.subr.mxu0 0.0
    %898 = vmatpush1.xpose.msra.mxu0 0.0
    %899 = vmatprep.subr.mxu0 0.0
    %900 = vmatpush1.xpose.msra.mxu0 0.0
    %901 = vmatprep.subr.mxu0 0.0
    %902 = vmatpush1.xpose.msra.mxu0 0.0
    %903 = vmatprep.mubr.f32.mxu0 0.0
    %904 = vmatmul.mubr.f32.gmra.mrb[0].mxu0 %v835
    %v905 = vpop.f32.mrb[0].mxu0
    %v906 = vadd.f32 0.0, %v905
    %v907 = vpop.f32.mrb[0].mxu0
    %908 = vdwg.mxu0
    %v909 = vmul.f32 %v906, 0.17677669
    %v910 = vadd.f32 %v909, %v331
    %v911 = vsel %vm332, %v910, -inf
    %912 = vmax.xlane.f32.xlu0 %v911
    %v913 = vpop.xlane.xlu0 %912
    %v914 = vsub.f32 %v910, %v913
    %v915 = vmul.f32 %v914, 1.442695
    %v916 = vpow.pop %v915
    %v917 = vsel %vm332, %v916, 0.0
    %918 = vadd.xlane.f32.xlu0 %v917
    %v919 = vpop.xlane.xlu0 %918
    %v920 = vrcp.pop %v919
    %v921 = vmul.f32 %v916, %v920
    %922 = vrot.lane.b32.xlu0 %v321, 32
    %v923 = vpop.permute.xlu0 %922
    %v926 = vsel %vm332, %v921, 0
    %928 = vmatprep.subr.mxu0 0.0
    %929 = vmatpush1.msra.mxu0 %v923
    %930 = vmatprep.subr.mxu0 0.0
    %931 = vmatpush1.msra.mxu0 0.0
    %932 = vmatprep.subr.mxu0 0.0
    %933 = vmatpush1.msra.mxu0 0.0
    %934 = vmatprep.subr.mxu0 0.0
    %935 = vmatpush1.msra.mxu0 0.0
    %936 = vmatprep.subr.mxu0 0.0
    %937 = vmatpush1.msra.mxu0 0.0
    %938 = vmatprep.subr.mxu0 0.0
    %939 = vmatpush1.msra.mxu0 0.0
    %940 = vmatprep.subr.mxu0 0.0
    %941 = vmatpush1.msra.mxu0 0.0
    %942 = vmatprep.subr.mxu0 0.0
    %943 = vmatpush1.msra.mxu0 0.0
    %944 = vmatprep.subr.mxu0 0.0
    %945 = vmatpush1.msra.mxu0 0.0
    %946 = vmatprep.subr.mxu0 0.0
    %947 = vmatpush1.msra.mxu0 0.0
    %948 = vmatprep.subr.mxu0 0.0
    %949 = vmatpush1.msra.mxu0 0.0
    %950 = vmatprep.subr.mxu0 0.0
    %951 = vmatpush1.msra.mxu0 0.0
    %952 = vmatprep.subr.mxu0 0.0
    %953 = vmatpush1.msra.mxu0 0.0
    %954 = vmatprep.subr.mxu0 0.0
    %955 = vmatpush1.msra.mxu0 0.0
    %956 = vmatprep.subr.mxu0 0.0
    %957 = vmatpush1.msra.mxu0 0.0
    %958 = vmatprep.subr.mxu0 0.0
    %959 = vmatpush1.msra.mxu0 0.0
    %960 = vmatprep.subr.mxu0 0.0
    %961 = vmatpush1.msra.mxu0 0.0
    %962 = vmatprep.subr.mxu0 0.0
    %963 = vmatpush1.msra.mxu0 0.0
    %964 = vmatprep.subr.mxu0 0.0
    %965 = vmatpush1.msra.mxu0 0.0
    %966 = vmatprep.subr.mxu0 0.0
    %967 = vmatpush1.msra.mxu0 0.0
    %968 = vmatprep.subr.mxu0 0.0
    %969 = vmatpush1.msra.mxu0 0.0
    %970 = vmatprep.subr.mxu0 0.0
    %971 = vmatpush1.msra.mxu0 0.0
    %972 = vmatprep.subr.mxu0 0.0
    %973 = vmatpush1.msra.mxu0 0.0
    %974 = vmatprep.subr.mxu0 0.0
    %975 = vmatpush1.msra.mxu0 0.0
    %976 = vmatprep.subr.mxu0 0.0
    %977 = vmatpush1.msra.mxu0 0.0
    %978 = vmatprep.subr.mxu0 0.0
    %979 = vmatpush1.msra.mxu0 0.0
    %980 = vmatprep.subr.mxu0 0.0
    %981 = vmatpush1.msra.mxu0 0.0
    %982 = vmatprep.subr.mxu0 0.0
    %983 = vmatpush1.msra.mxu0 0.0
    %984 = vmatprep.subr.mxu0 0.0
    %985 = vmatpush1.msra.mxu0 0.0
    %986 = vmatprep.subr.mxu0 0.0
    %987 = vmatpush1.msra.mxu0 0.0
    %988 = vmatprep.subr.mxu0 0.0
    %989 = vmatpush1.msra.mxu0 0.0
    %990 = vmatprep.subr.mxu0 0.0
    %991 = vmatpush1.msra.mxu0 0.0
    %992 = vmatprep.mubr.f32.mxu0 0.0
    %993 = vmatmul.mubr.f32.gmra.mrb[0].mxu0 %v926
    %v994 = vpop.f32.mrb[0].mxu0
    %v995 = vadd.f32 0.0, %v994
    %v996 = vpop.f32.mrb[0].mxu0
    %997 = vdwg.mxu0
    %v998 = vadd.f32 %v830, %v995
    %v1000 = vlaneseq
    %v1001 = vshrl.u32 %v1000, 7
    %v1002 = vsub.s32 0, %v1001
    %v1003 = vrot.slane %v96, %v1002
    %v1005 = vadd.f32 %v998, %v1003
    %1006 = vst.msk [vmem:[#allocation2] sm:$0xff] %vm97, %v1005
    %s1007 = scalar_lea.vmem %s2, 8
    %v1008 = vld [vmem:[%s1007] sm:$0xff]
    %vm1009 = vcmp.eq.f32.partialorder %v1008, 0.0
    %v1010 = vsel %vm1009, -1e+20, 0.0
    %v1012 = vsel %vm332, %v176, 0
    %v1015 = vsel %vm332, %v251, 0
    %1017 = vmatprep.subr.mxu0 0.0
    %1018 = vmatpush1.xpose.msra.mxu0 %v1015
    %1019 = vmatprep.subr.mxu0 0.0
    %1020 = vmatpush1.xpose.msra.mxu0 0.0
    %1021 = vmatprep.subr.mxu0 0.0
    %1022 = vmatpush1.xpose.msra.mxu0 0.0
    %1023 = vmatprep.subr.mxu0 0.0
    %1024 = vmatpush1.xpose.msra.mxu0 0.0
    %1025 = vmatprep.subr.mxu0 0.0
    %1026 = vmatpush1.xpose.msra.mxu0 0.0
    %1027 = vmatprep.subr.mxu0 0.0
    %1028 = vmatpush1.xpose.msra.mxu0 0.0
    %1029 = vmatprep.subr.mxu0 0.0
    %1030 = vmatpush1.xpose.msra.mxu0 0.0
    %1031 = vmatprep.subr.mxu0 0.0
    %1032 = vmatpush1.xpose.msra.mxu0 0.0
    %1033 = vmatprep.subr.mxu0 0.0
    %1034 = vmatpush1.xpose.msra.mxu0 0.0
    %1035 = vmatprep.subr.mxu0 0.0
    %1036 = vmatpush1.xpose.msra.mxu0 0.0
    %1037 = vmatprep.subr.mxu0 0.0
    %1038 = vmatpush1.xpose.msra.mxu0 0.0
    %1039 = vmatprep.subr.mxu0 0.0
    %1040 = vmatpush1.xpose.msra.mxu0 0.0
    %1041 = vmatprep.subr.mxu0 0.0
    %1042 = vmatpush1.xpose.msra.mxu0 0.0
    %1043 = vmatprep.subr.mxu0 0.0
    %1044 = vmatpush1.xpose.msra.mxu0 0.0
    %1045 = vmatprep.subr.mxu0 0.0
    %1046 = vmatpush1.xpose.msra.mxu0 0.0
    %1047 = vmatprep.subr.mxu0 0.0
    %1048 = vmatpush1.xpose.msra.mxu0 0.0
    %1049 = vmatprep.subr.mxu0 0.0
    %1050 = vmatpush1.xpose.msra.mxu0 0.0
    %1051 = vmatprep.subr.mxu0 0.0
    %1052 = vmatpush1.xpose.msra.mxu0 0.0
    %1053 = vmatprep.subr.mxu0 0.0
    %1054 = vmatpush1.xpose.msra.mxu0 0.0
    %1055 = vmatprep.subr.mxu0 0.0
    %1056 = vmatpush1.xpose.msra.mxu0 0.0
    %1057 = vmatprep.subr.mxu0 0.0
    %1058 = vmatpush1.xpose.msra.mxu0 0.0
    %1059 = vmatprep.subr.mxu0 0.0
    %1060 = vmatpush1.xpose.msra.mxu0 0.0
    %1061 = vmatprep.subr.mxu0 0.0
    %1062 = vmatpush1.xpose.msra.mxu0 0.0
    %1063 = vmatprep.subr.mxu0 0.0
    %1064 = vmatpush1.xpose.msra.mxu0 0.0
    %1065 = vmatprep.subr.mxu0 0.0
    %1066 = vmatpush1.xpose.msra.mxu0 0.0
    %1067 = vmatprep.subr.mxu0 0.0
    %1068 = vmatpush1.xpose.msra.mxu0 0.0
    %1069 = vmatprep.subr.mxu0 0.0
    %1070 = vmatpush1.xpose.msra.mxu0 0.0
    %1071 = vmatprep.subr.mxu0 0.0
    %1072 = vmatpush1.xpose.msra.mxu0 0.0
    %1073 = vmatprep.subr.mxu0 0.0
    %1074 = vmatpush1.xpose.msra.mxu0 0.0
    %1075 = vmatprep.subr.mxu0 0.0
    %1076 = vmatpush1.xpose.msra.mxu0 0.0
    %1077 = vmatprep.subr.mxu0 0.0
    %1078 = vmatpush1.xpose.msra.mxu0 0.0
    %1079 = vmatprep.subr.mxu0 0.0
    %1080 = vmatpush1.xpose.msra.mxu0 0.0
    %1081 = vmatprep.mubr.f32.mxu0 0.0
    %1082 = vmatmul.mubr.f32.gmra.mrb[0].mxu0 %v1012
    %v1083 = vpop.f32.mrb[0].mxu0
    %v1084 = vadd.f32 0.0, %v1083
    %v1085 = vpop.f32.mrb[0].mxu0
    %1086 = vdwg.mxu0
    %v1087 = vmul.f32 %v1084, 0.17677669
    %v1088 = vadd.f32 %v1087, %v1010
    %v1089 = vsel %vm332, %v1088, -inf
    %1090 = vmax.xlane.f32.xlu0 %v1089
    %v1091 = vpop.xlane.xlu0 %1090
    %v1092 = vsub.f32 %v1088, %v1091
    %v1093 = vmul.f32 %v1092, 1.442695
    %v1094 = vpow.pop %v1093
    %v1095 = vsel %vm332, %v1094, 0.0
    %1096 = vadd.xlane.f32.xlu0 %v1095
    %v1097 = vpop.xlane.xlu0 %1096
    %v1098 = vrcp.pop %v1097
    %v1099 = vmul.f32 %v1094, %v1098
    %1100 = vrot.lane.b32.xlu0 %v176, 120
    %v1101 = vpop.permute.xlu0 %1100
    %1102 = vrot.lane.b32.xlu0 %v251, 120
    %v1103 = vpop.permute.xlu0 %1102
    %v1104 = vsel %vm332, %v1101, 0
    %v1106 = vsel %vm332, %v1103, 0
    %1108 = vmatprep.subr.mxu0 0.0
    %1109 = vmatpush1.xpose.msra.mxu0 %v1106
    %1110 = vmatprep.subr.mxu0 0.0
    %1111 = vmatpush1.xpose.msra.mxu0 0.0
    %1112 = vmatprep.subr.mxu0 0.0
    %1113 = vmatpush1.xpose.msra.mxu0 0.0
    %1114 = vmatprep.subr.mxu0 0.0
    %1115 = vmatpush1.xpose.msra.mxu0 0.0
    %1116 = vmatprep.subr.mxu0 0.0
    %1117 = vmatpush1.xpose.msra.mxu0 0.0
    %1118 = vmatprep.subr.mxu0 0.0
    %1119 = vmatpush1.xpose.msra.mxu0 0.0
    %1120 = vmatprep.subr.mxu0 0.0
    %1121 = vmatpush1.xpose.msra.mxu0 0.0
    %1122 = vmatprep.subr.mxu0 0.0
    %1123 = vmatpush1.xpose.msra.mxu0 0.0
    %1124 = vmatprep.subr.mxu0 0.0
    %1125 = vmatpush1.xpose.msra.mxu0 0.0
    %1126 = vmatprep.subr.mxu0 0.0
    %1127 = vmatpush1.xpose.msra.mxu0 0.0
    %1128 = vmatprep.subr.mxu0 0.0
    %1129 = vmatpush1.xpose.msra.mxu0 0.0
    %1130 = vmatprep.subr.mxu0 0.0
    %1131 = vmatpush1.xpose.msra.mxu0 0.0
    %1132 = vmatprep.subr.mxu0 0.0
    %1133 = vmatpush1.xpose.msra.mxu0 0.0
    %1134 = vmatprep.subr.mxu0 0.0
    %1135 = vmatpush1.xpose.msra.mxu0 0.0
    %1136 = vmatprep.subr.mxu0 0.0
    %1137 = vmatpush1.xpose.msra.mxu0 0.0
    %1138 = vmatprep.subr.mxu0 0.0
    %1139 = vmatpush1.xpose.msra.mxu0 0.0
    %1140 = vmatprep.subr.mxu0 0.0
    %1141 = vmatpush1.xpose.msra.mxu0 0.0
    %1142 = vmatprep.subr.mxu0 0.0
    %1143 = vmatpush1.xpose.msra.mxu0 0.0
    %1144 = vmatprep.subr.mxu0 0.0
    %1145 = vmatpush1.xpose.msra.mxu0 0.0
    %1146 = vmatprep.subr.mxu0 0.0
    %1147 = vmatpush1.xpose.msra.mxu0 0.0
    %1148 = vmatprep.subr.mxu0 0.0
    %1149 = vmatpush1.xpose.msra.mxu0 0.0
    %1150 = vmatprep.subr.mxu0 0.0
    %1151 = vmatpush1.xpose.msra.mxu0 0.0
    %1152 = vmatprep.subr.mxu0 0.0
    %1153 = vmatpush1.xpose.msra.mxu0 0.0
    %1154 = vmatprep.subr.mxu0 0.0
    %1155 = vmatpush1.xpose.msra.mxu0 0.0
    %1156 = vmatprep.subr.mxu0 0.0
    %1157 = vmatpush1.xpose.msra.mxu0 0.0
    %1158 = vmatprep.subr.mxu0 0.0
    %1159 = vmatpush1.xpose.msra.mxu0 0.0
    %1160 = vmatprep.subr.mxu0 0.0
    %1161 = vmatpush1.xpose.msra.mxu0 0.0
    %1162 = vmatprep.subr.mxu0 0.0
    %1163 = vmatpush1.xpose.msra.mxu0 0.0
    %1164 = vmatprep.subr.mxu0 0.0
    %1165 = vmatpush1.xpose.msra.mxu0 0.0
    %1166 = vmatprep.subr.mxu0 0.0
    %1167 = vmatpush1.xpose.msra.mxu0 0.0
    %1168 = vmatprep.subr.mxu0 0.0
    %1169 = vmatpush1.xpose.msra.mxu0 0.0
    %1170 = vmatprep.subr.mxu0 0.0
    %1171 = vmatpush1.xpose.msra.mxu0 0.0
    %1172 = vmatprep.mubr.f32.mxu0 0.0
    %1173 = vmatmul.mubr.f32.gmra.mrb[0].mxu0 %v1104
    %v1174 = vpop.f32.mrb[0].mxu0
    %v1175 = vadd.f32 0.0, %v1174
    %v1176 = vpop.f32.mrb[0].mxu0
    %1177 = vdwg.mxu0
    %v1178 = vmul.f32 %v1175, 0.17677669
    %v1179 = vadd.f32 %v1178, %v1010
    %v1180 = vsel %vm332, %v1179, -inf
    %1181 = vmax.xlane.f32.xlu0 %v1180
    %v1182 = vpop.xlane.xlu0 %1181
    %v1183 = vsub.f32 %v1179, %v1182
    %v1184 = vmul.f32 %v1183, 1.442695
    %v1185 = vpow.pop %v1184
    %v1186 = vsel %vm332, %v1185, 0.0
    %1187 = vadd.xlane.f32.xlu0 %v1186
    %v1188 = vpop.xlane.xlu0 %1187
    %v1189 = vrcp.pop %v1188
    %v1190 = vmul.f32 %v1185, %v1189
    %1192 = vrot.lane.b32.xlu0 %v326, 96
    %v1193 = vpop.permute.xlu0 %1192
    %v1196 = vsel %vm332, %v1190, 0
    %1198 = vmatprep.subr.mxu0 0.0
    %1199 = vmatpush1.msra.mxu0 %v1193
    %1200 = vmatprep.subr.mxu0 0.0
    %1201 = vmatpush1.msra.mxu0 0.0
    %1202 = vmatprep.subr.mxu0 0.0
    %1203 = vmatpush1.msra.mxu0 0.0
    %1204 = vmatprep.subr.mxu0 0.0
    %1205 = vmatpush1.msra.mxu0 0.0
    %1206 = vmatprep.subr.mxu0 0.0
    %1207 = vmatpush1.msra.mxu0 0.0
    %1208 = vmatprep.subr.mxu0 0.0
    %1209 = vmatpush1.msra.mxu0 0.0
    %1210 = vmatprep.subr.mxu0 0.0
    %1211 = vmatpush1.msra.mxu0 0.0
    %1212 = vmatprep.subr.mxu0 0.0
    %1213 = vmatpush1.msra.mxu0 0.0
    %1214 = vmatprep.subr.mxu0 0.0
    %1215 = vmatpush1.msra.mxu0 0.0
    %1216 = vmatprep.subr.mxu0 0.0
    %1217 = vmatpush1.msra.mxu0 0.0
    %1218 = vmatprep.subr.mxu0 0.0
    %1219 = vmatpush1.msra.mxu0 0.0
    %1220 = vmatprep.subr.mxu0 0.0
    %1221 = vmatpush1.msra.mxu0 0.0
    %1222 = vmatprep.subr.mxu0 0.0
    %1223 = vmatpush1.msra.mxu0 0.0
    %1224 = vmatprep.subr.mxu0 0.0
    %1225 = vmatpush1.msra.mxu0 0.0
    %1226 = vmatprep.subr.mxu0 0.0
    %1227 = vmatpush1.msra.mxu0 0.0
    %1228 = vmatprep.subr.mxu0 0.0
    %1229 = vmatpush1.msra.mxu0 0.0
    %1230 = vmatprep.subr.mxu0 0.0
    %1231 = vmatpush1.msra.mxu0 0.0
    %1232 = vmatprep.subr.mxu0 0.0
    %1233 = vmatpush1.msra.mxu0 0.0
    %1234 = vmatprep.subr.mxu0 0.0
    %1235 = vmatpush1.msra.mxu0 0.0
    %1236 = vmatprep.subr.mxu0 0.0
    %1237 = vmatpush1.msra.mxu0 0.0
    %1238 = vmatprep.subr.mxu0 0.0
    %1239 = vmatpush1.msra.mxu0 0.0
    %1240 = vmatprep.subr.mxu0 0.0
    %1241 = vmatpush1.msra.mxu0 0.0
    %1242 = vmatprep.subr.mxu0 0.0
    %1243 = vmatpush1.msra.mxu0 0.0
    %1244 = vmatprep.subr.mxu0 0.0
    %1245 = vmatpush1.msra.mxu0 0.0
    %1246 = vmatprep.subr.mxu0 0.0
    %1247 = vmatpush1.msra.mxu0 0.0
    %1248 = vmatprep.subr.mxu0 0.0
    %1249 = vmatpush1.msra.mxu0 0.0
    %1250 = vmatprep.subr.mxu0 0.0
    %1251 = vmatpush1.msra.mxu0 0.0
    %1252 = vmatprep.subr.mxu0 0.0
    %1253 = vmatpush1.msra.mxu0 0.0
    %1254 = vmatprep.subr.mxu0 0.0
    %1255 = vmatpush1.msra.mxu0 0.0
    %1256 = vmatprep.subr.mxu0 0.0
    %1257 = vmatpush1.msra.mxu0 0.0
    %1258 = vmatprep.subr.mxu0 0.0
    %1259 = vmatpush1.msra.mxu0 0.0
    %1260 = vmatprep.subr.mxu0 0.0
    %1261 = vmatpush1.msra.mxu0 0.0
    %1262 = vmatprep.mubr.f32.mxu0 0.0
    %1263 = vmatmul.mubr.f32.gmra.mrb[0].mxu0 %v1196
    %v1264 = vpop.f32.mrb[0].mxu0
    %v1265 = vadd.f32 0.0, %v1264
    %v1266 = vpop.f32.mrb[0].mxu0
    %1267 = vdwg.mxu0
    %v1269 = vsel %vm332, %v1099, 0
    %1271 = vmatprep.subr.mxu0 0.0
    %1272 = vmatpush1.msra.mxu0 %v326
    %1273 = vmatprep.subr.mxu0 0.0
    %1274 = vmatpush1.msra.mxu0 0.0
    %1275 = vmatprep.subr.mxu0 0.0
    %1276 = vmatpush1.msra.mxu0 0.0
    %1277 = vmatprep.subr.mxu0 0.0
    %1278 = vmatpush1.msra.mxu0 0.0
    %1279 = vmatprep.subr.mxu0 0.0
    %1280 = vmatpush1.msra.mxu0 0.0
    %1281 = vmatprep.subr.mxu0 0.0
    %1282 = vmatpush1.msra.mxu0 0.0
    %1283 = vmatprep.subr.mxu0 0.0
    %1284 = vmatpush1.msra.mxu0 0.0
    %1285 = vmatprep.subr.mxu0 0.0
    %1286 = vmatpush1.msra.mxu0 0.0
    %1287 = vmatprep.subr.mxu0 0.0
    %1288 = vmatpush1.msra.mxu0 0.0
    %1289 = vmatprep.subr.mxu0 0.0
    %1290 = vmatpush1.msra.mxu0 0.0
    %1291 = vmatprep.subr.mxu0 0.0
    %1292 = vmatpush1.msra.mxu0 0.0
    %1293 = vmatprep.subr.mxu0 0.0
    %1294 = vmatpush1.msra.mxu0 0.0
    %1295 = vmatprep.subr.mxu0 0.0
    %1296 = vmatpush1.msra.mxu0 0.0
    %1297 = vmatprep.subr.mxu0 0.0
    %1298 = vmatpush1.msra.mxu0 0.0
    %1299 = vmatprep.subr.mxu0 0.0
    %1300 = vmatpush1.msra.mxu0 0.0
    %1301 = vmatprep.subr.mxu0 0.0
    %1302 = vmatpush1.msra.mxu0 0.0
    %1303 = vmatprep.subr.mxu0 0.0
    %1304 = vmatpush1.msra.mxu0 0.0
    %1305 = vmatprep.subr.mxu0 0.0
    %1306 = vmatpush1.msra.mxu0 0.0
    %1307 = vmatprep.subr.mxu0 0.0
    %1308 = vmatpush1.msra.mxu0 0.0
    %1309 = vmatprep.subr.mxu0 0.0
    %1310 = vmatpush1.msra.mxu0 0.0
    %1311 = vmatprep.subr.mxu0 0.0
    %1312 = vmatpush1.msra.mxu0 0.0
    %1313 = vmatprep.subr.mxu0 0.0
    %1314 = vmatpush1.msra.mxu0 0.0
    %1315 = vmatprep.subr.mxu0 0.0
    %1316 = vmatpush1.msra.mxu0 0.0
    %1317 = vmatprep.subr.mxu0 0.0
    %1318 = vmatpush1.msra.mxu0 0.0
    %1319 = vmatprep.subr.mxu0 0.0
    %1320 = vmatpush1.msra.mxu0 0.0
    %1321 = vmatprep.subr.mxu0 0.0
    %1322 = vmatpush1.msra.mxu0 0.0
    %1323 = vmatprep.subr.mxu0 0.0
    %1324 = vmatpush1.msra.mxu0 0.0
    %1325 = vmatprep.subr.mxu0 0.0
    %1326 = vmatpush1.msra.mxu0 0.0
    %1327 = vmatprep.subr.mxu0 0.0
    %1328 = vmatpush1.msra.mxu0 0.0
    %1329 = vmatprep.subr.mxu0 0.0
    %1330 = vmatpush1.msra.mxu0 0.0
    %1331 = vmatprep.subr.mxu0 0.0
    %1332 = vmatpush1.msra.mxu0 0.0
    %1333 = vmatprep.subr.mxu0 0.0
    %1334 = vmatpush1.msra.mxu0 0.0
    %1335 = vmatprep.mubr.f32.mxu0 0.0
    %1336 = vmatmul.mubr.f32.gmra.mrb[0].mxu0 %v1269
    %v1337 = vpop.f32.mrb[0].mxu0
    %v1338 = vadd.f32 %v1265, %v1337
    %v1339 = vpop.f32.mrb[0].mxu0
    %1340 = vdwg.mxu0
    %1341 = vrot.lane.b32.xlu0 %v176, 112
    %v1342 = vpop.permute.xlu0 %1341
    %1343 = vrot.lane.b32.xlu0 %v251, 112
    %v1344 = vpop.permute.xlu0 %1343
    %v1345 = vsel %vm332, %v1342, 0
    %v1347 = vsel %vm332, %v1344, 0
    %1349 = vmatprep.subr.mxu0 0.0
    %1350 = vmatpush1.xpose.msra.mxu0 %v1347
    %1351 = vmatprep.subr.mxu0 0.0
    %1352 = vmatpush1.xpose.msra.mxu0 0.0
    %1353 = vmatprep.subr.mxu0 0.0
    %1354 = vmatpush1.xpose.msra.mxu0 0.0
    %1355 = vmatprep.subr.mxu0 0.0
    %1356 = vmatpush1.xpose.msra.mxu0 0.0
    %1357 = vmatprep.subr.mxu0 0.0
    %1358 = vmatpush1.xpose.msra.mxu0 0.0
    %1359 = vmatprep.subr.mxu0 0.0
    %1360 = vmatpush1.xpose.msra.mxu0 0.0
    %1361 = vmatprep.subr.mxu0 0.0
    %1362 = vmatpush1.xpose.msra.mxu0 0.0
    %1363 = vmatprep.subr.mxu0 0.0
    %1364 = vmatpush1.xpose.msra.mxu0 0.0
    %1365 = vmatprep.subr.mxu0 0.0
    %1366 = vmatpush1.xpose.msra.mxu0 0.0
    %1367 = vmatprep.subr.mxu0 0.0
    %1368 = vmatpush1.xpose.msra.mxu0 0.0
    %1369 = vmatprep.subr.mxu0 0.0
    %1370 = vmatpush1.xpose.msra.mxu0 0.0
    %1371 = vmatprep.subr.mxu0 0.0
    %1372 = vmatpush1.xpose.msra.mxu0 0.0
    %1373 = vmatprep.subr.mxu0 0.0
    %1374 = vmatpush1.xpose.msra.mxu0 0.0
    %1375 = vmatprep.subr.mxu0 0.0
    %1376 = vmatpush1.xpose.msra.mxu0 0.0
    %1377 = vmatprep.subr.mxu0 0.0
    %1378 = vmatpush1.xpose.msra.mxu0 0.0
    %1379 = vmatprep.subr.mxu0 0.0
    %1380 = vmatpush1.xpose.msra.mxu0 0.0
    %1381 = vmatprep.subr.mxu0 0.0
    %1382 = vmatpush1.xpose.msra.mxu0 0.0
    %1383 = vmatprep.subr.mxu0 0.0
    %1384 = vmatpush1.xpose.msra.mxu0 0.0
    %1385 = vmatprep.subr.mxu0 0.0
    %1386 = vmatpush1.xpose.msra.mxu0 0.0
    %1387 = vmatprep.subr.mxu0 0.0
    %1388 = vmatpush1.xpose.msra.mxu0 0.0
    %1389 = vmatprep.subr.mxu0 0.0
    %1390 = vmatpush1.xpose.msra.mxu0 0.0
    %1391 = vmatprep.subr.mxu0 0.0
    %1392 = vmatpush1.xpose.msra.mxu0 0.0
    %1393 = vmatprep.subr.mxu0 0.0
    %1394 = vmatpush1.xpose.msra.mxu0 0.0
    %1395 = vmatprep.subr.mxu0 0.0
    %1396 = vmatpush1.xpose.msra.mxu0 0.0
    %1397 = vmatprep.subr.mxu0 0.0
    %1398 = vmatpush1.xpose.msra.mxu0 0.0
    %1399 = vmatprep.subr.mxu0 0.0
    %1400 = vmatpush1.xpose.msra.mxu0 0.0
    %1401 = vmatprep.subr.mxu0 0.0
    %1402 = vmatpush1.xpose.msra.mxu0 0.0
    %1403 = vmatprep.subr.mxu0 0.0
    %1404 = vmatpush1.xpose.msra.mxu0 0.0
    %1405 = vmatprep.subr.mxu0 0.0
    %1406 = vmatpush1.xpose.msra.mxu0 0.0
    %1407 = vmatprep.subr.mxu0 0.0
    %1408 = vmatpush1.xpose.msra.mxu0 0.0
    %1409 = vmatprep.subr.mxu0 0.0
    %1410 = vmatpush1.xpose.msra.mxu0 0.0
    %1411 = vmatprep.subr.mxu0 0.0
    %1412 = vmatpush1.xpose.msra.mxu0 0.0
    %1413 = vmatprep.mubr.f32.mxu0 0.0
    %1414 = vmatmul.mubr.f32.gmra.mrb[0].mxu0 %v1345
    %v1415 = vpop.f32.mrb[0].mxu0
    %v1416 = vadd.f32 0.0, %v1415
    %v1417 = vpop.f32.mrb[0].mxu0
    %1418 = vdwg.mxu0
    %v1419 = vmul.f32 %v1416, 0.17677669
    %v1420 = vadd.f32 %v1419, %v1010
    %v1421 = vsel %vm332, %v1420, -inf
    %1422 = vmax.xlane.f32.xlu0 %v1421
    %v1423 = vpop.xlane.xlu0 %1422
    %v1424 = vsub.f32 %v1420, %v1423
    %v1425 = vmul.f32 %v1424, 1.442695
    %v1426 = vpow.pop %v1425
    %v1427 = vsel %vm332, %v1426, 0.0
    %1428 = vadd.xlane.f32.xlu0 %v1427
    %v1429 = vpop.xlane.xlu0 %1428
    %v1430 = vrcp.pop %v1429
    %v1431 = vmul.f32 %v1426, %v1430
    %1432 = vrot.lane.b32.xlu0 %v326, 64
    %v1433 = vpop.permute.xlu0 %1432
    %v1436 = vsel %vm332, %v1431, 0
    %1438 = vmatprep.subr.mxu0 0.0
    %1439 = vmatpush1.msra.mxu0 %v1433
    %1440 = vmatprep.subr.mxu0 0.0
    %1441 = vmatpush1.msra.mxu0 0.0
    %1442 = vmatprep.subr.mxu0 0.0
    %1443 = vmatpush1.msra.mxu0 0.0
    %1444 = vmatprep.subr.mxu0 0.0
    %1445 = vmatpush1.msra.mxu0 0.0
    %1446 = vmatprep.subr.mxu0 0.0
    %1447 = vmatpush1.msra.mxu0 0.0
    %1448 = vmatprep.subr.mxu0 0.0
    %1449 = vmatpush1.msra.mxu0 0.0
    %1450 = vmatprep.subr.mxu0 0.0
    %1451 = vmatpush1.msra.mxu0 0.0
    %1452 = vmatprep.subr.mxu0 0.0
    %1453 = vmatpush1.msra.mxu0 0.0
    %1454 = vmatprep.subr.mxu0 0.0
    %1455 = vmatpush1.msra.mxu0 0.0
    %1456 = vmatprep.subr.mxu0 0.0
    %1457 = vmatpush1.msra.mxu0 0.0
    %1458 = vmatprep.subr.mxu0 0.0
    %1459 = vmatpush1.msra.mxu0 0.0
    %1460 = vmatprep.subr.mxu0 0.0
    %1461 = vmatpush1.msra.mxu0 0.0
    %1462 = vmatprep.subr.mxu0 0.0
    %1463 = vmatpush1.msra.mxu0 0.0
    %1464 = vmatprep.subr.mxu0 0.0
    %1465 = vmatpush1.msra.mxu0 0.0
    %1466 = vmatprep.subr.mxu0 0.0
    %1467 = vmatpush1.msra.mxu0 0.0
    %1468 = vmatprep.subr.mxu0 0.0
    %1469 = vmatpush1.msra.mxu0 0.0
    %1470 = vmatprep.subr.mxu0 0.0
    %1471 = vmatpush1.msra.mxu0 0.0
    %1472 = vmatprep.subr.mxu0 0.0
    %1473 = vmatpush1.msra.mxu0 0.0
    %1474 = vmatprep.subr.mxu0 0.0
    %1475 = vmatpush1.msra.mxu0 0.0
    %1476 = vmatprep.subr.mxu0 0.0
    %1477 = vmatpush1.msra.mxu0 0.0
    %1478 = vmatprep.subr.mxu0 0.0
    %1479 = vmatpush1.msra.mxu0 0.0
    %1480 = vmatprep.subr.mxu0 0.0
    %1481 = vmatpush1.msra.mxu0 0.0
    %1482 = vmatprep.subr.mxu0 0.0
    %1483 = vmatpush1.msra.mxu0 0.0
    %1484 = vmatprep.subr.mxu0 0.0
    %1485 = vmatpush1.msra.mxu0 0.0
    %1486 = vmatprep.subr.mxu0 0.0
    %1487 = vmatpush1.msra.mxu0 0.0
    %1488 = vmatprep.subr.mxu0 0.0
    %1489 = vmatpush1.msra.mxu0 0.0
    %1490 = vmatprep.subr.mxu0 0.0
    %1491 = vmatpush1.msra.mxu0 0.0
    %1492 = vmatprep.subr.mxu0 0.0
    %1493 = vmatpush1.msra.mxu0 0.0
    %1494 = vmatprep.subr.mxu0 0.0
    %1495 = vmatpush1.msra.mxu0 0.0
    %1496 = vmatprep.subr.mxu0 0.0
    %1497 = vmatpush1.msra.mxu0 0.0
    %1498 = vmatprep.subr.mxu0 0.0
    %1499 = vmatpush1.msra.mxu0 0.0
    %1500 = vmatprep.subr.mxu0 0.0
    %1501 = vmatpush1.msra.mxu0 0.0
    %1502 = vmatprep.mubr.f32.mxu0 0.0
    %1503 = vmatmul.mubr.f32.gmra.mrb[0].mxu0 %v1436
    %v1504 = vpop.f32.mrb[0].mxu0
    %v1505 = vadd.f32 0.0, %v1504
    %v1506 = vpop.f32.mrb[0].mxu0
    %1507 = vdwg.mxu0
    %v1508 = vadd.f32 %v1338, %v1505
    %1509 = vrot.lane.b32.xlu0 %v176, 104
    %v1510 = vpop.permute.xlu0 %1509
    %1511 = vrot.lane.b32.xlu0 %v251, 104
    %v1512 = vpop.permute.xlu0 %1511
    %v1513 = vsel %vm332, %v1510, 0
    %v1515 = vsel %vm332, %v1512, 0
    %1517 = vmatprep.subr.mxu0 0.0
    %1518 = vmatpush1.xpose.msra.mxu0 %v1515
    %1519 = vmatprep.subr.mxu0 0.0
    %1520 = vmatpush1.xpose.msra.mxu0 0.0
    %1521 = vmatprep.subr.mxu0 0.0
    %1522 = vmatpush1.xpose.msra.mxu0 0.0
    %1523 = vmatprep.subr.mxu0 0.0
    %1524 = vmatpush1.xpose.msra.mxu0 0.0
    %1525 = vmatprep.subr.mxu0 0.0
    %1526 = vmatpush1.xpose.msra.mxu0 0.0
    %1527 = vmatprep.subr.mxu0 0.0
    %1528 = vmatpush1.xpose.msra.mxu0 0.0
    %1529 = vmatprep.subr.mxu0 0.0
    %1530 = vmatpush1.xpose.msra.mxu0 0.0
    %1531 = vmatprep.subr.mxu0 0.0
    %1532 = vmatpush1.xpose.msra.mxu0 0.0
    %1533 = vmatprep.subr.mxu0 0.0
    %1534 = vmatpush1.xpose.msra.mxu0 0.0
    %1535 = vmatprep.subr.mxu0 0.0
    %1536 = vmatpush1.xpose.msra.mxu0 0.0
    %1537 = vmatprep.subr.mxu0 0.0
    %1538 = vmatpush1.xpose.msra.mxu0 0.0
    %1539 = vmatprep.subr.mxu0 0.0
    %1540 = vmatpush1.xpose.msra.mxu0 0.0
    %1541 = vmatprep.subr.mxu0 0.0
    %1542 = vmatpush1.xpose.msra.mxu0 0.0
    %1543 = vmatprep.subr.mxu0 0.0
    %1544 = vmatpush1.xpose.msra.mxu0 0.0
    %1545 = vmatprep.subr.mxu0 0.0
    %1546 = vmatpush1.xpose.msra.mxu0 0.0
    %1547 = vmatprep.subr.mxu0 0.0
    %1548 = vmatpush1.xpose.msra.mxu0 0.0
    %1549 = vmatprep.subr.mxu0 0.0
    %1550 = vmatpush1.xpose.msra.mxu0 0.0
    %1551 = vmatprep.subr.mxu0 0.0
    %1552 = vmatpush1.xpose.msra.mxu0 0.0
    %1553 = vmatprep.subr.mxu0 0.0
    %1554 = vmatpush1.xpose.msra.mxu0 0.0
    %1555 = vmatprep.subr.mxu0 0.0
    %1556 = vmatpush1.xpose.msra.mxu0 0.0
    %1557 = vmatprep.subr.mxu0 0.0
    %1558 = vmatpush1.xpose.msra.mxu0 0.0
    %1559 = vmatprep.subr.mxu0 0.0
    %1560 = vmatpush1.xpose.msra.mxu0 0.0
    %1561 = vmatprep.subr.mxu0 0.0
    %1562 = vmatpush1.xpose.msra.mxu0 0.0
    %1563 = vmatprep.subr.mxu0 0.0
    %1564 = vmatpush1.xpose.msra.mxu0 0.0
    %1565 = vmatprep.subr.mxu0 0.0
    %1566 = vmatpush1.xpose.msra.mxu0 0.0
    %1567 = vmatprep.subr.mxu0 0.0
    %1568 = vmatpush1.xpose.msra.mxu0 0.0
    %1569 = vmatprep.subr.mxu0 0.0
    %1570 = vmatpush1.xpose.msra.mxu0 0.0
    %1571 = vmatprep.subr.mxu0 0.0
    %1572 = vmatpush1.xpose.msra.mxu0 0.0
    %1573 = vmatprep.subr.mxu0 0.0
    %1574 = vmatpush1.xpose.msra.mxu0 0.0
    %1575 = vmatprep.subr.mxu0 0.0
    %1576 = vmatpush1.xpose.msra.mxu0 0.0
    %1577 = vmatprep.subr.mxu0 0.0
    %1578 = vmatpush1.xpose.msra.mxu0 0.0
    %1579 = vmatprep.subr.mxu0 0.0
    %1580 = vmatpush1.xpose.msra.mxu0 0.0
    %1581 = vmatprep.mubr.f32.mxu0 0.0
    %1582 = vmatmul.mubr.f32.gmra.mrb[0].mxu0 %v1513
    %v1583 = vpop.f32.mrb[0].mxu0
    %v1584 = vadd.f32 0.0, %v1583
    %v1585 = vpop.f32.mrb[0].mxu0
    %1586 = vdwg.mxu0
    %v1587 = vmul.f32 %v1584, 0.17677669
    %v1588 = vadd.f32 %v1587, %v1010
    %v1589 = vsel %vm332, %v1588, -inf
    %1590 = vmax.xlane.f32.xlu0 %v1589
    %v1591 = vpop.xlane.xlu0 %1590
    %v1592 = vsub.f32 %v1588, %v1591
    %v1593 = vmul.f32 %v1592, 1.442695
    %v1594 = vpow.pop %v1593
    %v1595 = vsel %vm332, %v1594, 0.0
    %1596 = vadd.xlane.f32.xlu0 %v1595
    %v1597 = vpop.xlane.xlu0 %1596
    %v1598 = vrcp.pop %v1597
    %v1599 = vmul.f32 %v1594, %v1598
    %1600 = vrot.lane.b32.xlu0 %v326, 32
    %v1601 = vpop.permute.xlu0 %1600
    %v1604 = vsel %vm332, %v1599, 0
    %1606 = vmatprep.subr.mxu0 0.0
    %1607 = vmatpush1.msra.mxu0 %v1601
    %1608 = vmatprep.subr.mxu0 0.0
    %1609 = vmatpush1.msra.mxu0 0.0
    %1610 = vmatprep.subr.mxu0 0.0
    %1611 = vmatpush1.msra.mxu0 0.0
    %1612 = vmatprep.subr.mxu0 0.0
    %1613 = vmatpush1.msra.mxu0 0.0
    %1614 = vmatprep.subr.mxu0 0.0
    %1615 = vmatpush1.msra.mxu0 0.0
    %1616 = vmatprep.subr.mxu0 0.0
    %1617 = vmatpush1.msra.mxu0 0.0
    %1618 = vmatprep.subr.mxu0 0.0
    %1619 = vmatpush1.msra.mxu0 0.0
    %1620 = vmatprep.subr.mxu0 0.0
    %1621 = vmatpush1.msra.mxu0 0.0
    %1622 = vmatprep.subr.mxu0 0.0
    %1623 = vmatpush1.msra.mxu0 0.0
    %1624 = vmatprep.subr.mxu0 0.0
    %1625 = vmatpush1.msra.mxu0 0.0
    %1626 = vmatprep.subr.mxu0 0.0
    %1627 = vmatpush1.msra.mxu0 0.0
    %1628 = vmatprep.subr.mxu0 0.0
    %1629 = vmatpush1.msra.mxu0 0.0
    %1630 = vmatprep.subr.mxu0 0.0
    %1631 = vmatpush1.msra.mxu0 0.0
    %1632 = vmatprep.subr.mxu0 0.0
    %1633 = vmatpush1.msra.mxu0 0.0
    %1634 = vmatprep.subr.mxu0 0.0
    %1635 = vmatpush1.msra.mxu0 0.0
    %1636 = vmatprep.subr.mxu0 0.0
    %1637 = vmatpush1.msra.mxu0 0.0
    %1638 = vmatprep.subr.mxu0 0.0
    %1639 = vmatpush1.msra.mxu0 0.0
    %1640 = vmatprep.subr.mxu0 0.0
    %1641 = vmatpush1.msra.mxu0 0.0
    %1642 = vmatprep.subr.mxu0 0.0
    %1643 = vmatpush1.msra.mxu0 0.0
    %1644 = vmatprep.subr.mxu0 0.0
    %1645 = vmatpush1.msra.mxu0 0.0
    %1646 = vmatprep.subr.mxu0 0.0
    %1647 = vmatpush1.msra.mxu0 0.0
    %1648 = vmatprep.subr.mxu0 0.0
    %1649 = vmatpush1.msra.mxu0 0.0
    %1650 = vmatprep.subr.mxu0 0.0
    %1651 = vmatpush1.msra.mxu0 0.0
    %1652 = vmatprep.subr.mxu0 0.0
    %1653 = vmatpush1.msra.mxu0 0.0
    %1654 = vmatprep.subr.mxu0 0.0
    %1655 = vmatpush1.msra.mxu0 0.0
    %1656 = vmatprep.subr.mxu0 0.0
    %1657 = vmatpush1.msra.mxu0 0.0
    %1658 = vmatprep.subr.mxu0 0.0
    %1659 = vmatpush1.msra.mxu0 0.0
    %1660 = vmatprep.subr.mxu0 0.0
    %1661 = vmatpush1.msra.mxu0 0.0
    %1662 = vmatprep.subr.mxu0 0.0
    %1663 = vmatpush1.msra.mxu0 0.0
    %1664 = vmatprep.subr.mxu0 0.0
    %1665 = vmatpush1.msra.mxu0 0.0
    %1666 = vmatprep.subr.mxu0 0.0
    %1667 = vmatpush1.msra.mxu0 0.0
    %1668 = vmatprep.subr.mxu0 0.0
    %1669 = vmatpush1.msra.mxu0 0.0
    %1670 = vmatprep.mubr.f32.mxu0 0.0
    %1671 = vmatmul.mubr.f32.gmra.mrb[0].mxu0 %v1604
    %v1672 = vpop.f32.mrb[0].mxu0
    %v1673 = vadd.f32 0.0, %v1672
    %v1674 = vpop.f32.mrb[0].mxu0
    %1675 = vdwg.mxu0
    %v1676 = vadd.f32 %v1508, %v1673
    %v1677 = vadd.f32 %v1676, %v1003
    %1678 = vst.msk [vmem:[#allocation2 + $0x8] sm:$0xff] %vm97, %v1677
    %v1679 = vld [vmem:[#allocation2] sm:$0xff]
    %v1680 = vld [vmem:[#allocation2 + $0x8] sm:$0xff]
    %v1681 = vld [vmem:[%s12] sm:$0x1]
    %v1682 = vld [vmem:[%s13] sm:$0x1]
    %v1683 = vadd.f32 %v1679, %v78
    %v1684 = vadd.f32 %v1680, %v79
    %v1685 = vsel %vm97, %v1683, 0.0
    %1686 = vadd.xlane.f32.xlu0 %v1685
    %v1687 = vpop.xlane.xlu0 %1686
    %v1688 = vsel %vm97, %v1684, 0.0
    %1689 = vadd.xlane.f32.xlu0 %v1688
    %v1690 = vpop.xlane.xlu0 %1689
    %v1691 = vrcp.pop 32.0
    %v1692 = vmul.f32 %v1687, %v1691
    %v1693 = vmul.f32 %v1690, %v1691
    %v1694 = vsub.f32 %v1683, %v1692
    %v1695 = vsub.f32 %v1684, %v1693
    %v1696 = vmul.f32 %v1694, %v1694
    %v1697 = vmul.f32 %v1695, %v1695
    %v1698 = vsel %vm97, %v1696, 0.0
    %1699 = vadd.xlane.f32.xlu0 %v1698
    %v1700 = vpop.xlane.xlu0 %1699
    %v1701 = vsel %vm97, %v1697, 0.0
    %1702 = vadd.xlane.f32.xlu0 %v1701
    %v1703 = vpop.xlane.xlu0 %1702
    %v1704 = vmul.f32 %v1700, %v1691
    %v1705 = vmul.f32 %v1703, %v1691
    %v1706 = vadd.f32 %v1704, 1e-05
    %v1707 = vadd.f32 %v1705, 1e-05
    %v1708 = vrsqrt.pop %v1706
    %v1709 = vrsqrt.pop %v1707
    %v1710 = vmul.f32 %v1694, %v1708
    %v1711 = vmul.f32 %v1695, %v1709
    %v1713 = vlaneseq
    %v1714 = vshrl.u32 %v1713, 7
    %v1715 = vsub.s32 0, %v1714
    %v1716 = vrot.slane %v1681, %v1715
    %v1718 = vmul.f32 %v1710, %v1716
    %v1719 = vmul.f32 %v1711, %v1716
    %v1721 = vlaneseq
    %v1722 = vshrl.u32 %v1721, 7
    %v1723 = vsub.s32 0, %v1722
    %v1724 = vrot.slane %v1682, %v1723
    %v1726 = vadd.f32 %v1718, %v1724
    %v1727 = vadd.f32 %v1719, %v1724
    %v1728 = vld [vmem:[%s8] sm:$0xff]
    %v1729 = vld [vmem:[%s8 + $0x8] sm:$0xff]
    %v1730 = vld [vmem:[%s8 + $0x10] sm:$0xff]
    %v1731 = vld [vmem:[%s8 + $0x18] sm:$0xff]
    %v1732 = vld [vmem:[%s9] sm:$0xff]
    %v1733 = vld [vmem:[%s9 + $0x8] sm:$0xff]
    %v1734 = vld [vmem:[%s9 + $0x10] sm:$0xff]
    %v1735 = vld [vmem:[%s9 + $0x18] sm:$0xff]
    %v1736 = vld [vmem:[%s10] sm:$0xff]
    %v1737 = vld [vmem:[%s10 + $0x8] sm:$0xff]
    %v1738 = vld [vmem:[%s10 + $0x10] sm:$0xff]
    %v1739 = vld [vmem:[%s10 + $0x18] sm:$0xff]
    %v1740 = vld [vmem:[%s11] sm:$0x1]
    %v1742 = vsel %vm97, %v1726, 0
    %v1745 = vsel %vm97, %v1727, 0
    %1747 = vmatprep.subr.mxu0 0.0
    %1748 = vmatpush1.msra.mxu0 %v1728
    %1749 = vmatprep.subr.mxu0 0.0
    %1750 = vmatpush1.msra.mxu0 %v1729
    %1751 = vmatprep.subr.mxu0 0.0
    %1752 = vmatpush1.msra.mxu0 %v1730
    %1753 = vmatprep.subr.mxu0 0.0
    %1754 = vmatpush1.msra.mxu0 %v1731
    %1755 = vmatprep.subr.mxu0 0.0
    %1756 = vmatpush1.msra.mxu0 0.0
    %1757 = vmatprep.subr.mxu0 0.0
    %1758 = vmatpush1.msra.mxu0 0.0
    %1759 = vmatprep.subr.mxu0 0.0
    %1760 = vmatpush1.msra.mxu0 0.0
    %1761 = vmatprep.subr.mxu0 0.0
    %1762 = vmatpush1.msra.mxu0 0.0
    %1763 = vmatprep.subr.mxu0 0.0
    %1764 = vmatpush1.msra.mxu0 0.0
    %1765 = vmatprep.subr.mxu0 0.0
    %1766 = vmatpush1.msra.mxu0 0.0
    %1767 = vmatprep.subr.mxu0 0.0
    %1768 = vmatpush1.msra.mxu0 0.0
    %1769 = vmatprep.subr.mxu0 0.0
    %1770 = vmatpush1.msra.mxu0 0.0
    %1771 = vmatprep.subr.mxu0 0.0
    %1772 = vmatpush1.msra.mxu0 0.0
    %1773 = vmatprep.subr.mxu0 0.0
    %1774 = vmatpush1.msra.mxu0 0.0
    %1775 = vmatprep.subr.mxu0 0.0
    %1776 = vmatpush1.msra.mxu0 0.0
    %1777 = vmatprep.subr.mxu0 0.0
    %1778 = vmatpush1.msra.mxu0 0.0
    %1779 = vmatprep.subr.mxu0 0.0
    %1780 = vmatpush1.msra.mxu0 0.0
    %1781 = vmatprep.subr.mxu0 0.0
    %1782 = vmatpush1.msra.mxu0 0.0
    %1783 = vmatprep.subr.mxu0 0.0
    %1784 = vmatpush1.msra.mxu0 0.0
    %1785 = vmatprep.subr.mxu0 0.0
    %1786 = vmatpush1.msra.mxu0 0.0
    %1787 = vmatprep.subr.mxu0 0.0
    %1788 = vmatpush1.msra.mxu0 0.0
    %1789 = vmatprep.subr.mxu0 0.0
    %1790 = vmatpush1.msra.mxu0 0.0
    %1791 = vmatprep.subr.mxu0 0.0
    %1792 = vmatpush1.msra.mxu0 0.0
    %1793 = vmatprep.subr.mxu0 0.0
    %1794 = vmatpush1.msra.mxu0 0.0
    %1795 = vmatprep.subr.mxu0 0.0
    %1796 = vmatpush1.msra.mxu0 0.0
    %1797 = vmatprep.subr.mxu0 0.0
    %1798 = vmatpush1.msra.mxu0 0.0
    %1799 = vmatprep.subr.mxu0 0.0
    %1800 = vmatpush1.msra.mxu0 0.0
    %1801 = vmatprep.subr.mxu0 0.0
    %1802 = vmatpush1.msra.mxu0 0.0
    %1803 = vmatprep.subr.mxu0 0.0
    %1804 = vmatpush1.msra.mxu0 0.0
    %1805 = vmatprep.subr.mxu0 0.0
    %1806 = vmatpush1.msra.mxu0 0.0
    %1807 = vmatprep.subr.mxu0 0.0
    %1808 = vmatpush1.msra.mxu0 0.0
    %1809 = vmatprep.subr.mxu0 0.0
    %1810 = vmatpush1.msra.mxu0 0.0
    %1811 = vmatprep.mubr.f32.mxu0 0.0
    %1812 = vmatmul.mubr.f32.gmra.mrb[0].mxu0 %v1742
    %v1813 = vpop.f32.mrb[0].mxu0
    %v1814 = vadd.f32 0.0, %v1813
    %v1815 = vpop.f32.mrb[0].mxu0
    %1816 = vmatprep.mubr.f32.mxu0 0.0
    %1817 = vmatmul.mubr.f32.gmra.mrb[0].mxu0 %v1745
    %v1818 = vpop.f32.mrb[0].mxu0
    %v1819 = vadd.f32 0.0, %v1818
    %v1820 = vpop.f32.mrb[0].mxu0
    %1821 = vdwg.mxu0
    %v1823 = vsel %vm97, %v80, 0
    %v1826 = vsel %vm97, %v81, 0
    %v1829 = vsel %vm97, %v82, 0
    %v1832 = vsel %vm97, %v83, 0
    %1834 = vmatprep.subr.mxu0 0.0
    %1835 = vmatpush1.msra.mxu0 %v1732
    %1836 = vmatprep.subr.mxu0 0.0
    %1837 = vmatpush1.msra.mxu0 %v1733
    %1838 = vmatprep.subr.mxu0 0.0
    %1839 = vmatpush1.msra.mxu0 %v1734
    %1840 = vmatprep.subr.mxu0 0.0
    %1841 = vmatpush1.msra.mxu0 %v1735
    %1842 = vmatprep.subr.mxu0 0.0
    %1843 = vmatpush1.msra.mxu0 0.0
    %1844 = vmatprep.subr.mxu0 0.0
    %1845 = vmatpush1.msra.mxu0 0.0
    %1846 = vmatprep.subr.mxu0 0.0
    %1847 = vmatpush1.msra.mxu0 0.0
    %1848 = vmatprep.subr.mxu0 0.0
    %1849 = vmatpush1.msra.mxu0 0.0
    %1850 = vmatprep.subr.mxu0 0.0
    %1851 = vmatpush1.msra.mxu0 0.0
    %1852 = vmatprep.subr.mxu0 0.0
    %1853 = vmatpush1.msra.mxu0 0.0
    %1854 = vmatprep.subr.mxu0 0.0
    %1855 = vmatpush1.msra.mxu0 0.0
    %1856 = vmatprep.subr.mxu0 0.0
    %1857 = vmatpush1.msra.mxu0 0.0
    %1858 = vmatprep.subr.mxu0 0.0
    %1859 = vmatpush1.msra.mxu0 0.0
    %1860 = vmatprep.subr.mxu0 0.0
    %1861 = vmatpush1.msra.mxu0 0.0
    %1862 = vmatprep.subr.mxu0 0.0
    %1863 = vmatpush1.msra.mxu0 0.0
    %1864 = vmatprep.subr.mxu0 0.0
    %1865 = vmatpush1.msra.mxu0 0.0
    %1866 = vmatprep.subr.mxu0 0.0
    %1867 = vmatpush1.msra.mxu0 0.0
    %1868 = vmatprep.subr.mxu0 0.0
    %1869 = vmatpush1.msra.mxu0 0.0
    %1870 = vmatprep.subr.mxu0 0.0
    %1871 = vmatpush1.msra.mxu0 0.0
    %1872 = vmatprep.subr.mxu0 0.0
    %1873 = vmatpush1.msra.mxu0 0.0
    %1874 = vmatprep.subr.mxu0 0.0
    %1875 = vmatpush1.msra.mxu0 0.0
    %1876 = vmatprep.subr.mxu0 0.0
    %1877 = vmatpush1.msra.mxu0 0.0
    %1878 = vmatprep.subr.mxu0 0.0
    %1879 = vmatpush1.msra.mxu0 0.0
    %1880 = vmatprep.subr.mxu0 0.0
    %1881 = vmatpush1.msra.mxu0 0.0
    %1882 = vmatprep.subr.mxu0 0.0
    %1883 = vmatpush1.msra.mxu0 0.0
    %1884 = vmatprep.subr.mxu0 0.0
    %1885 = vmatpush1.msra.mxu0 0.0
    %1886 = vmatprep.subr.mxu0 0.0
    %1887 = vmatpush1.msra.mxu0 0.0
    %1888 = vmatprep.subr.mxu0 0.0
    %1889 = vmatpush1.msra.mxu0 0.0
    %1890 = vmatprep.subr.mxu0 0.0
    %1891 = vmatpush1.msra.mxu0 0.0
    %1892 = vmatprep.subr.mxu0 0.0
    %1893 = vmatpush1.msra.mxu0 0.0
    %1894 = vmatprep.subr.mxu0 0.0
    %1895 = vmatpush1.msra.mxu0 0.0
    %1896 = vmatprep.subr.mxu0 0.0
    %1897 = vmatpush1.msra.mxu0 0.0
    %1898 = vmatprep.mubr.f32.mxu0 0.0
    %1899 = vmatmul.mubr.f32.gmra.mrb[0].mxu0 %v1823
    %v1900 = vpop.f32.mrb[0].mxu0
    %v1901 = vadd.f32 0.0, %v1900
    %v1902 = vpop.f32.mrb[0].mxu0
    %1903 = vmatprep.mubr.f32.mxu0 0.0
    %1904 = vmatmul.mubr.f32.gmra.mrb[0].mxu0 %v1826
    %v1905 = vpop.f32.mrb[0].mxu0
    %v1906 = vadd.f32 0.0, %v1905
    %v1907 = vpop.f32.mrb[0].mxu0
    %1908 = vmatprep.mubr.f32.mxu0 0.0
    %1909 = vmatmul.mubr.f32.gmra.mrb[0].mxu0 %v1829
    %v1910 = vpop.f32.mrb[0].mxu0
    %v1911 = vadd.f32 0.0, %v1910
    %v1912 = vpop.f32.mrb[0].mxu0
    %1913 = vmatprep.mubr.f32.mxu0 0.0
    %1914 = vmatmul.mubr.f32.gmra.mrb[0].mxu0 %v1832
    %v1915 = vpop.f32.mrb[0].mxu0
    %v1916 = vadd.f32 0.0, %v1915
    %v1917 = vpop.f32.mrb[0].mxu0
    %1918 = vdwg.mxu0
    %1919 = vmatprep.subr.mxu0 0.0
    %1920 = vmatpush1.msra.mxu0 %v1736
    %1921 = vmatprep.subr.mxu0 0.0
    %1922 = vmatpush1.msra.mxu0 %v1737
    %1923 = vmatprep.subr.mxu0 0.0
    %1924 = vmatpush1.msra.mxu0 %v1738
    %1925 = vmatprep.subr.mxu0 0.0
    %1926 = vmatpush1.msra.mxu0 %v1739
    %1927 = vmatprep.subr.mxu0 0.0
    %1928 = vmatpush1.msra.mxu0 0.0
    %1929 = vmatprep.subr.mxu0 0.0
    %1930 = vmatpush1.msra.mxu0 0.0
    %1931 = vmatprep.subr.mxu0 0.0
    %1932 = vmatpush1.msra.mxu0 0.0
    %1933 = vmatprep.subr.mxu0 0.0
    %1934 = vmatpush1.msra.mxu0 0.0
    %1935 = vmatprep.subr.mxu0 0.0
    %1936 = vmatpush1.msra.mxu0 0.0
    %1937 = vmatprep.subr.mxu0 0.0
    %1938 = vmatpush1.msra.mxu0 0.0
    %1939 = vmatprep.subr.mxu0 0.0
    %1940 = vmatpush1.msra.mxu0 0.0
    %1941 = vmatprep.subr.mxu0 0.0
    %1942 = vmatpush1.msra.mxu0 0.0
    %1943 = vmatprep.subr.mxu0 0.0
    %1944 = vmatpush1.msra.mxu0 0.0
    %1945 = vmatprep.subr.mxu0 0.0
    %1946 = vmatpush1.msra.mxu0 0.0
    %1947 = vmatprep.subr.mxu0 0.0
    %1948 = vmatpush1.msra.mxu0 0.0
    %1949 = vmatprep.subr.mxu0 0.0
    %1950 = vmatpush1.msra.mxu0 0.0
    %1951 = vmatprep.subr.mxu0 0.0
    %1952 = vmatpush1.msra.mxu0 0.0
    %1953 = vmatprep.subr.mxu0 0.0
    %1954 = vmatpush1.msra.mxu0 0.0
    %1955 = vmatprep.subr.mxu0 0.0
    %1956 = vmatpush1.msra.mxu0 0.0
    %1957 = vmatprep.subr.mxu0 0.0
    %1958 = vmatpush1.msra.mxu0 0.0
    %1959 = vmatprep.subr.mxu0 0.0
    %1960 = vmatpush1.msra.mxu0 0.0
    %1961 = vmatprep.subr.mxu0 0.0
    %1962 = vmatpush1.msra.mxu0 0.0
    %1963 = vmatprep.subr.mxu0 0.0
    %1964 = vmatpush1.msra.mxu0 0.0
    %1965 = vmatprep.subr.mxu0 0.0
    %1966 = vmatpush1.msra.mxu0 0.0
    %1967 = vmatprep.subr.mxu0 0.0
    %1968 = vmatpush1.msra.mxu0 0.0
    %1969 = vmatprep.subr.mxu0 0.0
    %1970 = vmatpush1.msra.mxu0 0.0
    %1971 = vmatprep.subr.mxu0 0.0
    %1972 = vmatpush1.msra.mxu0 0.0
    %1973 = vmatprep.subr.mxu0 0.0
    %1974 = vmatpush1.msra.mxu0 0.0
    %1975 = vmatprep.subr.mxu0 0.0
    %1976 = vmatpush1.msra.mxu0 0.0
    %1977 = vmatprep.subr.mxu0 0.0
    %1978 = vmatpush1.msra.mxu0 0.0
    %1979 = vmatprep.subr.mxu0 0.0
    %1980 = vmatpush1.msra.mxu0 0.0
    %1981 = vmatprep.subr.mxu0 0.0
    %1982 = vmatpush1.msra.mxu0 0.0
    %1983 = vmatprep.mubr.f32.mxu0 0.0
    %1984 = vmatmul.mubr.f32.gmra.mrb[0].mxu0 %v1823
    %v1985 = vpop.f32.mrb[0].mxu0
    %v1986 = vadd.f32 0.0, %v1985
    %v1987 = vpop.f32.mrb[0].mxu0
    %1988 = vmatprep.mubr.f32.mxu0 0.0
    %1989 = vmatmul.mubr.f32.gmra.mrb[0].mxu0 %v1826
    %v1990 = vpop.f32.mrb[0].mxu0
    %v1991 = vadd.f32 0.0, %v1990
    %v1992 = vpop.f32.mrb[0].mxu0
    %1993 = vmatprep.mubr.f32.mxu0 0.0
    %1994 = vmatmul.mubr.f32.gmra.mrb[0].mxu0 %v1829
    %v1995 = vpop.f32.mrb[0].mxu0
    %v1996 = vadd.f32 0.0, %v1995
    %v1997 = vpop.f32.mrb[0].mxu0
    %1998 = vmatprep.mubr.f32.mxu0 0.0
    %1999 = vmatmul.mubr.f32.gmra.mrb[0].mxu0 %v1832
    %v2000 = vpop.f32.mrb[0].mxu0
    %v2001 = vadd.f32 0.0, %v2000
    %v2002 = vpop.f32.mrb[0].mxu0
    %2003 = vdwg.mxu0
    %v2004 = vld [vmem:[%s3] sm:$0xff]
    %vm2005 = vcmp.eq.f32.partialorder %v2004, 0.0
    %v2006 = vsel %vm2005, -1e+20, 0.0
    %v2008 = vsel %vm332, %v1814, 0
    %v2011 = vsel %vm332, %v1901, 0
    %v2014 = vsel %vm332, %v1906, 0
    %2016 = vmatprep.subr.mxu0 0.0
    %2017 = vmatpush1.xpose.msra.mxu0 %v2011
    %2018 = vmatprep.subr.mxu0 0.0
    %2019 = vmatpush1.xpose.msra.mxu0 %v2014
    %2020 = vmatprep.subr.mxu0 0.0
    %2021 = vmatpush1.xpose.msra.mxu0 0.0
    %2022 = vmatprep.subr.mxu0 0.0
    %2023 = vmatpush1.xpose.msra.mxu0 0.0
    %2024 = vmatprep.subr.mxu0 0.0
    %2025 = vmatpush1.xpose.msra.mxu0 0.0
    %2026 = vmatprep.subr.mxu0 0.0
    %2027 = vmatpush1.xpose.msra.mxu0 0.0
    %2028 = vmatprep.subr.mxu0 0.0
    %2029 = vmatpush1.xpose.msra.mxu0 0.0
    %2030 = vmatprep.subr.mxu0 0.0
    %2031 = vmatpush1.xpose.msra.mxu0 0.0
    %2032 = vmatprep.subr.mxu0 0.0
    %2033 = vmatpush1.xpose.msra.mxu0 0.0
    %2034 = vmatprep.subr.mxu0 0.0
    %2035 = vmatpush1.xpose.msra.mxu0 0.0
    %2036 = vmatprep.subr.mxu0 0.0
    %2037 = vmatpush1.xpose.msra.mxu0 0.0
    %2038 = vmatprep.subr.mxu0 0.0
    %2039 = vmatpush1.xpose.msra.mxu0 0.0
    %2040 = vmatprep.subr.mxu0 0.0
    %2041 = vmatpush1.xpose.msra.mxu0 0.0
    %2042 = vmatprep.subr.mxu0 0.0
    %2043 = vmatpush1.xpose.msra.mxu0 0.0
    %2044 = vmatprep.subr.mxu0 0.0
    %2045 = vmatpush1.xpose.msra.mxu0 0.0
    %2046 = vmatprep.subr.mxu0 0.0
    %2047 = vmatpush1.xpose.msra.mxu0 0.0
    %2048 = vmatprep.subr.mxu0 0.0
    %2049 = vmatpush1.xpose.msra.mxu0 0.0
    %2050 = vmatprep.subr.mxu0 0.0
    %2051 = vmatpush1.xpose.msra.mxu0 0.0
    %2052 = vmatprep.subr.mxu0 0.0
    %2053 = vmatpush1.xpose.msra.mxu0 0.0
    %2054 = vmatprep.subr.mxu0 0.0
    %2055 = vmatpush1.xpose.msra.mxu0 0.0
    %2056 = vmatprep.subr.mxu0 0.0
    %2057 = vmatpush1.xpose.msra.mxu0 0.0
    %2058 = vmatprep.subr.mxu0 0.0
    %2059 = vmatpush1.xpose.msra.mxu0 0.0
    %2060 = vmatprep.subr.mxu0 0.0
    %2061 = vmatpush1.xpose.msra.mxu0 0.0
    %2062 = vmatprep.subr.mxu0 0.0
    %2063 = vmatpush1.xpose.msra.mxu0 0.0
    %2064 = vmatprep.subr.mxu0 0.0
    %2065 = vmatpush1.xpose.msra.mxu0 0.0
    %2066 = vmatprep.subr.mxu0 0.0
    %2067 = vmatpush1.xpose.msra.mxu0 0.0
    %2068 = vmatprep.subr.mxu0 0.0
    %2069 = vmatpush1.xpose.msra.mxu0 0.0
    %2070 = vmatprep.subr.mxu0 0.0
    %2071 = vmatpush1.xpose.msra.mxu0 0.0
    %2072 = vmatprep.subr.mxu0 0.0
    %2073 = vmatpush1.xpose.msra.mxu0 0.0
    %2074 = vmatprep.subr.mxu0 0.0
    %2075 = vmatpush1.xpose.msra.mxu0 0.0
    %2076 = vmatprep.subr.mxu0 0.0
    %2077 = vmatpush1.xpose.msra.mxu0 0.0
    %2078 = vmatprep.subr.mxu0 0.0
    %2079 = vmatpush1.xpose.msra.mxu0 0.0
    %2080 = vmatprep.mubr.f32.mxu0 0.0
    %2081 = vmatmul.mubr.f32.gmra.mrb[0].mxu0 %v2008
    %v2082 = vpop.f32.mrb[0].mxu0
    %v2083 = vadd.f32 0.0, %v2082
    %v2084 = vpop.f32.mrb[0].mxu0
    %2085 = vdwg.mxu0
    %v2086 = vmul.f32 %v2083, 0.17677669
    %v2087 = vadd.f32 %v2086, %v2006
    %vm2088 = vcmask 130048
    %v2089 = vsel %vm2088, %v2087, -inf
    %2090 = vmax.xlane.f32.xlu0 %v2089
    %v2091 = vpop.xlane.xlu0 %2090
    %v2092 = vsub.f32 %v2087, %v2091
    %v2093 = vmul.f32 %v2092, 1.442695
    %v2094 = vpow.pop %v2093
    %v2095 = vsel %vm2088, %v2094, 0.0
    %2096 = vadd.xlane.f32.xlu0 %v2095
    %v2097 = vpop.xlane.xlu0 %2096
    %v2098 = vrcp.pop %v2097
    %v2099 = vmul.f32 %v2094, %v2098
    %2100 = vrot.lane.b32.xlu0 %v1814, 120
    %v2101 = vpop.permute.xlu0 %2100
    %2102 = vrot.lane.b32.xlu0 %v1901, 120
    %v2103 = vpop.permute.xlu0 %2102
    %2104 = vrot.lane.b32.xlu0 %v1906, 120
    %v2105 = vpop.permute.xlu0 %2104
    %v2106 = vsel %vm332, %v2101, 0
    %v2108 = vsel %vm332, %v2103, 0
    %v2110 = vsel %vm332, %v2105, 0
    %2112 = vmatprep.subr.mxu0 0.0
    %2113 = vmatpush1.xpose.msra.mxu0 %v2108
    %2114 = vmatprep.subr.mxu0 0.0
    %2115 = vmatpush1.xpose.msra.mxu0 %v2110
    %2116 = vmatprep.subr.mxu0 0.0
    %2117 = vmatpush1.xpose.msra.mxu0 0.0
    %2118 = vmatprep.subr.mxu0 0.0
    %2119 = vmatpush1.xpose.msra.mxu0 0.0
    %2120 = vmatprep.subr.mxu0 0.0
    %2121 = vmatpush1.xpose.msra.mxu0 0.0
    %2122 = vmatprep.subr.mxu0 0.0
    %2123 = vmatpush1.xpose.msra.mxu0 0.0
    %2124 = vmatprep.subr.mxu0 0.0
    %2125 = vmatpush1.xpose.msra.mxu0 0.0
    %2126 = vmatprep.subr.mxu0 0.0
    %2127 = vmatpush1.xpose.msra.mxu0 0.0
    %2128 = vmatprep.subr.mxu0 0.0
    %2129 = vmatpush1.xpose.msra.mxu0 0.0
    %2130 = vmatprep.subr.mxu0 0.0
    %2131 = vmatpush1.xpose.msra.mxu0 0.0
    %2132 = vmatprep.subr.mxu0 0.0
    %2133 = vmatpush1.xpose.msra.mxu0 0.0
    %2134 = vmatprep.subr.mxu0 0.0
    %2135 = vmatpush1.xpose.msra.mxu0 0.0
    %2136 = vmatprep.subr.mxu0 0.0
    %2137 = vmatpush1.xpose.msra.mxu0 0.0
    %2138 = vmatprep.subr.mxu0 0.0
    %2139 = vmatpush1.xpose.msra.mxu0 0.0
    %2140 = vmatprep.subr.mxu0 0.0
    %2141 = vmatpush1.xpose.msra.mxu0 0.0
    %2142 = vmatprep.subr.mxu0 0.0
    %2143 = vmatpush1.xpose.msra.mxu0 0.0
    %2144 = vmatprep.subr.mxu0 0.0
    %2145 = vmatpush1.xpose.msra.mxu0 0.0
    %2146 = vmatprep.subr.mxu0 0.0
    %2147 = vmatpush1.xpose.msra.mxu0 0.0
    %2148 = vmatprep.subr.mxu0 0.0
    %2149 = vmatpush1.xpose.msra.mxu0 0.0
    %2150 = vmatprep.subr.mxu0 0.0
    %2151 = vmatpush1.xpose.msra.mxu0 0.0
    %2152 = vmatprep.subr.mxu0 0.0
    %2153 = vmatpush1.xpose.msra.mxu0 0.0
    %2154 = vmatprep.subr.mxu0 0.0
    %2155 = vmatpush1.xpose.msra.mxu0 0.0
    %2156 = vmatprep.subr.mxu0 0.0
    %2157 = vmatpush1.xpose.msra.mxu0 0.0
    %2158 = vmatprep.subr.mxu0 0.0
    %2159 = vmatpush1.xpose.msra.mxu0 0.0
    %2160 = vmatprep.subr.mxu0 0.0
    %2161 = vmatpush1.xpose.msra.mxu0 0.0
    %2162 = vmatprep.subr.mxu0 0.0
    %2163 = vmatpush1.xpose.msra.mxu0 0.0
    %2164 = vmatprep.subr.mxu0 0.0
    %2165 = vmatpush1.xpose.msra.mxu0 0.0
    %2166 = vmatprep.subr.mxu0 0.0
    %2167 = vmatpush1.xpose.msra.mxu0 0.0
    %2168 = vmatprep.subr.mxu0 0.0
    %2169 = vmatpush1.xpose.msra.mxu0 0.0
    %2170 = vmatprep.subr.mxu0 0.0
    %2171 = vmatpush1.xpose.msra.mxu0 0.0
    %2172 = vmatprep.subr.mxu0 0.0
    %2173 = vmatpush1.xpose.msra.mxu0 0.0
    %2174 = vmatprep.subr.mxu0 0.0
    %2175 = vmatpush1.xpose.msra.mxu0 0.0
    %2176 = vmatprep.mubr.f32.mxu0 0.0
    %2177 = vmatmul.mubr.f32.gmra.mrb[0].mxu0 %v2106
    %v2178 = vpop.f32.mrb[0].mxu0
    %v2179 = vadd.f32 0.0, %v2178
    %v2180 = vpop.f32.mrb[0].mxu0
    %2181 = vdwg.mxu0
    %v2182 = vmul.f32 %v2179, 0.17677669
    %v2183 = vadd.f32 %v2182, %v2006
    %v2184 = vsel %vm2088, %v2183, -inf
    %2185 = vmax.xlane.f32.xlu0 %v2184
    %v2186 = vpop.xlane.xlu0 %2185
    %v2187 = vsub.f32 %v2183, %v2186
    %v2188 = vmul.f32 %v2187, 1.442695
    %v2189 = vpow.pop %v2188
    %v2190 = vsel %vm2088, %v2189, 0.0
    %2191 = vadd.xlane.f32.xlu0 %v2190
    %v2192 = vpop.xlane.xlu0 %2191
    %v2193 = vrcp.pop %v2192
    %v2194 = vmul.f32 %v2189, %v2193
    %2197 = vrot.lane.b32.xlu0 %v1986, 96
    %v2198 = vpop.permute.xlu0 %2197
    %2199 = vrot.lane.b32.xlu0 %v1991, 96
    %v2200 = vpop.permute.xlu0 %2199
    %v2204 = vsel %vm2088, %v2194, 0
    %2206 = vmatprep.subr.mxu0 0.0
    %2207 = vmatpush1.msra.mxu0 %v2198
    %2208 = vmatprep.subr.mxu0 0.0
    %2209 = vmatpush1.msra.mxu0 %v2200
    %2210 = vmatprep.subr.mxu0 0.0
    %2211 = vmatpush1.msra.mxu0 0.0
    %2212 = vmatprep.subr.mxu0 0.0
    %2213 = vmatpush1.msra.mxu0 0.0
    %2214 = vmatprep.subr.mxu0 0.0
    %2215 = vmatpush1.msra.mxu0 0.0
    %2216 = vmatprep.subr.mxu0 0.0
    %2217 = vmatpush1.msra.mxu0 0.0
    %2218 = vmatprep.subr.mxu0 0.0
    %2219 = vmatpush1.msra.mxu0 0.0
    %2220 = vmatprep.subr.mxu0 0.0
    %2221 = vmatpush1.msra.mxu0 0.0
    %2222 = vmatprep.subr.mxu0 0.0
    %2223 = vmatpush1.msra.mxu0 0.0
    %2224 = vmatprep.subr.mxu0 0.0
    %2225 = vmatpush1.msra.mxu0 0.0
    %2226 = vmatprep.subr.mxu0 0.0
    %2227 = vmatpush1.msra.mxu0 0.0
    %2228 = vmatprep.subr.mxu0 0.0
    %2229 = vmatpush1.msra.mxu0 0.0
    %2230 = vmatprep.subr.mxu0 0.0
    %2231 = vmatpush1.msra.mxu0 0.0
    %2232 = vmatprep.subr.mxu0 0.0
    %2233 = vmatpush1.msra.mxu0 0.0
    %2234 = vmatprep.subr.mxu0 0.0
    %2235 = vmatpush1.msra.mxu0 0.0
    %2236 = vmatprep.subr.mxu0 0.0
    %2237 = vmatpush1.msra.mxu0 0.0
    %2238 = vmatprep.subr.mxu0 0.0
    %2239 = vmatpush1.msra.mxu0 0.0
    %2240 = vmatprep.subr.mxu0 0.0
    %2241 = vmatpush1.msra.mxu0 0.0
    %2242 = vmatprep.subr.mxu0 0.0
    %2243 = vmatpush1.msra.mxu0 0.0
    %2244 = vmatprep.subr.mxu0 0.0
    %2245 = vmatpush1.msra.mxu0 0.0
    %2246 = vmatprep.subr.mxu0 0.0
    %2247 = vmatpush1.msra.mxu0 0.0
    %2248 = vmatprep.subr.mxu0 0.0
    %2249 = vmatpush1.msra.mxu0 0.0
    %2250 = vmatprep.subr.mxu0 0.0
    %2251 = vmatpush1.msra.mxu0 0.0
    %2252 = vmatprep.subr.mxu0 0.0
    %2253 = vmatpush1.msra.mxu0 0.0
    %2254 = vmatprep.subr.mxu0 0.0
    %2255 = vmatpush1.msra.mxu0 0.0
    %2256 = vmatprep.subr.mxu0 0.0
    %2257 = vmatpush1.msra.mxu0 0.0
    %2258 = vmatprep.subr.mxu0 0.0
    %2259 = vmatpush1.msra.mxu0 0.0
    %2260 = vmatprep.subr.mxu0 0.0
    %2261 = vmatpush1.msra.mxu0 0.0
    %2262 = vmatprep.subr.mxu0 0.0
    %2263 = vmatpush1.msra.mxu0 0.0
    %2264 = vmatprep.subr.mxu0 0.0
    %2265 = vmatpush1.msra.mxu0 0.0
    %2266 = vmatprep.subr.mxu0 0.0
    %2267 = vmatpush1.msra.mxu0 0.0
    %2268 = vmatprep.subr.mxu0 0.0
    %2269 = vmatpush1.msra.mxu0 0.0
    %2270 = vmatprep.mubr.f32.mxu0 0.0
    %2271 = vmatmul.mubr.f32.gmra.mrb[0].mxu0 %v2204
    %v2272 = vpop.f32.mrb[0].mxu0
    %v2273 = vadd.f32 0.0, %v2272
    %v2274 = vpop.f32.mrb[0].mxu0
    %2275 = vdwg.mxu0
    %v2277 = vsel %vm2088, %v2099, 0
    %2279 = vmatprep.subr.mxu0 0.0
    %2280 = vmatpush1.msra.mxu0 %v1986
    %2281 = vmatprep.subr.mxu0 0.0
    %2282 = vmatpush1.msra.mxu0 %v1991
    %2283 = vmatprep.subr.mxu0 0.0
    %2284 = vmatpush1.msra.mxu0 0.0
    %2285 = vmatprep.subr.mxu0 0.0
    %2286 = vmatpush1.msra.mxu0 0.0
    %2287 = vmatprep.subr.mxu0 0.0
    %2288 = vmatpush1.msra.mxu0 0.0
    %2289 = vmatprep.subr.mxu0 0.0
    %2290 = vmatpush1.msra.mxu0 0.0
    %2291 = vmatprep.subr.mxu0 0.0
    %2292 = vmatpush1.msra.mxu0 0.0
    %2293 = vmatprep.subr.mxu0 0.0
    %2294 = vmatpush1.msra.mxu0 0.0
    %2295 = vmatprep.subr.mxu0 0.0
    %2296 = vmatpush1.msra.mxu0 0.0
    %2297 = vmatprep.subr.mxu0 0.0
    %2298 = vmatpush1.msra.mxu0 0.0
    %2299 = vmatprep.subr.mxu0 0.0
    %2300 = vmatpush1.msra.mxu0 0.0
    %2301 = vmatprep.subr.mxu0 0.0
    %2302 = vmatpush1.msra.mxu0 0.0
    %2303 = vmatprep.subr.mxu0 0.0
    %2304 = vmatpush1.msra.mxu0 0.0
    %2305 = vmatprep.subr.mxu0 0.0
    %2306 = vmatpush1.msra.mxu0 0.0
    %2307 = vmatprep.subr.mxu0 0.0
    %2308 = vmatpush1.msra.mxu0 0.0
    %2309 = vmatprep.subr.mxu0 0.0
    %2310 = vmatpush1.msra.mxu0 0.0
    %2311 = vmatprep.subr.mxu0 0.0
    %2312 = vmatpush1.msra.mxu0 0.0
    %2313 = vmatprep.subr.mxu0 0.0
    %2314 = vmatpush1.msra.mxu0 0.0
    %2315 = vmatprep.subr.mxu0 0.0
    %2316 = vmatpush1.msra.mxu0 0.0
    %2317 = vmatprep.subr.mxu0 0.0
    %2318 = vmatpush1.msra.mxu0 0.0
    %2319 = vmatprep.subr.mxu0 0.0
    %2320 = vmatpush1.msra.mxu0 0.0
    %2321 = vmatprep.subr.mxu0 0.0
    %2322 = vmatpush1.msra.mxu0 0.0
    %2323 = vmatprep.subr.mxu0 0.0
    %2324 = vmatpush1.msra.mxu0 0.0
    %2325 = vmatprep.subr.mxu0 0.0
    %2326 = vmatpush1.msra.mxu0 0.0
    %2327 = vmatprep.subr.mxu0 0.0
    %2328 = vmatpush1.msra.mxu0 0.0
    %2329 = vmatprep.subr.mxu0 0.0
    %2330 = vmatpush1.msra.mxu0 0.0
    %2331 = vmatprep.subr.mxu0 0.0
    %2332 = vmatpush1.msra.mxu0 0.0
    %2333 = vmatprep.subr.mxu0 0.0
    %2334 = vmatpush1.msra.mxu0 0.0
    %2335 = vmatprep.subr.mxu0 0.0
    %2336 = vmatpush1.msra.mxu0 0.0
    %2337 = vmatprep.subr.mxu0 0.0
    %2338 = vmatpush1.msra.mxu0 0.0
    %2339 = vmatprep.subr.mxu0 0.0
    %2340 = vmatpush1.msra.mxu0 0.0
    %2341 = vmatprep.subr.mxu0 0.0
    %2342 = vmatpush1.msra.mxu0 0.0
    %2343 = vmatprep.mubr.f32.mxu0 0.0
    %2344 = vmatmul.mubr.f32.gmra.mrb[0].mxu0 %v2277
    %v2345 = vpop.f32.mrb[0].mxu0
    %v2346 = vadd.f32 %v2273, %v2345
    %v2347 = vpop.f32.mrb[0].mxu0
    %2348 = vdwg.mxu0
    %2349 = vrot.lane.b32.xlu0 %v1814, 112
    %v2350 = vpop.permute.xlu0 %2349
    %2351 = vrot.lane.b32.xlu0 %v1901, 112
    %v2352 = vpop.permute.xlu0 %2351
    %2353 = vrot.lane.b32.xlu0 %v1906, 112
    %v2354 = vpop.permute.xlu0 %2353
    %v2355 = vsel %vm332, %v2350, 0
    %v2357 = vsel %vm332, %v2352, 0
    %v2359 = vsel %vm332, %v2354, 0
    %2361 = vmatprep.subr.mxu0 0.0
    %2362 = vmatpush1.xpose.msra.mxu0 %v2357
    %2363 = vmatprep.subr.mxu0 0.0
    %2364 = vmatpush1.xpose.msra.mxu0 %v2359
    %2365 = vmatprep.subr.mxu0 0.0
    %2366 = vmatpush1.xpose.msra.mxu0 0.0
    %2367 = vmatprep.subr.mxu0 0.0
    %2368 = vmatpush1.xpose.msra.mxu0 0.0
    %2369 = vmatprep.subr.mxu0 0.0
    %2370 = vmatpush1.xpose.msra.mxu0 0.0
    %2371 = vmatprep.subr.mxu0 0.0
    %2372 = vmatpush1.xpose.msra.mxu0 0.0
    %2373 = vmatprep.subr.mxu0 0.0
    %2374 = vmatpush1.xpose.msra.mxu0 0.0
    %2375 = vmatprep.subr.mxu0 0.0
    %2376 = vmatpush1.xpose.msra.mxu0 0.0
    %2377 = vmatprep.subr.mxu0 0.0
    %2378 = vmatpush1.xpose.msra.mxu0 0.0
    %2379 = vmatprep.subr.mxu0 0.0
    %2380 = vmatpush1.xpose.msra.mxu0 0.0
    %2381 = vmatprep.subr.mxu0 0.0
    %2382 = vmatpush1.xpose.msra.mxu0 0.0
    %2383 = vmatprep.subr.mxu0 0.0
    %2384 = vmatpush1.xpose.msra.mxu0 0.0
    %2385 = vmatprep.subr.mxu0 0.0
    %2386 = vmatpush1.xpose.msra.mxu0 0.0
    %2387 = vmatprep.subr.mxu0 0.0
    %2388 = vmatpush1.xpose.msra.mxu0 0.0
    %2389 = vmatprep.subr.mxu0 0.0
    %2390 = vmatpush1.xpose.msra.mxu0 0.0
    %2391 = vmatprep.subr.mxu0 0.0
    %2392 = vmatpush1.xpose.msra.mxu0 0.0
    %2393 = vmatprep.subr.mxu0 0.0
    %2394 = vmatpush1.xpose.msra.mxu0 0.0
    %2395 = vmatprep.subr.mxu0 0.0
    %2396 = vmatpush1.xpose.msra.mxu0 0.0
    %2397 = vmatprep.subr.mxu0 0.0
    %2398 = vmatpush1.xpose.msra.mxu0 0.0
    %2399 = vmatprep.subr.mxu0 0.0
    %2400 = vmatpush1.xpose.msra.mxu0 0.0
    %2401 = vmatprep.subr.mxu0 0.0
    %2402 = vmatpush1.xpose.msra.mxu0 0.0
    %2403 = vmatprep.subr.mxu0 0.0
    %2404 = vmatpush1.xpose.msra.mxu0 0.0
    %2405 = vmatprep.subr.mxu0 0.0
    %2406 = vmatpush1.xpose.msra.mxu0 0.0
    %2407 = vmatprep.subr.mxu0 0.0
    %2408 = vmatpush1.xpose.msra.mxu0 0.0
    %2409 = vmatprep.subr.mxu0 0.0
    %2410 = vmatpush1.xpose.msra.mxu0 0.0
    %2411 = vmatprep.subr.mxu0 0.0
    %2412 = vmatpush1.xpose.msra.mxu0 0.0
    %2413 = vmatprep.subr.mxu0 0.0
    %2414 = vmatpush1.xpose.msra.mxu0 0.0
    %2415 = vmatprep.subr.mxu0 0.0
    %2416 = vmatpush1.xpose.msra.mxu0 0.0
    %2417 = vmatprep.subr.mxu0 0.0
    %2418 = vmatpush1.xpose.msra.mxu0 0.0
    %2419 = vmatprep.subr.mxu0 0.0
    %2420 = vmatpush1.xpose.msra.mxu0 0.0
    %2421 = vmatprep.subr.mxu0 0.0
    %2422 = vmatpush1.xpose.msra.mxu0 0.0
    %2423 = vmatprep.subr.mxu0 0.0
    %2424 = vmatpush1.xpose.msra.mxu0 0.0
    %2425 = vmatprep.mubr.f32.mxu0 0.0
    %2426 = vmatmul.mubr.f32.gmra.mrb[0].mxu0 %v2355
    %v2427 = vpop.f32.mrb[0].mxu0
    %v2428 = vadd.f32 0.0, %v2427
    %v2429 = vpop.f32.mrb[0].mxu0
    %2430 = vdwg.mxu0
    %v2431 = vmul.f32 %v2428, 0.17677669
    %v2432 = vadd.f32 %v2431, %v2006
    %v2433 = vsel %vm2088, %v2432, -inf
    %2434 = vmax.xlane.f32.xlu0 %v2433
    %v2435 = vpop.xlane.xlu0 %2434
    %v2436 = vsub.f32 %v2432, %v2435
    %v2437 = vmul.f32 %v2436, 1.442695
    %v2438 = vpow.pop %v2437
    %v2439 = vsel %vm2088, %v2438, 0.0
    %2440 = vadd.xlane.f32.xlu0 %v2439
    %v2441 = vpop.xlane.xlu0 %2440
    %v2442 = vrcp.pop %v2441
    %v2443 = vmul.f32 %v2438, %v2442
    %2444 = vrot.lane.b32.xlu0 %v1986, 64
    %v2445 = vpop.permute.xlu0 %2444
    %2446 = vrot.lane.b32.xlu0 %v1991, 64
    %v2447 = vpop.permute.xlu0 %2446
    %v2451 = vsel %vm2088, %v2443, 0
    %2453 = vmatprep.subr.mxu0 0.0
    %2454 = vmatpush1.msra.mxu0 %v2445
    %2455 = vmatprep.subr.mxu0 0.0
    %2456 = vmatpush1.msra.mxu0 %v2447
    %2457 = vmatprep.subr.mxu0 0.0
    %2458 = vmatpush1.msra.mxu0 0.0
    %2459 = vmatprep.subr.mxu0 0.0
    %2460 = vmatpush1.msra.mxu0 0.0
    %2461 = vmatprep.subr.mxu0 0.0
    %2462 = vmatpush1.msra.mxu0 0.0
    %2463 = vmatprep.subr.mxu0 0.0
    %2464 = vmatpush1.msra.mxu0 0.0
    %2465 = vmatprep.subr.mxu0 0.0
    %2466 = vmatpush1.msra.mxu0 0.0
    %2467 = vmatprep.subr.mxu0 0.0
    %2468 = vmatpush1.msra.mxu0 0.0
    %2469 = vmatprep.subr.mxu0 0.0
    %2470 = vmatpush1.msra.mxu0 0.0
    %2471 = vmatprep.subr.mxu0 0.0
    %2472 = vmatpush1.msra.mxu0 0.0
    %2473 = vmatprep.subr.mxu0 0.0
    %2474 = vmatpush1.msra.mxu0 0.0
    %2475 = vmatprep.subr.mxu0 0.0
    %2476 = vmatpush1.msra.mxu0 0.0
    %2477 = vmatprep.subr.mxu0 0.0
    %2478 = vmatpush1.msra.mxu0 0.0
    %2479 = vmatprep.subr.mxu0 0.0
    %2480 = vmatpush1.msra.mxu0 0.0
    %2481 = vmatprep.subr.mxu0 0.0
    %2482 = vmatpush1.msra.mxu0 0.0
    %2483 = vmatprep.subr.mxu0 0.0
    %2484 = vmatpush1.msra.mxu0 0.0
    %2485 = vmatprep.subr.mxu0 0.0
    %2486 = vmatpush1.msra.mxu0 0.0
    %2487 = vmatprep.subr.mxu0 0.0
    %2488 = vmatpush1.msra.mxu0 0.0
    %2489 = vmatprep.subr.mxu0 0.0
    %2490 = vmatpush1.msra.mxu0 0.0
    %2491 = vmatprep.subr.mxu0 0.0
    %2492 = vmatpush1.msra.mxu0 0.0
    %2493 = vmatprep.subr.mxu0 0.0
    %2494 = vmatpush1.msra.mxu0 0.0
    %2495 = vmatprep.subr.mxu0 0.0
    %2496 = vmatpush1.msra.mxu0 0.0
    %2497 = vmatprep.subr.mxu0 0.0
    %2498 = vmatpush1.msra.mxu0 0.0
    %2499 = vmatprep.subr.mxu0 0.0
    %2500 = vmatpush1.msra.mxu0 0.0
    %2501 = vmatprep.subr.mxu0 0.0
    %2502 = vmatpush1.msra.mxu0 0.0
    %2503 = vmatprep.subr.mxu0 0.0
    %2504 = vmatpush1.msra.mxu0 0.0
    %2505 = vmatprep.subr.mxu0 0.0
    %2506 = vmatpush1.msra.mxu0 0.0
    %2507 = vmatprep.subr.mxu0 0.0
    %2508 = vmatpush1.msra.mxu0 0.0
    %2509 = vmatprep.subr.mxu0 0.0
    %2510 = vmatpush1.msra.mxu0 0.0
    %2511 = vmatprep.subr.mxu0 0.0
    %2512 = vmatpush1.msra.mxu0 0.0
    %2513 = vmatprep.subr.mxu0 0.0
    %2514 = vmatpush1.msra.mxu0 0.0
    %2515 = vmatprep.subr.mxu0 0.0
    %2516 = vmatpush1.msra.mxu0 0.0
    %2517 = vmatprep.mubr.f32.mxu0 0.0
    %2518 = vmatmul.mubr.f32.gmra.mrb[0].mxu0 %v2451
    %v2519 = vpop.f32.mrb[0].mxu0
    %v2520 = vadd.f32 0.0, %v2519
    %v2521 = vpop.f32.mrb[0].mxu0
    %2522 = vdwg.mxu0
    %v2523 = vadd.f32 %v2346, %v2520
    %2524 = vrot.lane.b32.xlu0 %v1814, 104
    %v2525 = vpop.permute.xlu0 %2524
    %2526 = vrot.lane.b32.xlu0 %v1901, 104
    %v2527 = vpop.permute.xlu0 %2526
    %2528 = vrot.lane.b32.xlu0 %v1906, 104
    %v2529 = vpop.permute.xlu0 %2528
    %v2530 = vsel %vm332, %v2525, 0
    %v2532 = vsel %vm332, %v2527, 0
    %v2534 = vsel %vm332, %v2529, 0
    %2536 = vmatprep.subr.mxu0 0.0
    %2537 = vmatpush1.xpose.msra.mxu0 %v2532
    %2538 = vmatprep.subr.mxu0 0.0
    %2539 = vmatpush1.xpose.msra.mxu0 %v2534
    %2540 = vmatprep.subr.mxu0 0.0
    %2541 = vmatpush1.xpose.msra.mxu0 0.0
    %2542 = vmatprep.subr.mxu0 0.0
    %2543 = vmatpush1.xpose.msra.mxu0 0.0
    %2544 = vmatprep.subr.mxu0 0.0
    %2545 = vmatpush1.xpose.msra.mxu0 0.0
    %2546 = vmatprep.subr.mxu0 0.0
    %2547 = vmatpush1.xpose.msra.mxu0 0.0
    %2548 = vmatprep.subr.mxu0 0.0
    %2549 = vmatpush1.xpose.msra.mxu0 0.0
    %2550 = vmatprep.subr.mxu0 0.0
    %2551 = vmatpush1.xpose.msra.mxu0 0.0
    %2552 = vmatprep.subr.mxu0 0.0
    %2553 = vmatpush1.xpose.msra.mxu0 0.0
    %2554 = vmatprep.subr.mxu0 0.0
    %2555 = vmatpush1.xpose.msra.mxu0 0.0
    %2556 = vmatprep.subr.mxu0 0.0
    %2557 = vmatpush1.xpose.msra.mxu0 0.0
    %2558 = vmatprep.subr.mxu0 0.0
    %2559 = vmatpush1.xpose.msra.mxu0 0.0
    %2560 = vmatprep.subr.mxu0 0.0
    %2561 = vmatpush1.xpose.msra.mxu0 0.0
    %2562 = vmatprep.subr.mxu0 0.0
    %2563 = vmatpush1.xpose.msra.mxu0 0.0
    %2564 = vmatprep.subr.mxu0 0.0
    %2565 = vmatpush1.xpose.msra.mxu0 0.0
    %2566 = vmatprep.subr.mxu0 0.0
    %2567 = vmatpush1.xpose.msra.mxu0 0.0
    %2568 = vmatprep.subr.mxu0 0.0
    %2569 = vmatpush1.xpose.msra.mxu0 0.0
    %2570 = vmatprep.subr.mxu0 0.0
    %2571 = vmatpush1.xpose.msra.mxu0 0.0
    %2572 = vmatprep.subr.mxu0 0.0
    %2573 = vmatpush1.xpose.msra.mxu0 0.0
    %2574 = vmatprep.subr.mxu0 0.0
    %2575 = vmatpush1.xpose.msra.mxu0 0.0
    %2576 = vmatprep.subr.mxu0 0.0
    %2577 = vmatpush1.xpose.msra.mxu0 0.0
    %2578 = vmatprep.subr.mxu0 0.0
    %2579 = vmatpush1.xpose.msra.mxu0 0.0
    %2580 = vmatprep.subr.mxu0 0.0
    %2581 = vmatpush1.xpose.msra.mxu0 0.0
    %2582 = vmatprep.subr.mxu0 0.0
    %2583 = vmatpush1.xpose.msra.mxu0 0.0
    %2584 = vmatprep.subr.mxu0 0.0
    %2585 = vmatpush1.xpose.msra.mxu0 0.0
    %2586 = vmatprep.subr.mxu0 0.0
    %2587 = vmatpush1.xpose.msra.mxu0 0.0
    %2588 = vmatprep.subr.mxu0 0.0
    %2589 = vmatpush1.xpose.msra.mxu0 0.0
    %2590 = vmatprep.subr.mxu0 0.0
    %2591 = vmatpush1.xpose.msra.mxu0 0.0
    %2592 = vmatprep.subr.mxu0 0.0
    %2593 = vmatpush1.xpose.msra.mxu0 0.0
    %2594 = vmatprep.subr.mxu0 0.0
    %2595 = vmatpush1.xpose.msra.mxu0 0.0
    %2596 = vmatprep.subr.mxu0 0.0
    %2597 = vmatpush1.xpose.msra.mxu0 0.0
    %2598 = vmatprep.subr.mxu0 0.0
    %2599 = vmatpush1.xpose.msra.mxu0 0.0
    %2600 = vmatprep.mubr.f32.mxu0 0.0
    %2601 = vmatmul.mubr.f32.gmra.mrb[0].mxu0 %v2530
    %v2602 = vpop.f32.mrb[0].mxu0
    %v2603 = vadd.f32 0.0, %v2602
    %v2604 = vpop.f32.mrb[0].mxu0
    %2605 = vdwg.mxu0
    %v2606 = vmul.f32 %v2603, 0.17677669
    %v2607 = vadd.f32 %v2606, %v2006
    %v2608 = vsel %vm2088, %v2607, -inf
    %2609 = vmax.xlane.f32.xlu0 %v2608
    %v2610 = vpop.xlane.xlu0 %2609
    %v2611 = vsub.f32 %v2607, %v2610
    %v2612 = vmul.f32 %v2611, 1.442695
    %v2613 = vpow.pop %v2612
    %v2614 = vsel %vm2088, %v2613, 0.0
    %2615 = vadd.xlane.f32.xlu0 %v2614
    %v2616 = vpop.xlane.xlu0 %2615
    %v2617 = vrcp.pop %v2616
    %v2618 = vmul.f32 %v2613, %v2617
    %2619 = vrot.lane.b32.xlu0 %v1986, 32
    %v2620 = vpop.permute.xlu0 %2619
    %2621 = vrot.lane.b32.xlu0 %v1991, 32
    %v2622 = vpop.permute.xlu0 %2621
    %v2626 = vsel %vm2088, %v2618, 0
    %2628 = vmatprep.subr.mxu0 0.0
    %2629 = vmatpush1.msra.mxu0 %v2620
    %2630 = vmatprep.subr.mxu0 0.0
    %2631 = vmatpush1.msra.mxu0 %v2622
    %2632 = vmatprep.subr.mxu0 0.0
    %2633 = vmatpush1.msra.mxu0 0.0
    %2634 = vmatprep.subr.mxu0 0.0
    %2635 = vmatpush1.msra.mxu0 0.0
    %2636 = vmatprep.subr.mxu0 0.0
    %2637 = vmatpush1.msra.mxu0 0.0
    %2638 = vmatprep.subr.mxu0 0.0
    %2639 = vmatpush1.msra.mxu0 0.0
    %2640 = vmatprep.subr.mxu0 0.0
    %2641 = vmatpush1.msra.mxu0 0.0
    %2642 = vmatprep.subr.mxu0 0.0
    %2643 = vmatpush1.msra.mxu0 0.0
    %2644 = vmatprep.subr.mxu0 0.0
    %2645 = vmatpush1.msra.mxu0 0.0
    %2646 = vmatprep.subr.mxu0 0.0
    %2647 = vmatpush1.msra.mxu0 0.0
    %2648 = vmatprep.subr.mxu0 0.0
    %2649 = vmatpush1.msra.mxu0 0.0
    %2650 = vmatprep.subr.mxu0 0.0
    %2651 = vmatpush1.msra.mxu0 0.0
    %2652 = vmatprep.subr.mxu0 0.0
    %2653 = vmatpush1.msra.mxu0 0.0
    %2654 = vmatprep.subr.mxu0 0.0
    %2655 = vmatpush1.msra.mxu0 0.0
    %2656 = vmatprep.subr.mxu0 0.0
    %2657 = vmatpush1.msra.mxu0 0.0
    %2658 = vmatprep.subr.mxu0 0.0
    %2659 = vmatpush1.msra.mxu0 0.0
    %2660 = vmatprep.subr.mxu0 0.0
    %2661 = vmatpush1.msra.mxu0 0.0
    %2662 = vmatprep.subr.mxu0 0.0
    %2663 = vmatpush1.msra.mxu0 0.0
    %2664 = vmatprep.subr.mxu0 0.0
    %2665 = vmatpush1.msra.mxu0 0.0
    %2666 = vmatprep.subr.mxu0 0.0
    %2667 = vmatpush1.msra.mxu0 0.0
    %2668 = vmatprep.subr.mxu0 0.0
    %2669 = vmatpush1.msra.mxu0 0.0
    %2670 = vmatprep.subr.mxu0 0.0
    %2671 = vmatpush1.msra.mxu0 0.0
    %2672 = vmatprep.subr.mxu0 0.0
    %2673 = vmatpush1.msra.mxu0 0.0
    %2674 = vmatprep.subr.mxu0 0.0
    %2675 = vmatpush1.msra.mxu0 0.0
    %2676 = vmatprep.subr.mxu0 0.0
    %2677 = vmatpush1.msra.mxu0 0.0
    %2678 = vmatprep.subr.mxu0 0.0
    %2679 = vmatpush1.msra.mxu0 0.0
    %2680 = vmatprep.subr.mxu0 0.0
    %2681 = vmatpush1.msra.mxu0 0.0
    %2682 = vmatprep.subr.mxu0 0.0
    %2683 = vmatpush1.msra.mxu0 0.0
    %2684 = vmatprep.subr.mxu0 0.0
    %2685 = vmatpush1.msra.mxu0 0.0
    %2686 = vmatprep.subr.mxu0 0.0
    %2687 = vmatpush1.msra.mxu0 0.0
    %2688 = vmatprep.subr.mxu0 0.0
    %2689 = vmatpush1.msra.mxu0 0.0
    %2690 = vmatprep.subr.mxu0 0.0
    %2691 = vmatpush1.msra.mxu0 0.0
    %2692 = vmatprep.mubr.f32.mxu0 0.0
    %2693 = vmatmul.mubr.f32.gmra.mrb[0].mxu0 %v2626
    %v2694 = vpop.f32.mrb[0].mxu0
    %v2695 = vadd.f32 0.0, %v2694
    %v2696 = vpop.f32.mrb[0].mxu0
    %2697 = vdwg.mxu0
    %v2698 = vadd.f32 %v2523, %v2695
    %v2700 = vlaneseq
    %v2701 = vshrl.u32 %v2700, 7
    %v2702 = vsub.s32 0, %v2701
    %v2703 = vrot.slane %v1740, %v2702
    %v2705 = vadd.f32 %v2698, %v2703
    %2706 = vst.msk [vmem:[#allocation2] sm:$0xff] %vm97, %v2705
    %s2707 = scalar_lea.vmem %s3, 8
    %v2708 = vld [vmem:[%s2707] sm:$0xff]
    %vm2709 = vcmp.eq.f32.partialorder %v2708, 0.0
    %v2710 = vsel %vm2709, -1e+20, 0.0
    %v2712 = vsel %vm332, %v1819, 0
    %v2715 = vsel %vm332, %v1911, 0
    %v2718 = vsel %vm332, %v1916, 0
    %2720 = vmatprep.subr.mxu0 0.0
    %2721 = vmatpush1.xpose.msra.mxu0 %v2715
    %2722 = vmatprep.subr.mxu0 0.0
    %2723 = vmatpush1.xpose.msra.mxu0 %v2718
    %2724 = vmatprep.subr.mxu0 0.0
    %2725 = vmatpush1.xpose.msra.mxu0 0.0
    %2726 = vmatprep.subr.mxu0 0.0
    %2727 = vmatpush1.xpose.msra.mxu0 0.0
    %2728 = vmatprep.subr.mxu0 0.0
    %2729 = vmatpush1.xpose.msra.mxu0 0.0
    %2730 = vmatprep.subr.mxu0 0.0
    %2731 = vmatpush1.xpose.msra.mxu0 0.0
    %2732 = vmatprep.subr.mxu0 0.0
    %2733 = vmatpush1.xpose.msra.mxu0 0.0
    %2734 = vmatprep.subr.mxu0 0.0
    %2735 = vmatpush1.xpose.msra.mxu0 0.0
    %2736 = vmatprep.subr.mxu0 0.0
    %2737 = vmatpush1.xpose.msra.mxu0 0.0
    %2738 = vmatprep.subr.mxu0 0.0
    %2739 = vmatpush1.xpose.msra.mxu0 0.0
    %2740 = vmatprep.subr.mxu0 0.0
    %2741 = vmatpush1.xpose.msra.mxu0 0.0
    %2742 = vmatprep.subr.mxu0 0.0
    %2743 = vmatpush1.xpose.msra.mxu0 0.0
    %2744 = vmatprep.subr.mxu0 0.0
    %2745 = vmatpush1.xpose.msra.mxu0 0.0
    %2746 = vmatprep.subr.mxu0 0.0
    %2747 = vmatpush1.xpose.msra.mxu0 0.0
    %2748 = vmatprep.subr.mxu0 0.0
    %2749 = vmatpush1.xpose.msra.mxu0 0.0
    %2750 = vmatprep.subr.mxu0 0.0
    %2751 = vmatpush1.xpose.msra.mxu0 0.0
    %2752 = vmatprep.subr.mxu0 0.0
    %2753 = vmatpush1.xpose.msra.mxu0 0.0
    %2754 = vmatprep.subr.mxu0 0.0
    %2755 = vmatpush1.xpose.msra.mxu0 0.0
    %2756 = vmatprep.subr.mxu0 0.0
    %2757 = vmatpush1.xpose.msra.mxu0 0.0
    %2758 = vmatprep.subr.mxu0 0.0
    %2759 = vmatpush1.xpose.msra.mxu0 0.0
    %2760 = vmatprep.subr.mxu0 0.0
    %2761 = vmatpush1.xpose.msra.mxu0 0.0
    %2762 = vmatprep.subr.mxu0 0.0
    %2763 = vmatpush1.xpose.msra.mxu0 0.0
    %2764 = vmatprep.subr.mxu0 0.0
    %2765 = vmatpush1.xpose.msra.mxu0 0.0
    %2766 = vmatprep.subr.mxu0 0.0
    %2767 = vmatpush1.xpose.msra.mxu0 0.0
    %2768 = vmatprep.subr.mxu0 0.0
    %2769 = vmatpush1.xpose.msra.mxu0 0.0
    %2770 = vmatprep.subr.mxu0 0.0
    %2771 = vmatpush1.xpose.msra.mxu0 0.0
    %2772 = vmatprep.subr.mxu0 0.0
    %2773 = vmatpush1.xpose.msra.mxu0 0.0
    %2774 = vmatprep.subr.mxu0 0.0
    %2775 = vmatpush1.xpose.msra.mxu0 0.0
    %2776 = vmatprep.subr.mxu0 0.0
    %2777 = vmatpush1.xpose.msra.mxu0 0.0
    %2778 = vmatprep.subr.mxu0 0.0
    %2779 = vmatpush1.xpose.msra.mxu0 0.0
    %2780 = vmatprep.subr.mxu0 0.0
    %2781 = vmatpush1.xpose.msra.mxu0 0.0
    %2782 = vmatprep.subr.mxu0 0.0
    %2783 = vmatpush1.xpose.msra.mxu0 0.0
    %2784 = vmatprep.mubr.f32.mxu0 0.0
    %2785 = vmatmul.mubr.f32.gmra.mrb[0].mxu0 %v2712
    %v2786 = vpop.f32.mrb[0].mxu0
    %v2787 = vadd.f32 0.0, %v2786
    %v2788 = vpop.f32.mrb[0].mxu0
    %2789 = vdwg.mxu0
    %v2790 = vmul.f32 %v2787, 0.17677669
    %v2791 = vadd.f32 %v2790, %v2710
    %v2792 = vsel %vm2088, %v2791, -inf
    %2793 = vmax.xlane.f32.xlu0 %v2792
    %v2794 = vpop.xlane.xlu0 %2793
    %v2795 = vsub.f32 %v2791, %v2794
    %v2796 = vmul.f32 %v2795, 1.442695
    %v2797 = vpow.pop %v2796
    %v2798 = vsel %vm2088, %v2797, 0.0
    %2799 = vadd.xlane.f32.xlu0 %v2798
    %v2800 = vpop.xlane.xlu0 %2799
    %v2801 = vrcp.pop %v2800
    %v2802 = vmul.f32 %v2797, %v2801
    %2803 = vrot.lane.b32.xlu0 %v1819, 120
    %v2804 = vpop.permute.xlu0 %2803
    %2805 = vrot.lane.b32.xlu0 %v1911, 120
    %v2806 = vpop.permute.xlu0 %2805
    %2807 = vrot.lane.b32.xlu0 %v1916, 120
    %v2808 = vpop.permute.xlu0 %2807
    %v2809 = vsel %vm332, %v2804, 0
    %v2811 = vsel %vm332, %v2806, 0
    %v2813 = vsel %vm332, %v2808, 0
    %2815 = vmatprep.subr.mxu0 0.0
    %2816 = vmatpush1.xpose.msra.mxu0 %v2811
    %2817 = vmatprep.subr.mxu0 0.0
    %2818 = vmatpush1.xpose.msra.mxu0 %v2813
    %2819 = vmatprep.subr.mxu0 0.0
    %2820 = vmatpush1.xpose.msra.mxu0 0.0
    %2821 = vmatprep.subr.mxu0 0.0
    %2822 = vmatpush1.xpose.msra.mxu0 0.0
    %2823 = vmatprep.subr.mxu0 0.0
    %2824 = vmatpush1.xpose.msra.mxu0 0.0
    %2825 = vmatprep.subr.mxu0 0.0
    %2826 = vmatpush1.xpose.msra.mxu0 0.0
    %2827 = vmatprep.subr.mxu0 0.0
    %2828 = vmatpush1.xpose.msra.mxu0 0.0
    %2829 = vmatprep.subr.mxu0 0.0
    %2830 = vmatpush1.xpose.msra.mxu0 0.0
    %2831 = vmatprep.subr.mxu0 0.0
    %2832 = vmatpush1.xpose.msra.mxu0 0.0
    %2833 = vmatprep.subr.mxu0 0.0
    %2834 = vmatpush1.xpose.msra.mxu0 0.0
    %2835 = vmatprep.subr.mxu0 0.0
    %2836 = vmatpush1.xpose.msra.mxu0 0.0
    %2837 = vmatprep.subr.mxu0 0.0
    %2838 = vmatpush1.xpose.msra.mxu0 0.0
    %2839 = vmatprep.subr.mxu0 0.0
    %2840 = vmatpush1.xpose.msra.mxu0 0.0
    %2841 = vmatprep.subr.mxu0 0.0
    %2842 = vmatpush1.xpose.msra.mxu0 0.0
    %2843 = vmatprep.subr.mxu0 0.0
    %2844 = vmatpush1.xpose.msra.mxu0 0.0
    %2845 = vmatprep.subr.mxu0 0.0
    %2846 = vmatpush1.xpose.msra.mxu0 0.0
    %2847 = vmatprep.subr.mxu0 0.0
    %2848 = vmatpush1.xpose.msra.mxu0 0.0
    %2849 = vmatprep.subr.mxu0 0.0
    %2850 = vmatpush1.xpose.msra.mxu0 0.0
    %2851 = vmatprep.subr.mxu0 0.0
    %2852 = vmatpush1.xpose.msra.mxu0 0.0
    %2853 = vmatprep.subr.mxu0 0.0
    %2854 = vmatpush1.xpose.msra.mxu0 0.0
    %2855 = vmatprep.subr.mxu0 0.0
    %2856 = vmatpush1.xpose.msra.mxu0 0.0
    %2857 = vmatprep.subr.mxu0 0.0
    %2858 = vmatpush1.xpose.msra.mxu0 0.0
    %2859 = vmatprep.subr.mxu0 0.0
    %2860 = vmatpush1.xpose.msra.mxu0 0.0
    %2861 = vmatprep.subr.mxu0 0.0
    %2862 = vmatpush1.xpose.msra.mxu0 0.0
    %2863 = vmatprep.subr.mxu0 0.0
    %2864 = vmatpush1.xpose.msra.mxu0 0.0
    %2865 = vmatprep.subr.mxu0 0.0
    %2866 = vmatpush1.xpose.msra.mxu0 0.0
    %2867 = vmatprep.subr.mxu0 0.0
    %2868 = vmatpush1.xpose.msra.mxu0 0.0
    %2869 = vmatprep.subr.mxu0 0.0
    %2870 = vmatpush1.xpose.msra.mxu0 0.0
    %2871 = vmatprep.subr.mxu0 0.0
    %2872 = vmatpush1.xpose.msra.mxu0 0.0
    %2873 = vmatprep.subr.mxu0 0.0
    %2874 = vmatpush1.xpose.msra.mxu0 0.0
    %2875 = vmatprep.subr.mxu0 0.0
    %2876 = vmatpush1.xpose.msra.mxu0 0.0
    %2877 = vmatprep.subr.mxu0 0.0
    %2878 = vmatpush1.xpose.msra.mxu0 0.0
    %2879 = vmatprep.mubr.f32.mxu0 0.0
    %2880 = vmatmul.mubr.f32.gmra.mrb[0].mxu0 %v2809
    %v2881 = vpop.f32.mrb[0].mxu0
    %v2882 = vadd.f32 0.0, %v2881
    %v2883 = vpop.f32.mrb[0].mxu0
    %2884 = vdwg.mxu0
    %v2885 = vmul.f32 %v2882, 0.17677669
    %v2886 = vadd.f32 %v2885, %v2710
    %v2887 = vsel %vm2088, %v2886, -inf
    %2888 = vmax.xlane.f32.xlu0 %v2887
    %v2889 = vpop.xlane.xlu0 %2888
    %v2890 = vsub.f32 %v2886, %v2889
    %v2891 = vmul.f32 %v2890, 1.442695
    %v2892 = vpow.pop %v2891
    %v2893 = vsel %vm2088, %v2892, 0.0
    %2894 = vadd.xlane.f32.xlu0 %v2893
    %v2895 = vpop.xlane.xlu0 %2894
    %v2896 = vrcp.pop %v2895
    %v2897 = vmul.f32 %v2892, %v2896
    %2900 = vrot.lane.b32.xlu0 %v1996, 96
    %v2901 = vpop.permute.xlu0 %2900
    %2902 = vrot.lane.b32.xlu0 %v2001, 96
    %v2903 = vpop.permute.xlu0 %2902
    %v2907 = vsel %vm2088, %v2897, 0
    %2909 = vmatprep.subr.mxu0 0.0
    %2910 = vmatpush1.msra.mxu0 %v2901
    %2911 = vmatprep.subr.mxu0 0.0
    %2912 = vmatpush1.msra.mxu0 %v2903
    %2913 = vmatprep.subr.mxu0 0.0
    %2914 = vmatpush1.msra.mxu0 0.0
    %2915 = vmatprep.subr.mxu0 0.0
    %2916 = vmatpush1.msra.mxu0 0.0
    %2917 = vmatprep.subr.mxu0 0.0
    %2918 = vmatpush1.msra.mxu0 0.0
    %2919 = vmatprep.subr.mxu0 0.0
    %2920 = vmatpush1.msra.mxu0 0.0
    %2921 = vmatprep.subr.mxu0 0.0
    %2922 = vmatpush1.msra.mxu0 0.0
    %2923 = vmatprep.subr.mxu0 0.0
    %2924 = vmatpush1.msra.mxu0 0.0
    %2925 = vmatprep.subr.mxu0 0.0
    %2926 = vmatpush1.msra.mxu0 0.0
    %2927 = vmatprep.subr.mxu0 0.0
    %2928 = vmatpush1.msra.mxu0 0.0
    %2929 = vmatprep.subr.mxu0 0.0
    %2930 = vmatpush1.msra.mxu0 0.0
    %2931 = vmatprep.subr.mxu0 0.0
    %2932 = vmatpush1.msra.mxu0 0.0
    %2933 = vmatprep.subr.mxu0 0.0
    %2934 = vmatpush1.msra.mxu0 0.0
    %2935 = vmatprep.subr.mxu0 0.0
    %2936 = vmatpush1.msra.mxu0 0.0
    %2937 = vmatprep.subr.mxu0 0.0
    %2938 = vmatpush1.msra.mxu0 0.0
    %2939 = vmatprep.subr.mxu0 0.0
    %2940 = vmatpush1.msra.mxu0 0.0
    %2941 = vmatprep.subr.mxu0 0.0
    %2942 = vmatpush1.msra.mxu0 0.0
    %2943 = vmatprep.subr.mxu0 0.0
    %2944 = vmatpush1.msra.mxu0 0.0
    %2945 = vmatprep.subr.mxu0 0.0
    %2946 = vmatpush1.msra.mxu0 0.0
    %2947 = vmatprep.subr.mxu0 0.0
    %2948 = vmatpush1.msra.mxu0 0.0
    %2949 = vmatprep.subr.mxu0 0.0
    %2950 = vmatpush1.msra.mxu0 0.0
    %2951 = vmatprep.subr.mxu0 0.0
    %2952 = vmatpush1.msra.mxu0 0.0
    %2953 = vmatprep.subr.mxu0 0.0
    %2954 = vmatpush1.msra.mxu0 0.0
    %2955 = vmatprep.subr.mxu0 0.0
    %2956 = vmatpush1.msra.mxu0 0.0
    %2957 = vmatprep.subr.mxu0 0.0
    %2958 = vmatpush1.msra.mxu0 0.0
    %2959 = vmatprep.subr.mxu0 0.0
    %2960 = vmatpush1.msra.mxu0 0.0
    %2961 = vmatprep.subr.mxu0 0.0
    %2962 = vmatpush1.msra.mxu0 0.0
    %2963 = vmatprep.subr.mxu0 0.0
    %2964 = vmatpush1.msra.mxu0 0.0
    %2965 = vmatprep.subr.mxu0 0.0
    %2966 = vmatpush1.msra.mxu0 0.0
    %2967 = vmatprep.subr.mxu0 0.0
    %2968 = vmatpush1.msra.mxu0 0.0
    %2969 = vmatprep.subr.mxu0 0.0
    %2970 = vmatpush1.msra.mxu0 0.0
    %2971 = vmatprep.subr.mxu0 0.0
    %2972 = vmatpush1.msra.mxu0 0.0
    %2973 = vmatprep.mubr.f32.mxu0 0.0
    %2974 = vmatmul.mubr.f32.gmra.mrb[0].mxu0 %v2907
    %v2975 = vpop.f32.mrb[0].mxu0
    %v2976 = vadd.f32 0.0, %v2975
    %v2977 = vpop.f32.mrb[0].mxu0
    %2978 = vdwg.mxu0
    %v2980 = vsel %vm2088, %v2802, 0
    %2982 = vmatprep.subr.mxu0 0.0
    %2983 = vmatpush1.msra.mxu0 %v1996
    %2984 = vmatprep.subr.mxu0 0.0
    %2985 = vmatpush1.msra.mxu0 %v2001
    %2986 = vmatprep.subr.mxu0 0.0
    %2987 = vmatpush1.msra.mxu0 0.0
    %2988 = vmatprep.subr.mxu0 0.0
    %2989 = vmatpush1.msra.mxu0 0.0
    %2990 = vmatprep.subr.mxu0 0.0
    %2991 = vmatpush1.msra.mxu0 0.0
    %2992 = vmatprep.subr.mxu0 0.0
    %2993 = vmatpush1.msra.mxu0 0.0
    %2994 = vmatprep.subr.mxu0 0.0
    %2995 = vmatpush1.msra.mxu0 0.0
    %2996 = vmatprep.subr.mxu0 0.0
    %2997 = vmatpush1.msra.mxu0 0.0
    %2998 = vmatprep.subr.mxu0 0.0
    %2999 = vmatpush1.msra.mxu0 0.0
    %3000 = vmatprep.subr.mxu0 0.0
    %3001 = vmatpush1.msra.mxu0 0.0
    %3002 = vmatprep.subr.mxu0 0.0
    %3003 = vmatpush1.msra.mxu0 0.0
    %3004 = vmatprep.subr.mxu0 0.0
    %3005 = vmatpush1.msra.mxu0 0.0
    %3006 = vmatprep.subr.mxu0 0.0
    %3007 = vmatpush1.msra.mxu0 0.0
    %3008 = vmatprep.subr.mxu0 0.0
    %3009 = vmatpush1.msra.mxu0 0.0
    %3010 = vmatprep.subr.mxu0 0.0
    %3011 = vmatpush1.msra.mxu0 0.0
    %3012 = vmatprep.subr.mxu0 0.0
    %3013 = vmatpush1.msra.mxu0 0.0
    %3014 = vmatprep.subr.mxu0 0.0
    %3015 = vmatpush1.msra.mxu0 0.0
    %3016 = vmatprep.subr.mxu0 0.0
    %3017 = vmatpush1.msra.mxu0 0.0
    %3018 = vmatprep.subr.mxu0 0.0
    %3019 = vmatpush1.msra.mxu0 0.0
    %3020 = vmatprep.subr.mxu0 0.0
    %3021 = vmatpush1.msra.mxu0 0.0
    %3022 = vmatprep.subr.mxu0 0.0
    %3023 = vmatpush1.msra.mxu0 0.0
    %3024 = vmatprep.subr.mxu0 0.0
    %3025 = vmatpush1.msra.mxu0 0.0
    %3026 = vmatprep.subr.mxu0 0.0
    %3027 = vmatpush1.msra.mxu0 0.0
    %3028 = vmatprep.subr.mxu0 0.0
    %3029 = vmatpush1.msra.mxu0 0.0
    %3030 = vmatprep.subr.mxu0 0.0
    %3031 = vmatpush1.msra.mxu0 0.0
    %3032 = vmatprep.subr.mxu0 0.0
    %3033 = vmatpush1.msra.mxu0 0.0
    %3034 = vmatprep.subr.mxu0 0.0
    %3035 = vmatpush1.msra.mxu0 0.0
    %3036 = vmatprep.subr.mxu0 0.0
    %3037 = vmatpush1.msra.mxu0 0.0
    %3038 = vmatprep.subr.mxu0 0.0
    %3039 = vmatpush1.msra.mxu0 0.0
    %3040 = vmatprep.subr.mxu0 0.0
    %3041 = vmatpush1.msra.mxu0 0.0
    %3042 = vmatprep.subr.mxu0 0.0
    %3043 = vmatpush1.msra.mxu0 0.0
    %3044 = vmatprep.subr.mxu0 0.0
    %3045 = vmatpush1.msra.mxu0 0.0
    %3046 = vmatprep.mubr.f32.mxu0 0.0
    %3047 = vmatmul.mubr.f32.gmra.mrb[0].mxu0 %v2980
    %v3048 = vpop.f32.mrb[0].mxu0
    %v3049 = vadd.f32 %v2976, %v3048
    %v3050 = vpop.f32.mrb[0].mxu0
    %3051 = vdwg.mxu0
    %3052 = vrot.lane.b32.xlu0 %v1819, 112
    %v3053 = vpop.permute.xlu0 %3052
    %3054 = vrot.lane.b32.xlu0 %v1911, 112
    %v3055 = vpop.permute.xlu0 %3054
    %3056 = vrot.lane.b32.xlu0 %v1916, 112
    %v3057 = vpop.permute.xlu0 %3056
    %v3058 = vsel %vm332, %v3053, 0
    %v3060 = vsel %vm332, %v3055, 0
    %v3062 = vsel %vm332, %v3057, 0
    %3064 = vmatprep.subr.mxu0 0.0
    %3065 = vmatpush1.xpose.msra.mxu0 %v3060
    %3066 = vmatprep.subr.mxu0 0.0
    %3067 = vmatpush1.xpose.msra.mxu0 %v3062
    %3068 = vmatprep.subr.mxu0 0.0
    %3069 = vmatpush1.xpose.msra.mxu0 0.0
    %3070 = vmatprep.subr.mxu0 0.0
    %3071 = vmatpush1.xpose.msra.mxu0 0.0
    %3072 = vmatprep.subr.mxu0 0.0
    %3073 = vmatpush1.xpose.msra.mxu0 0.0
    %3074 = vmatprep.subr.mxu0 0.0
    %3075 = vmatpush1.xpose.msra.mxu0 0.0
    %3076 = vmatprep.subr.mxu0 0.0
    %3077 = vmatpush1.xpose.msra.mxu0 0.0
    %3078 = vmatprep.subr.mxu0 0.0
    %3079 = vmatpush1.xpose.msra.mxu0 0.0
    %3080 = vmatprep.subr.mxu0 0.0
    %3081 = vmatpush1.xpose.msra.mxu0 0.0
    %3082 = vmatprep.subr.mxu0 0.0
    %3083 = vmatpush1.xpose.msra.mxu0 0.0
    %3084 = vmatprep.subr.mxu0 0.0
    %3085 = vmatpush1.xpose.msra.mxu0 0.0
    %3086 = vmatprep.subr.mxu0 0.0
    %3087 = vmatpush1.xpose.msra.mxu0 0.0
    %3088 = vmatprep.subr.mxu0 0.0
    %3089 = vmatpush1.xpose.msra.mxu0 0.0
    %3090 = vmatprep.subr.mxu0 0.0
    %3091 = vmatpush1.xpose.msra.mxu0 0.0
    %3092 = vmatprep.subr.mxu0 0.0
    %3093 = vmatpush1.xpose.msra.mxu0 0.0
    %3094 = vmatprep.subr.mxu0 0.0
    %3095 = vmatpush1.xpose.msra.mxu0 0.0
    %3096 = vmatprep.subr.mxu0 0.0
    %3097 = vmatpush1.xpose.msra.mxu0 0.0
    %3098 = vmatprep.subr.mxu0 0.0
    %3099 = vmatpush1.xpose.msra.mxu0 0.0
    %3100 = vmatprep.subr.mxu0 0.0
    %3101 = vmatpush1.xpose.msra.mxu0 0.0
    %3102 = vmatprep.subr.mxu0 0.0
    %3103 = vmatpush1.xpose.msra.mxu0 0.0
    %3104 = vmatprep.subr.mxu0 0.0
    %3105 = vmatpush1.xpose.msra.mxu0 0.0
    %3106 = vmatprep.subr.mxu0 0.0
    %3107 = vmatpush1.xpose.msra.mxu0 0.0
    %3108 = vmatprep.subr.mxu0 0.0
    %3109 = vmatpush1.xpose.msra.mxu0 0.0
    %3110 = vmatprep.subr.mxu0 0.0
    %3111 = vmatpush1.xpose.msra.mxu0 0.0
    %3112 = vmatprep.subr.mxu0 0.0
    %3113 = vmatpush1.xpose.msra.mxu0 0.0
    %3114 = vmatprep.subr.mxu0 0.0
    %3115 = vmatpush1.xpose.msra.mxu0 0.0
    %3116 = vmatprep.subr.mxu0 0.0
    %3117 = vmatpush1.xpose.msra.mxu0 0.0
    %3118 = vmatprep.subr.mxu0 0.0
    %3119 = vmatpush1.xpose.msra.mxu0 0.0
    %3120 = vmatprep.subr.mxu0 0.0
    %3121 = vmatpush1.xpose.msra.mxu0 0.0
    %3122 = vmatprep.subr.mxu0 0.0
    %3123 = vmatpush1.xpose.msra.mxu0 0.0
    %3124 = vmatprep.subr.mxu0 0.0
    %3125 = vmatpush1.xpose.msra.mxu0 0.0
    %3126 = vmatprep.subr.mxu0 0.0
    %3127 = vmatpush1.xpose.msra.mxu0 0.0
    %3128 = vmatprep.mubr.f32.mxu0 0.0
    %3129 = vmatmul.mubr.f32.gmra.mrb[0].mxu0 %v3058
    %v3130 = vpop.f32.mrb[0].mxu0
    %v3131 = vadd.f32 0.0, %v3130
    %v3132 = vpop.f32.mrb[0].mxu0
    %3133 = vdwg.mxu0
    %v3134 = vmul.f32 %v3131, 0.17677669
    %v3135 = vadd.f32 %v3134, %v2710
    %v3136 = vsel %vm2088, %v3135, -inf
    %3137 = vmax.xlane.f32.xlu0 %v3136
    %v3138 = vpop.xlane.xlu0 %3137
    %v3139 = vsub.f32 %v3135, %v3138
    %v3140 = vmul.f32 %v3139, 1.442695
    %v3141 = vpow.pop %v3140
    %v3142 = vsel %vm2088, %v3141, 0.0
    %3143 = vadd.xlane.f32.xlu0 %v3142
    %v3144 = vpop.xlane.xlu0 %3143
    %v3145 = vrcp.pop %v3144
    %v3146 = vmul.f32 %v3141, %v3145
    %3147 = vrot.lane.b32.xlu0 %v1996, 64
    %v3148 = vpop.permute.xlu0 %3147
    %3149 = vrot.lane.b32.xlu0 %v2001, 64
    %v3150 = vpop.permute.xlu0 %3149
    %v3154 = vsel %vm2088, %v3146, 0
    %3156 = vmatprep.subr.mxu0 0.0
    %3157 = vmatpush1.msra.mxu0 %v3148
    %3158 = vmatprep.subr.mxu0 0.0
    %3159 = vmatpush1.msra.mxu0 %v3150
    %3160 = vmatprep.subr.mxu0 0.0
    %3161 = vmatpush1.msra.mxu0 0.0
    %3162 = vmatprep.subr.mxu0 0.0
    %3163 = vmatpush1.msra.mxu0 0.0
    %3164 = vmatprep.subr.mxu0 0.0
    %3165 = vmatpush1.msra.mxu0 0.0
    %3166 = vmatprep.subr.mxu0 0.0
    %3167 = vmatpush1.msra.mxu0 0.0
    %3168 = vmatprep.subr.mxu0 0.0
    %3169 = vmatpush1.msra.mxu0 0.0
    %3170 = vmatprep.subr.mxu0 0.0
    %3171 = vmatpush1.msra.mxu0 0.0
    %3172 = vmatprep.subr.mxu0 0.0
    %3173 = vmatpush1.msra.mxu0 0.0
    %3174 = vmatprep.subr.mxu0 0.0
    %3175 = vmatpush1.msra.mxu0 0.0
    %3176 = vmatprep.subr.mxu0 0.0
    %3177 = vmatpush1.msra.mxu0 0.0
    %3178 = vmatprep.subr.mxu0 0.0
    %3179 = vmatpush1.msra.mxu0 0.0
    %3180 = vmatprep.subr.mxu0 0.0
    %3181 = vmatpush1.msra.mxu0 0.0
    %3182 = vmatprep.subr.mxu0 0.0
    %3183 = vmatpush1.msra.mxu0 0.0
    %3184 = vmatprep.subr.mxu0 0.0
    %3185 = vmatpush1.msra.mxu0 0.0
    %3186 = vmatprep.subr.mxu0 0.0
    %3187 = vmatpush1.msra.mxu0 0.0
    %3188 = vmatprep.subr.mxu0 0.0
    %3189 = vmatpush1.msra.mxu0 0.0
    %3190 = vmatprep.subr.mxu0 0.0
    %3191 = vmatpush1.msra.mxu0 0.0
    %3192 = vmatprep.subr.mxu0 0.0
    %3193 = vmatpush1.msra.mxu0 0.0
    %3194 = vmatprep.subr.mxu0 0.0
    %3195 = vmatpush1.msra.mxu0 0.0
    %3196 = vmatprep.subr.mxu0 0.0
    %3197 = vmatpush1.msra.mxu0 0.0
    %3198 = vmatprep.subr.mxu0 0.0
    %3199 = vmatpush1.msra.mxu0 0.0
    %3200 = vmatprep.subr.mxu0 0.0
    %3201 = vmatpush1.msra.mxu0 0.0
    %3202 = vmatprep.subr.mxu0 0.0
    %3203 = vmatpush1.msra.mxu0 0.0
    %3204 = vmatprep.subr.mxu0 0.0
    %3205 = vmatpush1.msra.mxu0 0.0
    %3206 = vmatprep.subr.mxu0 0.0
    %3207 = vmatpush1.msra.mxu0 0.0
    %3208 = vmatprep.subr.mxu0 0.0
    %3209 = vmatpush1.msra.mxu0 0.0
    %3210 = vmatprep.subr.mxu0 0.0
    %3211 = vmatpush1.msra.mxu0 0.0
    %3212 = vmatprep.subr.mxu0 0.0
    %3213 = vmatpush1.msra.mxu0 0.0
    %3214 = vmatprep.subr.mxu0 0.0
    %3215 = vmatpush1.msra.mxu0 0.0
    %3216 = vmatprep.subr.mxu0 0.0
    %3217 = vmatpush1.msra.mxu0 0.0
    %3218 = vmatprep.subr.mxu0 0.0
    %3219 = vmatpush1.msra.mxu0 0.0
    %3220 = vmatprep.mubr.f32.mxu0 0.0
    %3221 = vmatmul.mubr.f32.gmra.mrb[0].mxu0 %v3154
    %v3222 = vpop.f32.mrb[0].mxu0
    %v3223 = vadd.f32 0.0, %v3222
    %v3224 = vpop.f32.mrb[0].mxu0
    %3225 = vdwg.mxu0
    %v3226 = vadd.f32 %v3049, %v3223
    %3227 = vrot.lane.b32.xlu0 %v1819, 104
    %v3228 = vpop.permute.xlu0 %3227
    %3229 = vrot.lane.b32.xlu0 %v1911, 104
    %v3230 = vpop.permute.xlu0 %3229
    %3231 = vrot.lane.b32.xlu0 %v1916, 104
    %v3232 = vpop.permute.xlu0 %3231
    %v3233 = vsel %vm332, %v3228, 0
    %v3235 = vsel %vm332, %v3230, 0
    %v3237 = vsel %vm332, %v3232, 0
    %3239 = vmatprep.subr.mxu0 0.0
    %3240 = vmatpush1.xpose.msra.mxu0 %v3235
    %3241 = vmatprep.subr.mxu0 0.0
    %3242 = vmatpush1.xpose.msra.mxu0 %v3237
    %3243 = vmatprep.subr.mxu0 0.0
    %3244 = vmatpush1.xpose.msra.mxu0 0.0
    %3245 = vmatprep.subr.mxu0 0.0
    %3246 = vmatpush1.xpose.msra.mxu0 0.0
    %3247 = vmatprep.subr.mxu0 0.0
    %3248 = vmatpush1.xpose.msra.mxu0 0.0
    %3249 = vmatprep.subr.mxu0 0.0
    %3250 = vmatpush1.xpose.msra.mxu0 0.0
    %3251 = vmatprep.subr.mxu0 0.0
    %3252 = vmatpush1.xpose.msra.mxu0 0.0
    %3253 = vmatprep.subr.mxu0 0.0
    %3254 = vmatpush1.xpose.msra.mxu0 0.0
    %3255 = vmatprep.subr.mxu0 0.0
    %3256 = vmatpush1.xpose.msra.mxu0 0.0
    %3257 = vmatprep.subr.mxu0 0.0
    %3258 = vmatpush1.xpose.msra.mxu0 0.0
    %3259 = vmatprep.subr.mxu0 0.0
    %3260 = vmatpush1.xpose.msra.mxu0 0.0
    %3261 = vmatprep.subr.mxu0 0.0
    %3262 = vmatpush1.xpose.msra.mxu0 0.0
    %3263 = vmatprep.subr.mxu0 0.0
    %3264 = vmatpush1.xpose.msra.mxu0 0.0
    %3265 = vmatprep.subr.mxu0 0.0
    %3266 = vmatpush1.xpose.msra.mxu0 0.0
    %3267 = vmatprep.subr.mxu0 0.0
    %3268 = vmatpush1.xpose.msra.mxu0 0.0
    %3269 = vmatprep.subr.mxu0 0.0
    %3270 = vmatpush1.xpose.msra.mxu0 0.0
    %3271 = vmatprep.subr.mxu0 0.0
    %3272 = vmatpush1.xpose.msra.mxu0 0.0
    %3273 = vmatprep.subr.mxu0 0.0
    %3274 = vmatpush1.xpose.msra.mxu0 0.0
    %3275 = vmatprep.subr.mxu0 0.0
    %3276 = vmatpush1.xpose.msra.mxu0 0.0
    %3277 = vmatprep.subr.mxu0 0.0
    %3278 = vmatpush1.xpose.msra.mxu0 0.0
    %3279 = vmatprep.subr.mxu0 0.0
    %3280 = vmatpush1.xpose.msra.mxu0 0.0
    %3281 = vmatprep.subr.mxu0 0.0
    %3282 = vmatpush1.xpose.msra.mxu0 0.0
    %3283 = vmatprep.subr.mxu0 0.0
    %3284 = vmatpush1.xpose.msra.mxu0 0.0
    %3285 = vmatprep.subr.mxu0 0.0
    %3286 = vmatpush1.xpose.msra.mxu0 0.0
    %3287 = vmatprep.subr.mxu0 0.0
    %3288 = vmatpush1.xpose.msra.mxu0 0.0
    %3289 = vmatprep.subr.mxu0 0.0
    %3290 = vmatpush1.xpose.msra.mxu0 0.0
    %3291 = vmatprep.subr.mxu0 0.0
    %3292 = vmatpush1.xpose.msra.mxu0 0.0
    %3293 = vmatprep.subr.mxu0 0.0
    %3294 = vmatpush1.xpose.msra.mxu0 0.0
    %3295 = vmatprep.subr.mxu0 0.0
    %3296 = vmatpush1.xpose.msra.mxu0 0.0
    %3297 = vmatprep.subr.mxu0 0.0
    %3298 = vmatpush1.xpose.msra.mxu0 0.0
    %3299 = vmatprep.subr.mxu0 0.0
    %3300 = vmatpush1.xpose.msra.mxu0 0.0
    %3301 = vmatprep.subr.mxu0 0.0
    %3302 = vmatpush1.xpose.msra.mxu0 0.0
    %3303 = vmatprep.mubr.f32.mxu0 0.0
    %3304 = vmatmul.mubr.f32.gmra.mrb[0].mxu0 %v3233
    %v3305 = vpop.f32.mrb[0].mxu0
    %v3306 = vadd.f32 0.0, %v3305
    %v3307 = vpop.f32.mrb[0].mxu0
    %3308 = vdwg.mxu0
    %v3309 = vmul.f32 %v3306, 0.17677669
    %v3310 = vadd.f32 %v3309, %v2710
    %v3311 = vsel %vm2088, %v3310, -inf
    %3312 = vmax.xlane.f32.xlu0 %v3311
    %v3313 = vpop.xlane.xlu0 %3312
    %v3314 = vsub.f32 %v3310, %v3313
    %v3315 = vmul.f32 %v3314, 1.442695
    %v3316 = vpow.pop %v3315
    %v3317 = vsel %vm2088, %v3316, 0.0
    %3318 = vadd.xlane.f32.xlu0 %v3317
    %v3319 = vpop.xlane.xlu0 %3318
    %v3320 = vrcp.pop %v3319
    %v3321 = vmul.f32 %v3316, %v3320
    %3322 = vrot.lane.b32.xlu0 %v1996, 32
    %v3323 = vpop.permute.xlu0 %3322
    %3324 = vrot.lane.b32.xlu0 %v2001, 32
    %v3325 = vpop.permute.xlu0 %3324
    %v3329 = vsel %vm2088, %v3321, 0
    %3331 = vmatprep.subr.mxu0 0.0
    %3332 = vmatpush1.msra.mxu0 %v3323
    %3333 = vmatprep.subr.mxu0 0.0
    %3334 = vmatpush1.msra.mxu0 %v3325
    %3335 = vmatprep.subr.mxu0 0.0
    %3336 = vmatpush1.msra.mxu0 0.0
    %3337 = vmatprep.subr.mxu0 0.0
    %3338 = vmatpush1.msra.mxu0 0.0
    %3339 = vmatprep.subr.mxu0 0.0
    %3340 = vmatpush1.msra.mxu0 0.0
    %3341 = vmatprep.subr.mxu0 0.0
    %3342 = vmatpush1.msra.mxu0 0.0
    %3343 = vmatprep.subr.mxu0 0.0
    %3344 = vmatpush1.msra.mxu0 0.0
    %3345 = vmatprep.subr.mxu0 0.0
    %3346 = vmatpush1.msra.mxu0 0.0
    %3347 = vmatprep.subr.mxu0 0.0
    %3348 = vmatpush1.msra.mxu0 0.0
    %3349 = vmatprep.subr.mxu0 0.0
    %3350 = vmatpush1.msra.mxu0 0.0
    %3351 = vmatprep.subr.mxu0 0.0
    %3352 = vmatpush1.msra.mxu0 0.0
    %3353 = vmatprep.subr.mxu0 0.0
    %3354 = vmatpush1.msra.mxu0 0.0
    %3355 = vmatprep.subr.mxu0 0.0
    %3356 = vmatpush1.msra.mxu0 0.0
    %3357 = vmatprep.subr.mxu0 0.0
    %3358 = vmatpush1.msra.mxu0 0.0
    %3359 = vmatprep.subr.mxu0 0.0
    %3360 = vmatpush1.msra.mxu0 0.0
    %3361 = vmatprep.subr.mxu0 0.0
    %3362 = vmatpush1.msra.mxu0 0.0
    %3363 = vmatprep.subr.mxu0 0.0
    %3364 = vmatpush1.msra.mxu0 0.0
    %3365 = vmatprep.subr.mxu0 0.0
    %3366 = vmatpush1.msra.mxu0 0.0
    %3367 = vmatprep.subr.mxu0 0.0
    %3368 = vmatpush1.msra.mxu0 0.0
    %3369 = vmatprep.subr.mxu0 0.0
    %3370 = vmatpush1.msra.mxu0 0.0
    %3371 = vmatprep.subr.mxu0 0.0
    %3372 = vmatpush1.msra.mxu0 0.0
    %3373 = vmatprep.subr.mxu0 0.0
    %3374 = vmatpush1.msra.mxu0 0.0
    %3375 = vmatprep.subr.mxu0 0.0
    %3376 = vmatpush1.msra.mxu0 0.0
    %3377 = vmatprep.subr.mxu0 0.0
    %3378 = vmatpush1.msra.mxu0 0.0
    %3379 = vmatprep.subr.mxu0 0.0
    %3380 = vmatpush1.msra.mxu0 0.0
    %3381 = vmatprep.subr.mxu0 0.0
    %3382 = vmatpush1.msra.mxu0 0.0
    %3383 = vmatprep.subr.mxu0 0.0
    %3384 = vmatpush1.msra.mxu0 0.0
    %3385 = vmatprep.subr.mxu0 0.0
    %3386 = vmatpush1.msra.mxu0 0.0
    %3387 = vmatprep.subr.mxu0 0.0
    %3388 = vmatpush1.msra.mxu0 0.0
    %3389 = vmatprep.subr.mxu0 0.0
    %3390 = vmatpush1.msra.mxu0 0.0
    %3391 = vmatprep.subr.mxu0 0.0
    %3392 = vmatpush1.msra.mxu0 0.0
    %3393 = vmatprep.subr.mxu0 0.0
    %3394 = vmatpush1.msra.mxu0 0.0
    %3395 = vmatprep.mubr.f32.mxu0 0.0
    %3396 = vmatmul.mubr.f32.gmra.mrb[0].mxu0 %v3329
    %v3397 = vpop.f32.mrb[0].mxu0
    %v3398 = vadd.f32 0.0, %v3397
    %v3399 = vpop.f32.mrb[0].mxu0
    %3400 = vdwg.mxu0
    %v3401 = vadd.f32 %v3226, %v3398
    %v3402 = vadd.f32 %v3401, %v2703
    %3403 = vst.msk [vmem:[#allocation2 + $0x8] sm:$0xff] %vm97, %v3402
    %v3404 = vld [vmem:[#allocation2] sm:$0xff]
    %v3405 = vld [vmem:[#allocation2 + $0x8] sm:$0xff]
    %v3406 = vld [vmem:[%s14] sm:$0x1]
    %v3407 = vld [vmem:[%s15] sm:$0x1]
    %v3408 = vadd.f32 %v3404, %v1726
    %v3409 = vadd.f32 %v3405, %v1727
    %v3410 = vsel %vm97, %v3408, 0.0
    %3411 = vadd.xlane.f32.xlu0 %v3410
    %v3412 = vpop.xlane.xlu0 %3411
    %v3413 = vsel %vm97, %v3409, 0.0
    %3414 = vadd.xlane.f32.xlu0 %v3413
    %v3415 = vpop.xlane.xlu0 %3414
    %v3416 = vmul.f32 %v3412, %v1691
    %v3417 = vmul.f32 %v3415, %v1691
    %v3418 = vsub.f32 %v3408, %v3416
    %v3419 = vsub.f32 %v3409, %v3417
    %v3420 = vmul.f32 %v3418, %v3418
    %v3421 = vmul.f32 %v3419, %v3419
    %v3422 = vsel %vm97, %v3420, 0.0
    %3423 = vadd.xlane.f32.xlu0 %v3422
    %v3424 = vpop.xlane.xlu0 %3423
    %v3425 = vsel %vm97, %v3421, 0.0
    %3426 = vadd.xlane.f32.xlu0 %v3425
    %v3427 = vpop.xlane.xlu0 %3426
    %v3428 = vmul.f32 %v3424, %v1691
    %v3429 = vmul.f32 %v3427, %v1691
    %v3430 = vadd.f32 %v3428, 1e-05
    %v3431 = vadd.f32 %v3429, 1e-05
    %v3432 = vrsqrt.pop %v3430
    %v3433 = vrsqrt.pop %v3431
    %v3434 = vmul.f32 %v3418, %v3432
    %v3435 = vmul.f32 %v3419, %v3433
    %v3437 = vlaneseq
    %v3438 = vshrl.u32 %v3437, 7
    %v3439 = vsub.s32 0, %v3438
    %v3440 = vrot.slane %v3406, %v3439
    %v3442 = vmul.f32 %v3434, %v3440
    %v3443 = vmul.f32 %v3435, %v3440
    %v3445 = vlaneseq
    %v3446 = vshrl.u32 %v3445, 7
    %v3447 = vsub.s32 0, %v3446
    %v3448 = vrot.slane %v3407, %v3447
    %v3450 = vadd.f32 %v3442, %v3448
    %v3451 = vadd.f32 %v3443, %v3448
    %v3452 = vld [vmem:[%s18] sm:$0xff]
    %v3453 = vld [vmem:[%s18 + $0x8] sm:$0xff]
    %v3454 = vld [vmem:[%s18 + $0x10] sm:$0xff]
    %v3455 = vld [vmem:[%s18 + $0x18] sm:$0xff]
    %v3456 = vld [vmem:[%s19] sm:$0x1]
    %v3458 = vlaneseq
    %v3459 = vshrl.u32 %v3458, 7
    %v3460 = vsub.s32 0, %v3459
    %v3461 = vrot.slane %v3456, %v3460
    %v3464 = vsel %vm97, %v3450, 0
    %v3467 = vsel %vm97, %v3451, 0
    %3469 = vmatprep.subr.mxu0 0.0
    %3470 = vmatpush1.msra.mxu0 %v3452
    %3471 = vmatprep.subr.mxu0 0.0
    %3472 = vmatpush1.msra.mxu0 %v3453
    %3473 = vmatprep.subr.mxu0 0.0
    %3474 = vmatpush1.msra.mxu0 %v3454
    %3475 = vmatprep.subr.mxu0 0.0
    %3476 = vmatpush1.msra.mxu0 %v3455
    %3477 = vmatprep.subr.mxu0 0.0
    %3478 = vmatpush1.msra.mxu0 0.0
    %3479 = vmatprep.subr.mxu0 0.0
    %3480 = vmatpush1.msra.mxu0 0.0
    %3481 = vmatprep.subr.mxu0 0.0
    %3482 = vmatpush1.msra.mxu0 0.0
    %3483 = vmatprep.subr.mxu0 0.0
    %3484 = vmatpush1.msra.mxu0 0.0
    %3485 = vmatprep.subr.mxu0 0.0
    %3486 = vmatpush1.msra.mxu0 0.0
    %3487 = vmatprep.subr.mxu0 0.0
    %3488 = vmatpush1.msra.mxu0 0.0
    %3489 = vmatprep.subr.mxu0 0.0
    %3490 = vmatpush1.msra.mxu0 0.0
    %3491 = vmatprep.subr.mxu0 0.0
    %3492 = vmatpush1.msra.mxu0 0.0
    %3493 = vmatprep.subr.mxu0 0.0
    %3494 = vmatpush1.msra.mxu0 0.0
    %3495 = vmatprep.subr.mxu0 0.0
    %3496 = vmatpush1.msra.mxu0 0.0
    %3497 = vmatprep.subr.mxu0 0.0
    %3498 = vmatpush1.msra.mxu0 0.0
    %3499 = vmatprep.subr.mxu0 0.0
    %3500 = vmatpush1.msra.mxu0 0.0
    %3501 = vmatprep.subr.mxu0 0.0
    %3502 = vmatpush1.msra.mxu0 0.0
    %3503 = vmatprep.subr.mxu0 0.0
    %3504 = vmatpush1.msra.mxu0 0.0
    %3505 = vmatprep.subr.mxu0 0.0
    %3506 = vmatpush1.msra.mxu0 0.0
    %3507 = vmatprep.subr.mxu0 0.0
    %3508 = vmatpush1.msra.mxu0 0.0
    %3509 = vmatprep.subr.mxu0 0.0
    %3510 = vmatpush1.msra.mxu0 0.0
    %3511 = vmatprep.subr.mxu0 0.0
    %3512 = vmatpush1.msra.mxu0 0.0
    %3513 = vmatprep.subr.mxu0 0.0
    %3514 = vmatpush1.msra.mxu0 0.0
    %3515 = vmatprep.subr.mxu0 0.0
    %3516 = vmatpush1.msra.mxu0 0.0
    %3517 = vmatprep.subr.mxu0 0.0
    %3518 = vmatpush1.msra.mxu0 0.0
    %3519 = vmatprep.subr.mxu0 0.0
    %3520 = vmatpush1.msra.mxu0 0.0
    %3521 = vmatprep.subr.mxu0 0.0
    %3522 = vmatpush1.msra.mxu0 0.0
    %3523 = vmatprep.subr.mxu0 0.0
    %3524 = vmatpush1.msra.mxu0 0.0
    %3525 = vmatprep.subr.mxu0 0.0
    %3526 = vmatpush1.msra.mxu0 0.0
    %3527 = vmatprep.subr.mxu0 0.0
    %3528 = vmatpush1.msra.mxu0 0.0
    %3529 = vmatprep.subr.mxu0 0.0
    %3530 = vmatpush1.msra.mxu0 0.0
    %3531 = vmatprep.subr.mxu0 0.0
    %3532 = vmatpush1.msra.mxu0 0.0
    %3533 = vmatprep.mubr.f32.mxu0 0.0
    %3534 = vmatmul.mubr.f32.gmra.mrb[0].mxu0 %v3464
    %v3535 = vpop.f32.mrb[0].mxu0
    %v3536 = vadd.f32 %v3461, %v3535
    %v3537 = vpop.f32.mrb[0].mxu0
    %3538 = vmatprep.mubr.f32.mxu0 0.0
    %3539 = vmatmul.mubr.f32.gmra.mrb[0].mxu0 %v3467
    %v3540 = vpop.f32.mrb[0].mxu0
    %v3541 = vadd.f32 %v3461, %v3540
    %v3542 = vpop.f32.mrb[0].mxu0
    %3543 = vdwg.mxu0
    %v3544 = vmax.f32 %v3536, 0.0
    %v3545 = vmax.f32 %v3541, 0.0
    %v3546 = vld [vmem:[%s20] sm:$0xff]
    %v3547 = vld [vmem:[%s20 + $0x8] sm:$0xff]
    %v3548 = vld [vmem:[%s20 + $0x10] sm:$0xff]
    %v3549 = vld [vmem:[%s20 + $0x18] sm:$0xff]
    %v3550 = vld [vmem:[%s20 + $0x20] sm:$0xff]
    %v3551 = vld [vmem:[%s20 + $0x28] sm:$0xff]
    %v3552 = vld [vmem:[%s20 + $0x30] sm:$0xff]
    %v3553 = vld [vmem:[%s20 + $0x38] sm:$0xff]
    %v3554 = vld [vmem:[%s20 + $0x40] sm:$0xff]
    %v3555 = vld [vmem:[%s20 + $0x48] sm:$0xff]
    %v3556 = vld [vmem:[%s20 + $0x50] sm:$0xff]
    %v3557 = vld [vmem:[%s20 + $0x58] sm:$0xff]
    %v3558 = vld [vmem:[%s20 + $0x60] sm:$0xff]
    %v3559 = vld [vmem:[%s20 + $0x68] sm:$0xff]
    %v3560 = vld [vmem:[%s20 + $0x70] sm:$0xff]
    %v3561 = vld [vmem:[%s20 + $0x78] sm:$0xff]
    %v3562 = vld [vmem:[%s21] sm:$0x1]
    %v3564 = vlaneseq
    %v3565 = vshrl.u32 %v3564, 7
    %v3566 = vsub.s32 0, %v3565
    %v3567 = vrot.slane %v3562, %v3566
    %3569 = vmatprep.subr.mxu0 0.0
    %3570 = vmatpush1.msra.mxu0 %v3546
    %3571 = vmatprep.subr.mxu0 0.0
    %3572 = vmatpush1.msra.mxu0 %v3547
    %3573 = vmatprep.subr.mxu0 0.0
    %3574 = vmatpush1.msra.mxu0 %v3548
    %3575 = vmatprep.subr.mxu0 0.0
    %3576 = vmatpush1.msra.mxu0 %v3549
    %3577 = vmatprep.subr.mxu0 0.0
    %3578 = vmatpush1.msra.mxu0 %v3550
    %3579 = vmatprep.subr.mxu0 0.0
    %3580 = vmatpush1.msra.mxu0 %v3551
    %3581 = vmatprep.subr.mxu0 0.0
    %3582 = vmatpush1.msra.mxu0 %v3552
    %3583 = vmatprep.subr.mxu0 0.0
    %3584 = vmatpush1.msra.mxu0 %v3553
    %3585 = vmatprep.subr.mxu0 0.0
    %3586 = vmatpush1.msra.mxu0 %v3554
    %3587 = vmatprep.subr.mxu0 0.0
    %3588 = vmatpush1.msra.mxu0 %v3555
    %3589 = vmatprep.subr.mxu0 0.0
    %3590 = vmatpush1.msra.mxu0 %v3556
    %3591 = vmatprep.subr.mxu0 0.0
    %3592 = vmatpush1.msra.mxu0 %v3557
    %3593 = vmatprep.subr.mxu0 0.0
    %3594 = vmatpush1.msra.mxu0 %v3558
    %3595 = vmatprep.subr.mxu0 0.0
    %3596 = vmatpush1.msra.mxu0 %v3559
    %3597 = vmatprep.subr.mxu0 0.0
    %3598 = vmatpush1.msra.mxu0 %v3560
    %3599 = vmatprep.subr.mxu0 0.0
    %3600 = vmatpush1.msra.mxu0 %v3561
    %3601 = vmatprep.subr.mxu0 0.0
    %3602 = vmatpush1.msra.mxu0 0.0
    %3603 = vmatprep.subr.mxu0 0.0
    %3604 = vmatpush1.msra.mxu0 0.0
    %3605 = vmatprep.subr.mxu0 0.0
    %3606 = vmatpush1.msra.mxu0 0.0
    %3607 = vmatprep.subr.mxu0 0.0
    %3608 = vmatpush1.msra.mxu0 0.0
    %3609 = vmatprep.subr.mxu0 0.0
    %3610 = vmatpush1.msra.mxu0 0.0
    %3611 = vmatprep.subr.mxu0 0.0
    %3612 = vmatpush1.msra.mxu0 0.0
    %3613 = vmatprep.subr.mxu0 0.0
    %3614 = vmatpush1.msra.mxu0 0.0
    %3615 = vmatprep.subr.mxu0 0.0
    %3616 = vmatpush1.msra.mxu0 0.0
    %3617 = vmatprep.subr.mxu0 0.0
    %3618 = vmatpush1.msra.mxu0 0.0
    %3619 = vmatprep.subr.mxu0 0.0
    %3620 = vmatpush1.msra.mxu0 0.0
    %3621 = vmatprep.subr.mxu0 0.0
    %3622 = vmatpush1.msra.mxu0 0.0
    %3623 = vmatprep.subr.mxu0 0.0
    %3624 = vmatpush1.msra.mxu0 0.0
    %3625 = vmatprep.subr.mxu0 0.0
    %3626 = vmatpush1.msra.mxu0 0.0
    %3627 = vmatprep.subr.mxu0 0.0
    %3628 = vmatpush1.msra.mxu0 0.0
    %3629 = vmatprep.subr.mxu0 0.0
    %3630 = vmatpush1.msra.mxu0 0.0
    %3631 = vmatprep.subr.mxu0 0.0
    %3632 = vmatpush1.msra.mxu0 0.0
    %3633 = vmatprep.mubr.f32.mxu0 0.0
    %3634 = vmatmul.mubr.f32.gmra.mrb[0].mxu0 %v3544
    %v3635 = vpop.f32.mrb[0].mxu0
    %v3636 = vadd.f32 %v3567, %v3635
    %v3637 = vpop.f32.mrb[0].mxu0
    %3638 = vmatprep.mubr.f32.mxu0 0.0
    %3639 = vmatmul.mubr.f32.gmra.mrb[0].mxu0 %v3545
    %v3640 = vpop.f32.mrb[0].mxu0
    %v3641 = vadd.f32 %v3567, %v3640
    %v3642 = vpop.f32.mrb[0].mxu0
    %3643 = vdwg.mxu0
    %v3644 = vld [vmem:[%s16] sm:$0x1]
    %v3645 = vld [vmem:[%s17] sm:$0x1]
    %v3646 = vadd.f32 %v3636, %v3450
    %v3647 = vadd.f32 %v3641, %v3451
    %v3648 = vsel %vm97, %v3646, 0.0
    %3649 = vadd.xlane.f32.xlu0 %v3648
    %v3650 = vpop.xlane.xlu0 %3649
    %v3651 = vsel %vm97, %v3647, 0.0
    %3652 = vadd.xlane.f32.xlu0 %v3651
    %v3653 = vpop.xlane.xlu0 %3652
    %v3654 = vmul.f32 %v3650, %v1691
    %v3655 = vmul.f32 %v3653, %v1691
    %v3656 = vsub.f32 %v3646, %v3654
    %v3657 = vsub.f32 %v3647, %v3655
    %v3658 = vmul.f32 %v3656, %v3656
    %v3659 = vmul.f32 %v3657, %v3657
    %v3660 = vsel %vm97, %v3658, 0.0
    %3661 = vadd.xlane.f32.xlu0 %v3660
    %v3662 = vpop.xlane.xlu0 %3661
    %v3663 = vsel %vm97, %v3659, 0.0
    %3664 = vadd.xlane.f32.xlu0 %v3663
    %v3665 = vpop.xlane.xlu0 %3664
    %v3666 = vmul.f32 %v3662, %v1691
    %v3667 = vmul.f32 %v3665, %v1691
    %v3668 = vadd.f32 %v3666, 1e-05
    %v3669 = vadd.f32 %v3667, 1e-05
    %v3670 = vrsqrt.pop %v3668
    %v3671 = vrsqrt.pop %v3669
    %v3672 = vmul.f32 %v3656, %v3670
    %v3673 = vmul.f32 %v3657, %v3671
    %v3675 = vlaneseq
    %v3676 = vshrl.u32 %v3675, 7
    %v3677 = vsub.s32 0, %v3676
    %v3678 = vrot.slane %v3644, %v3677
    %v3680 = vmul.f32 %v3672, %v3678
    %v3681 = vmul.f32 %v3673, %v3678
    %v3683 = vlaneseq
    %v3684 = vshrl.u32 %v3683, 7
    %v3685 = vsub.s32 0, %v3684
    %v3686 = vrot.slane %v3645, %v3685
    %v3688 = vadd.f32 %v3680, %v3686
    %v3689 = vadd.f32 %v3681, %v3686
    %s3690 = scalar_lea.vmem %s4, 32
    %v3691 = vld [vmem:[%s3690] sm:$0xff]
    %v3692 = vld [vmem:[%s3690 + $0x8] sm:$0xff]
    %v3693 = vld [vmem:[%s3690 + $0x10] sm:$0xff]
    %v3694 = vld [vmem:[%s3690 + $0x18] sm:$0xff]
    %s3695 = scalar_lea.vmem %s5, 32
    %v3696 = vld [vmem:[%s3695] sm:$0xff]
    %v3697 = vld [vmem:[%s3695 + $0x8] sm:$0xff]
    %v3698 = vld [vmem:[%s3695 + $0x10] sm:$0xff]
    %v3699 = vld [vmem:[%s3695 + $0x18] sm:$0xff]
    %s3700 = scalar_lea.vmem %s6, 32
    %v3701 = vld [vmem:[%s3700] sm:$0xff]
    %v3702 = vld [vmem:[%s3700 + $0x8] sm:$0xff]
    %v3703 = vld [vmem:[%s3700 + $0x10] sm:$0xff]
    %v3704 = vld [vmem:[%s3700 + $0x18] sm:$0xff]
    %s3705 = scalar_lea.vmem %s7, 1
    %v3706 = vld [vmem:[%s3705] sm:$0x1]
    %v3708 = vsel %vm97, %v3688, 0
    %v3711 = vsel %vm97, %v3689, 0
    %3713 = vmatprep.subr.mxu0 0.0
    %3714 = vmatpush1.msra.mxu0 %v3691
    %3715 = vmatprep.subr.mxu0 0.0
    %3716 = vmatpush1.msra.mxu0 %v3692
    %3717 = vmatprep.subr.mxu0 0.0
    %3718 = vmatpush1.msra.mxu0 %v3693
    %3719 = vmatprep.subr.mxu0 0.0
    %3720 = vmatpush1.msra.mxu0 %v3694
    %3721 = vmatprep.subr.mxu0 0.0
    %3722 = vmatpush1.msra.mxu0 0.0
    %3723 = vmatprep.subr.mxu0 0.0
    %3724 = vmatpush1.msra.mxu0 0.0
    %3725 = vmatprep.subr.mxu0 0.0
    %3726 = vmatpush1.msra.mxu0 0.0
    %3727 = vmatprep.subr.mxu0 0.0
    %3728 = vmatpush1.msra.mxu0 0.0
    %3729 = vmatprep.subr.mxu0 0.0
    %3730 = vmatpush1.msra.mxu0 0.0
    %3731 = vmatprep.subr.mxu0 0.0
    %3732 = vmatpush1.msra.mxu0 0.0
    %3733 = vmatprep.subr.mxu0 0.0
    %3734 = vmatpush1.msra.mxu0 0.0
    %3735 = vmatprep.subr.mxu0 0.0
    %3736 = vmatpush1.msra.mxu0 0.0
    %3737 = vmatprep.subr.mxu0 0.0
    %3738 = vmatpush1.msra.mxu0 0.0
    %3739 = vmatprep.subr.mxu0 0.0
    %3740 = vmatpush1.msra.mxu0 0.0
    %3741 = vmatprep.subr.mxu0 0.0
    %3742 = vmatpush1.msra.mxu0 0.0
    %3743 = vmatprep.subr.mxu0 0.0
    %3744 = vmatpush1.msra.mxu0 0.0
    %3745 = vmatprep.subr.mxu0 0.0
    %3746 = vmatpush1.msra.mxu0 0.0
    %3747 = vmatprep.subr.mxu0 0.0
    %3748 = vmatpush1.msra.mxu0 0.0
    %3749 = vmatprep.subr.mxu0 0.0
    %3750 = vmatpush1.msra.mxu0 0.0
    %3751 = vmatprep.subr.mxu0 0.0
    %3752 = vmatpush1.msra.mxu0 0.0
    %3753 = vmatprep.subr.mxu0 0.0
    %3754 = vmatpush1.msra.mxu0 0.0
    %3755 = vmatprep.subr.mxu0 0.0
    %3756 = vmatpush1.msra.mxu0 0.0
    %3757 = vmatprep.subr.mxu0 0.0
    %3758 = vmatpush1.msra.mxu0 0.0
    %3759 = vmatprep.subr.mxu0 0.0
    %3760 = vmatpush1.msra.mxu0 0.0
    %3761 = vmatprep.subr.mxu0 0.0
    %3762 = vmatpush1.msra.mxu0 0.0
    %3763 = vmatprep.subr.mxu0 0.0
    %3764 = vmatpush1.msra.mxu0 0.0
    %3765 = vmatprep.subr.mxu0 0.0
    %3766 = vmatpush1.msra.mxu0 0.0
    %3767 = vmatprep.subr.mxu0 0.0
    %3768 = vmatpush1.msra.mxu0 0.0
    %3769 = vmatprep.subr.mxu0 0.0
    %3770 = vmatpush1.msra.mxu0 0.0
    %3771 = vmatprep.subr.mxu0 0.0
    %3772 = vmatpush1.msra.mxu0 0.0
    %3773 = vmatprep.subr.mxu0 0.0
    %3774 = vmatpush1.msra.mxu0 0.0
    %3775 = vmatprep.subr.mxu0 0.0
    %3776 = vmatpush1.msra.mxu0 0.0
    %3777 = vmatprep.mubr.f32.mxu0 0.0
    %3778 = vmatmul.mubr.f32.gmra.mrb[0].mxu0 %v3708
    %v3779 = vpop.f32.mrb[0].mxu0
    %v3780 = vadd.f32 0.0, %v3779
    %v3781 = vpop.f32.mrb[0].mxu0
    %3782 = vmatprep.mubr.f32.mxu0 0.0
    %3783 = vmatmul.mubr.f32.gmra.mrb[0].mxu0 %v3711
    %v3784 = vpop.f32.mrb[0].mxu0
    %v3785 = vadd.f32 0.0, %v3784
    %v3786 = vpop.f32.mrb[0].mxu0
    %3787 = vdwg.mxu0
    %3788 = vmatprep.subr.mxu0 0.0
    %3789 = vmatpush1.msra.mxu0 %v3696
    %3790 = vmatprep.subr.mxu0 0.0
    %3791 = vmatpush1.msra.mxu0 %v3697
    %3792 = vmatprep.subr.mxu0 0.0
    %3793 = vmatpush1.msra.mxu0 %v3698
    %3794 = vmatprep.subr.mxu0 0.0
    %3795 = vmatpush1.msra.mxu0 %v3699
    %3796 = vmatprep.subr.mxu0 0.0
    %3797 = vmatpush1.msra.mxu0 0.0
    %3798 = vmatprep.subr.mxu0 0.0
    %3799 = vmatpush1.msra.mxu0 0.0
    %3800 = vmatprep.subr.mxu0 0.0
    %3801 = vmatpush1.msra.mxu0 0.0
    %3802 = vmatprep.subr.mxu0 0.0
    %3803 = vmatpush1.msra.mxu0 0.0
    %3804 = vmatprep.subr.mxu0 0.0
    %3805 = vmatpush1.msra.mxu0 0.0
    %3806 = vmatprep.subr.mxu0 0.0
    %3807 = vmatpush1.msra.mxu0 0.0
    %3808 = vmatprep.subr.mxu0 0.0
    %3809 = vmatpush1.msra.mxu0 0.0
    %3810 = vmatprep.subr.mxu0 0.0
    %3811 = vmatpush1.msra.mxu0 0.0
    %3812 = vmatprep.subr.mxu0 0.0
    %3813 = vmatpush1.msra.mxu0 0.0
    %3814 = vmatprep.subr.mxu0 0.0
    %3815 = vmatpush1.msra.mxu0 0.0
    %3816 = vmatprep.subr.mxu0 0.0
    %3817 = vmatpush1.msra.mxu0 0.0
    %3818 = vmatprep.subr.mxu0 0.0
    %3819 = vmatpush1.msra.mxu0 0.0
    %3820 = vmatprep.subr.mxu0 0.0
    %3821 = vmatpush1.msra.mxu0 0.0
    %3822 = vmatprep.subr.mxu0 0.0
    %3823 = vmatpush1.msra.mxu0 0.0
    %3824 = vmatprep.subr.mxu0 0.0
    %3825 = vmatpush1.msra.mxu0 0.0
    %3826 = vmatprep.subr.mxu0 0.0
    %3827 = vmatpush1.msra.mxu0 0.0
    %3828 = vmatprep.subr.mxu0 0.0
    %3829 = vmatpush1.msra.mxu0 0.0
    %3830 = vmatprep.subr.mxu0 0.0
    %3831 = vmatpush1.msra.mxu0 0.0
    %3832 = vmatprep.subr.mxu0 0.0
    %3833 = vmatpush1.msra.mxu0 0.0
    %3834 = vmatprep.subr.mxu0 0.0
    %3835 = vmatpush1.msra.mxu0 0.0
    %3836 = vmatprep.subr.mxu0 0.0
    %3837 = vmatpush1.msra.mxu0 0.0
    %3838 = vmatprep.subr.mxu0 0.0
    %3839 = vmatpush1.msra.mxu0 0.0
    %3840 = vmatprep.subr.mxu0 0.0
    %3841 = vmatpush1.msra.mxu0 0.0
    %3842 = vmatprep.subr.mxu0 0.0
    %3843 = vmatpush1.msra.mxu0 0.0
    %3844 = vmatprep.subr.mxu0 0.0
    %3845 = vmatpush1.msra.mxu0 0.0
    %3846 = vmatprep.subr.mxu0 0.0
    %3847 = vmatpush1.msra.mxu0 0.0
    %3848 = vmatprep.subr.mxu0 0.0
    %3849 = vmatpush1.msra.mxu0 0.0
    %3850 = vmatprep.subr.mxu0 0.0
    %3851 = vmatpush1.msra.mxu0 0.0
    %3852 = vmatprep.mubr.f32.mxu0 0.0
    %3853 = vmatmul.mubr.f32.gmra.mrb[0].mxu0 %v3708
    %v3854 = vpop.f32.mrb[0].mxu0
    %v3855 = vadd.f32 0.0, %v3854
    %v3856 = vpop.f32.mrb[0].mxu0
    %3857 = vmatprep.mubr.f32.mxu0 0.0
    %3858 = vmatmul.mubr.f32.gmra.mrb[0].mxu0 %v3711
    %v3859 = vpop.f32.mrb[0].mxu0
    %v3860 = vadd.f32 0.0, %v3859
    %v3861 = vpop.f32.mrb[0].mxu0
    %3862 = vdwg.mxu0
    %3863 = vmatprep.subr.mxu0 0.0
    %3864 = vmatpush1.msra.mxu0 %v3701
    %3865 = vmatprep.subr.mxu0 0.0
    %3866 = vmatpush1.msra.mxu0 %v3702
    %3867 = vmatprep.subr.mxu0 0.0
    %3868 = vmatpush1.msra.mxu0 %v3703
    %3869 = vmatprep.subr.mxu0 0.0
    %3870 = vmatpush1.msra.mxu0 %v3704
    %3871 = vmatprep.subr.mxu0 0.0
    %3872 = vmatpush1.msra.mxu0 0.0
    %3873 = vmatprep.subr.mxu0 0.0
    %3874 = vmatpush1.msra.mxu0 0.0
    %3875 = vmatprep.subr.mxu0 0.0
    %3876 = vmatpush1.msra.mxu0 0.0
    %3877 = vmatprep.subr.mxu0 0.0
    %3878 = vmatpush1.msra.mxu0 0.0
    %3879 = vmatprep.subr.mxu0 0.0
    %3880 = vmatpush1.msra.mxu0 0.0
    %3881 = vmatprep.subr.mxu0 0.0
    %3882 = vmatpush1.msra.mxu0 0.0
    %3883 = vmatprep.subr.mxu0 0.0
    %3884 = vmatpush1.msra.mxu0 0.0
    %3885 = vmatprep.subr.mxu0 0.0
    %3886 = vmatpush1.msra.mxu0 0.0
    %3887 = vmatprep.subr.mxu0 0.0
    %3888 = vmatpush1.msra.mxu0 0.0
    %3889 = vmatprep.subr.mxu0 0.0
    %3890 = vmatpush1.msra.mxu0 0.0
    %3891 = vmatprep.subr.mxu0 0.0
    %3892 = vmatpush1.msra.mxu0 0.0
    %3893 = vmatprep.subr.mxu0 0.0
    %3894 = vmatpush1.msra.mxu0 0.0
    %3895 = vmatprep.subr.mxu0 0.0
    %3896 = vmatpush1.msra.mxu0 0.0
    %3897 = vmatprep.subr.mxu0 0.0
    %3898 = vmatpush1.msra.mxu0 0.0
    %3899 = vmatprep.subr.mxu0 0.0
    %3900 = vmatpush1.msra.mxu0 0.0
    %3901 = vmatprep.subr.mxu0 0.0
    %3902 = vmatpush1.msra.mxu0 0.0
    %3903 = vmatprep.subr.mxu0 0.0
    %3904 = vmatpush1.msra.mxu0 0.0
    %3905 = vmatprep.subr.mxu0 0.0
    %3906 = vmatpush1.msra.mxu0 0.0
    %3907 = vmatprep.subr.mxu0 0.0
    %3908 = vmatpush1.msra.mxu0 0.0
    %3909 = vmatprep.subr.mxu0 0.0
    %3910 = vmatpush1.msra.mxu0 0.0
    %3911 = vmatprep.subr.mxu0 0.0
    %3912 = vmatpush1.msra.mxu0 0.0
    %3913 = vmatprep.subr.mxu0 0.0
    %3914 = vmatpush1.msra.mxu0 0.0
    %3915 = vmatprep.subr.mxu0 0.0
    %3916 = vmatpush1.msra.mxu0 0.0
    %3917 = vmatprep.subr.mxu0 0.0
    %3918 = vmatpush1.msra.mxu0 0.0
    %3919 = vmatprep.subr.mxu0 0.0
    %3920 = vmatpush1.msra.mxu0 0.0
    %3921 = vmatprep.subr.mxu0 0.0
    %3922 = vmatpush1.msra.mxu0 0.0
    %3923 = vmatprep.subr.mxu0 0.0
    %3924 = vmatpush1.msra.mxu0 0.0
    %3925 = vmatprep.subr.mxu0 0.0
    %3926 = vmatpush1.msra.mxu0 0.0
    %3927 = vmatprep.mubr.f32.mxu0 0.0
    %3928 = vmatmul.mubr.f32.gmra.mrb[0].mxu0 %v3708
    %v3929 = vpop.f32.mrb[0].mxu0
    %v3930 = vadd.f32 0.0, %v3929
    %v3931 = vpop.f32.mrb[0].mxu0
    %3932 = vmatprep.mubr.f32.mxu0 0.0
    %3933 = vmatmul.mubr.f32.gmra.mrb[0].mxu0 %v3711
    %v3934 = vpop.f32.mrb[0].mxu0
    %v3935 = vadd.f32 0.0, %v3934
    %v3936 = vpop.f32.mrb[0].mxu0
    %3937 = vdwg.mxu0
    %v3938 = vld [vmem:[%s2] sm:$0xff]
    %vm3939 = vcmp.eq.f32.partialorder %v3938, 0.0
    %v3940 = vsel %vm3939, -1e+20, 0.0
    %v3942 = vsel %vm332, %v3780, 0
    %v3945 = vsel %vm332, %v3855, 0
    %3947 = vmatprep.subr.mxu0 0.0
    %3948 = vmatpush1.xpose.msra.mxu0 %v3945
    %3949 = vmatprep.subr.mxu0 0.0
    %3950 = vmatpush1.xpose.msra.mxu0 0.0
    %3951 = vmatprep.subr.mxu0 0.0
    %3952 = vmatpush1.xpose.msra.mxu0 0.0
    %3953 = vmatprep.subr.mxu0 0.0
    %3954 = vmatpush1.xpose.msra.mxu0 0.0
    %3955 = vmatprep.subr.mxu0 0.0
    %3956 = vmatpush1.xpose.msra.mxu0 0.0
    %3957 = vmatprep.subr.mxu0 0.0
    %3958 = vmatpush1.xpose.msra.mxu0 0.0
    %3959 = vmatprep.subr.mxu0 0.0
    %3960 = vmatpush1.xpose.msra.mxu0 0.0
    %3961 = vmatprep.subr.mxu0 0.0
    %3962 = vmatpush1.xpose.msra.mxu0 0.0
    %3963 = vmatprep.subr.mxu0 0.0
    %3964 = vmatpush1.xpose.msra.mxu0 0.0
    %3965 = vmatprep.subr.mxu0 0.0
    %3966 = vmatpush1.xpose.msra.mxu0 0.0
    %3967 = vmatprep.subr.mxu0 0.0
    %3968 = vmatpush1.xpose.msra.mxu0 0.0
    %3969 = vmatprep.subr.mxu0 0.0
    %3970 = vmatpush1.xpose.msra.mxu0 0.0
    %3971 = vmatprep.subr.mxu0 0.0
    %3972 = vmatpush1.xpose.msra.mxu0 0.0
    %3973 = vmatprep.subr.mxu0 0.0
    %3974 = vmatpush1.xpose.msra.mxu0 0.0
    %3975 = vmatprep.subr.mxu0 0.0
    %3976 = vmatpush1.xpose.msra.mxu0 0.0
    %3977 = vmatprep.subr.mxu0 0.0
    %3978 = vmatpush1.xpose.msra.mxu0 0.0
    %3979 = vmatprep.subr.mxu0 0.0
    %3980 = vmatpush1.xpose.msra.mxu0 0.0
    %3981 = vmatprep.subr.mxu0 0.0
    %3982 = vmatpush1.xpose.msra.mxu0 0.0
    %3983 = vmatprep.subr.mxu0 0.0
    %3984 = vmatpush1.xpose.msra.mxu0 0.0
    %3985 = vmatprep.subr.mxu0 0.0
    %3986 = vmatpush1.xpose.msra.mxu0 0.0
    %3987 = vmatprep.subr.mxu0 0.0
    %3988 = vmatpush1.xpose.msra.mxu0 0.0
    %3989 = vmatprep.subr.mxu0 0.0
    %3990 = vmatpush1.xpose.msra.mxu0 0.0
    %3991 = vmatprep.subr.mxu0 0.0
    %3992 = vmatpush1.xpose.msra.mxu0 0.0
    %3993 = vmatprep.subr.mxu0 0.0
    %3994 = vmatpush1.xpose.msra.mxu0 0.0
    %3995 = vmatprep.subr.mxu0 0.0
    %3996 = vmatpush1.xpose.msra.mxu0 0.0
    %3997 = vmatprep.subr.mxu0 0.0
    %3998 = vmatpush1.xpose.msra.mxu0 0.0
    %3999 = vmatprep.subr.mxu0 0.0
    %4000 = vmatpush1.xpose.msra.mxu0 0.0
    %4001 = vmatprep.subr.mxu0 0.0
    %4002 = vmatpush1.xpose.msra.mxu0 0.0
    %4003 = vmatprep.subr.mxu0 0.0
    %4004 = vmatpush1.xpose.msra.mxu0 0.0
    %4005 = vmatprep.subr.mxu0 0.0
    %4006 = vmatpush1.xpose.msra.mxu0 0.0
    %4007 = vmatprep.subr.mxu0 0.0
    %4008 = vmatpush1.xpose.msra.mxu0 0.0
    %4009 = vmatprep.subr.mxu0 0.0
    %4010 = vmatpush1.xpose.msra.mxu0 0.0
    %4011 = vmatprep.mubr.f32.mxu0 0.0
    %4012 = vmatmul.mubr.f32.gmra.mrb[0].mxu0 %v3942
    %v4013 = vpop.f32.mrb[0].mxu0
    %v4014 = vadd.f32 0.0, %v4013
    %v4015 = vpop.f32.mrb[0].mxu0
    %4016 = vdwg.mxu0
    %v4017 = vmul.f32 %v4014, 0.17677669
    %v4018 = vadd.f32 %v4017, %v3940
    %v4019 = vsel %vm332, %v4018, -inf
    %4020 = vmax.xlane.f32.xlu0 %v4019
    %v4021 = vpop.xlane.xlu0 %4020
    %v4022 = vsub.f32 %v4018, %v4021
    %v4023 = vmul.f32 %v4022, 1.442695
    %v4024 = vpow.pop %v4023
    %v4025 = vsel %vm332, %v4024, 0.0
    %4026 = vadd.xlane.f32.xlu0 %v4025
    %v4027 = vpop.xlane.xlu0 %4026
    %v4028 = vrcp.pop %v4027
    %v4029 = vmul.f32 %v4024, %v4028
    %4030 = vrot.lane.b32.xlu0 %v3780, 120
    %v4031 = vpop.permute.xlu0 %4030
    %4032 = vrot.lane.b32.xlu0 %v3855, 120
    %v4033 = vpop.permute.xlu0 %4032
    %v4034 = vsel %vm332, %v4031, 0
    %v4036 = vsel %vm332, %v4033, 0
    %4038 = vmatprep.subr.mxu0 0.0
    %4039 = vmatpush1.xpose.msra.mxu0 %v4036
    %4040 = vmatprep.subr.mxu0 0.0
    %4041 = vmatpush1.xpose.msra.mxu0 0.0
    %4042 = vmatprep.subr.mxu0 0.0
    %4043 = vmatpush1.xpose.msra.mxu0 0.0
    %4044 = vmatprep.subr.mxu0 0.0
    %4045 = vmatpush1.xpose.msra.mxu0 0.0
    %4046 = vmatprep.subr.mxu0 0.0
    %4047 = vmatpush1.xpose.msra.mxu0 0.0
    %4048 = vmatprep.subr.mxu0 0.0
    %4049 = vmatpush1.xpose.msra.mxu0 0.0
    %4050 = vmatprep.subr.mxu0 0.0
    %4051 = vmatpush1.xpose.msra.mxu0 0.0
    %4052 = vmatprep.subr.mxu0 0.0
    %4053 = vmatpush1.xpose.msra.mxu0 0.0
    %4054 = vmatprep.subr.mxu0 0.0
    %4055 = vmatpush1.xpose.msra.mxu0 0.0
    %4056 = vmatprep.subr.mxu0 0.0
    %4057 = vmatpush1.xpose.msra.mxu0 0.0
    %4058 = vmatprep.subr.mxu0 0.0
    %4059 = vmatpush1.xpose.msra.mxu0 0.0
    %4060 = vmatprep.subr.mxu0 0.0
    %4061 = vmatpush1.xpose.msra.mxu0 0.0
    %4062 = vmatprep.subr.mxu0 0.0
    %4063 = vmatpush1.xpose.msra.mxu0 0.0
    %4064 = vmatprep.subr.mxu0 0.0
    %4065 = vmatpush1.xpose.msra.mxu0 0.0
    %4066 = vmatprep.subr.mxu0 0.0
    %4067 = vmatpush1.xpose.msra.mxu0 0.0
    %4068 = vmatprep.subr.mxu0 0.0
    %4069 = vmatpush1.xpose.msra.mxu0 0.0
    %4070 = vmatprep.subr.mxu0 0.0
    %4071 = vmatpush1.xpose.msra.mxu0 0.0
    %4072 = vmatprep.subr.mxu0 0.0
    %4073 = vmatpush1.xpose.msra.mxu0 0.0
    %4074 = vmatprep.subr.mxu0 0.0
    %4075 = vmatpush1.xpose.msra.mxu0 0.0
    %4076 = vmatprep.subr.mxu0 0.0
    %4077 = vmatpush1.xpose.msra.mxu0 0.0
    %4078 = vmatprep.subr.mxu0 0.0
    %4079 = vmatpush1.xpose.msra.mxu0 0.0
    %4080 = vmatprep.subr.mxu0 0.0
    %4081 = vmatpush1.xpose.msra.mxu0 0.0
    %4082 = vmatprep.subr.mxu0 0.0
    %4083 = vmatpush1.xpose.msra.mxu0 0.0
    %4084 = vmatprep.subr.mxu0 0.0
    %4085 = vmatpush1.xpose.msra.mxu0 0.0
    %4086 = vmatprep.subr.mxu0 0.0
    %4087 = vmatpush1.xpose.msra.mxu0 0.0
    %4088 = vmatprep.subr.mxu0 0.0
    %4089 = vmatpush1.xpose.msra.mxu0 0.0
    %4090 = vmatprep.subr.mxu0 0.0
    %4091 = vmatpush1.xpose.msra.mxu0 0.0
    %4092 = vmatprep.subr.mxu0 0.0
    %4093 = vmatpush1.xpose.msra.mxu0 0.0
    %4094 = vmatprep.subr.mxu0 0.0
    %4095 = vmatpush1.xpose.msra.mxu0 0.0
    %4096 = vmatprep.subr.mxu0 0.0
    %4097 = vmatpush1.xpose.msra.mxu0 0.0
    %4098 = vmatprep.subr.mxu0 0.0
    %4099 = vmatpush1.xpose.msra.mxu0 0.0
    %4100 = vmatprep.subr.mxu0 0.0
    %4101 = vmatpush1.xpose.msra.mxu0 0.0
    %4102 = vmatprep.mubr.f32.mxu0 0.0
    %4103 = vmatmul.mubr.f32.gmra.mrb[0].mxu0 %v4034
    %v4104 = vpop.f32.mrb[0].mxu0
    %v4105 = vadd.f32 0.0, %v4104
    %v4106 = vpop.f32.mrb[0].mxu0
    %4107 = vdwg.mxu0
    %v4108 = vmul.f32 %v4105, 0.17677669
    %v4109 = vadd.f32 %v4108, %v3940
    %v4110 = vsel %vm332, %v4109, -inf
    %4111 = vmax.xlane.f32.xlu0 %v4110
    %v4112 = vpop.xlane.xlu0 %4111
    %v4113 = vsub.f32 %v4109, %v4112
    %v4114 = vmul.f32 %v4113, 1.442695
    %v4115 = vpow.pop %v4114
    %v4116 = vsel %vm332, %v4115, 0.0
    %4117 = vadd.xlane.f32.xlu0 %v4116
    %v4118 = vpop.xlane.xlu0 %4117
    %v4119 = vrcp.pop %v4118
    %v4120 = vmul.f32 %v4115, %v4119
    %4122 = vrot.lane.b32.xlu0 %v3930, 96
    %v4123 = vpop.permute.xlu0 %4122
    %v4126 = vsel %vm332, %v4120, 0
    %4128 = vmatprep.subr.mxu0 0.0
    %4129 = vmatpush1.msra.mxu0 %v4123
    %4130 = vmatprep.subr.mxu0 0.0
    %4131 = vmatpush1.msra.mxu0 0.0
    %4132 = vmatprep.subr.mxu0 0.0
    %4133 = vmatpush1.msra.mxu0 0.0
    %4134 = vmatprep.subr.mxu0 0.0
    %4135 = vmatpush1.msra.mxu0 0.0
    %4136 = vmatprep.subr.mxu0 0.0
    %4137 = vmatpush1.msra.mxu0 0.0
    %4138 = vmatprep.subr.mxu0 0.0
    %4139 = vmatpush1.msra.mxu0 0.0
    %4140 = vmatprep.subr.mxu0 0.0
    %4141 = vmatpush1.msra.mxu0 0.0
    %4142 = vmatprep.subr.mxu0 0.0
    %4143 = vmatpush1.msra.mxu0 0.0
    %4144 = vmatprep.subr.mxu0 0.0
    %4145 = vmatpush1.msra.mxu0 0.0
    %4146 = vmatprep.subr.mxu0 0.0
    %4147 = vmatpush1.msra.mxu0 0.0
    %4148 = vmatprep.subr.mxu0 0.0
    %4149 = vmatpush1.msra.mxu0 0.0
    %4150 = vmatprep.subr.mxu0 0.0
    %4151 = vmatpush1.msra.mxu0 0.0
    %4152 = vmatprep.subr.mxu0 0.0
    %4153 = vmatpush1.msra.mxu0 0.0
    %4154 = vmatprep.subr.mxu0 0.0
    %4155 = vmatpush1.msra.mxu0 0.0
    %4156 = vmatprep.subr.mxu0 0.0
    %4157 = vmatpush1.msra.mxu0 0.0
    %4158 = vmatprep.subr.mxu0 0.0
    %4159 = vmatpush1.msra.mxu0 0.0
    %4160 = vmatprep.subr.mxu0 0.0
    %4161 = vmatpush1.msra.mxu0 0.0
    %4162 = vmatprep.subr.mxu0 0.0
    %4163 = vmatpush1.msra.mxu0 0.0
    %4164 = vmatprep.subr.mxu0 0.0
    %4165 = vmatpush1.msra.mxu0 0.0
    %4166 = vmatprep.subr.mxu0 0.0
    %4167 = vmatpush1.msra.mxu0 0.0
    %4168 = vmatprep.subr.mxu0 0.0
    %4169 = vmatpush1.msra.mxu0 0.0
    %4170 = vmatprep.subr.mxu0 0.0
    %4171 = vmatpush1.msra.mxu0 0.0
    %4172 = vmatprep.subr.mxu0 0.0
    %4173 = vmatpush1.msra.mxu0 0.0
    %4174 = vmatprep.subr.mxu0 0.0
    %4175 = vmatpush1.msra.mxu0 0.0
    %4176 = vmatprep.subr.mxu0 0.0
    %4177 = vmatpush1.msra.mxu0 0.0
    %4178 = vmatprep.subr.mxu0 0.0
    %4179 = vmatpush1.msra.mxu0 0.0
    %4180 = vmatprep.subr.mxu0 0.0
    %4181 = vmatpush1.msra.mxu0 0.0
    %4182 = vmatprep.subr.mxu0 0.0
    %4183 = vmatpush1.msra.mxu0 0.0
    %4184 = vmatprep.subr.mxu0 0.0
    %4185 = vmatpush1.msra.mxu0 0.0
    %4186 = vmatprep.subr.mxu0 0.0
    %4187 = vmatpush1.msra.mxu0 0.0
    %4188 = vmatprep.subr.mxu0 0.0
    %4189 = vmatpush1.msra.mxu0 0.0
    %4190 = vmatprep.subr.mxu0 0.0
    %4191 = vmatpush1.msra.mxu0 0.0
    %4192 = vmatprep.mubr.f32.mxu0 0.0
    %4193 = vmatmul.mubr.f32.gmra.mrb[0].mxu0 %v4126
    %v4194 = vpop.f32.mrb[0].mxu0
    %v4195 = vadd.f32 0.0, %v4194
    %v4196 = vpop.f32.mrb[0].mxu0
    %4197 = vdwg.mxu0
    %v4199 = vsel %vm332, %v4029, 0
    %4201 = vmatprep.subr.mxu0 0.0
    %4202 = vmatpush1.msra.mxu0 %v3930
    %4203 = vmatprep.subr.mxu0 0.0
    %4204 = vmatpush1.msra.mxu0 0.0
    %4205 = vmatprep.subr.mxu0 0.0
    %4206 = vmatpush1.msra.mxu0 0.0
    %4207 = vmatprep.subr.mxu0 0.0
    %4208 = vmatpush1.msra.mxu0 0.0
    %4209 = vmatprep.subr.mxu0 0.0
    %4210 = vmatpush1.msra.mxu0 0.0
    %4211 = vmatprep.subr.mxu0 0.0
    %4212 = vmatpush1.msra.mxu0 0.0
    %4213 = vmatprep.subr.mxu0 0.0
    %4214 = vmatpush1.msra.mxu0 0.0
    %4215 = vmatprep.subr.mxu0 0.0
    %4216 = vmatpush1.msra.mxu0 0.0
    %4217 = vmatprep.subr.mxu0 0.0
    %4218 = vmatpush1.msra.mxu0 0.0
    %4219 = vmatprep.subr.mxu0 0.0
    %4220 = vmatpush1.msra.mxu0 0.0
    %4221 = vmatprep.subr.mxu0 0.0
    %4222 = vmatpush1.msra.mxu0 0.0
    %4223 = vmatprep.subr.mxu0 0.0
    %4224 = vmatpush1.msra.mxu0 0.0
    %4225 = vmatprep.subr.mxu0 0.0
    %4226 = vmatpush1.msra.mxu0 0.0
    %4227 = vmatprep.subr.mxu0 0.0
    %4228 = vmatpush1.msra.mxu0 0.0
    %4229 = vmatprep.subr.mxu0 0.0
    %4230 = vmatpush1.msra.mxu0 0.0
    %4231 = vmatprep.subr.mxu0 0.0
    %4232 = vmatpush1.msra.mxu0 0.0
    %4233 = vmatprep.subr.mxu0 0.0
    %4234 = vmatpush1.msra.mxu0 0.0
    %4235 = vmatprep.subr.mxu0 0.0
    %4236 = vmatpush1.msra.mxu0 0.0
    %4237 = vmatprep.subr.mxu0 0.0
    %4238 = vmatpush1.msra.mxu0 0.0
    %4239 = vmatprep.subr.mxu0 0.0
    %4240 = vmatpush1.msra.mxu0 0.0
    %4241 = vmatprep.subr.mxu0 0.0
    %4242 = vmatpush1.msra.mxu0 0.0
    %4243 = vmatprep.subr.mxu0 0.0
    %4244 = vmatpush1.msra.mxu0 0.0
    %4245 = vmatprep.subr.mxu0 0.0
    %4246 = vmatpush1.msra.mxu0 0.0
    %4247 = vmatprep.subr.mxu0 0.0
    %4248 = vmatpush1.msra.mxu0 0.0
    %4249 = vmatprep.subr.mxu0 0.0
    %4250 = vmatpush1.msra.mxu0 0.0
    %4251 = vmatprep.subr.mxu0 0.0
    %4252 = vmatpush1.msra.mxu0 0.0
    %4253 = vmatprep.subr.mxu0 0.0
    %4254 = vmatpush1.msra.mxu0 0.0
    %4255 = vmatprep.subr.mxu0 0.0
    %4256 = vmatpush1.msra.mxu0 0.0
    %4257 = vmatprep.subr.mxu0 0.0
    %4258 = vmatpush1.msra.mxu0 0.0
    %4259 = vmatprep.subr.mxu0 0.0
    %4260 = vmatpush1.msra.mxu0 0.0
    %4261 = vmatprep.subr.mxu0 0.0
    %4262 = vmatpush1.msra.mxu0 0.0
    %4263 = vmatprep.subr.mxu0 0.0
    %4264 = vmatpush1.msra.mxu0 0.0
    %4265 = vmatprep.mubr.f32.mxu0 0.0
    %4266 = vmatmul.mubr.f32.gmra.mrb[0].mxu0 %v4199
    %v4267 = vpop.f32.mrb[0].mxu0
    %v4268 = vadd.f32 %v4195, %v4267
    %v4269 = vpop.f32.mrb[0].mxu0
    %4270 = vdwg.mxu0
    %4271 = vrot.lane.b32.xlu0 %v3780, 112
    %v4272 = vpop.permute.xlu0 %4271
    %4273 = vrot.lane.b32.xlu0 %v3855, 112
    %v4274 = vpop.permute.xlu0 %4273
    %v4275 = vsel %vm332, %v4272, 0
    %v4277 = vsel %vm332, %v4274, 0
    %4279 = vmatprep.subr.mxu0 0.0
    %4280 = vmatpush1.xpose.msra.mxu0 %v4277
    %4281 = vmatprep.subr.mxu0 0.0
    %4282 = vmatpush1.xpose.msra.mxu0 0.0
    %4283 = vmatprep.subr.mxu0 0.0
    %4284 = vmatpush1.xpose.msra.mxu0 0.0
    %4285 = vmatprep.subr.mxu0 0.0
    %4286 = vmatpush1.xpose.msra.mxu0 0.0
    %4287 = vmatprep.subr.mxu0 0.0
    %4288 = vmatpush1.xpose.msra.mxu0 0.0
    %4289 = vmatprep.subr.mxu0 0.0
    %4290 = vmatpush1.xpose.msra.mxu0 0.0
    %4291 = vmatprep.subr.mxu0 0.0
    %4292 = vmatpush1.xpose.msra.mxu0 0.0
    %4293 = vmatprep.subr.mxu0 0.0
    %4294 = vmatpush1.xpose.msra.mxu0 0.0
    %4295 = vmatprep.subr.mxu0 0.0
    %4296 = vmatpush1.xpose.msra.mxu0 0.0
    %4297 = vmatprep.subr.mxu0 0.0
    %4298 = vmatpush1.xpose.msra.mxu0 0.0
    %4299 = vmatprep.subr.mxu0 0.0
    %4300 = vmatpush1.xpose.msra.mxu0 0.0
    %4301 = vmatprep.subr.mxu0 0.0
    %4302 = vmatpush1.xpose.msra.mxu0 0.0
    %4303 = vmatprep.subr.mxu0 0.0
    %4304 = vmatpush1.xpose.msra.mxu0 0.0
    %4305 = vmatprep.subr.mxu0 0.0
    %4306 = vmatpush1.xpose.msra.mxu0 0.0
    %4307 = vmatprep.subr.mxu0 0.0
    %4308 = vmatpush1.xpose.msra.mxu0 0.0
    %4309 = vmatprep.subr.mxu0 0.0
    %4310 = vmatpush1.xpose.msra.mxu0 0.0
    %4311 = vmatprep.subr.mxu0 0.0
    %4312 = vmatpush1.xpose.msra.mxu0 0.0
    %4313 = vmatprep.subr.mxu0 0.0
    %4314 = vmatpush1.xpose.msra.mxu0 0.0
    %4315 = vmatprep.subr.mxu0 0.0
    %4316 = vmatpush1.xpose.msra.mxu0 0.0
    %4317 = vmatprep.subr.mxu0 0.0
    %4318 = vmatpush1.xpose.msra.mxu0 0.0
    %4319 = vmatprep.subr.mxu0 0.0
    %4320 = vmatpush1.xpose.msra.mxu0 0.0
    %4321 = vmatprep.subr.mxu0 0.0
    %4322 = vmatpush1.xpose.msra.mxu0 0.0
    %4323 = vmatprep.subr.mxu0 0.0
    %4324 = vmatpush1.xpose.msra.mxu0 0.0
    %4325 = vmatprep.subr.mxu0 0.0
    %4326 = vmatpush1.xpose.msra.mxu0 0.0
    %4327 = vmatprep.subr.mxu0 0.0
    %4328 = vmatpush1.xpose.msra.mxu0 0.0
    %4329 = vmatprep.subr.mxu0 0.0
    %4330 = vmatpush1.xpose.msra.mxu0 0.0
    %4331 = vmatprep.subr.mxu0 0.0
    %4332 = vmatpush1.xpose.msra.mxu0 0.0
    %4333 = vmatprep.subr.mxu0 0.0
    %4334 = vmatpush1.xpose.msra.mxu0 0.0
    %4335 = vmatprep.subr.mxu0 0.0
    %4336 = vmatpush1.xpose.msra.mxu0 0.0
    %4337 = vmatprep.subr.mxu0 0.0
    %4338 = vmatpush1.xpose.msra.mxu0 0.0
    %4339 = vmatprep.subr.mxu0 0.0
    %4340 = vmatpush1.xpose.msra.mxu0 0.0
    %4341 = vmatprep.subr.mxu0 0.0
    %4342 = vmatpush1.xpose.msra.mxu0 0.0
    %4343 = vmatprep.mubr.f32.mxu0 0.0
    %4344 = vmatmul.mubr.f32.gmra.mrb[0].mxu0 %v4275
    %v4345 = vpop.f32.mrb[0].mxu0
    %v4346 = vadd.f32 0.0, %v4345
    %v4347 = vpop.f32.mrb[0].mxu0
    %4348 = vdwg.mxu0
    %v4349 = vmul.f32 %v4346, 0.17677669
    %v4350 = vadd.f32 %v4349, %v3940
    %v4351 = vsel %vm332, %v4350, -inf
    %4352 = vmax.xlane.f32.xlu0 %v4351
    %v4353 = vpop.xlane.xlu0 %4352
    %v4354 = vsub.f32 %v4350, %v4353
    %v4355 = vmul.f32 %v4354, 1.442695
    %v4356 = vpow.pop %v4355
    %v4357 = vsel %vm332, %v4356, 0.0
    %4358 = vadd.xlane.f32.xlu0 %v4357
    %v4359 = vpop.xlane.xlu0 %4358
    %v4360 = vrcp.pop %v4359
    %v4361 = vmul.f32 %v4356, %v4360
    %4362 = vrot.lane.b32.xlu0 %v3930, 64
    %v4363 = vpop.permute.xlu0 %4362
    %v4366 = vsel %vm332, %v4361, 0
    %4368 = vmatprep.subr.mxu0 0.0
    %4369 = vmatpush1.msra.mxu0 %v4363
    %4370 = vmatprep.subr.mxu0 0.0
    %4371 = vmatpush1.msra.mxu0 0.0
    %4372 = vmatprep.subr.mxu0 0.0
    %4373 = vmatpush1.msra.mxu0 0.0
    %4374 = vmatprep.subr.mxu0 0.0
    %4375 = vmatpush1.msra.mxu0 0.0
    %4376 = vmatprep.subr.mxu0 0.0
    %4377 = vmatpush1.msra.mxu0 0.0
    %4378 = vmatprep.subr.mxu0 0.0
    %4379 = vmatpush1.msra.mxu0 0.0
    %4380 = vmatprep.subr.mxu0 0.0
    %4381 = vmatpush1.msra.mxu0 0.0
    %4382 = vmatprep.subr.mxu0 0.0
    %4383 = vmatpush1.msra.mxu0 0.0
    %4384 = vmatprep.subr.mxu0 0.0
    %4385 = vmatpush1.msra.mxu0 0.0
    %4386 = vmatprep.subr.mxu0 0.0
    %4387 = vmatpush1.msra.mxu0 0.0
    %4388 = vmatprep.subr.mxu0 0.0
    %4389 = vmatpush1.msra.mxu0 0.0
    %4390 = vmatprep.subr.mxu0 0.0
    %4391 = vmatpush1.msra.mxu0 0.0
    %4392 = vmatprep.subr.mxu0 0.0
    %4393 = vmatpush1.msra.mxu0 0.0
    %4394 = vmatprep.subr.mxu0 0.0
    %4395 = vmatpush1.msra.mxu0 0.0
    %4396 = vmatprep.subr.mxu0 0.0
    %4397 = vmatpush1.msra.mxu0 0.0
    %4398 = vmatprep.subr.mxu0 0.0
    %4399 = vmatpush1.msra.mxu0 0.0
    %4400 = vmatprep.subr.mxu0 0.0
    %4401 = vmatpush1.msra.mxu0 0.0
    %4402 = vmatprep.subr.mxu0 0.0
    %4403 = vmatpush1.msra.mxu0 0.0
    %4404 = vmatprep.subr.mxu0 0.0
    %4405 = vmatpush1.msra.mxu0 0.0
    %4406 = vmatprep.subr.mxu0 0.0
    %4407 = vmatpush1.msra.mxu0 0.0
    %4408 = vmatprep.subr.mxu0 0.0
    %4409 = vmatpush1.msra.mxu0 0.0
    %4410 = vmatprep.subr.mxu0 0.0
    %4411 = vmatpush1.msra.mxu0 0.0
    %4412 = vmatprep.subr.mxu0 0.0
    %4413 = vmatpush1.msra.mxu0 0.0
    %4414 = vmatprep.subr.mxu0 0.0
    %4415 = vmatpush1.msra.mxu0 0.0
    %4416 = vmatprep.subr.mxu0 0.0
    %4417 = vmatpush1.msra.mxu0 0.0
    %4418 = vmatprep.subr.mxu0 0.0
    %4419 = vmatpush1.msra.mxu0 0.0
    %4420 = vmatprep.subr.mxu0 0.0
    %4421 = vmatpush1.msra.mxu0 0.0
    %4422 = vmatprep.subr.mxu0 0.0
    %4423 = vmatpush1.msra.mxu0 0.0
    %4424 = vmatprep.subr.mxu0 0.0
    %4425 = vmatpush1.msra.mxu0 0.0
    %4426 = vmatprep.subr.mxu0 0.0
    %4427 = vmatpush1.msra.mxu0 0.0
    %4428 = vmatprep.subr.mxu0 0.0
    %4429 = vmatpush1.msra.mxu0 0.0
    %4430 = vmatprep.subr.mxu0 0.0
    %4431 = vmatpush1.msra.mxu0 0.0
    %4432 = vmatprep.mubr.f32.mxu0 0.0
    %4433 = vmatmul.mubr.f32.gmra.mrb[0].mxu0 %v4366
    %v4434 = vpop.f32.mrb[0].mxu0
    %v4435 = vadd.f32 0.0, %v4434
    %v4436 = vpop.f32.mrb[0].mxu0
    %4437 = vdwg.mxu0
    %v4438 = vadd.f32 %v4268, %v4435
    %4439 = vrot.lane.b32.xlu0 %v3780, 104
    %v4440 = vpop.permute.xlu0 %4439
    %4441 = vrot.lane.b32.xlu0 %v3855, 104
    %v4442 = vpop.permute.xlu0 %4441
    %v4443 = vsel %vm332, %v4440, 0
    %v4445 = vsel %vm332, %v4442, 0
    %4447 = vmatprep.subr.mxu0 0.0
    %4448 = vmatpush1.xpose.msra.mxu0 %v4445
    %4449 = vmatprep.subr.mxu0 0.0
    %4450 = vmatpush1.xpose.msra.mxu0 0.0
    %4451 = vmatprep.subr.mxu0 0.0
    %4452 = vmatpush1.xpose.msra.mxu0 0.0
    %4453 = vmatprep.subr.mxu0 0.0
    %4454 = vmatpush1.xpose.msra.mxu0 0.0
    %4455 = vmatprep.subr.mxu0 0.0
    %4456 = vmatpush1.xpose.msra.mxu0 0.0
    %4457 = vmatprep.subr.mxu0 0.0
    %4458 = vmatpush1.xpose.msra.mxu0 0.0
    %4459 = vmatprep.subr.mxu0 0.0
    %4460 = vmatpush1.xpose.msra.mxu0 0.0
    %4461 = vmatprep.subr.mxu0 0.0
    %4462 = vmatpush1.xpose.msra.mxu0 0.0
    %4463 = vmatprep.subr.mxu0 0.0
    %4464 = vmatpush1.xpose.msra.mxu0 0.0
    %4465 = vmatprep.subr.mxu0 0.0
    %4466 = vmatpush1.xpose.msra.mxu0 0.0
    %4467 = vmatprep.subr.mxu0 0.0
    %4468 = vmatpush1.xpose.msra.mxu0 0.0
    %4469 = vmatprep.subr.mxu0 0.0
    %4470 = vmatpush1.xpose.msra.mxu0 0.0
    %4471 = vmatprep.subr.mxu0 0.0
    %4472 = vmatpush1.xpose.msra.mxu0 0.0
    %4473 = vmatprep.subr.mxu0 0.0
    %4474 = vmatpush1.xpose.msra.mxu0 0.0
    %4475 = vmatprep.subr.mxu0 0.0
    %4476 = vmatpush1.xpose.msra.mxu0 0.0
    %4477 = vmatprep.subr.mxu0 0.0
    %4478 = vmatpush1.xpose.msra.mxu0 0.0
    %4479 = vmatprep.subr.mxu0 0.0
    %4480 = vmatpush1.xpose.msra.mxu0 0.0
    %4481 = vmatprep.subr.mxu0 0.0
    %4482 = vmatpush1.xpose.msra.mxu0 0.0
    %4483 = vmatprep.subr.mxu0 0.0
    %4484 = vmatpush1.xpose.msra.mxu0 0.0
    %4485 = vmatprep.subr.mxu0 0.0
    %4486 = vmatpush1.xpose.msra.mxu0 0.0
    %4487 = vmatprep.subr.mxu0 0.0
    %4488 = vmatpush1.xpose.msra.mxu0 0.0
    %4489 = vmatprep.subr.mxu0 0.0
    %4490 = vmatpush1.xpose.msra.mxu0 0.0
    %4491 = vmatprep.subr.mxu0 0.0
    %4492 = vmatpush1.xpose.msra.mxu0 0.0
    %4493 = vmatprep.subr.mxu0 0.0
    %4494 = vmatpush1.xpose.msra.mxu0 0.0
    %4495 = vmatprep.subr.mxu0 0.0
    %4496 = vmatpush1.xpose.msra.mxu0 0.0
    %4497 = vmatprep.subr.mxu0 0.0
    %4498 = vmatpush1.xpose.msra.mxu0 0.0
    %4499 = vmatprep.subr.mxu0 0.0
    %4500 = vmatpush1.xpose.msra.mxu0 0.0
    %4501 = vmatprep.subr.mxu0 0.0
    %4502 = vmatpush1.xpose.msra.mxu0 0.0
    %4503 = vmatprep.subr.mxu0 0.0
    %4504 = vmatpush1.xpose.msra.mxu0 0.0
    %4505 = vmatprep.subr.mxu0 0.0
    %4506 = vmatpush1.xpose.msra.mxu0 0.0
    %4507 = vmatprep.subr.mxu0 0.0
    %4508 = vmatpush1.xpose.msra.mxu0 0.0
    %4509 = vmatprep.subr.mxu0 0.0
    %4510 = vmatpush1.xpose.msra.mxu0 0.0
    %4511 = vmatprep.mubr.f32.mxu0 0.0
    %4512 = vmatmul.mubr.f32.gmra.mrb[0].mxu0 %v4443
    %v4513 = vpop.f32.mrb[0].mxu0
    %v4514 = vadd.f32 0.0, %v4513
    %v4515 = vpop.f32.mrb[0].mxu0
    %4516 = vdwg.mxu0
    %v4517 = vmul.f32 %v4514, 0.17677669
    %v4518 = vadd.f32 %v4517, %v3940
    %v4519 = vsel %vm332, %v4518, -inf
    %4520 = vmax.xlane.f32.xlu0 %v4519
    %v4521 = vpop.xlane.xlu0 %4520
    %v4522 = vsub.f32 %v4518, %v4521
    %v4523 = vmul.f32 %v4522, 1.442695
    %v4524 = vpow.pop %v4523
    %v4525 = vsel %vm332, %v4524, 0.0
    %4526 = vadd.xlane.f32.xlu0 %v4525
    %v4527 = vpop.xlane.xlu0 %4526
    %v4528 = vrcp.pop %v4527
    %v4529 = vmul.f32 %v4524, %v4528
    %4530 = vrot.lane.b32.xlu0 %v3930, 32
    %v4531 = vpop.permute.xlu0 %4530
    %v4534 = vsel %vm332, %v4529, 0
    %4536 = vmatprep.subr.mxu0 0.0
    %4537 = vmatpush1.msra.mxu0 %v4531
    %4538 = vmatprep.subr.mxu0 0.0
    %4539 = vmatpush1.msra.mxu0 0.0
    %4540 = vmatprep.subr.mxu0 0.0
    %4541 = vmatpush1.msra.mxu0 0.0
    %4542 = vmatprep.subr.mxu0 0.0
    %4543 = vmatpush1.msra.mxu0 0.0
    %4544 = vmatprep.subr.mxu0 0.0
    %4545 = vmatpush1.msra.mxu0 0.0
    %4546 = vmatprep.subr.mxu0 0.0
    %4547 = vmatpush1.msra.mxu0 0.0
    %4548 = vmatprep.subr.mxu0 0.0
    %4549 = vmatpush1.msra.mxu0 0.0
    %4550 = vmatprep.subr.mxu0 0.0
    %4551 = vmatpush1.msra.mxu0 0.0
    %4552 = vmatprep.subr.mxu0 0.0
    %4553 = vmatpush1.msra.mxu0 0.0
    %4554 = vmatprep.subr.mxu0 0.0
    %4555 = vmatpush1.msra.mxu0 0.0
    %4556 = vmatprep.subr.mxu0 0.0
    %4557 = vmatpush1.msra.mxu0 0.0
    %4558 = vmatprep.subr.mxu0 0.0
    %4559 = vmatpush1.msra.mxu0 0.0
    %4560 = vmatprep.subr.mxu0 0.0
    %4561 = vmatpush1.msra.mxu0 0.0
    %4562 = vmatprep.subr.mxu0 0.0
    %4563 = vmatpush1.msra.mxu0 0.0
    %4564 = vmatprep.subr.mxu0 0.0
    %4565 = vmatpush1.msra.mxu0 0.0
    %4566 = vmatprep.subr.mxu0 0.0
    %4567 = vmatpush1.msra.mxu0 0.0
    %4568 = vmatprep.subr.mxu0 0.0
    %4569 = vmatpush1.msra.mxu0 0.0
    %4570 = vmatprep.subr.mxu0 0.0
    %4571 = vmatpush1.msra.mxu0 0.0
    %4572 = vmatprep.subr.mxu0 0.0
    %4573 = vmatpush1.msra.mxu0 0.0
    %4574 = vmatprep.subr.mxu0 0.0
    %4575 = vmatpush1.msra.mxu0 0.0
    %4576 = vmatprep.subr.mxu0 0.0
    %4577 = vmatpush1.msra.mxu0 0.0
    %4578 = vmatprep.subr.mxu0 0.0
    %4579 = vmatpush1.msra.mxu0 0.0
    %4580 = vmatprep.subr.mxu0 0.0
    %4581 = vmatpush1.msra.mxu0 0.0
    %4582 = vmatprep.subr.mxu0 0.0
    %4583 = vmatpush1.msra.mxu0 0.0
    %4584 = vmatprep.subr.mxu0 0.0
    %4585 = vmatpush1.msra.mxu0 0.0
    %4586 = vmatprep.subr.mxu0 0.0
    %4587 = vmatpush1.msra.mxu0 0.0
    %4588 = vmatprep.subr.mxu0 0.0
    %4589 = vmatpush1.msra.mxu0 0.0
    %4590 = vmatprep.subr.mxu0 0.0
    %4591 = vmatpush1.msra.mxu0 0.0
    %4592 = vmatprep.subr.mxu0 0.0
    %4593 = vmatpush1.msra.mxu0 0.0
    %4594 = vmatprep.subr.mxu0 0.0
    %4595 = vmatpush1.msra.mxu0 0.0
    %4596 = vmatprep.subr.mxu0 0.0
    %4597 = vmatpush1.msra.mxu0 0.0
    %4598 = vmatprep.subr.mxu0 0.0
    %4599 = vmatpush1.msra.mxu0 0.0
    %4600 = vmatprep.mubr.f32.mxu0 0.0
    %4601 = vmatmul.mubr.f32.gmra.mrb[0].mxu0 %v4534
    %v4602 = vpop.f32.mrb[0].mxu0
    %v4603 = vadd.f32 0.0, %v4602
    %v4604 = vpop.f32.mrb[0].mxu0
    %4605 = vdwg.mxu0
    %v4606 = vadd.f32 %v4438, %v4603
    %v4608 = vlaneseq
    %v4609 = vshrl.u32 %v4608, 7
    %v4610 = vsub.s32 0, %v4609
    %v4611 = vrot.slane %v3706, %v4610
    %v4613 = vadd.f32 %v4606, %v4611
    %4614 = vst.msk [vmem:[#allocation2] sm:$0xff] %vm97, %v4613
    %v4615 = vld [vmem:[%s1007] sm:$0xff]
    %vm4616 = vcmp.eq.f32.partialorder %v4615, 0.0
    %v4617 = vsel %vm4616, -1e+20, 0.0
    %v4619 = vsel %vm332, %v3785, 0
    %v4622 = vsel %vm332, %v3860, 0
    %4624 = vmatprep.subr.mxu0 0.0
    %4625 = vmatpush1.xpose.msra.mxu0 %v4622
    %4626 = vmatprep.subr.mxu0 0.0
    %4627 = vmatpush1.xpose.msra.mxu0 0.0
    %4628 = vmatprep.subr.mxu0 0.0
    %4629 = vmatpush1.xpose.msra.mxu0 0.0
    %4630 = vmatprep.subr.mxu0 0.0
    %4631 = vmatpush1.xpose.msra.mxu0 0.0
    %4632 = vmatprep.subr.mxu0 0.0
    %4633 = vmatpush1.xpose.msra.mxu0 0.0
    %4634 = vmatprep.subr.mxu0 0.0
    %4635 = vmatpush1.xpose.msra.mxu0 0.0
    %4636 = vmatprep.subr.mxu0 0.0
    %4637 = vmatpush1.xpose.msra.mxu0 0.0
    %4638 = vmatprep.subr.mxu0 0.0
    %4639 = vmatpush1.xpose.msra.mxu0 0.0
    %4640 = vmatprep.subr.mxu0 0.0
    %4641 = vmatpush1.xpose.msra.mxu0 0.0
    %4642 = vmatprep.subr.mxu0 0.0
    %4643 = vmatpush1.xpose.msra.mxu0 0.0
    %4644 = vmatprep.subr.mxu0 0.0
    %4645 = vmatpush1.xpose.msra.mxu0 0.0
    %4646 = vmatprep.subr.mxu0 0.0
    %4647 = vmatpush1.xpose.msra.mxu0 0.0
    %4648 = vmatprep.subr.mxu0 0.0
    %4649 = vmatpush1.xpose.msra.mxu0 0.0
    %4650 = vmatprep.subr.mxu0 0.0
    %4651 = vmatpush1.xpose.msra.mxu0 0.0
    %4652 = vmatprep.subr.mxu0 0.0
    %4653 = vmatpush1.xpose.msra.mxu0 0.0
    %4654 = vmatprep.subr.mxu0 0.0
    %4655 = vmatpush1.xpose.msra.mxu0 0.0
    %4656 = vmatprep.subr.mxu0 0.0
    %4657 = vmatpush1.xpose.msra.mxu0 0.0
    %4658 = vmatprep.subr.mxu0 0.0
    %4659 = vmatpush1.xpose.msra.mxu0 0.0
    %4660 = vmatprep.subr.mxu0 0.0
    %4661 = vmatpush1.xpose.msra.mxu0 0.0
    %4662 = vmatprep.subr.mxu0 0.0
    %4663 = vmatpush1.xpose.msra.mxu0 0.0
    %4664 = vmatprep.subr.mxu0 0.0
    %4665 = vmatpush1.xpose.msra.mxu0 0.0
    %4666 = vmatprep.subr.mxu0 0.0
    %4667 = vmatpush1.xpose.msra.mxu0 0.0
    %4668 = vmatprep.subr.mxu0 0.0
    %4669 = vmatpush1.xpose.msra.mxu0 0.0
    %4670 = vmatprep.subr.mxu0 0.0
    %4671 = vmatpush1.xpose.msra.mxu0 0.0
    %4672 = vmatprep.subr.mxu0 0.0
    %4673 = vmatpush1.xpose.msra.mxu0 0.0
    %4674 = vmatprep.subr.mxu0 0.0
    %4675 = vmatpush1.xpose.msra.mxu0 0.0
    %4676 = vmatprep.subr.mxu0 0.0
    %4677 = vmatpush1.xpose.msra.mxu0 0.0
    %4678 = vmatprep.subr.mxu0 0.0
    %4679 = vmatpush1.xpose.msra.mxu0 0.0
    %4680 = vmatprep.subr.mxu0 0.0
    %4681 = vmatpush1.xpose.msra.mxu0 0.0
    %4682 = vmatprep.subr.mxu0 0.0
    %4683 = vmatpush1.xpose.msra.mxu0 0.0
    %4684 = vmatprep.subr.mxu0 0.0
    %4685 = vmatpush1.xpose.msra.mxu0 0.0
    %4686 = vmatprep.subr.mxu0 0.0
    %4687 = vmatpush1.xpose.msra.mxu0 0.0
    %4688 = vmatprep.mubr.f32.mxu0 0.0
    %4689 = vmatmul.mubr.f32.gmra.mrb[0].mxu0 %v4619
    %v4690 = vpop.f32.mrb[0].mxu0
    %v4691 = vadd.f32 0.0, %v4690
    %v4692 = vpop.f32.mrb[0].mxu0
    %4693 = vdwg.mxu0
    %v4694 = vmul.f32 %v4691, 0.17677669
    %v4695 = vadd.f32 %v4694, %v4617
    %v4696 = vsel %vm332, %v4695, -inf
    %4697 = vmax.xlane.f32.xlu0 %v4696
    %v4698 = vpop.xlane.xlu0 %4697
    %v4699 = vsub.f32 %v4695, %v4698
    %v4700 = vmul.f32 %v4699, 1.442695
    %v4701 = vpow.pop %v4700
    %v4702 = vsel %vm332, %v4701, 0.0
    %4703 = vadd.xlane.f32.xlu0 %v4702
    %v4704 = vpop.xlane.xlu0 %4703
    %v4705 = vrcp.pop %v4704
    %v4706 = vmul.f32 %v4701, %v4705
    %4707 = vrot.lane.b32.xlu0 %v3785, 120
    %v4708 = vpop.permute.xlu0 %4707
    %4709 = vrot.lane.b32.xlu0 %v3860, 120
    %v4710 = vpop.permute.xlu0 %4709
    %v4711 = vsel %vm332, %v4708, 0
    %v4713 = vsel %vm332, %v4710, 0
    %4715 = vmatprep.subr.mxu0 0.0
    %4716 = vmatpush1.xpose.msra.mxu0 %v4713
    %4717 = vmatprep.subr.mxu0 0.0
    %4718 = vmatpush1.xpose.msra.mxu0 0.0
    %4719 = vmatprep.subr.mxu0 0.0
    %4720 = vmatpush1.xpose.msra.mxu0 0.0
    %4721 = vmatprep.subr.mxu0 0.0
    %4722 = vmatpush1.xpose.msra.mxu0 0.0
    %4723 = vmatprep.subr.mxu0 0.0
    %4724 = vmatpush1.xpose.msra.mxu0 0.0
    %4725 = vmatprep.subr.mxu0 0.0
    %4726 = vmatpush1.xpose.msra.mxu0 0.0
    %4727 = vmatprep.subr.mxu0 0.0
    %4728 = vmatpush1.xpose.msra.mxu0 0.0
    %4729 = vmatprep.subr.mxu0 0.0
    %4730 = vmatpush1.xpose.msra.mxu0 0.0
    %4731 = vmatprep.subr.mxu0 0.0
    %4732 = vmatpush1.xpose.msra.mxu0 0.0
    %4733 = vmatprep.subr.mxu0 0.0
    %4734 = vmatpush1.xpose.msra.mxu0 0.0
    %4735 = vmatprep.subr.mxu0 0.0
    %4736 = vmatpush1.xpose.msra.mxu0 0.0
    %4737 = vmatprep.subr.mxu0 0.0
    %4738 = vmatpush1.xpose.msra.mxu0 0.0
    %4739 = vmatprep.subr.mxu0 0.0
    %4740 = vmatpush1.xpose.msra.mxu0 0.0
    %4741 = vmatprep.subr.mxu0 0.0
    %4742 = vmatpush1.xpose.msra.mxu0 0.0
    %4743 = vmatprep.subr.mxu0 0.0
    %4744 = vmatpush1.xpose.msra.mxu0 0.0
    %4745 = vmatprep.subr.mxu0 0.0
    %4746 = vmatpush1.xpose.msra.mxu0 0.0
    %4747 = vmatprep.subr.mxu0 0.0
    %4748 = vmatpush1.xpose.msra.mxu0 0.0
    %4749 = vmatprep.subr.mxu0 0.0
    %4750 = vmatpush1.xpose.msra.mxu0 0.0
    %4751 = vmatprep.subr.mxu0 0.0
    %4752 = vmatpush1.xpose.msra.mxu0 0.0
    %4753 = vmatprep.subr.mxu0 0.0
    %4754 = vmatpush1.xpose.msra.mxu0 0.0
    %4755 = vmatprep.subr.mxu0 0.0
    %4756 = vmatpush1.xpose.msra.mxu0 0.0
    %4757 = vmatprep.subr.mxu0 0.0
    %4758 = vmatpush1.xpose.msra.mxu0 0.0
    %4759 = vmatprep.subr.mxu0 0.0
    %4760 = vmatpush1.xpose.msra.mxu0 0.0
    %4761 = vmatprep.subr.mxu0 0.0
    %4762 = vmatpush1.xpose.msra.mxu0 0.0
    %4763 = vmatprep.subr.mxu0 0.0
    %4764 = vmatpush1.xpose.msra.mxu0 0.0
    %4765 = vmatprep.subr.mxu0 0.0
    %4766 = vmatpush1.xpose.msra.mxu0 0.0
    %4767 = vmatprep.subr.mxu0 0.0
    %4768 = vmatpush1.xpose.msra.mxu0 0.0
    %4769 = vmatprep.subr.mxu0 0.0
    %4770 = vmatpush1.xpose.msra.mxu0 0.0
    %4771 = vmatprep.subr.mxu0 0.0
    %4772 = vmatpush1.xpose.msra.mxu0 0.0
    %4773 = vmatprep.subr.mxu0 0.0
    %4774 = vmatpush1.xpose.msra.mxu0 0.0
    %4775 = vmatprep.subr.mxu0 0.0
    %4776 = vmatpush1.xpose.msra.mxu0 0.0
    %4777 = vmatprep.subr.mxu0 0.0
    %4778 = vmatpush1.xpose.msra.mxu0 0.0
    %4779 = vmatprep.mubr.f32.mxu0 0.0
    %4780 = vmatmul.mubr.f32.gmra.mrb[0].mxu0 %v4711
    %v4781 = vpop.f32.mrb[0].mxu0
    %v4782 = vadd.f32 0.0, %v4781
    %v4783 = vpop.f32.mrb[0].mxu0
    %4784 = vdwg.mxu0
    %v4785 = vmul.f32 %v4782, 0.17677669
    %v4786 = vadd.f32 %v4785, %v4617
    %v4787 = vsel %vm332, %v4786, -inf
    %4788 = vmax.xlane.f32.xlu0 %v4787
    %v4789 = vpop.xlane.xlu0 %4788
    %v4790 = vsub.f32 %v4786, %v4789
    %v4791 = vmul.f32 %v4790, 1.442695
    %v4792 = vpow.pop %v4791
    %v4793 = vsel %vm332, %v4792, 0.0
    %4794 = vadd.xlane.f32.xlu0 %v4793
    %v4795 = vpop.xlane.xlu0 %4794
    %v4796 = vrcp.pop %v4795
    %v4797 = vmul.f32 %v4792, %v4796
    %4799 = vrot.lane.b32.xlu0 %v3935, 96
    %v4800 = vpop.permute.xlu0 %4799
    %v4803 = vsel %vm332, %v4797, 0
    %4805 = vmatprep.subr.mxu0 0.0
    %4806 = vmatpush1.msra.mxu0 %v4800
    %4807 = vmatprep.subr.mxu0 0.0
    %4808 = vmatpush1.msra.mxu0 0.0
    %4809 = vmatprep.subr.mxu0 0.0
    %4810 = vmatpush1.msra.mxu0 0.0
    %4811 = vmatprep.subr.mxu0 0.0
    %4812 = vmatpush1.msra.mxu0 0.0
    %4813 = vmatprep.subr.mxu0 0.0
    %4814 = vmatpush1.msra.mxu0 0.0
    %4815 = vmatprep.subr.mxu0 0.0
    %4816 = vmatpush1.msra.mxu0 0.0
    %4817 = vmatprep.subr.mxu0 0.0
    %4818 = vmatpush1.msra.mxu0 0.0
    %4819 = vmatprep.subr.mxu0 0.0
    %4820 = vmatpush1.msra.mxu0 0.0
    %4821 = vmatprep.subr.mxu0 0.0
    %4822 = vmatpush1.msra.mxu0 0.0
    %4823 = vmatprep.subr.mxu0 0.0
    %4824 = vmatpush1.msra.mxu0 0.0
    %4825 = vmatprep.subr.mxu0 0.0
    %4826 = vmatpush1.msra.mxu0 0.0
    %4827 = vmatprep.subr.mxu0 0.0
    %4828 = vmatpush1.msra.mxu0 0.0
    %4829 = vmatprep.subr.mxu0 0.0
    %4830 = vmatpush1.msra.mxu0 0.0
    %4831 = vmatprep.subr.mxu0 0.0
    %4832 = vmatpush1.msra.mxu0 0.0
    %4833 = vmatprep.subr.mxu0 0.0
    %4834 = vmatpush1.msra.mxu0 0.0
    %4835 = vmatprep.subr.mxu0 0.0
    %4836 = vmatpush1.msra.mxu0 0.0
    %4837 = vmatprep.subr.mxu0 0.0
    %4838 = vmatpush1.msra.mxu0 0.0
    %4839 = vmatprep.subr.mxu0 0.0
    %4840 = vmatpush1.msra.mxu0 0.0
    %4841 = vmatprep.subr.mxu0 0.0
    %4842 = vmatpush1.msra.mxu0 0.0
    %4843 = vmatprep.subr.mxu0 0.0
    %4844 = vmatpush1.msra.mxu0 0.0
    %4845 = vmatprep.subr.mxu0 0.0
    %4846 = vmatpush1.msra.mxu0 0.0
    %4847 = vmatprep.subr.mxu0 0.0
    %4848 = vmatpush1.msra.mxu0 0.0
    %4849 = vmatprep.subr.mxu0 0.0
    %4850 = vmatpush1.msra.mxu0 0.0
    %4851 = vmatprep.subr.mxu0 0.0
    %4852 = vmatpush1.msra.mxu0 0.0
    %4853 = vmatprep.subr.mxu0 0.0
    %4854 = vmatpush1.msra.mxu0 0.0
    %4855 = vmatprep.subr.mxu0 0.0
    %4856 = vmatpush1.msra.mxu0 0.0
    %4857 = vmatprep.subr.mxu0 0.0
    %4858 = vmatpush1.msra.mxu0 0.0
    %4859 = vmatprep.subr.mxu0 0.0
    %4860 = vmatpush1.msra.mxu0 0.0
    %4861 = vmatprep.subr.mxu0 0.0
    %4862 = vmatpush1.msra.mxu0 0.0
    %4863 = vmatprep.subr.mxu0 0.0
    %4864 = vmatpush1.msra.mxu0 0.0
    %4865 = vmatprep.subr.mxu0 0.0
    %4866 = vmatpush1.msra.mxu0 0.0
    %4867 = vmatprep.subr.mxu0 0.0
    %4868 = vmatpush1.msra.mxu0 0.0
    %4869 = vmatprep.mubr.f32.mxu0 0.0
    %4870 = vmatmul.mubr.f32.gmra.mrb[0].mxu0 %v4803
    %v4871 = vpop.f32.mrb[0].mxu0
    %v4872 = vadd.f32 0.0, %v4871
    %v4873 = vpop.f32.mrb[0].mxu0
    %4874 = vdwg.mxu0
    %v4876 = vsel %vm332, %v4706, 0
    %4878 = vmatprep.subr.mxu0 0.0
    %4879 = vmatpush1.msra.mxu0 %v3935
    %4880 = vmatprep.subr.mxu0 0.0
    %4881 = vmatpush1.msra.mxu0 0.0
    %4882 = vmatprep.subr.mxu0 0.0
    %4883 = vmatpush1.msra.mxu0 0.0
    %4884 = vmatprep.subr.mxu0 0.0
    %4885 = vmatpush1.msra.mxu0 0.0
    %4886 = vmatprep.subr.mxu0 0.0
    %4887 = vmatpush1.msra.mxu0 0.0
    %4888 = vmatprep.subr.mxu0 0.0
    %4889 = vmatpush1.msra.mxu0 0.0
    %4890 = vmatprep.subr.mxu0 0.0
    %4891 = vmatpush1.msra.mxu0 0.0
    %4892 = vmatprep.subr.mxu0 0.0
    %4893 = vmatpush1.msra.mxu0 0.0
    %4894 = vmatprep.subr.mxu0 0.0
    %4895 = vmatpush1.msra.mxu0 0.0
    %4896 = vmatprep.subr.mxu0 0.0
    %4897 = vmatpush1.msra.mxu0 0.0
    %4898 = vmatprep.subr.mxu0 0.0
    %4899 = vmatpush1.msra.mxu0 0.0
    %4900 = vmatprep.subr.mxu0 0.0
    %4901 = vmatpush1.msra.mxu0 0.0
    %4902 = vmatprep.subr.mxu0 0.0
    %4903 = vmatpush1.msra.mxu0 0.0
    %4904 = vmatprep.subr.mxu0 0.0
    %4905 = vmatpush1.msra.mxu0 0.0
    %4906 = vmatprep.subr.mxu0 0.0
    %4907 = vmatpush1.msra.mxu0 0.0
    %4908 = vmatprep.subr.mxu0 0.0
    %4909 = vmatpush1.msra.mxu0 0.0
    %4910 = vmatprep.subr.mxu0 0.0
    %4911 = vmatpush1.msra.mxu0 0.0
    %4912 = vmatprep.subr.mxu0 0.0
    %4913 = vmatpush1.msra.mxu0 0.0
    %4914 = vmatprep.subr.mxu0 0.0
    %4915 = vmatpush1.msra.mxu0 0.0
    %4916 = vmatprep.subr.mxu0 0.0
    %4917 = vmatpush1.msra.mxu0 0.0
    %4918 = vmatprep.subr.mxu0 0.0
    %4919 = vmatpush1.msra.mxu0 0.0
    %4920 = vmatprep.subr.mxu0 0.0
    %4921 = vmatpush1.msra.mxu0 0.0
    %4922 = vmatprep.subr.mxu0 0.0
    %4923 = vmatpush1.msra.mxu0 0.0
    %4924 = vmatprep.subr.mxu0 0.0
    %4925 = vmatpush1.msra.mxu0 0.0
    %4926 = vmatprep.subr.mxu0 0.0
    %4927 = vmatpush1.msra.mxu0 0.0
    %4928 = vmatprep.subr.mxu0 0.0
    %4929 = vmatpush1.msra.mxu0 0.0
    %4930 = vmatprep.subr.mxu0 0.0
    %4931 = vmatpush1.msra.mxu0 0.0
    %4932 = vmatprep.subr.mxu0 0.0
    %4933 = vmatpush1.msra.mxu0 0.0
    %4934 = vmatprep.subr.mxu0 0.0
    %4935 = vmatpush1.msra.mxu0 0.0
    %4936 = vmatprep.subr.mxu0 0.0
    %4937 = vmatpush1.msra.mxu0 0.0
    %4938 = vmatprep.subr.mxu0 0.0
    %4939 = vmatpush1.msra.mxu0 0.0
    %4940 = vmatprep.subr.mxu0 0.0
    %4941 = vmatpush1.msra.mxu0 0.0
    %4942 = vmatprep.mubr.f32.mxu0 0.0
    %4943 = vmatmul.mubr.f32.gmra.mrb[0].mxu0 %v4876
    %v4944 = vpop.f32.mrb[0].mxu0
    %v4945 = vadd.f32 %v4872, %v4944
    %v4946 = vpop.f32.mrb[0].mxu0
    %4947 = vdwg.mxu0
    %4948 = vrot.lane.b32.xlu0 %v3785, 112
    %v4949 = vpop.permute.xlu0 %4948
    %4950 = vrot.lane.b32.xlu0 %v3860, 112
    %v4951 = vpop.permute.xlu0 %4950
    %v4952 = vsel %vm332, %v4949, 0
    %v4954 = vsel %vm332, %v4951, 0
    %4956 = vmatprep.subr.mxu0 0.0
    %4957 = vmatpush1.xpose.msra.mxu0 %v4954
    %4958 = vmatprep.subr.mxu0 0.0
    %4959 = vmatpush1.xpose.msra.mxu0 0.0
    %4960 = vmatprep.subr.mxu0 0.0
    %4961 = vmatpush1.xpose.msra.mxu0 0.0
    %4962 = vmatprep.subr.mxu0 0.0
    %4963 = vmatpush1.xpose.msra.mxu0 0.0
    %4964 = vmatprep.subr.mxu0 0.0
    %4965 = vmatpush1.xpose.msra.mxu0 0.0
    %4966 = vmatprep.subr.mxu0 0.0
    %4967 = vmatpush1.xpose.msra.mxu0 0.0
    %4968 = vmatprep.subr.mxu0 0.0
    %4969 = vmatpush1.xpose.msra.mxu0 0.0
    %4970 = vmatprep.subr.mxu0 0.0
    %4971 = vmatpush1.xpose.msra.mxu0 0.0
    %4972 = vmatprep.subr.mxu0 0.0
    %4973 = vmatpush1.xpose.msra.mxu0 0.0
    %4974 = vmatprep.subr.mxu0 0.0
    %4975 = vmatpush1.xpose.msra.mxu0 0.0
    %4976 = vmatprep.subr.mxu0 0.0
    %4977 = vmatpush1.xpose.msra.mxu0 0.0
    %4978 = vmatprep.subr.mxu0 0.0
    %4979 = vmatpush1.xpose.msra.mxu0 0.0
    %4980 = vmatprep.subr.mxu0 0.0
    %4981 = vmatpush1.xpose.msra.mxu0 0.0
    %4982 = vmatprep.subr.mxu0 0.0
    %4983 = vmatpush1.xpose.msra.mxu0 0.0
    %4984 = vmatprep.subr.mxu0 0.0
    %4985 = vmatpush1.xpose.msra.mxu0 0.0
    %4986 = vmatprep.subr.mxu0 0.0
    %4987 = vmatpush1.xpose.msra.mxu0 0.0
    %4988 = vmatprep.subr.mxu0 0.0
    %4989 = vmatpush1.xpose.msra.mxu0 0.0
    %4990 = vmatprep.subr.mxu0 0.0
    %4991 = vmatpush1.xpose.msra.mxu0 0.0
    %4992 = vmatprep.subr.mxu0 0.0
    %4993 = vmatpush1.xpose.msra.mxu0 0.0
    %4994 = vmatprep.subr.mxu0 0.0
    %4995 = vmatpush1.xpose.msra.mxu0 0.0
    %4996 = vmatprep.subr.mxu0 0.0
    %4997 = vmatpush1.xpose.msra.mxu0 0.0
    %4998 = vmatprep.subr.mxu0 0.0
    %4999 = vmatpush1.xpose.msra.mxu0 0.0
    %5000 = vmatprep.subr.mxu0 0.0
    %5001 = vmatpush1.xpose.msra.mxu0 0.0
    %5002 = vmatprep.subr.mxu0 0.0
    %5003 = vmatpush1.xpose.msra.mxu0 0.0
    %5004 = vmatprep.subr.mxu0 0.0
    %5005 = vmatpush1.xpose.msra.mxu0 0.0
    %5006 = vmatprep.subr.mxu0 0.0
    %5007 = vmatpush1.xpose.msra.mxu0 0.0
    %5008 = vmatprep.subr.mxu0 0.0
    %5009 = vmatpush1.xpose.msra.mxu0 0.0
    %5010 = vmatprep.subr.mxu0 0.0
    %5011 = vmatpush1.xpose.msra.mxu0 0.0
    %5012 = vmatprep.subr.mxu0 0.0
    %5013 = vmatpush1.xpose.msra.mxu0 0.0
    %5014 = vmatprep.subr.mxu0 0.0
    %5015 = vmatpush1.xpose.msra.mxu0 0.0
    %5016 = vmatprep.subr.mxu0 0.0
    %5017 = vmatpush1.xpose.msra.mxu0 0.0
    %5018 = vmatprep.subr.mxu0 0.0
    %5019 = vmatpush1.xpose.msra.mxu0 0.0
    %5020 = vmatprep.mubr.f32.mxu0 0.0
    %5021 = vmatmul.mubr.f32.gmra.mrb[0].mxu0 %v4952
    %v5022 = vpop.f32.mrb[0].mxu0
    %v5023 = vadd.f32 0.0, %v5022
    %v5024 = vpop.f32.mrb[0].mxu0
    %5025 = vdwg.mxu0
    %v5026 = vmul.f32 %v5023, 0.17677669
    %v5027 = vadd.f32 %v5026, %v4617
    %v5028 = vsel %vm332, %v5027, -inf
    %5029 = vmax.xlane.f32.xlu0 %v5028
    %v5030 = vpop.xlane.xlu0 %5029
    %v5031 = vsub.f32 %v5027, %v5030
    %v5032 = vmul.f32 %v5031, 1.442695
    %v5033 = vpow.pop %v5032
    %v5034 = vsel %vm332, %v5033, 0.0
    %5035 = vadd.xlane.f32.xlu0 %v5034
    %v5036 = vpop.xlane.xlu0 %5035
    %v5037 = vrcp.pop %v5036
    %v5038 = vmul.f32 %v5033, %v5037
    %5039 = vrot.lane.b32.xlu0 %v3935, 64
    %v5040 = vpop.permute.xlu0 %5039
    %v5043 = vsel %vm332, %v5038, 0
    %5045 = vmatprep.subr.mxu0 0.0
    %5046 = vmatpush1.msra.mxu0 %v5040
    %5047 = vmatprep.subr.mxu0 0.0
    %5048 = vmatpush1.msra.mxu0 0.0
    %5049 = vmatprep.subr.mxu0 0.0
    %5050 = vmatpush1.msra.mxu0 0.0
    %5051 = vmatprep.subr.mxu0 0.0
    %5052 = vmatpush1.msra.mxu0 0.0
    %5053 = vmatprep.subr.mxu0 0.0
    %5054 = vmatpush1.msra.mxu0 0.0
    %5055 = vmatprep.subr.mxu0 0.0
    %5056 = vmatpush1.msra.mxu0 0.0
    %5057 = vmatprep.subr.mxu0 0.0
    %5058 = vmatpush1.msra.mxu0 0.0
    %5059 = vmatprep.subr.mxu0 0.0
    %5060 = vmatpush1.msra.mxu0 0.0
    %5061 = vmatprep.subr.mxu0 0.0
    %5062 = vmatpush1.msra.mxu0 0.0
    %5063 = vmatprep.subr.mxu0 0.0
    %5064 = vmatpush1.msra.mxu0 0.0
    %5065 = vmatprep.subr.mxu0 0.0
    %5066 = vmatpush1.msra.mxu0 0.0
    %5067 = vmatprep.subr.mxu0 0.0
    %5068 = vmatpush1.msra.mxu0 0.0
    %5069 = vmatprep.subr.mxu0 0.0
    %5070 = vmatpush1.msra.mxu0 0.0
    %5071 = vmatprep.subr.mxu0 0.0
    %5072 = vmatpush1.msra.mxu0 0.0
    %5073 = vmatprep.subr.mxu0 0.0
    %5074 = vmatpush1.msra.mxu0 0.0
    %5075 = vmatprep.subr.mxu0 0.0
    %5076 = vmatpush1.msra.mxu0 0.0
    %5077 = vmatprep.subr.mxu0 0.0
    %5078 = vmatpush1.msra.mxu0 0.0
    %5079 = vmatprep.subr.mxu0 0.0
    %5080 = vmatpush1.msra.mxu0 0.0
    %5081 = vmatprep.subr.mxu0 0.0
    %5082 = vmatpush1.msra.mxu0 0.0
    %5083 = vmatprep.subr.mxu0 0.0
    %5084 = vmatpush1.msra.mxu0 0.0
    %5085 = vmatprep.subr.mxu0 0.0
    %5086 = vmatpush1.msra.mxu0 0.0
    %5087 = vmatprep.subr.mxu0 0.0
    %5088 = vmatpush1.msra.mxu0 0.0
    %5089 = vmatprep.subr.mxu0 0.0
    %5090 = vmatpush1.msra.mxu0 0.0
    %5091 = vmatprep.subr.mxu0 0.0
    %5092 = vmatpush1.msra.mxu0 0.0
    %5093 = vmatprep.subr.mxu0 0.0
    %5094 = vmatpush1.msra.mxu0 0.0
    %5095 = vmatprep.subr.mxu0 0.0
    %5096 = vmatpush1.msra.mxu0 0.0
    %5097 = vmatprep.subr.mxu0 0.0
    %5098 = vmatpush1.msra.mxu0 0.0
    %5099 = vmatprep.subr.mxu0 0.0
    %5100 = vmatpush1.msra.mxu0 0.0
    %5101 = vmatprep.subr.mxu0 0.0
    %5102 = vmatpush1.msra.mxu0 0.0
    %5103 = vmatprep.subr.mxu0 0.0
    %5104 = vmatpush1.msra.mxu0 0.0
    %5105 = vmatprep.subr.mxu0 0.0
    %5106 = vmatpush1.msra.mxu0 0.0
    %5107 = vmatprep.subr.mxu0 0.0
    %5108 = vmatpush1.msra.mxu0 0.0
    %5109 = vmatprep.mubr.f32.mxu0 0.0
    %5110 = vmatmul.mubr.f32.gmra.mrb[0].mxu0 %v5043
    %v5111 = vpop.f32.mrb[0].mxu0
    %v5112 = vadd.f32 0.0, %v5111
    %v5113 = vpop.f32.mrb[0].mxu0
    %5114 = vdwg.mxu0
    %v5115 = vadd.f32 %v4945, %v5112
    %5116 = vrot.lane.b32.xlu0 %v3785, 104
    %v5117 = vpop.permute.xlu0 %5116
    %5118 = vrot.lane.b32.xlu0 %v3860, 104
    %v5119 = vpop.permute.xlu0 %5118
    %v5120 = vsel %vm332, %v5117, 0
    %v5122 = vsel %vm332, %v5119, 0
    %5124 = vmatprep.subr.mxu0 0.0
    %5125 = vmatpush1.xpose.msra.mxu0 %v5122
    %5126 = vmatprep.subr.mxu0 0.0
    %5127 = vmatpush1.xpose.msra.mxu0 0.0
    %5128 = vmatprep.subr.mxu0 0.0
    %5129 = vmatpush1.xpose.msra.mxu0 0.0
    %5130 = vmatprep.subr.mxu0 0.0
    %5131 = vmatpush1.xpose.msra.mxu0 0.0
    %5132 = vmatprep.subr.mxu0 0.0
    %5133 = vmatpush1.xpose.msra.mxu0 0.0
    %5134 = vmatprep.subr.mxu0 0.0
    %5135 = vmatpush1.xpose.msra.mxu0 0.0
    %5136 = vmatprep.subr.mxu0 0.0
    %5137 = vmatpush1.xpose.msra.mxu0 0.0
    %5138 = vmatprep.subr.mxu0 0.0
    %5139 = vmatpush1.xpose.msra.mxu0 0.0
    %5140 = vmatprep.subr.mxu0 0.0
    %5141 = vmatpush1.xpose.msra.mxu0 0.0
    %5142 = vmatprep.subr.mxu0 0.0
    %5143 = vmatpush1.xpose.msra.mxu0 0.0
    %5144 = vmatprep.subr.mxu0 0.0
    %5145 = vmatpush1.xpose.msra.mxu0 0.0
    %5146 = vmatprep.subr.mxu0 0.0
    %5147 = vmatpush1.xpose.msra.mxu0 0.0
    %5148 = vmatprep.subr.mxu0 0.0
    %5149 = vmatpush1.xpose.msra.mxu0 0.0
    %5150 = vmatprep.subr.mxu0 0.0
    %5151 = vmatpush1.xpose.msra.mxu0 0.0
    %5152 = vmatprep.subr.mxu0 0.0
    %5153 = vmatpush1.xpose.msra.mxu0 0.0
    %5154 = vmatprep.subr.mxu0 0.0
    %5155 = vmatpush1.xpose.msra.mxu0 0.0
    %5156 = vmatprep.subr.mxu0 0.0
    %5157 = vmatpush1.xpose.msra.mxu0 0.0
    %5158 = vmatprep.subr.mxu0 0.0
    %5159 = vmatpush1.xpose.msra.mxu0 0.0
    %5160 = vmatprep.subr.mxu0 0.0
    %5161 = vmatpush1.xpose.msra.mxu0 0.0
    %5162 = vmatprep.subr.mxu0 0.0
    %5163 = vmatpush1.xpose.msra.mxu0 0.0
    %5164 = vmatprep.subr.mxu0 0.0
    %5165 = vmatpush1.xpose.msra.mxu0 0.0
    %5166 = vmatprep.subr.mxu0 0.0
    %5167 = vmatpush1.xpose.msra.mxu0 0.0
    %5168 = vmatprep.subr.mxu0 0.0
    %5169 = vmatpush1.xpose.msra.mxu0 0.0
    %5170 = vmatprep.subr.mxu0 0.0
    %5171 = vmatpush1.xpose.msra.mxu0 0.0
    %5172 = vmatprep.subr.mxu0 0.0
    %5173 = vmatpush1.xpose.msra.mxu0 0.0
    %5174 = vmatprep.subr.mxu0 0.0
    %5175 = vmatpush1.xpose.msra.mxu0 0.0
    %5176 = vmatprep.subr.mxu0 0.0
    %5177 = vmatpush1.xpose.msra.mxu0 0.0
    %5178 = vmatprep.subr.mxu0 0.0
    %5179 = vmatpush1.xpose.msra.mxu0 0.0
    %5180 = vmatprep.subr.mxu0 0.0
    %5181 = vmatpush1.xpose.msra.mxu0 0.0
    %5182 = vmatprep.subr.mxu0 0.0
    %5183 = vmatpush1.xpose.msra.mxu0 0.0
    %5184 = vmatprep.subr.mxu0 0.0
    %5185 = vmatpush1.xpose.msra.mxu0 0.0
    %5186 = vmatprep.subr.mxu0 0.0
    %5187 = vmatpush1.xpose.msra.mxu0 0.0
    %5188 = vmatprep.mubr.f32.mxu0 0.0
    %5189 = vmatmul.mubr.f32.gmra.mrb[0].mxu0 %v5120
    %v5190 = vpop.f32.mrb[0].mxu0
    %v5191 = vadd.f32 0.0, %v5190
    %v5192 = vpop.f32.mrb[0].mxu0
    %5193 = vdwg.mxu0
    %v5194 = vmul.f32 %v5191, 0.17677669
    %v5195 = vadd.f32 %v5194, %v4617
    %v5196 = vsel %vm332, %v5195, -inf
    %5197 = vmax.xlane.f32.xlu0 %v5196
    %v5198 = vpop.xlane.xlu0 %5197
    %v5199 = vsub.f32 %v5195, %v5198
    %v5200 = vmul.f32 %v5199, 1.442695
    %v5201 = vpow.pop %v5200
    %v5202 = vsel %vm332, %v5201, 0.0
    %5203 = vadd.xlane.f32.xlu0 %v5202
    %v5204 = vpop.xlane.xlu0 %5203
    %v5205 = vrcp.pop %v5204
    %v5206 = vmul.f32 %v5201, %v5205
    %5207 = vrot.lane.b32.xlu0 %v3935, 32
    %v5208 = vpop.permute.xlu0 %5207
    %v5211 = vsel %vm332, %v5206, 0
    %5213 = vmatprep.subr.mxu0 0.0
    %5214 = vmatpush1.msra.mxu0 %v5208
    %5215 = vmatprep.subr.mxu0 0.0
    %5216 = vmatpush1.msra.mxu0 0.0
    %5217 = vmatprep.subr.mxu0 0.0
    %5218 = vmatpush1.msra.mxu0 0.0
    %5219 = vmatprep.subr.mxu0 0.0
    %5220 = vmatpush1.msra.mxu0 0.0
    %5221 = vmatprep.subr.mxu0 0.0
    %5222 = vmatpush1.msra.mxu0 0.0
    %5223 = vmatprep.subr.mxu0 0.0
    %5224 = vmatpush1.msra.mxu0 0.0
    %5225 = vmatprep.subr.mxu0 0.0
    %5226 = vmatpush1.msra.mxu0 0.0
    %5227 = vmatprep.subr.mxu0 0.0
    %5228 = vmatpush1.msra.mxu0 0.0
    %5229 = vmatprep.subr.mxu0 0.0
    %5230 = vmatpush1.msra.mxu0 0.0
    %5231 = vmatprep.subr.mxu0 0.0
    %5232 = vmatpush1.msra.mxu0 0.0
    %5233 = vmatprep.subr.mxu0 0.0
    %5234 = vmatpush1.msra.mxu0 0.0
    %5235 = vmatprep.subr.mxu0 0.0
    %5236 = vmatpush1.msra.mxu0 0.0
    %5237 = vmatprep.subr.mxu0 0.0
    %5238 = vmatpush1.msra.mxu0 0.0
    %5239 = vmatprep.subr.mxu0 0.0
    %5240 = vmatpush1.msra.mxu0 0.0
    %5241 = vmatprep.subr.mxu0 0.0
    %5242 = vmatpush1.msra.mxu0 0.0
    %5243 = vmatprep.subr.mxu0 0.0
    %5244 = vmatpush1.msra.mxu0 0.0
    %5245 = vmatprep.subr.mxu0 0.0
    %5246 = vmatpush1.msra.mxu0 0.0
    %5247 = vmatprep.subr.mxu0 0.0
    %5248 = vmatpush1.msra.mxu0 0.0
    %5249 = vmatprep.subr.mxu0 0.0
    %5250 = vmatpush1.msra.mxu0 0.0
    %5251 = vmatprep.subr.mxu0 0.0
    %5252 = vmatpush1.msra.mxu0 0.0
    %5253 = vmatprep.subr.mxu0 0.0
    %5254 = vmatpush1.msra.mxu0 0.0
    %5255 = vmatprep.subr.mxu0 0.0
    %5256 = vmatpush1.msra.mxu0 0.0
    %5257 = vmatprep.subr.mxu0 0.0
    %5258 = vmatpush1.msra.mxu0 0.0
    %5259 = vmatprep.subr.mxu0 0.0
    %5260 = vmatpush1.msra.mxu0 0.0
    %5261 = vmatprep.subr.mxu0 0.0
    %5262 = vmatpush1.msra.mxu0 0.0
    %5263 = vmatprep.subr.mxu0 0.0
    %5264 = vmatpush1.msra.mxu0 0.0
    %5265 = vmatprep.subr.mxu0 0.0
    %5266 = vmatpush1.msra.mxu0 0.0
    %5267 = vmatprep.subr.mxu0 0.0
    %5268 = vmatpush1.msra.mxu0 0.0
    %5269 = vmatprep.subr.mxu0 0.0
    %5270 = vmatpush1.msra.mxu0 0.0
    %5271 = vmatprep.subr.mxu0 0.0
    %5272 = vmatpush1.msra.mxu0 0.0
    %5273 = vmatprep.subr.mxu0 0.0
    %5274 = vmatpush1.msra.mxu0 0.0
    %5275 = vmatprep.subr.mxu0 0.0
    %5276 = vmatpush1.msra.mxu0 0.0
    %5277 = vmatprep.mubr.f32.mxu0 0.0
    %5278 = vmatmul.mubr.f32.gmra.mrb[0].mxu0 %v5211
    %v5279 = vpop.f32.mrb[0].mxu0
    %v5280 = vadd.f32 0.0, %v5279
    %v5281 = vpop.f32.mrb[0].mxu0
    %5282 = vdwg.mxu0
    %v5283 = vadd.f32 %v5115, %v5280
    %v5284 = vadd.f32 %v5283, %v4611
    %5285 = vst.msk [vmem:[#allocation2 + $0x8] sm:$0xff] %vm97, %v5284
    %v5286 = vld [vmem:[#allocation2] sm:$0xff]
    %v5287 = vld [vmem:[#allocation2 + $0x8] sm:$0xff]
    %s5288 = scalar_lea.vmem %s12, 1
    %v5289 = vld [vmem:[%s5288] sm:$0x1]
    %s5290 = scalar_lea.vmem %s13, 1
    %v5291 = vld [vmem:[%s5290] sm:$0x1]
    %v5292 = vadd.f32 %v5286, %v3688
    %v5293 = vadd.f32 %v5287, %v3689
    %v5294 = vsel %vm97, %v5292, 0.0
    %5295 = vadd.xlane.f32.xlu0 %v5294
    %v5296 = vpop.xlane.xlu0 %5295
    %v5297 = vsel %vm97, %v5293, 0.0
    %5298 = vadd.xlane.f32.xlu0 %v5297
    %v5299 = vpop.xlane.xlu0 %5298
    %v5300 = vmul.f32 %v5296, %v1691
    %v5301 = vmul.f32 %v5299, %v1691
    %v5302 = vsub.f32 %v5292, %v5300
    %v5303 = vsub.f32 %v5293, %v5301
    %v5304 = vmul.f32 %v5302, %v5302
    %v5305 = vmul.f32 %v5303, %v5303
    %v5306 = vsel %vm97, %v5304, 0.0
    %5307 = vadd.xlane.f32.xlu0 %v5306
    %v5308 = vpop.xlane.xlu0 %5307
    %v5309 = vsel %vm97, %v5305, 0.0
    %5310 = vadd.xlane.f32.xlu0 %v5309
    %v5311 = vpop.xlane.xlu0 %5310
    %v5312 = vmul.f32 %v5308, %v1691
    %v5313 = vmul.f32 %v5311, %v1691
    %v5314 = vadd.f32 %v5312, 1e-05
    %v5315 = vadd.f32 %v5313, 1e-05
    %v5316 = vrsqrt.pop %v5314
    %v5317 = vrsqrt.pop %v5315
    %v5318 = vmul.f32 %v5302, %v5316
    %v5319 = vmul.f32 %v5303, %v5317
    %v5321 = vlaneseq
    %v5322 = vshrl.u32 %v5321, 7
    %v5323 = vsub.s32 0, %v5322
    %v5324 = vrot.slane %v5289, %v5323
    %v5326 = vmul.f32 %v5318, %v5324
    %v5327 = vmul.f32 %v5319, %v5324
    %v5329 = vlaneseq
    %v5330 = vshrl.u32 %v5329, 7
    %v5331 = vsub.s32 0, %v5330
    %v5332 = vrot.slane %v5291, %v5331
    %v5334 = vadd.f32 %v5326, %v5332
    %v5335 = vadd.f32 %v5327, %v5332
    %s5336 = scalar_lea.vmem %s8, 32
    %v5337 = vld [vmem:[%s5336] sm:$0xff]
    %v5338 = vld [vmem:[%s5336 + $0x8] sm:$0xff]
    %v5339 = vld [vmem:[%s5336 + $0x10] sm:$0xff]
    %v5340 = vld [vmem:[%s5336 + $0x18] sm:$0xff]
    %s5341 = scalar_lea.vmem %s9, 32
    %v5342 = vld [vmem:[%s5341] sm:$0xff]
    %v5343 = vld [vmem:[%s5341 + $0x8] sm:$0xff]
    %v5344 = vld [vmem:[%s5341 + $0x10] sm:$0xff]
    %v5345 = vld [vmem:[%s5341 + $0x18] sm:$0xff]
    %s5346 = scalar_lea.vmem %s10, 32
    %v5347 = vld [vmem:[%s5346] sm:$0xff]
    %v5348 = vld [vmem:[%s5346 + $0x8] sm:$0xff]
    %v5349 = vld [vmem:[%s5346 + $0x10] sm:$0xff]
    %v5350 = vld [vmem:[%s5346 + $0x18] sm:$0xff]
    %s5351 = scalar_lea.vmem %s11, 1
    %v5352 = vld [vmem:[%s5351] sm:$0x1]
    %v5354 = vsel %vm97, %v5334, 0
    %v5357 = vsel %vm97, %v5335, 0
    %5359 = vmatprep.subr.mxu0 0.0
    %5360 = vmatpush1.msra.mxu0 %v5337
    %5361 = vmatprep.subr.mxu0 0.0
    %5362 = vmatpush1.msra.mxu0 %v5338
    %5363 = vmatprep.subr.mxu0 0.0
    %5364 = vmatpush1.msra.mxu0 %v5339
    %5365 = vmatprep.subr.mxu0 0.0
    %5366 = vmatpush1.msra.mxu0 %v5340
    %5367 = vmatprep.subr.mxu0 0.0
    %5368 = vmatpush1.msra.mxu0 0.0
    %5369 = vmatprep.subr.mxu0 0.0
    %5370 = vmatpush1.msra.mxu0 0.0
    %5371 = vmatprep.subr.mxu0 0.0
    %5372 = vmatpush1.msra.mxu0 0.0
    %5373 = vmatprep.subr.mxu0 0.0
    %5374 = vmatpush1.msra.mxu0 0.0
    %5375 = vmatprep.subr.mxu0 0.0
    %5376 = vmatpush1.msra.mxu0 0.0
    %5377 = vmatprep.subr.mxu0 0.0
    %5378 = vmatpush1.msra.mxu0 0.0
    %5379 = vmatprep.subr.mxu0 0.0
    %5380 = vmatpush1.msra.mxu0 0.0
    %5381 = vmatprep.subr.mxu0 0.0
    %5382 = vmatpush1.msra.mxu0 0.0
    %5383 = vmatprep.subr.mxu0 0.0
    %5384 = vmatpush1.msra.mxu0 0.0
    %5385 = vmatprep.subr.mxu0 0.0
    %5386 = vmatpush1.msra.mxu0 0.0
    %5387 = vmatprep.subr.mxu0 0.0
    %5388 = vmatpush1.msra.mxu0 0.0
    %5389 = vmatprep.subr.mxu0 0.0
    %5390 = vmatpush1.msra.mxu0 0.0
    %5391 = vmatprep.subr.mxu0 0.0
    %5392 = vmatpush1.msra.mxu0 0.0
    %5393 = vmatprep.subr.mxu0 0.0
    %5394 = vmatpush1.msra.mxu0 0.0
    %5395 = vmatprep.subr.mxu0 0.0
    %5396 = vmatpush1.msra.mxu0 0.0
    %5397 = vmatprep.subr.mxu0 0.0
    %5398 = vmatpush1.msra.mxu0 0.0
    %5399 = vmatprep.subr.mxu0 0.0
    %5400 = vmatpush1.msra.mxu0 0.0
    %5401 = vmatprep.subr.mxu0 0.0
    %5402 = vmatpush1.msra.mxu0 0.0
    %5403 = vmatprep.subr.mxu0 0.0
    %5404 = vmatpush1.msra.mxu0 0.0
    %5405 = vmatprep.subr.mxu0 0.0
    %5406 = vmatpush1.msra.mxu0 0.0
    %5407 = vmatprep.subr.mxu0 0.0
    %5408 = vmatpush1.msra.mxu0 0.0
    %5409 = vmatprep.subr.mxu0 0.0
    %5410 = vmatpush1.msra.mxu0 0.0
    %5411 = vmatprep.subr.mxu0 0.0
    %5412 = vmatpush1.msra.mxu0 0.0
    %5413 = vmatprep.subr.mxu0 0.0
    %5414 = vmatpush1.msra.mxu0 0.0
    %5415 = vmatprep.subr.mxu0 0.0
    %5416 = vmatpush1.msra.mxu0 0.0
    %5417 = vmatprep.subr.mxu0 0.0
    %5418 = vmatpush1.msra.mxu0 0.0
    %5419 = vmatprep.subr.mxu0 0.0
    %5420 = vmatpush1.msra.mxu0 0.0
    %5421 = vmatprep.subr.mxu0 0.0
    %5422 = vmatpush1.msra.mxu0 0.0
    %5423 = vmatprep.mubr.f32.mxu0 0.0
    %5424 = vmatmul.mubr.f32.gmra.mrb[0].mxu0 %v5354
    %v5425 = vpop.f32.mrb[0].mxu0
    %v5426 = vadd.f32 0.0, %v5425
    %v5427 = vpop.f32.mrb[0].mxu0
    %5428 = vmatprep.mubr.f32.mxu0 0.0
    %5429 = vmatmul.mubr.f32.gmra.mrb[0].mxu0 %v5357
    %v5430 = vpop.f32.mrb[0].mxu0
    %v5431 = vadd.f32 0.0, %v5430
    %v5432 = vpop.f32.mrb[0].mxu0
    %5433 = vdwg.mxu0
    %5434 = vmatprep.subr.mxu0 0.0
    %5435 = vmatpush1.msra.mxu0 %v5342
    %5436 = vmatprep.subr.mxu0 0.0
    %5437 = vmatpush1.msra.mxu0 %v5343
    %5438 = vmatprep.subr.mxu0 0.0
    %5439 = vmatpush1.msra.mxu0 %v5344
    %5440 = vmatprep.subr.mxu0 0.0
    %5441 = vmatpush1.msra.mxu0 %v5345
    %5442 = vmatprep.subr.mxu0 0.0
    %5443 = vmatpush1.msra.mxu0 0.0
    %5444 = vmatprep.subr.mxu0 0.0
    %5445 = vmatpush1.msra.mxu0 0.0
    %5446 = vmatprep.subr.mxu0 0.0
    %5447 = vmatpush1.msra.mxu0 0.0
    %5448 = vmatprep.subr.mxu0 0.0
    %5449 = vmatpush1.msra.mxu0 0.0
    %5450 = vmatprep.subr.mxu0 0.0
    %5451 = vmatpush1.msra.mxu0 0.0
    %5452 = vmatprep.subr.mxu0 0.0
    %5453 = vmatpush1.msra.mxu0 0.0
    %5454 = vmatprep.subr.mxu0 0.0
    %5455 = vmatpush1.msra.mxu0 0.0
    %5456 = vmatprep.subr.mxu0 0.0
    %5457 = vmatpush1.msra.mxu0 0.0
    %5458 = vmatprep.subr.mxu0 0.0
    %5459 = vmatpush1.msra.mxu0 0.0
    %5460 = vmatprep.subr.mxu0 0.0
    %5461 = vmatpush1.msra.mxu0 0.0
    %5462 = vmatprep.subr.mxu0 0.0
    %5463 = vmatpush1.msra.mxu0 0.0
    %5464 = vmatprep.subr.mxu0 0.0
    %5465 = vmatpush1.msra.mxu0 0.0
    %5466 = vmatprep.subr.mxu0 0.0
    %5467 = vmatpush1.msra.mxu0 0.0
    %5468 = vmatprep.subr.mxu0 0.0
    %5469 = vmatpush1.msra.mxu0 0.0
    %5470 = vmatprep.subr.mxu0 0.0
    %5471 = vmatpush1.msra.mxu0 0.0
    %5472 = vmatprep.subr.mxu0 0.0
    %5473 = vmatpush1.msra.mxu0 0.0
    %5474 = vmatprep.subr.mxu0 0.0
    %5475 = vmatpush1.msra.mxu0 0.0
    %5476 = vmatprep.subr.mxu0 0.0
    %5477 = vmatpush1.msra.mxu0 0.0
    %5478 = vmatprep.subr.mxu0 0.0
    %5479 = vmatpush1.msra.mxu0 0.0
    %5480 = vmatprep.subr.mxu0 0.0
    %5481 = vmatpush1.msra.mxu0 0.0
    %5482 = vmatprep.subr.mxu0 0.0
    %5483 = vmatpush1.msra.mxu0 0.0
    %5484 = vmatprep.subr.mxu0 0.0
    %5485 = vmatpush1.msra.mxu0 0.0
    %5486 = vmatprep.subr.mxu0 0.0
    %5487 = vmatpush1.msra.mxu0 0.0
    %5488 = vmatprep.subr.mxu0 0.0
    %5489 = vmatpush1.msra.mxu0 0.0
    %5490 = vmatprep.subr.mxu0 0.0
    %5491 = vmatpush1.msra.mxu0 0.0
    %5492 = vmatprep.subr.mxu0 0.0
    %5493 = vmatpush1.msra.mxu0 0.0
    %5494 = vmatprep.subr.mxu0 0.0
    %5495 = vmatpush1.msra.mxu0 0.0
    %5496 = vmatprep.subr.mxu0 0.0
    %5497 = vmatpush1.msra.mxu0 0.0
    %5498 = vmatprep.mubr.f32.mxu0 0.0
    %5499 = vmatmul.mubr.f32.gmra.mrb[0].mxu0 %v1823
    %v5500 = vpop.f32.mrb[0].mxu0
    %v5501 = vadd.f32 0.0, %v5500
    %v5502 = vpop.f32.mrb[0].mxu0
    %5503 = vmatprep.mubr.f32.mxu0 0.0
    %5504 = vmatmul.mubr.f32.gmra.mrb[0].mxu0 %v1826
    %v5505 = vpop.f32.mrb[0].mxu0
    %v5506 = vadd.f32 0.0, %v5505
    %v5507 = vpop.f32.mrb[0].mxu0
    %5508 = vmatprep.mubr.f32.mxu0 0.0
    %5509 = vmatmul.mubr.f32.gmra.mrb[0].mxu0 %v1829
    %v5510 = vpop.f32.mrb[0].mxu0
    %v5511 = vadd.f32 0.0, %v5510
    %v5512 = vpop.f32.mrb[0].mxu0
    %5513 = vmatprep.mubr.f32.mxu0 0.0
    %5514 = vmatmul.mubr.f32.gmra.mrb[0].mxu0 %v1832
    %v5515 = vpop.f32.mrb[0].mxu0
    %v5516 = vadd.f32 0.0, %v5515
    %v5517 = vpop.f32.mrb[0].mxu0
    %5518 = vdwg.mxu0
    %5519 = vmatprep.subr.mxu0 0.0
    %5520 = vmatpush1.msra.mxu0 %v5347
    %5521 = vmatprep.subr.mxu0 0.0
    %5522 = vmatpush1.msra.mxu0 %v5348
    %5523 = vmatprep.subr.mxu0 0.0
    %5524 = vmatpush1.msra.mxu0 %v5349
    %5525 = vmatprep.subr.mxu0 0.0
    %5526 = vmatpush1.msra.mxu0 %v5350
    %5527 = vmatprep.subr.mxu0 0.0
    %5528 = vmatpush1.msra.mxu0 0.0
    %5529 = vmatprep.subr.mxu0 0.0
    %5530 = vmatpush1.msra.mxu0 0.0
    %5531 = vmatprep.subr.mxu0 0.0
    %5532 = vmatpush1.msra.mxu0 0.0
    %5533 = vmatprep.subr.mxu0 0.0
    %5534 = vmatpush1.msra.mxu0 0.0
    %5535 = vmatprep.subr.mxu0 0.0
    %5536 = vmatpush1.msra.mxu0 0.0
    %5537 = vmatprep.subr.mxu0 0.0
    %5538 = vmatpush1.msra.mxu0 0.0
    %5539 = vmatprep.subr.mxu0 0.0
    %5540 = vmatpush1.msra.mxu0 0.0
    %5541 = vmatprep.subr.mxu0 0.0
    %5542 = vmatpush1.msra.mxu0 0.0
    %5543 = vmatprep.subr.mxu0 0.0
    %5544 = vmatpush1.msra.mxu0 0.0
    %5545 = vmatprep.subr.mxu0 0.0
    %5546 = vmatpush1.msra.mxu0 0.0
    %5547 = vmatprep.subr.mxu0 0.0
    %5548 = vmatpush1.msra.mxu0 0.0
    %5549 = vmatprep.subr.mxu0 0.0
    %5550 = vmatpush1.msra.mxu0 0.0
    %5551 = vmatprep.subr.mxu0 0.0
    %5552 = vmatpush1.msra.mxu0 0.0
    %5553 = vmatprep.subr.mxu0 0.0
    %5554 = vmatpush1.msra.mxu0 0.0
    %5555 = vmatprep.subr.mxu0 0.0
    %5556 = vmatpush1.msra.mxu0 0.0
    %5557 = vmatprep.subr.mxu0 0.0
    %5558 = vmatpush1.msra.mxu0 0.0
    %5559 = vmatprep.subr.mxu0 0.0
    %5560 = vmatpush1.msra.mxu0 0.0
    %5561 = vmatprep.subr.mxu0 0.0
    %5562 = vmatpush1.msra.mxu0 0.0
    %5563 = vmatprep.subr.mxu0 0.0
    %5564 = vmatpush1.msra.mxu0 0.0
    %5565 = vmatprep.subr.mxu0 0.0
    %5566 = vmatpush1.msra.mxu0 0.0
    %5567 = vmatprep.subr.mxu0 0.0
    %5568 = vmatpush1.msra.mxu0 0.0
    %5569 = vmatprep.subr.mxu0 0.0
    %5570 = vmatpush1.msra.mxu0 0.0
    %5571 = vmatprep.subr.mxu0 0.0
    %5572 = vmatpush1.msra.mxu0 0.0
    %5573 = vmatprep.subr.mxu0 0.0
    %5574 = vmatpush1.msra.mxu0 0.0
    %5575 = vmatprep.subr.mxu0 0.0
    %5576 = vmatpush1.msra.mxu0 0.0
    %5577 = vmatprep.subr.mxu0 0.0
    %5578 = vmatpush1.msra.mxu0 0.0
    %5579 = vmatprep.subr.mxu0 0.0
    %5580 = vmatpush1.msra.mxu0 0.0
    %5581 = vmatprep.subr.mxu0 0.0
    %5582 = vmatpush1.msra.mxu0 0.0
    %5583 = vmatprep.mubr.f32.mxu0 0.0
    %5584 = vmatmul.mubr.f32.gmra.mrb[0].mxu0 %v1823
    %v5585 = vpop.f32.mrb[0].mxu0
    %v5586 = vadd.f32 0.0, %v5585
    %v5587 = vpop.f32.mrb[0].mxu0
    %5588 = vmatprep.mubr.f32.mxu0 0.0
    %5589 = vmatmul.mubr.f32.gmra.mrb[0].mxu0 %v1826
    %v5590 = vpop.f32.mrb[0].mxu0
    %v5591 = vadd.f32 0.0, %v5590
    %v5592 = vpop.f32.mrb[0].mxu0
    %5593 = vmatprep.mubr.f32.mxu0 0.0
    %5594 = vmatmul.mubr.f32.gmra.mrb[0].mxu0 %v1829
    %v5595 = vpop.f32.mrb[0].mxu0
    %v5596 = vadd.f32 0.0, %v5595
    %v5597 = vpop.f32.mrb[0].mxu0
    %5598 = vmatprep.mubr.f32.mxu0 0.0
    %5599 = vmatmul.mubr.f32.gmra.mrb[0].mxu0 %v1832
    %v5600 = vpop.f32.mrb[0].mxu0
    %v5601 = vadd.f32 0.0, %v5600
    %v5602 = vpop.f32.mrb[0].mxu0
    %5603 = vdwg.mxu0
    %v5604 = vld [vmem:[%s3] sm:$0xff]
    %vm5605 = vcmp.eq.f32.partialorder %v5604, 0.0
    %v5606 = vsel %vm5605, -1e+20, 0.0
    %v5608 = vsel %vm332, %v5426, 0
    %v5611 = vsel %vm332, %v5501, 0
    %v5614 = vsel %vm332, %v5506, 0
    %5616 = vmatprep.subr.mxu0 0.0
    %5617 = vmatpush1.xpose.msra.mxu0 %v5611
    %5618 = vmatprep.subr.mxu0 0.0
    %5619 = vmatpush1.xpose.msra.mxu0 %v5614
    %5620 = vmatprep.subr.mxu0 0.0
    %5621 = vmatpush1.xpose.msra.mxu0 0.0
    %5622 = vmatprep.subr.mxu0 0.0
    %5623 = vmatpush1.xpose.msra.mxu0 0.0
    %5624 = vmatprep.subr.mxu0 0.0
    %5625 = vmatpush1.xpose.msra.mxu0 0.0
    %5626 = vmatprep.subr.mxu0 0.0
    %5627 = vmatpush1.xpose.msra.mxu0 0.0
    %5628 = vmatprep.subr.mxu0 0.0
    %5629 = vmatpush1.xpose.msra.mxu0 0.0
    %5630 = vmatprep.subr.mxu0 0.0
    %5631 = vmatpush1.xpose.msra.mxu0 0.0
    %5632 = vmatprep.subr.mxu0 0.0
    %5633 = vmatpush1.xpose.msra.mxu0 0.0
    %5634 = vmatprep.subr.mxu0 0.0
    %5635 = vmatpush1.xpose.msra.mxu0 0.0
    %5636 = vmatprep.subr.mxu0 0.0
    %5637 = vmatpush1.xpose.msra.mxu0 0.0
    %5638 = vmatprep.subr.mxu0 0.0
    %5639 = vmatpush1.xpose.msra.mxu0 0.0
    %5640 = vmatprep.subr.mxu0 0.0
    %5641 = vmatpush1.xpose.msra.mxu0 0.0
    %5642 = vmatprep.subr.mxu0 0.0
    %5643 = vmatpush1.xpose.msra.mxu0 0.0
    %5644 = vmatprep.subr.mxu0 0.0
    %5645 = vmatpush1.xpose.msra.mxu0 0.0
    %5646 = vmatprep.subr.mxu0 0.0
    %5647 = vmatpush1.xpose.msra.mxu0 0.0
    %5648 = vmatprep.subr.mxu0 0.0
    %5649 = vmatpush1.xpose.msra.mxu0 0.0
    %5650 = vmatprep.subr.mxu0 0.0
    %5651 = vmatpush1.xpose.msra.mxu0 0.0
    %5652 = vmatprep.subr.mxu0 0.0
    %5653 = vmatpush1.xpose.msra.mxu0 0.0
    %5654 = vmatprep.subr.mxu0 0.0
    %5655 = vmatpush1.xpose.msra.mxu0 0.0
    %5656 = vmatprep.subr.mxu0 0.0
    %5657 = vmatpush1.xpose.msra.mxu0 0.0
    %5658 = vmatprep.subr.mxu0 0.0
    %5659 = vmatpush1.xpose.msra.mxu0 0.0
    %5660 = vmatprep.subr.mxu0 0.0
    %5661 = vmatpush1.xpose.msra.mxu0 0.0
    %5662 = vmatprep.subr.mxu0 0.0
    %5663 = vmatpush1.xpose.msra.mxu0 0.0
    %5664 = vmatprep.subr.mxu0 0.0
    %5665 = vmatpush1.xpose.msra.mxu0 0.0
    %5666 = vmatprep.subr.mxu0 0.0
    %5667 = vmatpush1.xpose.msra.mxu0 0.0
    %5668 = vmatprep.subr.mxu0 0.0
    %5669 = vmatpush1.xpose.msra.mxu0 0.0
    %5670 = vmatprep.subr.mxu0 0.0
    %5671 = vmatpush1.xpose.msra.mxu0 0.0
    %5672 = vmatprep.subr.mxu0 0.0
    %5673 = vmatpush1.xpose.msra.mxu0 0.0
    %5674 = vmatprep.subr.mxu0 0.0
    %5675 = vmatpush1.xpose.msra.mxu0 0.0
    %5676 = vmatprep.subr.mxu0 0.0
    %5677 = vmatpush1.xpose.msra.mxu0 0.0
    %5678 = vmatprep.subr.mxu0 0.0
    %5679 = vmatpush1.xpose.msra.mxu0 0.0
    %5680 = vmatprep.mubr.f32.mxu0 0.0
    %5681 = vmatmul.mubr.f32.gmra.mrb[0].mxu0 %v5608
    %v5682 = vpop.f32.mrb[0].mxu0
    %v5683 = vadd.f32 0.0, %v5682
    %v5684 = vpop.f32.mrb[0].mxu0
    %5685 = vdwg.mxu0
    %v5686 = vmul.f32 %v5683, 0.17677669
    %v5687 = vadd.f32 %v5686, %v5606
    %v5688 = vsel %vm2088, %v5687, -inf
    %5689 = vmax.xlane.f32.xlu0 %v5688
    %v5690 = vpop.xlane.xlu0 %5689
    %v5691 = vsub.f32 %v5687, %v5690
    %v5692 = vmul.f32 %v5691, 1.442695
    %v5693 = vpow.pop %v5692
    %v5694 = vsel %vm2088, %v5693, 0.0
    %5695 = vadd.xlane.f32.xlu0 %v5694
    %v5696 = vpop.xlane.xlu0 %5695
    %v5697 = vrcp.pop %v5696
    %v5698 = vmul.f32 %v5693, %v5697
    %5699 = vrot.lane.b32.xlu0 %v5426, 120
    %v5700 = vpop.permute.xlu0 %5699
    %5701 = vrot.lane.b32.xlu0 %v5501, 120
    %v5702 = vpop.permute.xlu0 %5701
    %5703 = vrot.lane.b32.xlu0 %v5506, 120
    %v5704 = vpop.permute.xlu0 %5703
    %v5705 = vsel %vm332, %v5700, 0
    %v5707 = vsel %vm332, %v5702, 0
    %v5709 = vsel %vm332, %v5704, 0
    %5711 = vmatprep.subr.mxu0 0.0
    %5712 = vmatpush1.xpose.msra.mxu0 %v5707
    %5713 = vmatprep.subr.mxu0 0.0
    %5714 = vmatpush1.xpose.msra.mxu0 %v5709
    %5715 = vmatprep.subr.mxu0 0.0
    %5716 = vmatpush1.xpose.msra.mxu0 0.0
    %5717 = vmatprep.subr.mxu0 0.0
    %5718 = vmatpush1.xpose.msra.mxu0 0.0
    %5719 = vmatprep.subr.mxu0 0.0
    %5720 = vmatpush1.xpose.msra.mxu0 0.0
    %5721 = vmatprep.subr.mxu0 0.0
    %5722 = vmatpush1.xpose.msra.mxu0 0.0
    %5723 = vmatprep.subr.mxu0 0.0
    %5724 = vmatpush1.xpose.msra.mxu0 0.0
    %5725 = vmatprep.subr.mxu0 0.0
    %5726 = vmatpush1.xpose.msra.mxu0 0.0
    %5727 = vmatprep.subr.mxu0 0.0
    %5728 = vmatpush1.xpose.msra.mxu0 0.0
    %5729 = vmatprep.subr.mxu0 0.0
    %5730 = vmatpush1.xpose.msra.mxu0 0.0
    %5731 = vmatprep.subr.mxu0 0.0
    %5732 = vmatpush1.xpose.msra.mxu0 0.0
    %5733 = vmatprep.subr.mxu0 0.0
    %5734 = vmatpush1.xpose.msra.mxu0 0.0
    %5735 = vmatprep.subr.mxu0 0.0
    %5736 = vmatpush1.xpose.msra.mxu0 0.0
    %5737 = vmatprep.subr.mxu0 0.0
    %5738 = vmatpush1.xpose.msra.mxu0 0.0
    %5739 = vmatprep.subr.mxu0 0.0
    %5740 = vmatpush1.xpose.msra.mxu0 0.0
    %5741 = vmatprep.subr.mxu0 0.0
    %5742 = vmatpush1.xpose.msra.mxu0 0.0
    %5743 = vmatprep.subr.mxu0 0.0
    %5744 = vmatpush1.xpose.msra.mxu0 0.0
    %5745 = vmatprep.subr.mxu0 0.0
    %5746 = vmatpush1.xpose.msra.mxu0 0.0
    %5747 = vmatprep.subr.mxu0 0.0
    %5748 = vmatpush1.xpose.msra.mxu0 0.0
    %5749 = vmatprep.subr.mxu0 0.0
    %5750 = vmatpush1.xpose.msra.mxu0 0.0
    %5751 = vmatprep.subr.mxu0 0.0
    %5752 = vmatpush1.xpose.msra.mxu0 0.0
    %5753 = vmatprep.subr.mxu0 0.0
    %5754 = vmatpush1.xpose.msra.mxu0 0.0
    %5755 = vmatprep.subr.mxu0 0.0
    %5756 = vmatpush1.xpose.msra.mxu0 0.0
    %5757 = vmatprep.subr.mxu0 0.0
    %5758 = vmatpush1.xpose.msra.mxu0 0.0
    %5759 = vmatprep.subr.mxu0 0.0
    %5760 = vmatpush1.xpose.msra.mxu0 0.0
    %5761 = vmatprep.subr.mxu0 0.0
    %5762 = vmatpush1.xpose.msra.mxu0 0.0
    %5763 = vmatprep.subr.mxu0 0.0
    %5764 = vmatpush1.xpose.msra.mxu0 0.0
    %5765 = vmatprep.subr.mxu0 0.0
    %5766 = vmatpush1.xpose.msra.mxu0 0.0
    %5767 = vmatprep.subr.mxu0 0.0
    %5768 = vmatpush1.xpose.msra.mxu0 0.0
    %5769 = vmatprep.subr.mxu0 0.0
    %5770 = vmatpush1.xpose.msra.mxu0 0.0
    %5771 = vmatprep.subr.mxu0 0.0
    %5772 = vmatpush1.xpose.msra.mxu0 0.0
    %5773 = vmatprep.subr.mxu0 0.0
    %5774 = vmatpush1.xpose.msra.mxu0 0.0
    %5775 = vmatprep.mubr.f32.mxu0 0.0
    %5776 = vmatmul.mubr.f32.gmra.mrb[0].mxu0 %v5705
    %v5777 = vpop.f32.mrb[0].mxu0
    %v5778 = vadd.f32 0.0, %v5777
    %v5779 = vpop.f32.mrb[0].mxu0
    %5780 = vdwg.mxu0
    %v5781 = vmul.f32 %v5778, 0.17677669
    %v5782 = vadd.f32 %v5781, %v5606
    %v5783 = vsel %vm2088, %v5782, -inf
    %5784 = vmax.xlane.f32.xlu0 %v5783
    %v5785 = vpop.xlane.xlu0 %5784
    %v5786 = vsub.f32 %v5782, %v5785
    %v5787 = vmul.f32 %v5786, 1.442695
    %v5788 = vpow.pop %v5787
    %v5789 = vsel %vm2088, %v5788, 0.0
    %5790 = vadd.xlane.f32.xlu0 %v5789
    %v5791 = vpop.xlane.xlu0 %5790
    %v5792 = vrcp.pop %v5791
    %v5793 = vmul.f32 %v5788, %v5792
    %5796 = vrot.lane.b32.xlu0 %v5586, 96
    %v5797 = vpop.permute.xlu0 %5796
    %5798 = vrot.lane.b32.xlu0 %v5591, 96
    %v5799 = vpop.permute.xlu0 %5798
    %v5803 = vsel %vm2088, %v5793, 0
    %5805 = vmatprep.subr.mxu0 0.0
    %5806 = vmatpush1.msra.mxu0 %v5797
    %5807 = vmatprep.subr.mxu0 0.0
    %5808 = vmatpush1.msra.mxu0 %v5799
    %5809 = vmatprep.subr.mxu0 0.0
    %5810 = vmatpush1.msra.mxu0 0.0
    %5811 = vmatprep.subr.mxu0 0.0
    %5812 = vmatpush1.msra.mxu0 0.0
    %5813 = vmatprep.subr.mxu0 0.0
    %5814 = vmatpush1.msra.mxu0 0.0
    %5815 = vmatprep.subr.mxu0 0.0
    %5816 = vmatpush1.msra.mxu0 0.0
    %5817 = vmatprep.subr.mxu0 0.0
    %5818 = vmatpush1.msra.mxu0 0.0
    %5819 = vmatprep.subr.mxu0 0.0
    %5820 = vmatpush1.msra.mxu0 0.0
    %5821 = vmatprep.subr.mxu0 0.0
    %5822 = vmatpush1.msra.mxu0 0.0
    %5823 = vmatprep.subr.mxu0 0.0
    %5824 = vmatpush1.msra.mxu0 0.0
    %5825 = vmatprep.subr.mxu0 0.0
    %5826 = vmatpush1.msra.mxu0 0.0
    %5827 = vmatprep.subr.mxu0 0.0
    %5828 = vmatpush1.msra.mxu0 0.0
    %5829 = vmatprep.subr.mxu0 0.0
    %5830 = vmatpush1.msra.mxu0 0.0
    %5831 = vmatprep.subr.mxu0 0.0
    %5832 = vmatpush1.msra.mxu0 0.0
    %5833 = vmatprep.subr.mxu0 0.0
    %5834 = vmatpush1.msra.mxu0 0.0
    %5835 = vmatprep.subr.mxu0 0.0
    %5836 = vmatpush1.msra.mxu0 0.0
    %5837 = vmatprep.subr.mxu0 0.0
    %5838 = vmatpush1.msra.mxu0 0.0
    %5839 = vmatprep.subr.mxu0 0.0
    %5840 = vmatpush1.msra.mxu0 0.0
    %5841 = vmatprep.subr.mxu0 0.0
    %5842 = vmatpush1.msra.mxu0 0.0
    %5843 = vmatprep.subr.mxu0 0.0
    %5844 = vmatpush1.msra.mxu0 0.0
    %5845 = vmatprep.subr.mxu0 0.0
    %5846 = vmatpush1.msra.mxu0 0.0
    %5847 = vmatprep.subr.mxu0 0.0
    %5848 = vmatpush1.msra.mxu0 0.0
    %5849 = vmatprep.subr.mxu0 0.0
    %5850 = vmatpush1.msra.mxu0 0.0
    %5851 = vmatprep.subr.mxu0 0.0
    %5852 = vmatpush1.msra.mxu0 0.0
    %5853 = vmatprep.subr.mxu0 0.0
    %5854 = vmatpush1.msra.mxu0 0.0
    %5855 = vmatprep.subr.mxu0 0.0
    %5856 = vmatpush1.msra.mxu0 0.0
    %5857 = vmatprep.subr.mxu0 0.0
    %5858 = vmatpush1.msra.mxu0 0.0
    %5859 = vmatprep.subr.mxu0 0.0
    %5860 = vmatpush1.msra.mxu0 0.0
    %5861 = vmatprep.subr.mxu0 0.0
    %5862 = vmatpush1.msra.mxu0 0.0
    %5863 = vmatprep.subr.mxu0 0.0
    %5864 = vmatpush1.msra.mxu0 0.0
    %5865 = vmatprep.subr.mxu0 0.0
    %5866 = vmatpush1.msra.mxu0 0.0
    %5867 = vmatprep.subr.mxu0 0.0
    %5868 = vmatpush1.msra.mxu0 0.0
    %5869 = vmatprep.mubr.f32.mxu0 0.0
    %5870 = vmatmul.mubr.f32.gmra.mrb[0].mxu0 %v5803
    %v5871 = vpop.f32.mrb[0].mxu0
    %v5872 = vadd.f32 0.0, %v5871
    %v5873 = vpop.f32.mrb[0].mxu0
    %5874 = vdwg.mxu0
    %v5876 = vsel %vm2088, %v5698, 0
    %5878 = vmatprep.subr.mxu0 0.0
    %5879 = vmatpush1.msra.mxu0 %v5586
    %5880 = vmatprep.subr.mxu0 0.0
    %5881 = vmatpush1.msra.mxu0 %v5591
    %5882 = vmatprep.subr.mxu0 0.0
    %5883 = vmatpush1.msra.mxu0 0.0
    %5884 = vmatprep.subr.mxu0 0.0
    %5885 = vmatpush1.msra.mxu0 0.0
    %5886 = vmatprep.subr.mxu0 0.0
    %5887 = vmatpush1.msra.mxu0 0.0
    %5888 = vmatprep.subr.mxu0 0.0
    %5889 = vmatpush1.msra.mxu0 0.0
    %5890 = vmatprep.subr.mxu0 0.0
    %5891 = vmatpush1.msra.mxu0 0.0
    %5892 = vmatprep.subr.mxu0 0.0
    %5893 = vmatpush1.msra.mxu0 0.0
    %5894 = vmatprep.subr.mxu0 0.0
    %5895 = vmatpush1.msra.mxu0 0.0
    %5896 = vmatprep.subr.mxu0 0.0
    %5897 = vmatpush1.msra.mxu0 0.0
    %5898 = vmatprep.subr.mxu0 0.0
    %5899 = vmatpush1.msra.mxu0 0.0
    %5900 = vmatprep.subr.mxu0 0.0
    %5901 = vmatpush1.msra.mxu0 0.0
    %5902 = vmatprep.subr.mxu0 0.0
    %5903 = vmatpush1.msra.mxu0 0.0
    %5904 = vmatprep.subr.mxu0 0.0
    %5905 = vmatpush1.msra.mxu0 0.0
    %5906 = vmatprep.subr.mxu0 0.0
    %5907 = vmatpush1.msra.mxu0 0.0
    %5908 = vmatprep.subr.mxu0 0.0
    %5909 = vmatpush1.msra.mxu0 0.0
    %5910 = vmatprep.subr.mxu0 0.0
    %5911 = vmatpush1.msra.mxu0 0.0
    %5912 = vmatprep.subr.mxu0 0.0
    %5913 = vmatpush1.msra.mxu0 0.0
    %5914 = vmatprep.subr.mxu0 0.0
    %5915 = vmatpush1.msra.mxu0 0.0
    %5916 = vmatprep.subr.mxu0 0.0
    %5917 = vmatpush1.msra.mxu0 0.0
    %5918 = vmatprep.subr.mxu0 0.0
    %5919 = vmatpush1.msra.mxu0 0.0
    %5920 = vmatprep.subr.mxu0 0.0
    %5921 = vmatpush1.msra.mxu0 0.0
    %5922 = vmatprep.subr.mxu0 0.0
    %5923 = vmatpush1.msra.mxu0 0.0
    %5924 = vmatprep.subr.mxu0 0.0
    %5925 = vmatpush1.msra.mxu0 0.0
    %5926 = vmatprep.subr.mxu0 0.0
    %5927 = vmatpush1.msra.mxu0 0.0
    %5928 = vmatprep.subr.mxu0 0.0
    %5929 = vmatpush1.msra.mxu0 0.0
    %5930 = vmatprep.subr.mxu0 0.0
    %5931 = vmatpush1.msra.mxu0 0.0
    %5932 = vmatprep.subr.mxu0 0.0
    %5933 = vmatpush1.msra.mxu0 0.0
    %5934 = vmatprep.subr.mxu0 0.0
    %5935 = vmatpush1.msra.mxu0 0.0
    %5936 = vmatprep.subr.mxu0 0.0
    %5937 = vmatpush1.msra.mxu0 0.0
    %5938 = vmatprep.subr.mxu0 0.0
    %5939 = vmatpush1.msra.mxu0 0.0
    %5940 = vmatprep.subr.mxu0 0.0
    %5941 = vmatpush1.msra.mxu0 0.0
    %5942 = vmatprep.mubr.f32.mxu0 0.0
    %5943 = vmatmul.mubr.f32.gmra.mrb[0].mxu0 %v5876
    %v5944 = vpop.f32.mrb[0].mxu0
    %v5945 = vadd.f32 %v5872, %v5944
    %v5946 = vpop.f32.mrb[0].mxu0
    %5947 = vdwg.mxu0
    %5948 = vrot.lane.b32.xlu0 %v5426, 112
    %v5949 = vpop.permute.xlu0 %5948
    %5950 = vrot.lane.b32.xlu0 %v5501, 112
    %v5951 = vpop.permute.xlu0 %5950
    %5952 = vrot.lane.b32.xlu0 %v5506, 112
    %v5953 = vpop.permute.xlu0 %5952
    %v5954 = vsel %vm332, %v5949, 0
    %v5956 = vsel %vm332, %v5951, 0
    %v5958 = vsel %vm332, %v5953, 0
    %5960 = vmatprep.subr.mxu0 0.0
    %5961 = vmatpush1.xpose.msra.mxu0 %v5956
    %5962 = vmatprep.subr.mxu0 0.0
    %5963 = vmatpush1.xpose.msra.mxu0 %v5958
    %5964 = vmatprep.subr.mxu0 0.0
    %5965 = vmatpush1.xpose.msra.mxu0 0.0
    %5966 = vmatprep.subr.mxu0 0.0
    %5967 = vmatpush1.xpose.msra.mxu0 0.0
    %5968 = vmatprep.subr.mxu0 0.0
    %5969 = vmatpush1.xpose.msra.mxu0 0.0
    %5970 = vmatprep.subr.mxu0 0.0
    %5971 = vmatpush1.xpose.msra.mxu0 0.0
    %5972 = vmatprep.subr.mxu0 0.0
    %5973 = vmatpush1.xpose.msra.mxu0 0.0
    %5974 = vmatprep.subr.mxu0 0.0
    %5975 = vmatpush1.xpose.msra.mxu0 0.0
    %5976 = vmatprep.subr.mxu0 0.0
    %5977 = vmatpush1.xpose.msra.mxu0 0.0
    %5978 = vmatprep.subr.mxu0 0.0
    %5979 = vmatpush1.xpose.msra.mxu0 0.0
    %5980 = vmatprep.subr.mxu0 0.0
    %5981 = vmatpush1.xpose.msra.mxu0 0.0
    %5982 = vmatprep.subr.mxu0 0.0
    %5983 = vmatpush1.xpose.msra.mxu0 0.0
    %5984 = vmatprep.subr.mxu0 0.0
    %5985 = vmatpush1.xpose.msra.mxu0 0.0
    %5986 = vmatprep.subr.mxu0 0.0
    %5987 = vmatpush1.xpose.msra.mxu0 0.0
    %5988 = vmatprep.subr.mxu0 0.0
    %5989 = vmatpush1.xpose.msra.mxu0 0.0
    %5990 = vmatprep.subr.mxu0 0.0
    %5991 = vmatpush1.xpose.msra.mxu0 0.0
    %5992 = vmatprep.subr.mxu0 0.0
    %5993 = vmatpush1.xpose.msra.mxu0 0.0
    %5994 = vmatprep.subr.mxu0 0.0
    %5995 = vmatpush1.xpose.msra.mxu0 0.0
    %5996 = vmatprep.subr.mxu0 0.0
    %5997 = vmatpush1.xpose.msra.mxu0 0.0
    %5998 = vmatprep.subr.mxu0 0.0
    %5999 = vmatpush1.xpose.msra.mxu0 0.0
    %6000 = vmatprep.subr.mxu0 0.0
    %6001 = vmatpush1.xpose.msra.mxu0 0.0
    %6002 = vmatprep.subr.mxu0 0.0
    %6003 = vmatpush1.xpose.msra.mxu0 0.0
    %6004 = vmatprep.subr.mxu0 0.0
    %6005 = vmatpush1.xpose.msra.mxu0 0.0
    %6006 = vmatprep.subr.mxu0 0.0
    %6007 = vmatpush1.xpose.msra.mxu0 0.0
    %6008 = vmatprep.subr.mxu0 0.0
    %6009 = vmatpush1.xpose.msra.mxu0 0.0
    %6010 = vmatprep.subr.mxu0 0.0
    %6011 = vmatpush1.xpose.msra.mxu0 0.0
    %6012 = vmatprep.subr.mxu0 0.0
    %6013 = vmatpush1.xpose.msra.mxu0 0.0
    %6014 = vmatprep.subr.mxu0 0.0
    %6015 = vmatpush1.xpose.msra.mxu0 0.0
    %6016 = vmatprep.subr.mxu0 0.0
    %6017 = vmatpush1.xpose.msra.mxu0 0.0
    %6018 = vmatprep.subr.mxu0 0.0
    %6019 = vmatpush1.xpose.msra.mxu0 0.0
    %6020 = vmatprep.subr.mxu0 0.0
    %6021 = vmatpush1.xpose.msra.mxu0 0.0
    %6022 = vmatprep.subr.mxu0 0.0
    %6023 = vmatpush1.xpose.msra.mxu0 0.0
    %6024 = vmatprep.mubr.f32.mxu0 0.0
    %6025 = vmatmul.mubr.f32.gmra.mrb[0].mxu0 %v5954
    %v6026 = vpop.f32.mrb[0].mxu0
    %v6027 = vadd.f32 0.0, %v6026
    %v6028 = vpop.f32.mrb[0].mxu0
    %6029 = vdwg.mxu0
    %v6030 = vmul.f32 %v6027, 0.17677669
    %v6031 = vadd.f32 %v6030, %v5606
    %v6032 = vsel %vm2088, %v6031, -inf
    %6033 = vmax.xlane.f32.xlu0 %v6032
    %v6034 = vpop.xlane.xlu0 %6033
    %v6035 = vsub.f32 %v6031, %v6034
    %v6036 = vmul.f32 %v6035, 1.442695
    %v6037 = vpow.pop %v6036
    %v6038 = vsel %vm2088, %v6037, 0.0
    %6039 = vadd.xlane.f32.xlu0 %v6038
    %v6040 = vpop.xlane.xlu0 %6039
    %v6041 = vrcp.pop %v6040
    %v6042 = vmul.f32 %v6037, %v6041
    %6043 = vrot.lane.b32.xlu0 %v5586, 64
    %v6044 = vpop.permute.xlu0 %6043
    %6045 = vrot.lane.b32.xlu0 %v5591, 64
    %v6046 = vpop.permute.xlu0 %6045
    %v6050 = vsel %vm2088, %v6042, 0
    %6052 = vmatprep.subr.mxu0 0.0
    %6053 = vmatpush1.msra.mxu0 %v6044
    %6054 = vmatprep.subr.mxu0 0.0
    %6055 = vmatpush1.msra.mxu0 %v6046
    %6056 = vmatprep.subr.mxu0 0.0
    %6057 = vmatpush1.msra.mxu0 0.0
    %6058 = vmatprep.subr.mxu0 0.0
    %6059 = vmatpush1.msra.mxu0 0.0
    %6060 = vmatprep.subr.mxu0 0.0
    %6061 = vmatpush1.msra.mxu0 0.0
    %6062 = vmatprep.subr.mxu0 0.0
    %6063 = vmatpush1.msra.mxu0 0.0
    %6064 = vmatprep.subr.mxu0 0.0
    %6065 = vmatpush1.msra.mxu0 0.0
    %6066 = vmatprep.subr.mxu0 0.0
    %6067 = vmatpush1.msra.mxu0 0.0
    %6068 = vmatprep.subr.mxu0 0.0
    %6069 = vmatpush1.msra.mxu0 0.0
    %6070 = vmatprep.subr.mxu0 0.0
    %6071 = vmatpush1.msra.mxu0 0.0
    %6072 = vmatprep.subr.mxu0 0.0
    %6073 = vmatpush1.msra.mxu0 0.0
    %6074 = vmatprep.subr.mxu0 0.0
    %6075 = vmatpush1.msra.mxu0 0.0
    %6076 = vmatprep.subr.mxu0 0.0
    %6077 = vmatpush1.msra.mxu0 0.0
    %6078 = vmatprep.subr.mxu0 0.0
    %6079 = vmatpush1.msra.mxu0 0.0
    %6080 = vmatprep.subr.mxu0 0.0
    %6081 = vmatpush1.msra.mxu0 0.0
    %6082 = vmatprep.subr.mxu0 0.0
    %6083 = vmatpush1.msra.mxu0 0.0
    %6084 = vmatprep.subr.mxu0 0.0
    %6085 = vmatpush1.msra.mxu0 0.0
    %6086 = vmatprep.subr.mxu0 0.0
    %6087 = vmatpush1.msra.mxu0 0.0
    %6088 = vmatprep.subr.mxu0 0.0
    %6089 = vmatpush1.msra.mxu0 0.0
    %6090 = vmatprep.subr.mxu0 0.0
    %6091 = vmatpush1.msra.mxu0 0.0
    %6092 = vmatprep.subr.mxu0 0.0
    %6093 = vmatpush1.msra.mxu0 0.0
    %6094 = vmatprep.subr.mxu0 0.0
    %6095 = vmatpush1.msra.mxu0 0.0
    %6096 = vmatprep.subr.mxu0 0.0
    %6097 = vmatpush1.msra.mxu0 0.0
    %6098 = vmatprep.subr.mxu0 0.0
    %6099 = vmatpush1.msra.mxu0 0.0
    %6100 = vmatprep.subr.mxu0 0.0
    %6101 = vmatpush1.msra.mxu0 0.0
    %6102 = vmatprep.subr.mxu0 0.0
    %6103 = vmatpush1.msra.mxu0 0.0
    %6104 = vmatprep.subr.mxu0 0.0
    %6105 = vmatpush1.msra.mxu0 0.0
    %6106 = vmatprep.subr.mxu0 0.0
    %6107 = vmatpush1.msra.mxu0 0.0
    %6108 = vmatprep.subr.mxu0 0.0
    %6109 = vmatpush1.msra.mxu0 0.0
    %6110 = vmatprep.subr.mxu0 0.0
    %6111 = vmatpush1.msra.mxu0 0.0
    %6112 = vmatprep.subr.mxu0 0.0
    %6113 = vmatpush1.msra.mxu0 0.0
    %6114 = vmatprep.subr.mxu0 0.0
    %6115 = vmatpush1.msra.mxu0 0.0
    %6116 = vmatprep.mubr.f32.mxu0 0.0
    %6117 = vmatmul.mubr.f32.gmra.mrb[0].mxu0 %v6050
    %v6118 = vpop.f32.mrb[0].mxu0
    %v6119 = vadd.f32 0.0, %v6118
    %v6120 = vpop.f32.mrb[0].mxu0
    %6121 = vdwg.mxu0
    %v6122 = vadd.f32 %v5945, %v6119
    %6123 = vrot.lane.b32.xlu0 %v5426, 104
    %v6124 = vpop.permute.xlu0 %6123
    %6125 = vrot.lane.b32.xlu0 %v5501, 104
    %v6126 = vpop.permute.xlu0 %6125
    %6127 = vrot.lane.b32.xlu0 %v5506, 104
    %v6128 = vpop.permute.xlu0 %6127
    %v6129 = vsel %vm332, %v6124, 0
    %v6131 = vsel %vm332, %v6126, 0
    %v6133 = vsel %vm332, %v6128, 0
    %6135 = vmatprep.subr.mxu0 0.0
    %6136 = vmatpush1.xpose.msra.mxu0 %v6131
    %6137 = vmatprep.subr.mxu0 0.0
    %6138 = vmatpush1.xpose.msra.mxu0 %v6133
    %6139 = vmatprep.subr.mxu0 0.0
    %6140 = vmatpush1.xpose.msra.mxu0 0.0
    %6141 = vmatprep.subr.mxu0 0.0
    %6142 = vmatpush1.xpose.msra.mxu0 0.0
    %6143 = vmatprep.subr.mxu0 0.0
    %6144 = vmatpush1.xpose.msra.mxu0 0.0
    %6145 = vmatprep.subr.mxu0 0.0
    %6146 = vmatpush1.xpose.msra.mxu0 0.0
    %6147 = vmatprep.subr.mxu0 0.0
    %6148 = vmatpush1.xpose.msra.mxu0 0.0
    %6149 = vmatprep.subr.mxu0 0.0
    %6150 = vmatpush1.xpose.msra.mxu0 0.0
    %6151 = vmatprep.subr.mxu0 0.0
    %6152 = vmatpush1.xpose.msra.mxu0 0.0
    %6153 = vmatprep.subr.mxu0 0.0
    %6154 = vmatpush1.xpose.msra.mxu0 0.0
    %6155 = vmatprep.subr.mxu0 0.0
    %6156 = vmatpush1.xpose.msra.mxu0 0.0
    %6157 = vmatprep.subr.mxu0 0.0
    %6158 = vmatpush1.xpose.msra.mxu0 0.0
    %6159 = vmatprep.subr.mxu0 0.0
    %6160 = vmatpush1.xpose.msra.mxu0 0.0
    %6161 = vmatprep.subr.mxu0 0.0
    %6162 = vmatpush1.xpose.msra.mxu0 0.0
    %6163 = vmatprep.subr.mxu0 0.0
    %6164 = vmatpush1.xpose.msra.mxu0 0.0
    %6165 = vmatprep.subr.mxu0 0.0
    %6166 = vmatpush1.xpose.msra.mxu0 0.0
    %6167 = vmatprep.subr.mxu0 0.0
    %6168 = vmatpush1.xpose.msra.mxu0 0.0
    %6169 = vmatprep.subr.mxu0 0.0
    %6170 = vmatpush1.xpose.msra.mxu0 0.0
    %6171 = vmatprep.subr.mxu0 0.0
    %6172 = vmatpush1.xpose.msra.mxu0 0.0
    %6173 = vmatprep.subr.mxu0 0.0
    %6174 = vmatpush1.xpose.msra.mxu0 0.0
    %6175 = vmatprep.subr.mxu0 0.0
    %6176 = vmatpush1.xpose.msra.mxu0 0.0
    %6177 = vmatprep.subr.mxu0 0.0
    %6178 = vmatpush1.xpose.msra.mxu0 0.0
    %6179 = vmatprep.subr.mxu0 0.0
    %6180 = vmatpush1.xpose.msra.mxu0 0.0
    %6181 = vmatprep.subr.mxu0 0.0
    %6182 = vmatpush1.xpose.msra.mxu0 0.0
    %6183 = vmatprep.subr.mxu0 0.0
    %6184 = vmatpush1.xpose.msra.mxu0 0.0
    %6185 = vmatprep.subr.mxu0 0.0
    %6186 = vmatpush1.xpose.msra.mxu0 0.0
    %6187 = vmatprep.subr.mxu0 0.0
    %6188 = vmatpush1.xpose.msra.mxu0 0.0
    %6189 = vmatprep.subr.mxu0 0.0
    %6190 = vmatpush1.xpose.msra.mxu0 0.0
    %6191 = vmatprep.subr.mxu0 0.0
    %6192 = vmatpush1.xpose.msra.mxu0 0.0
    %6193 = vmatprep.subr.mxu0 0.0
    %6194 = vmatpush1.xpose.msra.mxu0 0.0
    %6195 = vmatprep.subr.mxu0 0.0
    %6196 = vmatpush1.xpose.msra.mxu0 0.0
    %6197 = vmatprep.subr.mxu0 0.0
    %6198 = vmatpush1.xpose.msra.mxu0 0.0
    %6199 = vmatprep.mubr.f32.mxu0 0.0
    %6200 = vmatmul.mubr.f32.gmra.mrb[0].mxu0 %v6129
    %v6201 = vpop.f32.mrb[0].mxu0
    %v6202 = vadd.f32 0.0, %v6201
    %v6203 = vpop.f32.mrb[0].mxu0
    %6204 = vdwg.mxu0
    %v6205 = vmul.f32 %v6202, 0.17677669
    %v6206 = vadd.f32 %v6205, %v5606
    %v6207 = vsel %vm2088, %v6206, -inf
    %6208 = vmax.xlane.f32.xlu0 %v6207
    %v6209 = vpop.xlane.xlu0 %6208
    %v6210 = vsub.f32 %v6206, %v6209
    %v6211 = vmul.f32 %v6210, 1.442695
    %v6212 = vpow.pop %v6211
    %v6213 = vsel %vm2088, %v6212, 0.0
    %6214 = vadd.xlane.f32.xlu0 %v6213
    %v6215 = vpop.xlane.xlu0 %6214
    %v6216 = vrcp.pop %v6215
    %v6217 = vmul.f32 %v6212, %v6216
    %6218 = vrot.lane.b32.xlu0 %v5586, 32
    %v6219 = vpop.permute.xlu0 %6218
    %6220 = vrot.lane.b32.xlu0 %v5591, 32
    %v6221 = vpop.permute.xlu0 %6220
    %v6225 = vsel %vm2088, %v6217, 0
    %6227 = vmatprep.subr.mxu0 0.0
    %6228 = vmatpush1.msra.mxu0 %v6219
    %6229 = vmatprep.subr.mxu0 0.0
    %6230 = vmatpush1.msra.mxu0 %v6221
    %6231 = vmatprep.subr.mxu0 0.0
    %6232 = vmatpush1.msra.mxu0 0.0
    %6233 = vmatprep.subr.mxu0 0.0
    %6234 = vmatpush1.msra.mxu0 0.0
    %6235 = vmatprep.subr.mxu0 0.0
    %6236 = vmatpush1.msra.mxu0 0.0
    %6237 = vmatprep.subr.mxu0 0.0
    %6238 = vmatpush1.msra.mxu0 0.0
    %6239 = vmatprep.subr.mxu0 0.0
    %6240 = vmatpush1.msra.mxu0 0.0
    %6241 = vmatprep.subr.mxu0 0.0
    %6242 = vmatpush1.msra.mxu0 0.0
    %6243 = vmatprep.subr.mxu0 0.0
    %6244 = vmatpush1.msra.mxu0 0.0
    %6245 = vmatprep.subr.mxu0 0.0
    %6246 = vmatpush1.msra.mxu0 0.0
    %6247 = vmatprep.subr.mxu0 0.0
    %6248 = vmatpush1.msra.mxu0 0.0
    %6249 = vmatprep.subr.mxu0 0.0
    %6250 = vmatpush1.msra.mxu0 0.0
    %6251 = vmatprep.subr.mxu0 0.0
    %6252 = vmatpush1.msra.mxu0 0.0
    %6253 = vmatprep.subr.mxu0 0.0
    %6254 = vmatpush1.msra.mxu0 0.0
    %6255 = vmatprep.subr.mxu0 0.0
    %6256 = vmatpush1.msra.mxu0 0.0
    %6257 = vmatprep.subr.mxu0 0.0
    %6258 = vmatpush1.msra.mxu0 0.0
    %6259 = vmatprep.subr.mxu0 0.0
    %6260 = vmatpush1.msra.mxu0 0.0
    %6261 = vmatprep.subr.mxu0 0.0
    %6262 = vmatpush1.msra.mxu0 0.0
    %6263 = vmatprep.subr.mxu0 0.0
    %6264 = vmatpush1.msra.mxu0 0.0
    %6265 = vmatprep.subr.mxu0 0.0
    %6266 = vmatpush1.msra.mxu0 0.0
    %6267 = vmatprep.subr.mxu0 0.0
    %6268 = vmatpush1.msra.mxu0 0.0
    %6269 = vmatprep.subr.mxu0 0.0
    %6270 = vmatpush1.msra.mxu0 0.0
    %6271 = vmatprep.subr.mxu0 0.0
    %6272 = vmatpush1.msra.mxu0 0.0
    %6273 = vmatprep.subr.mxu0 0.0
    %6274 = vmatpush1.msra.mxu0 0.0
    %6275 = vmatprep.subr.mxu0 0.0
    %6276 = vmatpush1.msra.mxu0 0.0
    %6277 = vmatprep.subr.mxu0 0.0
    %6278 = vmatpush1.msra.mxu0 0.0
    %6279 = vmatprep.subr.mxu0 0.0
    %6280 = vmatpush1.msra.mxu0 0.0
    %6281 = vmatprep.subr.mxu0 0.0
    %6282 = vmatpush1.msra.mxu0 0.0
    %6283 = vmatprep.subr.mxu0 0.0
    %6284 = vmatpush1.msra.mxu0 0.0
    %6285 = vmatprep.subr.mxu0 0.0
    %6286 = vmatpush1.msra.mxu0 0.0
    %6287 = vmatprep.subr.mxu0 0.0
    %6288 = vmatpush1.msra.mxu0 0.0
    %6289 = vmatprep.subr.mxu0 0.0
    %6290 = vmatpush1.msra.mxu0 0.0
    %6291 = vmatprep.mubr.f32.mxu0 0.0
    %6292 = vmatmul.mubr.f32.gmra.mrb[0].mxu0 %v6225
    %v6293 = vpop.f32.mrb[0].mxu0
    %v6294 = vadd.f32 0.0, %v6293
    %v6295 = vpop.f32.mrb[0].mxu0
    %6296 = vdwg.mxu0
    %v6297 = vadd.f32 %v6122, %v6294
    %v6299 = vlaneseq
    %v6300 = vshrl.u32 %v6299, 7
    %v6301 = vsub.s32 0, %v6300
    %v6302 = vrot.slane %v5352, %v6301
    %v6304 = vadd.f32 %v6297, %v6302
    %6305 = vst.msk [vmem:[#allocation2] sm:$0xff] %vm97, %v6304
    %v6306 = vld [vmem:[%s2707] sm:$0xff]
    %vm6307 = vcmp.eq.f32.partialorder %v6306, 0.0
    %v6308 = vsel %vm6307, -1e+20, 0.0
    %v6310 = vsel %vm332, %v5431, 0
    %v6313 = vsel %vm332, %v5511, 0
    %v6316 = vsel %vm332, %v5516, 0
    %6318 = vmatprep.subr.mxu0 0.0
    %6319 = vmatpush1.xpose.msra.mxu0 %v6313
    %6320 = vmatprep.subr.mxu0 0.0
    %6321 = vmatpush1.xpose.msra.mxu0 %v6316
    %6322 = vmatprep.subr.mxu0 0.0
    %6323 = vmatpush1.xpose.msra.mxu0 0.0
    %6324 = vmatprep.subr.mxu0 0.0
    %6325 = vmatpush1.xpose.msra.mxu0 0.0
    %6326 = vmatprep.subr.mxu0 0.0
    %6327 = vmatpush1.xpose.msra.mxu0 0.0
    %6328 = vmatprep.subr.mxu0 0.0
    %6329 = vmatpush1.xpose.msra.mxu0 0.0
    %6330 = vmatprep.subr.mxu0 0.0
    %6331 = vmatpush1.xpose.msra.mxu0 0.0
    %6332 = vmatprep.subr.mxu0 0.0
    %6333 = vmatpush1.xpose.msra.mxu0 0.0
    %6334 = vmatprep.subr.mxu0 0.0
    %6335 = vmatpush1.xpose.msra.mxu0 0.0
    %6336 = vmatprep.subr.mxu0 0.0
    %6337 = vmatpush1.xpose.msra.mxu0 0.0
    %6338 = vmatprep.subr.mxu0 0.0
    %6339 = vmatpush1.xpose.msra.mxu0 0.0
    %6340 = vmatprep.subr.mxu0 0.0
    %6341 = vmatpush1.xpose.msra.mxu0 0.0
    %6342 = vmatprep.subr.mxu0 0.0
    %6343 = vmatpush1.xpose.msra.mxu0 0.0
    %6344 = vmatprep.subr.mxu0 0.0
    %6345 = vmatpush1.xpose.msra.mxu0 0.0
    %6346 = vmatprep.subr.mxu0 0.0
    %6347 = vmatpush1.xpose.msra.mxu0 0.0
    %6348 = vmatprep.subr.mxu0 0.0
    %6349 = vmatpush1.xpose.msra.mxu0 0.0
    %6350 = vmatprep.subr.mxu0 0.0
    %6351 = vmatpush1.xpose.msra.mxu0 0.0
    %6352 = vmatprep.subr.mxu0 0.0
    %6353 = vmatpush1.xpose.msra.mxu0 0.0
    %6354 = vmatprep.subr.mxu0 0.0
    %6355 = vmatpush1.xpose.msra.mxu0 0.0
    %6356 = vmatprep.subr.mxu0 0.0
    %6357 = vmatpush1.xpose.msra.mxu0 0.0
    %6358 = vmatprep.subr.mxu0 0.0
    %6359 = vmatpush1.xpose.msra.mxu0 0.0
    %6360 = vmatprep.subr.mxu0 0.0
    %6361 = vmatpush1.xpose.msra.mxu0 0.0
    %6362 = vmatprep.subr.mxu0 0.0
    %6363 = vmatpush1.xpose.msra.mxu0 0.0
    %6364 = vmatprep.subr.mxu0 0.0
    %6365 = vmatpush1.xpose.msra.mxu0 0.0
    %6366 = vmatprep.subr.mxu0 0.0
    %6367 = vmatpush1.xpose.msra.mxu0 0.0
    %6368 = vmatprep.subr.mxu0 0.0
    %6369 = vmatpush1.xpose.msra.mxu0 0.0
    %6370 = vmatprep.subr.mxu0 0.0
    %6371 = vmatpush1.xpose.msra.mxu0 0.0
    %6372 = vmatprep.subr.mxu0 0.0
    %6373 = vmatpush1.xpose.msra.mxu0 0.0
    %6374 = vmatprep.subr.mxu0 0.0
    %6375 = vmatpush1.xpose.msra.mxu0 0.0
    %6376 = vmatprep.subr.mxu0 0.0
    %6377 = vmatpush1.xpose.msra.mxu0 0.0
    %6378 = vmatprep.subr.mxu0 0.0
    %6379 = vmatpush1.xpose.msra.mxu0 0.0
    %6380 = vmatprep.subr.mxu0 0.0
    %6381 = vmatpush1.xpose.msra.mxu0 0.0
    %6382 = vmatprep.mubr.f32.mxu0 0.0
    %6383 = vmatmul.mubr.f32.gmra.mrb[0].mxu0 %v6310
    %v6384 = vpop.f32.mrb[0].mxu0
    %v6385 = vadd.f32 0.0, %v6384
    %v6386 = vpop.f32.mrb[0].mxu0
    %6387 = vdwg.mxu0
    %v6388 = vmul.f32 %v6385, 0.17677669
    %v6389 = vadd.f32 %v6388, %v6308
    %v6390 = vsel %vm2088, %v6389, -inf
    %6391 = vmax.xlane.f32.xlu0 %v6390
    %v6392 = vpop.xlane.xlu0 %6391
    %v6393 = vsub.f32 %v6389, %v6392
    %v6394 = vmul.f32 %v6393, 1.442695
    %v6395 = vpow.pop %v6394
    %v6396 = vsel %vm2088, %v6395, 0.0
    %6397 = vadd.xlane.f32.xlu0 %v6396
    %v6398 = vpop.xlane.xlu0 %6397
    %v6399 = vrcp.pop %v6398
    %v6400 = vmul.f32 %v6395, %v6399
    %6401 = vrot.lane.b32.xlu0 %v5431, 120
    %v6402 = vpop.permute.xlu0 %6401
    %6403 = vrot.lane.b32.xlu0 %v5511, 120
    %v6404 = vpop.permute.xlu0 %6403
    %6405 = vrot.lane.b32.xlu0 %v5516, 120
    %v6406 = vpop.permute.xlu0 %6405
    %v6407 = vsel %vm332, %v6402, 0
    %v6409 = vsel %vm332, %v6404, 0
    %v6411 = vsel %vm332, %v6406, 0
    %6413 = vmatprep.subr.mxu0 0.0
    %6414 = vmatpush1.xpose.msra.mxu0 %v6409
    %6415 = vmatprep.subr.mxu0 0.0
    %6416 = vmatpush1.xpose.msra.mxu0 %v6411
    %6417 = vmatprep.subr.mxu0 0.0
    %6418 = vmatpush1.xpose.msra.mxu0 0.0
    %6419 = vmatprep.subr.mxu0 0.0
    %6420 = vmatpush1.xpose.msra.mxu0 0.0
    %6421 = vmatprep.subr.mxu0 0.0
    %6422 = vmatpush1.xpose.msra.mxu0 0.0
    %6423 = vmatprep.subr.mxu0 0.0
    %6424 = vmatpush1.xpose.msra.mxu0 0.0
    %6425 = vmatprep.subr.mxu0 0.0
    %6426 = vmatpush1.xpose.msra.mxu0 0.0
    %6427 = vmatprep.subr.mxu0 0.0
    %6428 = vmatpush1.xpose.msra.mxu0 0.0
    %6429 = vmatprep.subr.mxu0 0.0
    %6430 = vmatpush1.xpose.msra.mxu0 0.0
    %6431 = vmatprep.subr.mxu0 0.0
    %6432 = vmatpush1.xpose.msra.mxu0 0.0
    %6433 = vmatprep.subr.mxu0 0.0
    %6434 = vmatpush1.xpose.msra.mxu0 0.0
    %6435 = vmatprep.subr.mxu0 0.0
    %6436 = vmatpush1.xpose.msra.mxu0 0.0
    %6437 = vmatprep.subr.mxu0 0.0
    %6438 = vmatpush1.xpose.msra.mxu0 0.0
    %6439 = vmatprep.subr.mxu0 0.0
    %6440 = vmatpush1.xpose.msra.mxu0 0.0
    %6441 = vmatprep.subr.mxu0 0.0
    %6442 = vmatpush1.xpose.msra.mxu0 0.0
    %6443 = vmatprep.subr.mxu0 0.0
    %6444 = vmatpush1.xpose.msra.mxu0 0.0
    %6445 = vmatprep.subr.mxu0 0.0
    %6446 = vmatpush1.xpose.msra.mxu0 0.0
    %6447 = vmatprep.subr.mxu0 0.0
    %6448 = vmatpush1.xpose.msra.mxu0 0.0
    %6449 = vmatprep.subr.mxu0 0.0
    %6450 = vmatpush1.xpose.msra.mxu0 0.0
    %6451 = vmatprep.subr.mxu0 0.0
    %6452 = vmatpush1.xpose.msra.mxu0 0.0
    %6453 = vmatprep.subr.mxu0 0.0
    %6454 = vmatpush1.xpose.msra.mxu0 0.0
    %6455 = vmatprep.subr.mxu0 0.0
    %6456 = vmatpush1.xpose.msra.mxu0 0.0
    %6457 = vmatprep.subr.mxu0 0.0
    %6458 = vmatpush1.xpose.msra.mxu0 0.0
    %6459 = vmatprep.subr.mxu0 0.0
    %6460 = vmatpush1.xpose.msra.mxu0 0.0
    %6461 = vmatprep.subr.mxu0 0.0
    %6462 = vmatpush1.xpose.msra.mxu0 0.0
    %6463 = vmatprep.subr.mxu0 0.0
    %6464 = vmatpush1.xpose.msra.mxu0 0.0
    %6465 = vmatprep.subr.mxu0 0.0
    %6466 = vmatpush1.xpose.msra.mxu0 0.0
    %6467 = vmatprep.subr.mxu0 0.0
    %6468 = vmatpush1.xpose.msra.mxu0 0.0
    %6469 = vmatprep.subr.mxu0 0.0
    %6470 = vmatpush1.xpose.msra.mxu0 0.0
    %6471 = vmatprep.subr.mxu0 0.0
    %6472 = vmatpush1.xpose.msra.mxu0 0.0
    %6473 = vmatprep.subr.mxu0 0.0
    %6474 = vmatpush1.xpose.msra.mxu0 0.0
    %6475 = vmatprep.subr.mxu0 0.0
    %6476 = vmatpush1.xpose.msra.mxu0 0.0
    %6477 = vmatprep.mubr.f32.mxu0 0.0
    %6478 = vmatmul.mubr.f32.gmra.mrb[0].mxu0 %v6407
    %v6479 = vpop.f32.mrb[0].mxu0
    %v6480 = vadd.f32 0.0, %v6479
    %v6481 = vpop.f32.mrb[0].mxu0
    %6482 = vdwg.mxu0
    %v6483 = vmul.f32 %v6480, 0.17677669
    %v6484 = vadd.f32 %v6483, %v6308
    %v6485 = vsel %vm2088, %v6484, -inf
    %6486 = vmax.xlane.f32.xlu0 %v6485
    %v6487 = vpop.xlane.xlu0 %6486
    %v6488 = vsub.f32 %v6484, %v6487
    %v6489 = vmul.f32 %v6488, 1.442695
    %v6490 = vpow.pop %v6489
    %v6491 = vsel %vm2088, %v6490, 0.0
    %6492 = vadd.xlane.f32.xlu0 %v6491
    %v6493 = vpop.xlane.xlu0 %6492
    %v6494 = vrcp.pop %v6493
    %v6495 = vmul.f32 %v6490, %v6494
    %6498 = vrot.lane.b32.xlu0 %v5596, 96
    %v6499 = vpop.permute.xlu0 %6498
    %6500 = vrot.lane.b32.xlu0 %v5601, 96
    %v6501 = vpop.permute.xlu0 %6500
    %v6505 = vsel %vm2088, %v6495, 0
    %6507 = vmatprep.subr.mxu0 0.0
    %6508 = vmatpush1.msra.mxu0 %v6499
    %6509 = vmatprep.subr.mxu0 0.0
    %6510 = vmatpush1.msra.mxu0 %v6501
    %6511 = vmatprep.subr.mxu0 0.0
    %6512 = vmatpush1.msra.mxu0 0.0
    %6513 = vmatprep.subr.mxu0 0.0
    %6514 = vmatpush1.msra.mxu0 0.0
    %6515 = vmatprep.subr.mxu0 0.0
    %6516 = vmatpush1.msra.mxu0 0.0
    %6517 = vmatprep.subr.mxu0 0.0
    %6518 = vmatpush1.msra.mxu0 0.0
    %6519 = vmatprep.subr.mxu0 0.0
    %6520 = vmatpush1.msra.mxu0 0.0
    %6521 = vmatprep.subr.mxu0 0.0
    %6522 = vmatpush1.msra.mxu0 0.0
    %6523 = vmatprep.subr.mxu0 0.0
    %6524 = vmatpush1.msra.mxu0 0.0
    %6525 = vmatprep.subr.mxu0 0.0
    %6526 = vmatpush1.msra.mxu0 0.0
    %6527 = vmatprep.subr.mxu0 0.0
    %6528 = vmatpush1.msra.mxu0 0.0
    %6529 = vmatprep.subr.mxu0 0.0
    %6530 = vmatpush1.msra.mxu0 0.0
    %6531 = vmatprep.subr.mxu0 0.0
    %6532 = vmatpush1.msra.mxu0 0.0
    %6533 = vmatprep.subr.mxu0 0.0
    %6534 = vmatpush1.msra.mxu0 0.0
    %6535 = vmatprep.subr.mxu0 0.0
    %6536 = vmatpush1.msra.mxu0 0.0
    %6537 = vmatprep.subr.mxu0 0.0
    %6538 = vmatpush1.msra.mxu0 0.0
    %6539 = vmatprep.subr.mxu0 0.0
    %6540 = vmatpush1.msra.mxu0 0.0
    %6541 = vmatprep.subr.mxu0 0.0
    %6542 = vmatpush1.msra.mxu0 0.0
    %6543 = vmatprep.subr.mxu0 0.0
    %6544 = vmatpush1.msra.mxu0 0.0
    %6545 = vmatprep.subr.mxu0 0.0
    %6546 = vmatpush1.msra.mxu0 0.0
    %6547 = vmatprep.subr.mxu0 0.0
    %6548 = vmatpush1.msra.mxu0 0.0
    %6549 = vmatprep.subr.mxu0 0.0
    %6550 = vmatpush1.msra.mxu0 0.0
    %6551 = vmatprep.subr.mxu0 0.0
    %6552 = vmatpush1.msra.mxu0 0.0
    %6553 = vmatprep.subr.mxu0 0.0
    %6554 = vmatpush1.msra.mxu0 0.0
    %6555 = vmatprep.subr.mxu0 0.0
    %6556 = vmatpush1.msra.mxu0 0.0
    %6557 = vmatprep.subr.mxu0 0.0
    %6558 = vmatpush1.msra.mxu0 0.0
    %6559 = vmatprep.subr.mxu0 0.0
    %6560 = vmatpush1.msra.mxu0 0.0
    %6561 = vmatprep.subr.mxu0 0.0
    %6562 = vmatpush1.msra.mxu0 0.0
    %6563 = vmatprep.subr.mxu0 0.0
    %6564 = vmatpush1.msra.mxu0 0.0
    %6565 = vmatprep.subr.mxu0 0.0
    %6566 = vmatpush1.msra.mxu0 0.0
    %6567 = vmatprep.subr.mxu0 0.0
    %6568 = vmatpush1.msra.mxu0 0.0
    %6569 = vmatprep.subr.mxu0 0.0
    %6570 = vmatpush1.msra.mxu0 0.0
    %6571 = vmatprep.mubr.f32.mxu0 0.0
    %6572 = vmatmul.mubr.f32.gmra.mrb[0].mxu0 %v6505
    %v6573 = vpop.f32.mrb[0].mxu0
    %v6574 = vadd.f32 0.0, %v6573
    %v6575 = vpop.f32.mrb[0].mxu0
    %6576 = vdwg.mxu0
    %v6578 = vsel %vm2088, %v6400, 0
    %6580 = vmatprep.subr.mxu0 0.0
    %6581 = vmatpush1.msra.mxu0 %v5596
    %6582 = vmatprep.subr.mxu0 0.0
    %6583 = vmatpush1.msra.mxu0 %v5601
    %6584 = vmatprep.subr.mxu0 0.0
    %6585 = vmatpush1.msra.mxu0 0.0
    %6586 = vmatprep.subr.mxu0 0.0
    %6587 = vmatpush1.msra.mxu0 0.0
    %6588 = vmatprep.subr.mxu0 0.0
    %6589 = vmatpush1.msra.mxu0 0.0
    %6590 = vmatprep.subr.mxu0 0.0
    %6591 = vmatpush1.msra.mxu0 0.0
    %6592 = vmatprep.subr.mxu0 0.0
    %6593 = vmatpush1.msra.mxu0 0.0
    %6594 = vmatprep.subr.mxu0 0.0
    %6595 = vmatpush1.msra.mxu0 0.0
    %6596 = vmatprep.subr.mxu0 0.0
    %6597 = vmatpush1.msra.mxu0 0.0
    %6598 = vmatprep.subr.mxu0 0.0
    %6599 = vmatpush1.msra.mxu0 0.0
    %6600 = vmatprep.subr.mxu0 0.0
    %6601 = vmatpush1.msra.mxu0 0.0
    %6602 = vmatprep.subr.mxu0 0.0
    %6603 = vmatpush1.msra.mxu0 0.0
    %6604 = vmatprep.subr.mxu0 0.0
    %6605 = vmatpush1.msra.mxu0 0.0
    %6606 = vmatprep.subr.mxu0 0.0
    %6607 = vmatpush1.msra.mxu0 0.0
    %6608 = vmatprep.subr.mxu0 0.0
    %6609 = vmatpush1.msra.mxu0 0.0
    %6610 = vmatprep.subr.mxu0 0.0
    %6611 = vmatpush1.msra.mxu0 0.0
    %6612 = vmatprep.subr.mxu0 0.0
    %6613 = vmatpush1.msra.mxu0 0.0
    %6614 = vmatprep.subr.mxu0 0.0
    %6615 = vmatpush1.msra.mxu0 0.0
    %6616 = vmatprep.subr.mxu0 0.0
    %6617 = vmatpush1.msra.mxu0 0.0
    %6618 = vmatprep.subr.mxu0 0.0
    %6619 = vmatpush1.msra.mxu0 0.0
    %6620 = vmatprep.subr.mxu0 0.0
    %6621 = vmatpush1.msra.mxu0 0.0
    %6622 = vmatprep.subr.mxu0 0.0
    %6623 = vmatpush1.msra.mxu0 0.0
    %6624 = vmatprep.subr.mxu0 0.0
    %6625 = vmatpush1.msra.mxu0 0.0
    %6626 = vmatprep.subr.mxu0 0.0
    %6627 = vmatpush1.msra.mxu0 0.0
    %6628 = vmatprep.subr.mxu0 0.0
    %6629 = vmatpush1.msra.mxu0 0.0
    %6630 = vmatprep.subr.mxu0 0.0
    %6631 = vmatpush1.msra.mxu0 0.0
    %6632 = vmatprep.subr.mxu0 0.0
    %6633 = vmatpush1.msra.mxu0 0.0
    %6634 = vmatprep.subr.mxu0 0.0
    %6635 = vmatpush1.msra.mxu0 0.0
    %6636 = vmatprep.subr.mxu0 0.0
    %6637 = vmatpush1.msra.mxu0 0.0
    %6638 = vmatprep.subr.mxu0 0.0
    %6639 = vmatpush1.msra.mxu0 0.0
    %6640 = vmatprep.subr.mxu0 0.0
    %6641 = vmatpush1.msra.mxu0 0.0
    %6642 = vmatprep.subr.mxu0 0.0
    %6643 = vmatpush1.msra.mxu0 0.0
    %6644 = vmatprep.mubr.f32.mxu0 0.0
    %6645 = vmatmul.mubr.f32.gmra.mrb[0].mxu0 %v6578
    %v6646 = vpop.f32.mrb[0].mxu0
    %v6647 = vadd.f32 %v6574, %v6646
    %v6648 = vpop.f32.mrb[0].mxu0
    %6649 = vdwg.mxu0
    %6650 = vrot.lane.b32.xlu0 %v5431, 112
    %v6651 = vpop.permute.xlu0 %6650
    %6652 = vrot.lane.b32.xlu0 %v5511, 112
    %v6653 = vpop.permute.xlu0 %6652
    %6654 = vrot.lane.b32.xlu0 %v5516, 112
    %v6655 = vpop.permute.xlu0 %6654
    %v6656 = vsel %vm332, %v6651, 0
    %v6658 = vsel %vm332, %v6653, 0
    %v6660 = vsel %vm332, %v6655, 0
    %6662 = vmatprep.subr.mxu0 0.0
    %6663 = vmatpush1.xpose.msra.mxu0 %v6658
    %6664 = vmatprep.subr.mxu0 0.0
    %6665 = vmatpush1.xpose.msra.mxu0 %v6660
    %6666 = vmatprep.subr.mxu0 0.0
    %6667 = vmatpush1.xpose.msra.mxu0 0.0
    %6668 = vmatprep.subr.mxu0 0.0
    %6669 = vmatpush1.xpose.msra.mxu0 0.0
    %6670 = vmatprep.subr.mxu0 0.0
    %6671 = vmatpush1.xpose.msra.mxu0 0.0
    %6672 = vmatprep.subr.mxu0 0.0
    %6673 = vmatpush1.xpose.msra.mxu0 0.0
    %6674 = vmatprep.subr.mxu0 0.0
    %6675 = vmatpush1.xpose.msra.mxu0 0.0
    %6676 = vmatprep.subr.mxu0 0.0
    %6677 = vmatpush1.xpose.msra.mxu0 0.0
    %6678 = vmatprep.subr.mxu0 0.0
    %6679 = vmatpush1.xpose.msra.mxu0 0.0
    %6680 = vmatprep.subr.mxu0 0.0
    %6681 = vmatpush1.xpose.msra.mxu0 0.0
    %6682 = vmatprep.subr.mxu0 0.0
    %6683 = vmatpush1.xpose.msra.mxu0 0.0
    %6684 = vmatprep.subr.mxu0 0.0
    %6685 = vmatpush1.xpose.msra.mxu0 0.0
    %6686 = vmatprep.subr.mxu0 0.0
    %6687 = vmatpush1.xpose.msra.mxu0 0.0
    %6688 = vmatprep.subr.mxu0 0.0
    %6689 = vmatpush1.xpose.msra.mxu0 0.0
    %6690 = vmatprep.subr.mxu0 0.0
    %6691 = vmatpush1.xpose.msra.mxu0 0.0
    %6692 = vmatprep.subr.mxu0 0.0
    %6693 = vmatpush1.xpose.msra.mxu0 0.0
    %6694 = vmatprep.subr.mxu0 0.0
    %6695 = vmatpush1.xpose.msra.mxu0 0.0
    %6696 = vmatprep.subr.mxu0 0.0
    %6697 = vmatpush1.xpose.msra.mxu0 0.0
    %6698 = vmatprep.subr.mxu0 0.0
    %6699 = vmatpush1.xpose.msra.mxu0 0.0
    %6700 = vmatprep.subr.mxu0 0.0
    %6701 = vmatpush1.xpose.msra.mxu0 0.0
    %6702 = vmatprep.subr.mxu0 0.0
    %6703 = vmatpush1.xpose.msra.mxu0 0.0
    %6704 = vmatprep.subr.mxu0 0.0
    %6705 = vmatpush1.xpose.msra.mxu0 0.0
    %6706 = vmatprep.subr.mxu0 0.0
    %6707 = vmatpush1.xpose.msra.mxu0 0.0
    %6708 = vmatprep.subr.mxu0 0.0
    %6709 = vmatpush1.xpose.msra.mxu0 0.0
    %6710 = vmatprep.subr.mxu0 0.0
    %6711 = vmatpush1.xpose.msra.mxu0 0.0
    %6712 = vmatprep.subr.mxu0 0.0
    %6713 = vmatpush1.xpose.msra.mxu0 0.0
    %6714 = vmatprep.subr.mxu0 0.0
    %6715 = vmatpush1.xpose.msra.mxu0 0.0
    %6716 = vmatprep.subr.mxu0 0.0
    %6717 = vmatpush1.xpose.msra.mxu0 0.0
    %6718 = vmatprep.subr.mxu0 0.0
    %6719 = vmatpush1.xpose.msra.mxu0 0.0
    %6720 = vmatprep.subr.mxu0 0.0
    %6721 = vmatpush1.xpose.msra.mxu0 0.0
    %6722 = vmatprep.subr.mxu0 0.0
    %6723 = vmatpush1.xpose.msra.mxu0 0.0
    %6724 = vmatprep.subr.mxu0 0.0
    %6725 = vmatpush1.xpose.msra.mxu0 0.0
    %6726 = vmatprep.mubr.f32.mxu0 0.0
    %6727 = vmatmul.mubr.f32.gmra.mrb[0].mxu0 %v6656
    %v6728 = vpop.f32.mrb[0].mxu0
    %v6729 = vadd.f32 0.0, %v6728
    %v6730 = vpop.f32.mrb[0].mxu0
    %6731 = vdwg.mxu0
    %v6732 = vmul.f32 %v6729, 0.17677669
    %v6733 = vadd.f32 %v6732, %v6308
    %v6734 = vsel %vm2088, %v6733, -inf
    %6735 = vmax.xlane.f32.xlu0 %v6734
    %v6736 = vpop.xlane.xlu0 %6735
    %v6737 = vsub.f32 %v6733, %v6736
    %v6738 = vmul.f32 %v6737, 1.442695
    %v6739 = vpow.pop %v6738
    %v6740 = vsel %vm2088, %v6739, 0.0
    %6741 = vadd.xlane.f32.xlu0 %v6740
    %v6742 = vpop.xlane.xlu0 %6741
    %v6743 = vrcp.pop %v6742
    %v6744 = vmul.f32 %v6739, %v6743
    %6745 = vrot.lane.b32.xlu0 %v5596, 64
    %v6746 = vpop.permute.xlu0 %6745
    %6747 = vrot.lane.b32.xlu0 %v5601, 64
    %v6748 = vpop.permute.xlu0 %6747
    %v6752 = vsel %vm2088, %v6744, 0
    %6754 = vmatprep.subr.mxu0 0.0
    %6755 = vmatpush1.msra.mxu0 %v6746
    %6756 = vmatprep.subr.mxu0 0.0
    %6757 = vmatpush1.msra.mxu0 %v6748
    %6758 = vmatprep.subr.mxu0 0.0
    %6759 = vmatpush1.msra.mxu0 0.0
    %6760 = vmatprep.subr.mxu0 0.0
    %6761 = vmatpush1.msra.mxu0 0.0
    %6762 = vmatprep.subr.mxu0 0.0
    %6763 = vmatpush1.msra.mxu0 0.0
    %6764 = vmatprep.subr.mxu0 0.0
    %6765 = vmatpush1.msra.mxu0 0.0
    %6766 = vmatprep.subr.mxu0 0.0
    %6767 = vmatpush1.msra.mxu0 0.0
    %6768 = vmatprep.subr.mxu0 0.0
    %6769 = vmatpush1.msra.mxu0 0.0
    %6770 = vmatprep.subr.mxu0 0.0
    %6771 = vmatpush1.msra.mxu0 0.0
    %6772 = vmatprep.subr.mxu0 0.0
    %6773 = vmatpush1.msra.mxu0 0.0
    %6774 = vmatprep.subr.mxu0 0.0
    %6775 = vmatpush1.msra.mxu0 0.0
    %6776 = vmatprep.subr.mxu0 0.0
    %6777 = vmatpush1.msra.mxu0 0.0
    %6778 = vmatprep.subr.mxu0 0.0
    %6779 = vmatpush1.msra.mxu0 0.0
    %6780 = vmatprep.subr.mxu0 0.0
    %6781 = vmatpush1.msra.mxu0 0.0
    %6782 = vmatprep.subr.mxu0 0.0
    %6783 = vmatpush1.msra.mxu0 0.0
    %6784 = vmatprep.subr.mxu0 0.0
    %6785 = vmatpush1.msra.mxu0 0.0
    %6786 = vmatprep.subr.mxu0 0.0
    %6787 = vmatpush1.msra.mxu0 0.0
    %6788 = vmatprep.subr.mxu0 0.0
    %6789 = vmatpush1.msra.mxu0 0.0
    %6790 = vmatprep.subr.mxu0 0.0
    %6791 = vmatpush1.msra.mxu0 0.0
    %6792 = vmatprep.subr.mxu0 0.0
    %6793 = vmatpush1.msra.mxu0 0.0
    %6794 = vmatprep.subr.mxu0 0.0
    %6795 = vmatpush1.msra.mxu0 0.0
    %6796 = vmatprep.subr.mxu0 0.0
    %6797 = vmatpush1.msra.mxu0 0.0
    %6798 = vmatprep.subr.mxu0 0.0
    %6799 = vmatpush1.msra.mxu0 0.0
    %6800 = vmatprep.subr.mxu0 0.0
    %6801 = vmatpush1.msra.mxu0 0.0
    %6802 = vmatprep.subr.mxu0 0.0
    %6803 = vmatpush1.msra.mxu0 0.0
    %6804 = vmatprep.subr.mxu0 0.0
    %6805 = vmatpush1.msra.mxu0 0.0
    %6806 = vmatprep.subr.mxu0 0.0
    %6807 = vmatpush1.msra.mxu0 0.0
    %6808 = vmatprep.subr.mxu0 0.0
    %6809 = vmatpush1.msra.mxu0 0.0
    %6810 = vmatprep.subr.mxu0 0.0
    %6811 = vmatpush1.msra.mxu0 0.0
    %6812 = vmatprep.subr.mxu0 0.0
    %6813 = vmatpush1.msra.mxu0 0.0
    %6814 = vmatprep.subr.mxu0 0.0
    %6815 = vmatpush1.msra.mxu0 0.0
    %6816 = vmatprep.subr.mxu0 0.0
    %6817 = vmatpush1.msra.mxu0 0.0
    %6818 = vmatprep.mubr.f32.mxu0 0.0
    %6819 = vmatmul.mubr.f32.gmra.mrb[0].mxu0 %v6752
    %v6820 = vpop.f32.mrb[0].mxu0
    %v6821 = vadd.f32 0.0, %v6820
    %v6822 = vpop.f32.mrb[0].mxu0
    %6823 = vdwg.mxu0
    %v6824 = vadd.f32 %v6647, %v6821
    %6825 = vrot.lane.b32.xlu0 %v5431, 104
    %v6826 = vpop.permute.xlu0 %6825
    %6827 = vrot.lane.b32.xlu0 %v5511, 104
    %v6828 = vpop.permute.xlu0 %6827
    %6829 = vrot.lane.b32.xlu0 %v5516, 104
    %v6830 = vpop.permute.xlu0 %6829
    %v6831 = vsel %vm332, %v6826, 0
    %v6833 = vsel %vm332, %v6828, 0
    %v6835 = vsel %vm332, %v6830, 0
    %6837 = vmatprep.subr.mxu0 0.0
    %6838 = vmatpush1.xpose.msra.mxu0 %v6833
    %6839 = vmatprep.subr.mxu0 0.0
    %6840 = vmatpush1.xpose.msra.mxu0 %v6835
    %6841 = vmatprep.subr.mxu0 0.0
    %6842 = vmatpush1.xpose.msra.mxu0 0.0
    %6843 = vmatprep.subr.mxu0 0.0
    %6844 = vmatpush1.xpose.msra.mxu0 0.0
    %6845 = vmatprep.subr.mxu0 0.0
    %6846 = vmatpush1.xpose.msra.mxu0 0.0
    %6847 = vmatprep.subr.mxu0 0.0
    %6848 = vmatpush1.xpose.msra.mxu0 0.0
    %6849 = vmatprep.subr.mxu0 0.0
    %6850 = vmatpush1.xpose.msra.mxu0 0.0
    %6851 = vmatprep.subr.mxu0 0.0
    %6852 = vmatpush1.xpose.msra.mxu0 0.0
    %6853 = vmatprep.subr.mxu0 0.0
    %6854 = vmatpush1.xpose.msra.mxu0 0.0
    %6855 = vmatprep.subr.mxu0 0.0
    %6856 = vmatpush1.xpose.msra.mxu0 0.0
    %6857 = vmatprep.subr.mxu0 0.0
    %6858 = vmatpush1.xpose.msra.mxu0 0.0
    %6859 = vmatprep.subr.mxu0 0.0
    %6860 = vmatpush1.xpose.msra.mxu0 0.0
    %6861 = vmatprep.subr.mxu0 0.0
    %6862 = vmatpush1.xpose.msra.mxu0 0.0
    %6863 = vmatprep.subr.mxu0 0.0
    %6864 = vmatpush1.xpose.msra.mxu0 0.0
    %6865 = vmatprep.subr.mxu0 0.0
    %6866 = vmatpush1.xpose.msra.mxu0 0.0
    %6867 = vmatprep.subr.mxu0 0.0
    %6868 = vmatpush1.xpose.msra.mxu0 0.0
    %6869 = vmatprep.subr.mxu0 0.0
    %6870 = vmatpush1.xpose.msra.mxu0 0.0
    %6871 = vmatprep.subr.mxu0 0.0
    %6872 = vmatpush1.xpose.msra.mxu0 0.0
    %6873 = vmatprep.subr.mxu0 0.0
    %6874 = vmatpush1.xpose.msra.mxu0 0.0
    %6875 = vmatprep.subr.mxu0 0.0
    %6876 = vmatpush1.xpose.msra.mxu0 0.0
    %6877 = vmatprep.subr.mxu0 0.0
    %6878 = vmatpush1.xpose.msra.mxu0 0.0
    %6879 = vmatprep.subr.mxu0 0.0
    %6880 = vmatpush1.xpose.msra.mxu0 0.0
    %6881 = vmatprep.subr.mxu0 0.0
    %6882 = vmatpush1.xpose.msra.mxu0 0.0
    %6883 = vmatprep.subr.mxu0 0.0
    %6884 = vmatpush1.xpose.msra.mxu0 0.0
    %6885 = vmatprep.subr.mxu0 0.0
    %6886 = vmatpush1.xpose.msra.mxu0 0.0
    %6887 = vmatprep.subr.mxu0 0.0
    %6888 = vmatpush1.xpose.msra.mxu0 0.0
    %6889 = vmatprep.subr.mxu0 0.0
    %6890 = vmatpush1.xpose.msra.mxu0 0.0
    %6891 = vmatprep.subr.mxu0 0.0
    %6892 = vmatpush1.xpose.msra.mxu0 0.0
    %6893 = vmatprep.subr.mxu0 0.0
    %6894 = vmatpush1.xpose.msra.mxu0 0.0
    %6895 = vmatprep.subr.mxu0 0.0
    %6896 = vmatpush1.xpose.msra.mxu0 0.0
    %6897 = vmatprep.subr.mxu0 0.0
    %6898 = vmatpush1.xpose.msra.mxu0 0.0
    %6899 = vmatprep.subr.mxu0 0.0
    %6900 = vmatpush1.xpose.msra.mxu0 0.0
    %6901 = vmatprep.mubr.f32.mxu0 0.0
    %6902 = vmatmul.mubr.f32.gmra.mrb[0].mxu0 %v6831
    %v6903 = vpop.f32.mrb[0].mxu0
    %v6904 = vadd.f32 0.0, %v6903
    %v6905 = vpop.f32.mrb[0].mxu0
    %6906 = vdwg.mxu0
    %v6907 = vmul.f32 %v6904, 0.17677669
    %v6908 = vadd.f32 %v6907, %v6308
    %v6909 = vsel %vm2088, %v6908, -inf
    %6910 = vmax.xlane.f32.xlu0 %v6909
    %v6911 = vpop.xlane.xlu0 %6910
    %v6912 = vsub.f32 %v6908, %v6911
    %v6913 = vmul.f32 %v6912, 1.442695
    %v6914 = vpow.pop %v6913
    %v6915 = vsel %vm2088, %v6914, 0.0
    %6916 = vadd.xlane.f32.xlu0 %v6915
    %v6917 = vpop.xlane.xlu0 %6916
    %v6918 = vrcp.pop %v6917
    %v6919 = vmul.f32 %v6914, %v6918
    %6920 = vrot.lane.b32.xlu0 %v5596, 32
    %v6921 = vpop.permute.xlu0 %6920
    %6922 = vrot.lane.b32.xlu0 %v5601, 32
    %v6923 = vpop.permute.xlu0 %6922
    %v6927 = vsel %vm2088, %v6919, 0
    %6929 = vmatprep.subr.mxu0 0.0
    %6930 = vmatpush1.msra.mxu0 %v6921
    %6931 = vmatprep.subr.mxu0 0.0
    %6932 = vmatpush1.msra.mxu0 %v6923
    %6933 = vmatprep.subr.mxu0 0.0
    %6934 = vmatpush1.msra.mxu0 0.0
    %6935 = vmatprep.subr.mxu0 0.0
    %6936 = vmatpush1.msra.mxu0 0.0
    %6937 = vmatprep.subr.mxu0 0.0
    %6938 = vmatpush1.msra.mxu0 0.0
    %6939 = vmatprep.subr.mxu0 0.0
    %6940 = vmatpush1.msra.mxu0 0.0
    %6941 = vmatprep.subr.mxu0 0.0
    %6942 = vmatpush1.msra.mxu0 0.0
    %6943 = vmatprep.subr.mxu0 0.0
    %6944 = vmatpush1.msra.mxu0 0.0
    %6945 = vmatprep.subr.mxu0 0.0
    %6946 = vmatpush1.msra.mxu0 0.0
    %6947 = vmatprep.subr.mxu0 0.0
    %6948 = vmatpush1.msra.mxu0 0.0
    %6949 = vmatprep.subr.mxu0 0.0
    %6950 = vmatpush1.msra.mxu0 0.0
    %6951 = vmatprep.subr.mxu0 0.0
    %6952 = vmatpush1.msra.mxu0 0.0
    %6953 = vmatprep.subr.mxu0 0.0
    %6954 = vmatpush1.msra.mxu0 0.0
    %6955 = vmatprep.subr.mxu0 0.0
    %6956 = vmatpush1.msra.mxu0 0.0
    %6957 = vmatprep.subr.mxu0 0.0
    %6958 = vmatpush1.msra.mxu0 0.0
    %6959 = vmatprep.subr.mxu0 0.0
    %6960 = vmatpush1.msra.mxu0 0.0
    %6961 = vmatprep.subr.mxu0 0.0
    %6962 = vmatpush1.msra.mxu0 0.0
    %6963 = vmatprep.subr.mxu0 0.0
    %6964 = vmatpush1.msra.mxu0 0.0
    %6965 = vmatprep.subr.mxu0 0.0
    %6966 = vmatpush1.msra.mxu0 0.0
    %6967 = vmatprep.subr.mxu0 0.0
    %6968 = vmatpush1.msra.mxu0 0.0
    %6969 = vmatprep.subr.mxu0 0.0
    %6970 = vmatpush1.msra.mxu0 0.0
    %6971 = vmatprep.subr.mxu0 0.0
    %6972 = vmatpush1.msra.mxu0 0.0
    %6973 = vmatprep.subr.mxu0 0.0
    %6974 = vmatpush1.msra.mxu0 0.0
    %6975 = vmatprep.subr.mxu0 0.0
    %6976 = vmatpush1.msra.mxu0 0.0
    %6977 = vmatprep.subr.mxu0 0.0
    %6978 = vmatpush1.msra.mxu0 0.0
    %6979 = vmatprep.subr.mxu0 0.0
    %6980 = vmatpush1.msra.mxu0 0.0
    %6981 = vmatprep.subr.mxu0 0.0
    %6982 = vmatpush1.msra.mxu0 0.0
    %6983 = vmatprep.subr.mxu0 0.0
    %6984 = vmatpush1.msra.mxu0 0.0
    %6985 = vmatprep.subr.mxu0 0.0
    %6986 = vmatpush1.msra.mxu0 0.0
    %6987 = vmatprep.subr.mxu0 0.0
    %6988 = vmatpush1.msra.mxu0 0.0
    %6989 = vmatprep.subr.mxu0 0.0
    %6990 = vmatpush1.msra.mxu0 0.0
    %6991 = vmatprep.subr.mxu0 0.0
    %6992 = vmatpush1.msra.mxu0 0.0
    %6993 = vmatprep.mubr.f32.mxu0 0.0
    %6994 = vmatmul.mubr.f32.gmra.mrb[0].mxu0 %v6927
    %v6995 = vpop.f32.mrb[0].mxu0
    %v6996 = vadd.f32 0.0, %v6995
    %v6997 = vpop.f32.mrb[0].mxu0
    %6998 = vdwg.mxu0
    %v6999 = vadd.f32 %v6824, %v6996
    %v7000 = vadd.f32 %v6999, %v6302
    %7001 = vst.msk [vmem:[#allocation2 + $0x8] sm:$0xff] %vm97, %v7000
    %v7002 = vld [vmem:[#allocation2] sm:$0xff]
    %v7003 = vld [vmem:[#allocation2 + $0x8] sm:$0xff]
    %s7004 = scalar_lea.vmem %s14, 1
    %v7005 = vld [vmem:[%s7004] sm:$0x1]
    %s7006 = scalar_lea.vmem %s15, 1
    %v7007 = vld [vmem:[%s7006] sm:$0x1]
    %v7008 = vadd.f32 %v7002, %v5334
    %v7009 = vadd.f32 %v7003, %v5335
    %v7010 = vsel %vm97, %v7008, 0.0
    %7011 = vadd.xlane.f32.xlu0 %v7010
    %v7012 = vpop.xlane.xlu0 %7011
    %v7013 = vsel %vm97, %v7009, 0.0
    %7014 = vadd.xlane.f32.xlu0 %v7013
    %v7015 = vpop.xlane.xlu0 %7014
    %v7016 = vmul.f32 %v7012, %v1691
    %v7017 = vmul.f32 %v7015, %v1691
    %v7018 = vsub.f32 %v7008, %v7016
    %v7019 = vsub.f32 %v7009, %v7017
    %v7020 = vmul.f32 %v7018, %v7018
    %v7021 = vmul.f32 %v7019, %v7019
    %v7022 = vsel %vm97, %v7020, 0.0
    %7023 = vadd.xlane.f32.xlu0 %v7022
    %v7024 = vpop.xlane.xlu0 %7023
    %v7025 = vsel %vm97, %v7021, 0.0
    %7026 = vadd.xlane.f32.xlu0 %v7025
    %v7027 = vpop.xlane.xlu0 %7026
    %v7028 = vmul.f32 %v7024, %v1691
    %v7029 = vmul.f32 %v7027, %v1691
    %v7030 = vadd.f32 %v7028, 1e-05
    %v7031 = vadd.f32 %v7029, 1e-05
    %v7032 = vrsqrt.pop %v7030
    %v7033 = vrsqrt.pop %v7031
    %v7034 = vmul.f32 %v7018, %v7032
    %v7035 = vmul.f32 %v7019, %v7033
    %v7037 = vlaneseq
    %v7038 = vshrl.u32 %v7037, 7
    %v7039 = vsub.s32 0, %v7038
    %v7040 = vrot.slane %v7005, %v7039
    %v7042 = vmul.f32 %v7034, %v7040
    %v7043 = vmul.f32 %v7035, %v7040
    %v7045 = vlaneseq
    %v7046 = vshrl.u32 %v7045, 7
    %v7047 = vsub.s32 0, %v7046
    %v7048 = vrot.slane %v7007, %v7047
    %v7050 = vadd.f32 %v7042, %v7048
    %v7051 = vadd.f32 %v7043, %v7048
    %s7052 = scalar_lea.vmem %s18, 32
    %v7053 = vld [vmem:[%s7052] sm:$0xff]
    %v7054 = vld [vmem:[%s7052 + $0x8] sm:$0xff]
    %v7055 = vld [vmem:[%s7052 + $0x10] sm:$0xff]
    %v7056 = vld [vmem:[%s7052 + $0x18] sm:$0xff]
    %s7057 = scalar_lea.vmem %s19, 1
    %v7058 = vld [vmem:[%s7057] sm:$0x1]
    %v7060 = vlaneseq
    %v7061 = vshrl.u32 %v7060, 7
    %v7062 = vsub.s32 0, %v7061
    %v7063 = vrot.slane %v7058, %v7062
    %v7066 = vsel %vm97, %v7050, 0
    %v7069 = vsel %vm97, %v7051, 0
    %7071 = vmatprep.subr.mxu0 0.0
    %7072 = vmatpush1.msra.mxu0 %v7053
    %7073 = vmatprep.subr.mxu0 0.0
    %7074 = vmatpush1.msra.mxu0 %v7054
    %7075 = vmatprep.subr.mxu0 0.0
    %7076 = vmatpush1.msra.mxu0 %v7055
    %7077 = vmatprep.subr.mxu0 0.0
    %7078 = vmatpush1.msra.mxu0 %v7056
    %7079 = vmatprep.subr.mxu0 0.0
    %7080 = vmatpush1.msra.mxu0 0.0
    %7081 = vmatprep.subr.mxu0 0.0
    %7082 = vmatpush1.msra.mxu0 0.0
    %7083 = vmatprep.subr.mxu0 0.0
    %7084 = vmatpush1.msra.mxu0 0.0
    %7085 = vmatprep.subr.mxu0 0.0
    %7086 = vmatpush1.msra.mxu0 0.0
    %7087 = vmatprep.subr.mxu0 0.0
    %7088 = vmatpush1.msra.mxu0 0.0
    %7089 = vmatprep.subr.mxu0 0.0
    %7090 = vmatpush1.msra.mxu0 0.0
    %7091 = vmatprep.subr.mxu0 0.0
    %7092 = vmatpush1.msra.mxu0 0.0
    %7093 = vmatprep.subr.mxu0 0.0
    %7094 = vmatpush1.msra.mxu0 0.0
    %7095 = vmatprep.subr.mxu0 0.0
    %7096 = vmatpush1.msra.mxu0 0.0
    %7097 = vmatprep.subr.mxu0 0.0
    %7098 = vmatpush1.msra.mxu0 0.0
    %7099 = vmatprep.subr.mxu0 0.0
    %7100 = vmatpush1.msra.mxu0 0.0
    %7101 = vmatprep.subr.mxu0 0.0
    %7102 = vmatpush1.msra.mxu0 0.0
    %7103 = vmatprep.subr.mxu0 0.0
    %7104 = vmatpush1.msra.mxu0 0.0
    %7105 = vmatprep.subr.mxu0 0.0
    %7106 = vmatpush1.msra.mxu0 0.0
    %7107 = vmatprep.subr.mxu0 0.0
    %7108 = vmatpush1.msra.mxu0 0.0
    %7109 = vmatprep.subr.mxu0 0.0
    %7110 = vmatpush1.msra.mxu0 0.0
    %7111 = vmatprep.subr.mxu0 0.0
    %7112 = vmatpush1.msra.mxu0 0.0
    %7113 = vmatprep.subr.mxu0 0.0
    %7114 = vmatpush1.msra.mxu0 0.0
    %7115 = vmatprep.subr.mxu0 0.0
    %7116 = vmatpush1.msra.mxu0 0.0
    %7117 = vmatprep.subr.mxu0 0.0
    %7118 = vmatpush1.msra.mxu0 0.0
    %7119 = vmatprep.subr.mxu0 0.0
    %7120 = vmatpush1.msra.mxu0 0.0
    %7121 = vmatprep.subr.mxu0 0.0
    %7122 = vmatpush1.msra.mxu0 0.0
    %7123 = vmatprep.subr.mxu0 0.0
    %7124 = vmatpush1.msra.mxu0 0.0
    %7125 = vmatprep.subr.mxu0 0.0
    %7126 = vmatpush1.msra.mxu0 0.0
    %7127 = vmatprep.subr.mxu0 0.0
    %7128 = vmatpush1.msra.mxu0 0.0
    %7129 = vmatprep.subr.mxu0 0.0
    %7130 = vmatpush1.msra.mxu0 0.0
    %7131 = vmatprep.subr.mxu0 0.0
    %7132 = vmatpush1.msra.mxu0 0.0
    %7133 = vmatprep.subr.mxu0 0.0
    %7134 = vmatpush1.msra.mxu0 0.0
    %7135 = vmatprep.mubr.f32.mxu0 0.0
    %7136 = vmatmul.mubr.f32.gmra.mrb[0].mxu0 %v7066
    %v7137 = vpop.f32.mrb[0].mxu0
    %v7138 = vadd.f32 %v7063, %v7137
    %v7139 = vpop.f32.mrb[0].mxu0
    %7140 = vmatprep.mubr.f32.mxu0 0.0
    %7141 = vmatmul.mubr.f32.gmra.mrb[0].mxu0 %v7069
    %v7142 = vpop.f32.mrb[0].mxu0
    %v7143 = vadd.f32 %v7063, %v7142
    %v7144 = vpop.f32.mrb[0].mxu0
    %7145 = vdwg.mxu0
    %v7146 = vmax.f32 %v7138, 0.0
    %v7147 = vmax.f32 %v7143, 0.0
    %s7148 = scalar_lea.vmem %s20, 128
    %v7149 = vld [vmem:[%s7148] sm:$0xff]
    %v7150 = vld [vmem:[%s7148 + $0x8] sm:$0xff]
    %v7151 = vld [vmem:[%s7148 + $0x10] sm:$0xff]
    %v7152 = vld [vmem:[%s7148 + $0x18] sm:$0xff]
    %v7153 = vld [vmem:[%s7148 + $0x20] sm:$0xff]
    %v7154 = vld [vmem:[%s7148 + $0x28] sm:$0xff]
    %v7155 = vld [vmem:[%s7148 + $0x30] sm:$0xff]
    %v7156 = vld [vmem:[%s7148 + $0x38] sm:$0xff]
    %v7157 = vld [vmem:[%s7148 + $0x40] sm:$0xff]
    %v7158 = vld [vmem:[%s7148 + $0x48] sm:$0xff]
    %v7159 = vld [vmem:[%s7148 + $0x50] sm:$0xff]
    %v7160 = vld [vmem:[%s7148 + $0x58] sm:$0xff]
    %v7161 = vld [vmem:[%s7148 + $0x60] sm:$0xff]
    %v7162 = vld [vmem:[%s7148 + $0x68] sm:$0xff]
    %v7163 = vld [vmem:[%s7148 + $0x70] sm:$0xff]
    %v7164 = vld [vmem:[%s7148 + $0x78] sm:$0xff]
    %s7165 = scalar_lea.vmem %s21, 1
    %v7166 = vld [vmem:[%s7165] sm:$0x1]
    %v7168 = vlaneseq
    %v7169 = vshrl.u32 %v7168, 7
    %v7170 = vsub.s32 0, %v7169
    %v7171 = vrot.slane %v7166, %v7170
    %7173 = vmatprep.subr.mxu0 0.0
    %7174 = vmatpush1.msra.mxu0 %v7149
    %7175 = vmatprep.subr.mxu0 0.0
    %7176 = vmatpush1.msra.mxu0 %v7150
    %7177 = vmatprep.subr.mxu0 0.0
    %7178 = vmatpush1.msra.mxu0 %v7151
    %7179 = vmatprep.subr.mxu0 0.0
    %7180 = vmatpush1.msra.mxu0 %v7152
    %7181 = vmatprep.subr.mxu0 0.0
    %7182 = vmatpush1.msra.mxu0 %v7153
    %7183 = vmatprep.subr.mxu0 0.0
    %7184 = vmatpush1.msra.mxu0 %v7154
    %7185 = vmatprep.subr.mxu0 0.0
    %7186 = vmatpush1.msra.mxu0 %v7155
    %7187 = vmatprep.subr.mxu0 0.0
    %7188 = vmatpush1.msra.mxu0 %v7156
    %7189 = vmatprep.subr.mxu0 0.0
    %7190 = vmatpush1.msra.mxu0 %v7157
    %7191 = vmatprep.subr.mxu0 0.0
    %7192 = vmatpush1.msra.mxu0 %v7158
    %7193 = vmatprep.subr.mxu0 0.0
    %7194 = vmatpush1.msra.mxu0 %v7159
    %7195 = vmatprep.subr.mxu0 0.0
    %7196 = vmatpush1.msra.mxu0 %v7160
    %7197 = vmatprep.subr.mxu0 0.0
    %7198 = vmatpush1.msra.mxu0 %v7161
    %7199 = vmatprep.subr.mxu0 0.0
    %7200 = vmatpush1.msra.mxu0 %v7162
    %7201 = vmatprep.subr.mxu0 0.0
    %7202 = vmatpush1.msra.mxu0 %v7163
    %7203 = vmatprep.subr.mxu0 0.0
    %7204 = vmatpush1.msra.mxu0 %v7164
    %7205 = vmatprep.subr.mxu0 0.0
    %7206 = vmatpush1.msra.mxu0 0.0
    %7207 = vmatprep.subr.mxu0 0.0
    %7208 = vmatpush1.msra.mxu0 0.0
    %7209 = vmatprep.subr.mxu0 0.0
    %7210 = vmatpush1.msra.mxu0 0.0
    %7211 = vmatprep.subr.mxu0 0.0
    %7212 = vmatpush1.msra.mxu0 0.0
    %7213 = vmatprep.subr.mxu0 0.0
    %7214 = vmatpush1.msra.mxu0 0.0
    %7215 = vmatprep.subr.mxu0 0.0
    %7216 = vmatpush1.msra.mxu0 0.0
    %7217 = vmatprep.subr.mxu0 0.0
    %7218 = vmatpush1.msra.mxu0 0.0
    %7219 = vmatprep.subr.mxu0 0.0
    %7220 = vmatpush1.msra.mxu0 0.0
    %7221 = vmatprep.subr.mxu0 0.0
    %7222 = vmatpush1.msra.mxu0 0.0
    %7223 = vmatprep.subr.mxu0 0.0
    %7224 = vmatpush1.msra.mxu0 0.0
    %7225 = vmatprep.subr.mxu0 0.0
    %7226 = vmatpush1.msra.mxu0 0.0
    %7227 = vmatprep.subr.mxu0 0.0
    %7228 = vmatpush1.msra.mxu0 0.0
    %7229 = vmatprep.subr.mxu0 0.0
    %7230 = vmatpush1.msra.mxu0 0.0
    %7231 = vmatprep.subr.mxu0 0.0
    %7232 = vmatpush1.msra.mxu0 0.0
    %7233 = vmatprep.subr.mxu0 0.0
    %7234 = vmatpush1.msra.mxu0 0.0
    %7235 = vmatprep.subr.mxu0 0.0
    %7236 = vmatpush1.msra.mxu0 0.0
    %7237 = vmatprep.mubr.f32.mxu0 0.0
    %7238 = vmatmul.mubr.f32.gmra.mrb[0].mxu0 %v7146
    %v7239 = vpop.f32.mrb[0].mxu0
    %v7240 = vadd.f32 %v7171, %v7239
    %v7241 = vpop.f32.mrb[0].mxu0
    %7242 = vmatprep.mubr.f32.mxu0 0.0
    %7243 = vmatmul.mubr.f32.gmra.mrb[0].mxu0 %v7147
    %v7244 = vpop.f32.mrb[0].mxu0
    %v7245 = vadd.f32 %v7171, %v7244
    %v7246 = vpop.f32.mrb[0].mxu0
    %7247 = vdwg.mxu0
    %s7248 = scalar_lea.vmem %s16, 1
    %v7249 = vld [vmem:[%s7248] sm:$0x1]
    %s7250 = scalar_lea.vmem %s17, 1
    %v7251 = vld [vmem:[%s7250] sm:$0x1]
    %v7252 = vadd.f32 %v7240, %v7050
    %v7253 = vadd.f32 %v7245, %v7051
    %v7254 = vsel %vm97, %v7252, 0.0
    %7255 = vadd.xlane.f32.xlu0 %v7254
    %v7256 = vpop.xlane.xlu0 %7255
    %v7257 = vsel %vm97, %v7253, 0.0
    %7258 = vadd.xlane.f32.xlu0 %v7257
    %v7259 = vpop.xlane.xlu0 %7258
    %v7260 = vmul.f32 %v7256, %v1691
    %v7261 = vmul.f32 %v7259, %v1691
    %v7262 = vsub.f32 %v7252, %v7260
    %v7263 = vsub.f32 %v7253, %v7261
    %v7264 = vmul.f32 %v7262, %v7262
    %v7265 = vmul.f32 %v7263, %v7263
    %v7266 = vsel %vm97, %v7264, 0.0
    %7267 = vadd.xlane.f32.xlu0 %v7266
    %v7268 = vpop.xlane.xlu0 %7267
    %v7269 = vsel %vm97, %v7265, 0.0
    %7270 = vadd.xlane.f32.xlu0 %v7269
    %v7271 = vpop.xlane.xlu0 %7270
    %v7272 = vmul.f32 %v7268, %v1691
    %v7273 = vmul.f32 %v7271, %v1691
    %v7274 = vadd.f32 %v7272, 1e-05
    %v7275 = vadd.f32 %v7273, 1e-05
    %v7276 = vrsqrt.pop %v7274
    %v7277 = vrsqrt.pop %v7275
    %v7278 = vmul.f32 %v7262, %v7276
    %v7279 = vmul.f32 %v7263, %v7277
    %v7281 = vlaneseq
    %v7282 = vshrl.u32 %v7281, 7
    %v7283 = vsub.s32 0, %v7282
    %v7284 = vrot.slane %v7249, %v7283
    %v7286 = vmul.f32 %v7278, %v7284
    %v7287 = vmul.f32 %v7279, %v7284
    %v7289 = vlaneseq
    %v7290 = vshrl.u32 %v7289, 7
    %v7291 = vsub.s32 0, %v7290
    %v7292 = vrot.slane %v7251, %v7291
    %v7294 = vadd.f32 %v7286, %v7292
    %v7295 = vadd.f32 %v7287, %v7292
    %v7296 = vld [vmem:[%s22] sm:$0xff]
    %v7297 = vld [vmem:[%s22 + $0x8] sm:$0xff]
    %v7298 = vld [vmem:[%s22 + $0x10] sm:$0xff]
    %v7299 = vld [vmem:[%s22 + $0x18] sm:$0xff]
    %v7300 = vld [vmem:[%s23] sm:$0x1]
    %v7302 = vlaneseq
    %v7303 = vshrl.u32 %v7302, 7
    %v7304 = vsub.s32 0, %v7303
    %v7305 = vrot.slane %v7300, %v7304
    %v7308 = vsel %vm97, %v7294, 0
    %v7311 = vsel %vm97, %v7295, 0
    %7313 = vmatprep.subr.mxu0 0.0
    %7314 = vmatpush1.msra.mxu0 %v7296
    %7315 = vmatprep.subr.mxu0 0.0
    %7316 = vmatpush1.msra.mxu0 %v7297
    %7317 = vmatprep.subr.mxu0 0.0
    %7318 = vmatpush1.msra.mxu0 %v7298
    %7319 = vmatprep.subr.mxu0 0.0
    %7320 = vmatpush1.msra.mxu0 %v7299
    %7321 = vmatprep.subr.mxu0 0.0
    %7322 = vmatpush1.msra.mxu0 0.0
    %7323 = vmatprep.subr.mxu0 0.0
    %7324 = vmatpush1.msra.mxu0 0.0
    %7325 = vmatprep.subr.mxu0 0.0
    %7326 = vmatpush1.msra.mxu0 0.0
    %7327 = vmatprep.subr.mxu0 0.0
    %7328 = vmatpush1.msra.mxu0 0.0
    %7329 = vmatprep.subr.mxu0 0.0
    %7330 = vmatpush1.msra.mxu0 0.0
    %7331 = vmatprep.subr.mxu0 0.0
    %7332 = vmatpush1.msra.mxu0 0.0
    %7333 = vmatprep.subr.mxu0 0.0
    %7334 = vmatpush1.msra.mxu0 0.0
    %7335 = vmatprep.subr.mxu0 0.0
    %7336 = vmatpush1.msra.mxu0 0.0
    %7337 = vmatprep.subr.mxu0 0.0
    %7338 = vmatpush1.msra.mxu0 0.0
    %7339 = vmatprep.subr.mxu0 0.0
    %7340 = vmatpush1.msra.mxu0 0.0
    %7341 = vmatprep.subr.mxu0 0.0
    %7342 = vmatpush1.msra.mxu0 0.0
    %7343 = vmatprep.subr.mxu0 0.0
    %7344 = vmatpush1.msra.mxu0 0.0
    %7345 = vmatprep.subr.mxu0 0.0
    %7346 = vmatpush1.msra.mxu0 0.0
    %7347 = vmatprep.subr.mxu0 0.0
    %7348 = vmatpush1.msra.mxu0 0.0
    %7349 = vmatprep.subr.mxu0 0.0
    %7350 = vmatpush1.msra.mxu0 0.0
    %7351 = vmatprep.subr.mxu0 0.0
    %7352 = vmatpush1.msra.mxu0 0.0
    %7353 = vmatprep.subr.mxu0 0.0
    %7354 = vmatpush1.msra.mxu0 0.0
    %7355 = vmatprep.subr.mxu0 0.0
    %7356 = vmatpush1.msra.mxu0 0.0
    %7357 = vmatprep.subr.mxu0 0.0
    %7358 = vmatpush1.msra.mxu0 0.0
    %7359 = vmatprep.subr.mxu0 0.0
    %7360 = vmatpush1.msra.mxu0 0.0
    %7361 = vmatprep.subr.mxu0 0.0
    %7362 = vmatpush1.msra.mxu0 0.0
    %7363 = vmatprep.subr.mxu0 0.0
    %7364 = vmatpush1.msra.mxu0 0.0
    %7365 = vmatprep.subr.mxu0 0.0
    %7366 = vmatpush1.msra.mxu0 0.0
    %7367 = vmatprep.subr.mxu0 0.0
    %7368 = vmatpush1.msra.mxu0 0.0
    %7369 = vmatprep.subr.mxu0 0.0
    %7370 = vmatpush1.msra.mxu0 0.0
    %7371 = vmatprep.subr.mxu0 0.0
    %7372 = vmatpush1.msra.mxu0 0.0
    %7373 = vmatprep.subr.mxu0 0.0
    %7374 = vmatpush1.msra.mxu0 0.0
    %7375 = vmatprep.subr.mxu0 0.0
    %7376 = vmatpush1.msra.mxu0 0.0
    %7377 = vmatprep.mubr.f32.mxu0 0.0
    %7378 = vmatmul.mubr.f32.gmra.mrb[0].mxu0 %v7308
    %v7379 = vpop.f32.mrb[0].mxu0
    %v7380 = vadd.f32 %v7305, %v7379
    %v7381 = vpop.f32.mrb[0].mxu0
    %7382 = vmatprep.mubr.f32.mxu0 0.0
    %7383 = vmatmul.mubr.f32.gmra.mrb[0].mxu0 %v7311
    %v7384 = vpop.f32.mrb[0].mxu0
    %v7385 = vadd.f32 %v7305, %v7384
    %v7386 = vpop.f32.mrb[0].mxu0
    %7387 = vdwg.mxu0
    %vm7388 = vcmask 195584
    %7389 = vst.msk [vmem:[#allocation3] sm:$0xff] %vm7388, %v7380
    %7390 = vst.msk [vmem:[#allocation3 + $0x8] sm:$0xff] %vm7388, %v7385
    // Predicated region
    $region98: #{transformer_forward.1} parent=1 // pred_check
      _
    $region99: #{transformer_forward.1} parent=1 // pred_check_branch
      %7392 = sbr.rel (0) target = $region101
    $region100: #{transformer_forward.1} parent=1 // pred_region
      %s7394 = ssub.s32 256, 256
      %7395 = vsyncadd [#allocation4], %s7394
      %s7396 = sshll.u32 [#allocation3], 4
      %s7397 = int_to_ptr.vmem [resolvable:$true] %s7396
      %7402 = dma.vmem_to_hbm [thread:$0]  %s7397, 256, %s24, [#allocation4], 128, 128, 8
    $region101: #{transformer_forward.1} parent=1 // pred_fallthru
      _
    // Predicated region
    $region102: #{transformer_forward.1} parent=1 // pred_check
      _
    $region103: #{transformer_forward.1} parent=1 // pred_check_branch
      %7404 = sbr.rel (0) target = $region105
    $region104: #{transformer_forward.1} parent=1 // pred_region
      %7405 = dma.done [#allocation4], 256
    $region105: #{transformer_forward.1} parent=1 // pred_fallthru
      _
    %7406 = vsyncpa [#allocation4], 1

</llo_original>
